<compile_context>
chip_gen: v5e
topology: v5e:2x2
jax: 0.10.0
libtpu: 0.0.40
codegen_flags: <defaults>
</compile_context>

<pallas_src>
import functools

import numpy as np
import jax
import jax.numpy as jnp
from jax.experimental import pallas as pl
from jax.experimental.pallas import tpu as pltpu

CHANNELS = [16, 32, 64]
KSIZE = 3
IN_CHANNELS = 1
LIN1_DMA_CHUNKS = 4          # lin1 weight is fetched & consumed in this many K-chunks


def _round_up(v, m):
    return ((v + m - 1) // m) * m


# ----------------------------------------------------------------------------
# Fused Pallas kernel: conv1+ReLU -> conv2+ReLU -> valid/NCHW select -> 3x Linear
# ----------------------------------------------------------------------------
def _fused_forward_kernel(x_ref, w1_ref, b1_ref, w2_ref, b2_ref, sel_ref,
                          lw1_hbm_ref, lb1_ref, lw2_ref, lb2_ref,
                          lw3_ref, lb3_ref,
                          o_ref,
                          lw1_vmem, dma_sems,
                          *, B, H, W):
    C1 = w1_ref.shape[0]
    C2 = w2_ref.shape[0]
    K = KSIZE
    OH2 = H - 2 * (K - 1)
    OW2 = W - 2 * (K - 1)
    PG = H * W                       # per-image full-grid positions
    P = B * PG                       # full-grid positions across the batch
    NPOS = OH2 * OW2                 # valid conv2 positions per image
    MAXOFF = (K - 1) * W + (K - 1)   # largest tap offset on the flattened grid
    A1W = _round_up(P + MAXOFF, 128)  # conv1 output width (lane dim)
    H1 = lw1_vmem.shape[1]

    assert x_ref.shape[1] >= A1W + MAXOFF
    assert sel_ref.shape == (PG, NPOS)
    assert C2 % LIN1_DMA_CHUNKS == 0

    # ---- kick off the lin1-weight fetch, split into K-chunks so the lin1
    #      partial matmuls can start as each chunk lands ----------------------
    ch_per_chunk = C2 // LIN1_DMA_CHUNKS
    rows_per_chunk = ch_per_chunk * NPOS
    lw1_copies = []
    for i in range(LIN1_DMA_CHUNKS):
        r0 = i * rows_per_chunk
        cp = pltpu.make_async_copy(
            lw1_hbm_ref.at[pl.ds(r0, rows_per_chunk), :],
            lw1_vmem.at[pl.ds(r0, rows_per_chunk), :],
            dma_sems.at[i])
        cp.start()
        lw1_copies.append(cp)

    # tap offsets on the row-major, batch-flattened (b, h, w) grid
    offs = [kh * W + kw for kh in range(K) for kw in range(K)]

    # ---- conv1 (valid 3x3, Cin=1) + ReLU: one (C1,9)x(9,A1W) matmul ---------
    # Outputs are computed at EVERY grid position (positions that straddle a
    # row / image / pad boundary are finite garbage and never consumed).
    x_row = x_ref[...]                                               # (1, XPW)
    taps1 = jnp.concatenate([x_row[:, off:off + A1W] for off in offs],
                            axis=0)                                  # (9, A1W)
    a1 = jnp.maximum(
        jnp.dot(w1_ref[...], taps1, preferred_element_type=jnp.float32)
        + b1_ref[...], 0.0)                                          # (C1, A1W)

    # ---- conv2 (valid 3x3, C1->C2) + ReLU: one (C2,144)x(144,P) matmul ------
    taps2 = jnp.concatenate([a1[:, off:off + P] for off in offs],
                            axis=0)                                  # (K*K*C1, P)
    a2 = jnp.maximum(
        jnp.dot(w2_ref[...], taps2, preferred_element_type=jnp.float32)
        + b2_ref[...], 0.0)                                          # (C2, P)

    # ---- pick the valid (oh, ow) positions in NCHW flatten order with one
    #      constant 0/1 selection matmul per image (lane gather -> MXU op) ----
    sel = sel_ref[...]                                               # (PG, NPOS)
    compact = [jnp.dot(a2[:, b * PG:(b + 1) * PG], sel,
                       preferred_element_type=jnp.float32)           # (C2, NPOS)
               for b in range(B)]

    # ---- lin1: per-chunk DMA wait + per-channel matmuls against the
    #      naturally-ordered (NCHW rows) bf16 weight ---------------------------
    acc = jnp.zeros((B, H1), jnp.float32)
    for i in range(LIN1_DMA_CHUNKS):
        lw1_copies[i].wait()
        for j in range(ch_per_chunk):
            co = i * ch_per_chunk + j
            a_co = jnp.concatenate(
                [compact[b][co:co + 1, :] for b in range(B)],
                axis=0).astype(jnp.bfloat16)                         # (B, NPOS)
            w_co = lw1_vmem[co * NPOS:(co + 1) * NPOS, :]            # (NPOS, H1) bf16
            acc = acc + jnp.dot(a_co, w_co,
                                preferred_element_type=jnp.float32)
    h = jnp.maximum(acc + lb1_ref[...], 0.0)                         # (B, H1)

    # ---- lin2 + ReLU, lin3 ---------------------------------------------------
    h = jnp.maximum(
        jnp.dot(h, lw2_ref[...], preferred_element_type=jnp.float32)
        + lb2_ref[...], 0.0)                                         # (B, H2)
    out = (jnp.dot(h, lw3_ref[...], preferred_element_type=jnp.float32)
           + lb3_ref[...])                                           # (B, n_act)
    o_ref[...] = out.astype(o_ref.dtype)


# ----------------------------------------------------------------------------
# Wrapper
# ----------------------------------------------------------------------------
def conv_nn_forward(params, x, rows, cols):
    B = x.shape[0]
    C1, C2 = CHANNELS[0], CHANNELS[1]
    K = KSIZE
    OH2 = rows - 2 * (K - 1)
    OW2 = cols - 2 * (K - 1)
    NPOS = OH2 * OW2
    k_flat = C2 * NPOS
    PG = rows * cols
    P = B * PG
    MAXOFF = (K - 1) * cols + (K - 1)
    A1W = _round_up(P + MAXOFF, 128)
    XPW = _round_up(A1W + MAXOFF, 128)

    # Flattened, zero-padded input row (lane dim = batch*rows*cols + slack for
    # the tap shifts).  PyTorch: x.view(B, 1, rows, cols); this is just a view.
    x_flat = x.reshape(1, P).astype(jnp.float32)
    x_pad = jnp.pad(x_flat, ((0, 0), (0, XPW - P)))

    # Constant 0/1 selection matrix: full-grid position -> valid NCHW position.
    sel_np = np.zeros((PG, NPOS), np.float32)
    for j in range(NPOS):
        oh, ow = divmod(j, OW2)
        sel_np[oh * cols + ow, j] = 1.0
    sel = jnp.asarray(sel_np)

    # Tiny conv-weight massaging (few KB): channel-major, columns in (kh,kw,ci)
    # order to match the in-kernel tap ordering.
    w1_cm = jnp.transpose(params["conv1_w"].reshape(K * K * IN_CHANNELS, C1))
    b1 = params["conv1_b"].reshape(C1, 1)
    w2_cm = jnp.transpose(params["conv2_w"], (3, 0, 1, 2)).reshape(C2, K * K * C1)
    b2 = params["conv2_b"].reshape(C2, 1)
    lw1 = params["lin1_w"]                        # (k_flat, H1) bf16, NCHW rows
    H1 = lw1.shape[1]
    lb1 = params["lin1_b"].reshape(1, H1)
    lw2 = params["lin2_w"]
    H2 = lw2.shape[1]
    lb2 = params["lin2_b"].reshape(1, H2)
    lw3 = params["lin3_w"]
    n_act = lw3.shape[1]
    lb3 = params["lin3_b"].reshape(1, n_act)

    assert lw1.shape[0] == k_flat and lw1.dtype == jnp.bfloat16
    assert C2 % LIN1_DMA_CHUNKS == 0

    kernel = functools.partial(_fused_forward_kernel, B=B, H=rows, W=cols)

    # TODO(synk): if this ever runs on v7x hot paths, shard the lw1 DMA + lin1
    # over the two TensorCores (core_map / parallel leading grid axis).
    return pl.pallas_call(
        kernel,
        out_shape=jax.ShapeDtypeStruct((B, n_act), jnp.float32),
        grid=(1,),
        in_specs=[
            pl.BlockSpec((1, XPW), lambda i: (0, 0)),                # x (flat, padded)
            pl.BlockSpec((C1, K * K), lambda i: (0, 0)),             # conv1 w
            pl.BlockSpec((C1, 1), lambda i: (0, 0)),                 # conv1 b
            pl.BlockSpec((C2, K * K * C1), lambda i: (0, 0)),        # conv2 w
            pl.BlockSpec((C2, 1), lambda i: (0, 0)),                 # conv2 b
            pl.BlockSpec((PG, NPOS), lambda i: (0, 0)),              # valid-pos selector
            pl.BlockSpec(memory_space=pl.ANY),                       # lin1 w (stays in HBM)
            pl.BlockSpec((1, H1), lambda i: (0, 0)),                 # lin1 b
            pl.BlockSpec((H1, H2), lambda i: (0, 0)),                # lin2 w
            pl.BlockSpec((1, H2), lambda i: (0, 0)),                 # lin2 b
            pl.BlockSpec((H2, n_act), lambda i: (0, 0)),             # lin3 w
            pl.BlockSpec((1, n_act), lambda i: (0, 0)),              # lin3 b
        ],
        out_specs=pl.BlockSpec((B, n_act), lambda i: (0, 0)),
        scratch_shapes=[
            pltpu.VMEM((k_flat, H1), jnp.bfloat16),                  # lin1 w landing buffer
            pltpu.SemaphoreType.DMA((LIN1_DMA_CHUNKS,)),             # per-chunk DMA sems
        ],
        compiler_params=pltpu.CompilerParams(
            dimension_semantics=("arbitrary",)),
    )(x_pad, w1_cm, b1, w2_cm, b2, sel, lw1, lb1, lw2, lb2, lw3, lb3)


# ----------------------------------------------------------------------------
# Parameters (deterministic, PyTorch-default-style uniform init).
# lin1_w is stored in bf16 ONCE here so the hot path never pays for the cast.
# ----------------------------------------------------------------------------
def init_params(rows, cols, n_act, key):
    keys = jax.random.split(key, 10)

    def u(k, shape, fan_in):
        bound = 1.0 / float(fan_in) ** 0.5
        return jax.random.uniform(k, shape, jnp.float32, -bound, bound)

    oh = rows - 2 * (KSIZE - 1)
    ow = cols - 2 * (KSIZE - 1)
    size_out_conv = CHANNELS[1] * oh * ow          # = get_conv_size(rows, cols)
    h1 = rows * cols * 2
    h2 = (rows * cols) // 2

    return {
        "conv1_w": u(keys[0], (KSIZE, KSIZE, IN_CHANNELS, CHANNELS[0]),
                     IN_CHANNELS * KSIZE * KSIZE),
        "conv1_b": u(keys[1], (CHANNELS[0],), IN_CHANNELS * KSIZE * KSIZE),
        "conv2_w": u(keys[2], (KSIZE, KSIZE, CHANNELS[0], CHANNELS[1]),
                     CHANNELS[0] * KSIZE * KSIZE),
        "conv2_b": u(keys[3], (CHANNELS[1],), CHANNELS[0] * KSIZE * KSIZE),
        "lin1_w": u(keys[4], (size_out_conv, h1),
                    size_out_conv).astype(jnp.bfloat16),
        "lin1_b": u(keys[5], (h1,), size_out_conv),
        "lin2_w": u(keys[6], (h1, h2), h1),
        "lin2_b": u(keys[7], (h2,), h1),
        "lin3_w": u(keys[8], (h2, n_act), h2),
        "lin3_b": u(keys[9], (n_act,), h2),
    }


# ----------------------------------------------------------------------------
# Pure-JAX reference (matches the PyTorch module semantics; uses the same
# bf16-stored lin1 weight, upcast to f32, for an apples-to-apples check).
# ----------------------------------------------------------------------------
def conv_nn_reference(params, x, rows, cols):
    B = x.shape[0]
    xn = x.reshape(B, IN_CHANNELS, rows, cols).transpose(0, 2, 3, 1)

    def conv(inp, w, b):
        out = jax.lax.conv_general_dilated(
            inp, w, window_strides=(1, 1), padding="VALID",
            dimension_numbers=("NHWC", "HWIO", "NHWC"),
            precision=jax.lax.Precision.HIGHEST)
        return jnp.maximum(out + b, 0.0)

    def lin(v, w, b, relu):
        y = jnp.dot(v, w, precision=jax.lax.Precision.HIGHEST) + b
        return jnp.maximum(y, 0.0) if relu else y

    h = conv(xn, params["conv1_w"], params["conv1_b"])
    h = conv(h, params["conv2_w"], params["conv2_b"])
    h = h.transpose(0, 3, 1, 2).reshape(B, -1)     # PyTorch NCHW flatten order
    h = lin(h, params["lin1_w"].astype(jnp.float32), params["lin1_b"], True)
    h = lin(h, params["lin2_w"], params["lin2_b"], True)
    h = lin(h, params["lin3_w"], params["lin3_b"], False)
    return h


if __name__ == "__main__":
    rows, cols, n_act, batch = 16, 16, 4, 2

    key = jax.random.PRNGKey(0)
    pkey, xkey = jax.random.split(key)
    params = init_params(rows, cols, n_act, pkey)
    # NCHW input, just like the PyTorch module expects before .view()
    x = jax.random.normal(xkey, (batch, IN_CHANNELS, rows, cols), jnp.float32)

    fwd = jax.jit(lambda p, xx: conv_nn_forward(p, xx, rows, cols))
    out = jax.block_until_ready(fwd(params, x))
    assert out.shape == (batch, n_act), out.shape

    ref = conv_nn_reference(params, x, rows, cols)
    if not bool(jnp.allclose(out, ref, rtol=1e-2, atol=1e-2)):
        raise AssertionError(
            "mismatch vs reference, max abs diff = "
            f"{float(jnp.max(jnp.abs(out - ref)))}")

    print("KERNEL_OK")
</pallas_src>

<mosaic_0001>
module attributes {stable_mosaic.version = 11 : i64} {
  func.func @_fused_forward_kernel(%arg0: i32, %arg1: memref<1x768xf32, #tpu.memory_space<vmem>>, %arg2: memref<16x9xf32, #tpu.memory_space<vmem>>, %arg3: memref<16x1xf32, #tpu.memory_space<vmem>>, %arg4: memref<32x144xf32, #tpu.memory_space<vmem>>, %arg5: memref<32x1xf32, #tpu.memory_space<vmem>>, %arg6: memref<256x144xf32, #tpu.memory_space<vmem>>, %arg7: memref<4608x512xbf16, #tpu.memory_space<any>>, %arg8: memref<1x512xf32, #tpu.memory_space<vmem>>, %arg9: memref<512x128xf32, #tpu.memory_space<vmem>>, %arg10: memref<1x128xf32, #tpu.memory_space<vmem>>, %arg11: memref<128x4xf32, #tpu.memory_space<vmem>>, %arg12: memref<1x4xf32, #tpu.memory_space<vmem>>, %arg13: memref<2x4xf32, #tpu.memory_space<vmem>>, %arg14: memref<4608x512xbf16, #tpu.memory_space<vmem>>, %arg15: memref<4x!tpu.dma_semaphore, #tpu.memory_space<semaphore_mem>>) attributes {dimension_semantics = [#tpu.dimension_semantics<arbitrary>], iteration_bounds = array<i64: 1>, scalar_prefetch = 0 : i64, scratch_operands = 2 : i64, tpu.core_type = #tpu.core_type<tc>, window_params = [{pipeline_mode = #tpu.pipeline_mode<synchronous>, transform_indices = @transform_0, window_bounds = array<i64: 1, 768>}, {pipeline_mode = #tpu.pipeline_mode<synchronous>, transform_indices = @transform_1, window_bounds = array<i64: 16, 9>}, {pipeline_mode = #tpu.pipeline_mode<synchronous>, transform_indices = @transform_2, window_bounds = array<i64: 16, 1>}, {pipeline_mode = #tpu.pipeline_mode<synchronous>, transform_indices = @transform_3, window_bounds = array<i64: 32, 144>}, {pipeline_mode = #tpu.pipeline_mode<synchronous>, transform_indices = @transform_4, window_bounds = array<i64: 32, 1>}, {pipeline_mode = #tpu.pipeline_mode<synchronous>, transform_indices = @transform_5, window_bounds = array<i64: 256, 144>}, {}, {pipeline_mode = #tpu.pipeline_mode<synchronous>, transform_indices = @transform_7, window_bounds = array<i64: 1, 512>}, {pipeline_mode = #tpu.pipeline_mode<synchronous>, transform_indices = @transform_8, window_bounds = array<i64: 512, 128>}, {pipeline_mode = #tpu.pipeline_mode<synchronous>, transform_indices = @transform_9, window_bounds = array<i64: 1, 128>}, {pipeline_mode = #tpu.pipeline_mode<synchronous>, transform_indices = @transform_10, window_bounds = array<i64: 128, 4>}, {pipeline_mode = #tpu.pipeline_mode<synchronous>, transform_indices = @transform_11, window_bounds = array<i64: 1, 4>}, {pipeline_mode = #tpu.pipeline_mode<synchronous>, transform_indices = @transform_12, window_bounds = array<i64: 2, 4>}]} {
    %c0_i32 = arith.constant 0 : i32
    %c0_i32_0 = arith.constant 0 : i32
    %c0_i32_1 = arith.constant 0 : i32
    %0 = tpu.memref_slice %arg7[%c0_i32_0, %c0_i32_1] : memref<4608x512xbf16, #tpu.memory_space<any>> -> memref<1152x512xbf16, #tpu.memory_space<any>>
    %c0_i32_2 = arith.constant 0 : i32
    %c0_i32_3 = arith.constant 0 : i32
    %1 = tpu.memref_slice %arg14[%c0_i32_2, %c0_i32_3] : memref<4608x512xbf16, #tpu.memory_space<vmem>> -> memref<1152x512xbf16, #tpu.memory_space<vmem>>
    %2 = tpu.memref_slice %arg15[%c0_i32] : memref<4x!tpu.dma_semaphore, #tpu.memory_space<semaphore_mem>> -> memref<1x!tpu.dma_semaphore, #tpu.memory_space<semaphore_mem>>
    %3 = tpu.memref_squeeze %2 : memref<1x!tpu.dma_semaphore, #tpu.memory_space<semaphore_mem>> -> memref<!tpu.dma_semaphore, #tpu.memory_space<semaphore_mem>>
    tpu.enqueue_dma source(%0 : memref<1152x512xbf16, #tpu.memory_space<any>>) target(%1 : memref<1152x512xbf16, #tpu.memory_space<vmem>>) target_semaphore(%3 : memref<!tpu.dma_semaphore, #tpu.memory_space<semaphore_mem>>)
    %c1_i32 = arith.constant 1 : i32
    %c1152_i32 = arith.constant 1152 : i32
    %c0_i32_4 = arith.constant 0 : i32
    %4 = tpu.memref_slice %arg7[%c1152_i32, %c0_i32_4] : memref<4608x512xbf16, #tpu.memory_space<any>> -> memref<1152x512xbf16, #tpu.memory_space<any>>
    %c1152_i32_5 = arith.constant 1152 : i32
    %c0_i32_6 = arith.constant 0 : i32
    %5 = tpu.memref_slice %arg14[%c1152_i32_5, %c0_i32_6] : memref<4608x512xbf16, #tpu.memory_space<vmem>> -> memref<1152x512xbf16, #tpu.memory_space<vmem>>
    %6 = tpu.memref_slice %arg15[%c1_i32] : memref<4x!tpu.dma_semaphore, #tpu.memory_space<semaphore_mem>> -> memref<1x!tpu.dma_semaphore, #tpu.memory_space<semaphore_mem>>
    %7 = tpu.memref_squeeze %6 : memref<1x!tpu.dma_semaphore, #tpu.memory_space<semaphore_mem>> -> memref<!tpu.dma_semaphore, #tpu.memory_space<semaphore_mem>>
    tpu.enqueue_dma source(%4 : memref<1152x512xbf16, #tpu.memory_space<any>>) target(%5 : memref<1152x512xbf16, #tpu.memory_space<vmem>>) target_semaphore(%7 : memref<!tpu.dma_semaphore, #tpu.memory_space<semaphore_mem>>)
    %c2_i32 = arith.constant 2 : i32
    %c2304_i32 = arith.constant 2304 : i32
    %c0_i32_7 = arith.constant 0 : i32
    %8 = tpu.memref_slice %arg7[%c2304_i32, %c0_i32_7] : memref<4608x512xbf16, #tpu.memory_space<any>> -> memref<1152x512xbf16, #tpu.memory_space<any>>
    %c2304_i32_8 = arith.constant 2304 : i32
    %c0_i32_9 = arith.constant 0 : i32
    %9 = tpu.memref_slice %arg14[%c2304_i32_8, %c0_i32_9] : memref<4608x512xbf16, #tpu.memory_space<vmem>> -> memref<1152x512xbf16, #tpu.memory_space<vmem>>
    %10 = tpu.memref_slice %arg15[%c2_i32] : memref<4x!tpu.dma_semaphore, #tpu.memory_space<semaphore_mem>> -> memref<1x!tpu.dma_semaphore, #tpu.memory_space<semaphore_mem>>
    %11 = tpu.memref_squeeze %10 : memref<1x!tpu.dma_semaphore, #tpu.memory_space<semaphore_mem>> -> memref<!tpu.dma_semaphore, #tpu.memory_space<semaphore_mem>>
    tpu.enqueue_dma source(%8 : memref<1152x512xbf16, #tpu.memory_space<any>>) target(%9 : memref<1152x512xbf16, #tpu.memory_space<vmem>>) target_semaphore(%11 : memref<!tpu.dma_semaphore, #tpu.memory_space<semaphore_mem>>)
    %c3_i32 = arith.constant 3 : i32
    %c3456_i32 = arith.constant 3456 : i32
    %c0_i32_10 = arith.constant 0 : i32
    %12 = tpu.memref_slice %arg7[%c3456_i32, %c0_i32_10] : memref<4608x512xbf16, #tpu.memory_space<any>> -> memref<1152x512xbf16, #tpu.memory_space<any>>
    %c3456_i32_11 = arith.constant 3456 : i32
    %c0_i32_12 = arith.constant 0 : i32
    %13 = tpu.memref_slice %arg14[%c3456_i32_11, %c0_i32_12] : memref<4608x512xbf16, #tpu.memory_space<vmem>> -> memref<1152x512xbf16, #tpu.memory_space<vmem>>
    %14 = tpu.memref_slice %arg15[%c3_i32] : memref<4x!tpu.dma_semaphore, #tpu.memory_space<semaphore_mem>> -> memref<1x!tpu.dma_semaphore, #tpu.memory_space<semaphore_mem>>
    %15 = tpu.memref_squeeze %14 : memref<1x!tpu.dma_semaphore, #tpu.memory_space<semaphore_mem>> -> memref<!tpu.dma_semaphore, #tpu.memory_space<semaphore_mem>>
    tpu.enqueue_dma source(%12 : memref<1152x512xbf16, #tpu.memory_space<any>>) target(%13 : memref<1152x512xbf16, #tpu.memory_space<vmem>>) target_semaphore(%15 : memref<!tpu.dma_semaphore, #tpu.memory_space<semaphore_mem>>)
    %c0 = arith.constant 0 : index
    %c0_13 = arith.constant 0 : index
    %16 = vector.load %arg1[%c0, %c0_13] : memref<1x768xf32, #tpu.memory_space<vmem>>, vector<1x768xf32>
    %17 = vector.extract_strided_slice %16 {offsets = [0, 0], sizes = [1, 640], strides = [1, 1]} : vector<1x768xf32> to vector<1x640xf32>
    %18 = vector.extract_strided_slice %16 {offsets = [0, 1], sizes = [1, 640], strides = [1, 1]} : vector<1x768xf32> to vector<1x640xf32>
    %19 = vector.extract_strided_slice %16 {offsets = [0, 2], sizes = [1, 640], strides = [1, 1]} : vector<1x768xf32> to vector<1x640xf32>
    %20 = vector.extract_strided_slice %16 {offsets = [0, 16], sizes = [1, 640], strides = [1, 1]} : vector<1x768xf32> to vector<1x640xf32>
    %21 = vector.extract_strided_slice %16 {offsets = [0, 17], sizes = [1, 640], strides = [1, 1]} : vector<1x768xf32> to vector<1x640xf32>
    %22 = vector.extract_strided_slice %16 {offsets = [0, 18], sizes = [1, 640], strides = [1, 1]} : vector<1x768xf32> to vector<1x640xf32>
    %23 = vector.extract_strided_slice %16 {offsets = [0, 32], sizes = [1, 640], strides = [1, 1]} : vector<1x768xf32> to vector<1x640xf32>
    %24 = vector.extract_strided_slice %16 {offsets = [0, 33], sizes = [1, 640], strides = [1, 1]} : vector<1x768xf32> to vector<1x640xf32>
    %25 = vector.extract_strided_slice %16 {offsets = [0, 34], sizes = [1, 640], strides = [1, 1]} : vector<1x768xf32> to vector<1x640xf32>
    %26 = tpu.concatenate %17, %18, %19, %20, %21, %22, %23, %24, %25 in 0 : vector<1x640xf32>, vector<1x640xf32>, vector<1x640xf32>, vector<1x640xf32>, vector<1x640xf32>, vector<1x640xf32>, vector<1x640xf32>, vector<1x640xf32>, vector<1x640xf32> -> vector<9x640xf32>
    %c0_14 = arith.constant 0 : index
    %c0_15 = arith.constant 0 : index
    %27 = vector.load %arg2[%c0_14, %c0_15] : memref<16x9xf32, #tpu.memory_space<vmem>>, vector<16x9xf32>
    %cst = arith.constant dense<0.000000e+00> : vector<16x640xf32>
    %28 = tpu.matmul %27, %26, %cst {dimension_numbers = #tpu.dot_dimension_numbers<[1], [0], [0], [1], [0, 0, 1, 1], [], []>} : vector<16x9xf32>, vector<9x640xf32>, vector<16x640xf32> -> vector<16x640xf32>
    %c0_16 = arith.constant 0 : index
    %c0_17 = arith.constant 0 : index
    %29 = vector.load %arg3[%c0_16, %c0_17] : memref<16x1xf32, #tpu.memory_space<vmem>>, vector<16x1xf32>
    %30 = vector.broadcast %29 : vector<16x1xf32> to vector<16x640xf32>
    %31 = arith.addf %28, %30 : vector<16x640xf32>
    %cst_18 = arith.constant 0.000000e+00 : f32
    %32 = vector.broadcast %cst_18 : f32 to vector<16x640xf32>
    %33 = arith.maximumf %31, %32 : vector<16x640xf32>
    %34 = vector.extract_strided_slice %33 {offsets = [0, 0], sizes = [16, 512], strides = [1, 1]} : vector<16x640xf32> to vector<16x512xf32>
    %35 = vector.extract_strided_slice %33 {offsets = [0, 1], sizes = [16, 512], strides = [1, 1]} : vector<16x640xf32> to vector<16x512xf32>
    %36 = vector.extract_strided_slice %33 {offsets = [0, 2], sizes = [16, 512], strides = [1, 1]} : vector<16x640xf32> to vector<16x512xf32>
    %37 = vector.extract_strided_slice %33 {offsets = [0, 16], sizes = [16, 512], strides = [1, 1]} : vector<16x640xf32> to vector<16x512xf32>
    %38 = vector.extract_strided_slice %33 {offsets = [0, 17], sizes = [16, 512], strides = [1, 1]} : vector<16x640xf32> to vector<16x512xf32>
    %39 = vector.extract_strided_slice %33 {offsets = [0, 18], sizes = [16, 512], strides = [1, 1]} : vector<16x640xf32> to vector<16x512xf32>
    %40 = vector.extract_strided_slice %33 {offsets = [0, 32], sizes = [16, 512], strides = [1, 1]} : vector<16x640xf32> to vector<16x512xf32>
    %41 = vector.extract_strided_slice %33 {offsets = [0, 33], sizes = [16, 512], strides = [1, 1]} : vector<16x640xf32> to vector<16x512xf32>
    %42 = vector.extract_strided_slice %33 {offsets = [0, 34], sizes = [16, 512], strides = [1, 1]} : vector<16x640xf32> to vector<16x512xf32>
    %43 = tpu.concatenate %34, %35, %36, %37, %38, %39, %40, %41, %42 in 0 : vector<16x512xf32>, vector<16x512xf32>, vector<16x512xf32>, vector<16x512xf32>, vector<16x512xf32>, vector<16x512xf32>, vector<16x512xf32>, vector<16x512xf32>, vector<16x512xf32> -> vector<144x512xf32>
    %c0_19 = arith.constant 0 : index
    %c0_20 = arith.constant 0 : index
    %44 = vector.load %arg4[%c0_19, %c0_20] : memref<32x144xf32, #tpu.memory_space<vmem>>, vector<32x144xf32>
    %cst_21 = arith.constant dense<0.000000e+00> : vector<32x512xf32>
    %45 = tpu.matmul %44, %43, %cst_21 {dimension_numbers = #tpu.dot_dimension_numbers<[1], [0], [0], [1], [0, 0, 1, 1], [], []>} : vector<32x144xf32>, vector<144x512xf32>, vector<32x512xf32> -> vector<32x512xf32>
    %c0_22 = arith.constant 0 : index
    %c0_23 = arith.constant 0 : index
    %46 = vector.load %arg5[%c0_22, %c0_23] : memref<32x1xf32, #tpu.memory_space<vmem>>, vector<32x1xf32>
    %47 = vector.broadcast %46 : vector<32x1xf32> to vector<32x512xf32>
    %48 = arith.addf %45, %47 : vector<32x512xf32>
    %cst_24 = arith.constant 0.000000e+00 : f32
    %49 = vector.broadcast %cst_24 : f32 to vector<32x512xf32>
    %50 = arith.maximumf %48, %49 : vector<32x512xf32>
    %c0_25 = arith.constant 0 : index
    %c0_26 = arith.constant 0 : index
    %51 = vector.load %arg6[%c0_25, %c0_26] : memref<256x144xf32, #tpu.memory_space<vmem>>, vector<256x144xf32>
    %52 = vector.extract_strided_slice %50 {offsets = [0, 0], sizes = [32, 256], strides = [1, 1]} : vector<32x512xf32> to vector<32x256xf32>
    %cst_27 = arith.constant dense<0.000000e+00> : vector<32x144xf32>
    %53 = tpu.matmul %52, %51, %cst_27 {dimension_numbers = #tpu.dot_dimension_numbers<[1], [0], [0], [1], [0, 0, 1, 1], [], []>} : vector<32x256xf32>, vector<256x144xf32>, vector<32x144xf32> -> vector<32x144xf32>
    %54 = vector.extract_strided_slice %50 {offsets = [0, 256], sizes = [32, 256], strides = [1, 1]} : vector<32x512xf32> to vector<32x256xf32>
    %cst_28 = arith.constant dense<0.000000e+00> : vector<32x144xf32>
    %55 = tpu.matmul %54, %51, %cst_28 {dimension_numbers = #tpu.dot_dimension_numbers<[1], [0], [0], [1], [0, 0, 1, 1], [], []>} : vector<32x256xf32>, vector<256x144xf32>, vector<32x144xf32> -> vector<32x144xf32>
    %cst_29 = arith.constant 0.000000e+00 : f32
    %56 = vector.broadcast %cst_29 : f32 to vector<2x512xf32>
    %c0_i32_30 = arith.constant 0 : i32
    %c0_i32_31 = arith.constant 0 : i32
    %c0_i32_32 = arith.constant 0 : i32
    %57 = tpu.memref_slice %arg7[%c0_i32_31, %c0_i32_32] : memref<4608x512xbf16, #tpu.memory_space<any>> -> memref<1152x512xbf16, #tpu.memory_space<any>>
    %c0_i32_33 = arith.constant 0 : i32
    %c0_i32_34 = arith.constant 0 : i32
    %58 = tpu.memref_slice %arg14[%c0_i32_33, %c0_i32_34] : memref<4608x512xbf16, #tpu.memory_space<vmem>> -> memref<1152x512xbf16, #tpu.memory_space<vmem>>
    %59 = tpu.memref_slice %arg15[%c0_i32_30] : memref<4x!tpu.dma_semaphore, #tpu.memory_space<semaphore_mem>> -> memref<1x!tpu.dma_semaphore, #tpu.memory_space<semaphore_mem>>
    %60 = tpu.memref_squeeze %59 : memref<1x!tpu.dma_semaphore, #tpu.memory_space<semaphore_mem>> -> memref<!tpu.dma_semaphore, #tpu.memory_space<semaphore_mem>>
    tpu.wait_dma2 semaphore(%60 : memref<!tpu.dma_semaphore, #tpu.memory_space<semaphore_mem>>) src(%57 : memref<1152x512xbf16, #tpu.memory_space<any>>) dst(%58 : memref<1152x512xbf16, #tpu.memory_space<vmem>>)
    %61 = vector.extract_strided_slice %53 {offsets = [0, 0], sizes = [1, 144], strides = [1, 1]} : vector<32x144xf32> to vector<1x144xf32>
    %62 = vector.extract_strided_slice %55 {offsets = [0, 0], sizes = [1, 144], strides = [1, 1]} : vector<32x144xf32> to vector<1x144xf32>
    %63 = tpu.concatenate %61, %62 in 0 : vector<1x144xf32>, vector<1x144xf32> -> vector<2x144xf32>
    %64 = arith.truncf %63 : vector<2x144xf32> to vector<2x144xbf16>
    %c0_35 = arith.constant 0 : index
    %c0_36 = arith.constant 0 : index
    %65 = vector.load %arg14[%c0_35, %c0_36] : memref<4608x512xbf16, #tpu.memory_space<vmem>>, vector<144x512xbf16>
    %cst_37 = arith.constant dense<0.000000e+00> : vector<2x512xf32>
    %66 = tpu.matmul %64, %65, %cst_37 {dimension_numbers = #tpu.dot_dimension_numbers<[1], [0], [0], [1], [0, 0, 1, 1], [], []>} : vector<2x144xbf16>, vector<144x512xbf16>, vector<2x512xf32> -> vector<2x512xf32>
    %67 = arith.addf %56, %66 : vector<2x512xf32>
    %68 = vector.extract_strided_slice %53 {offsets = [1, 0], sizes = [1, 144], strides = [1, 1]} : vector<32x144xf32> to vector<1x144xf32>
    %69 = vector.extract_strided_slice %55 {offsets = [1, 0], sizes = [1, 144], strides = [1, 1]} : vector<32x144xf32> to vector<1x144xf32>
    %70 = tpu.concatenate %68, %69 in 0 : vector<1x144xf32>, vector<1x144xf32> -> vector<2x144xf32>
    %71 = arith.truncf %70 : vector<2x144xf32> to vector<2x144xbf16>
    %c144 = arith.constant 144 : index
    %c0_38 = arith.constant 0 : index
    %72 = vector.load %arg14[%c144, %c0_38] : memref<4608x512xbf16, #tpu.memory_space<vmem>>, vector<144x512xbf16>
    %cst_39 = arith.constant dense<0.000000e+00> : vector<2x512xf32>
    %73 = tpu.matmul %71, %72, %cst_39 {dimension_numbers = #tpu.dot_dimension_numbers<[1], [0], [0], [1], [0, 0, 1, 1], [], []>} : vector<2x144xbf16>, vector<144x512xbf16>, vector<2x512xf32> -> vector<2x512xf32>
    %74 = arith.addf %67, %73 : vector<2x512xf32>
    %75 = vector.extract_strided_slice %53 {offsets = [2, 0], sizes = [1, 144], strides = [1, 1]} : vector<32x144xf32> to vector<1x144xf32>
    %76 = vector.extract_strided_slice %55 {offsets = [2, 0], sizes = [1, 144], strides = [1, 1]} : vector<32x144xf32> to vector<1x144xf32>
    %77 = tpu.concatenate %75, %76 in 0 : vector<1x144xf32>, vector<1x144xf32> -> vector<2x144xf32>
    %78 = arith.truncf %77 : vector<2x144xf32> to vector<2x144xbf16>
    %c288 = arith.constant 288 : index
    %c0_40 = arith.constant 0 : index
    %79 = vector.load %arg14[%c288, %c0_40] : memref<4608x512xbf16, #tpu.memory_space<vmem>>, vector<144x512xbf16>
    %cst_41 = arith.constant dense<0.000000e+00> : vector<2x512xf32>
    %80 = tpu.matmul %78, %79, %cst_41 {dimension_numbers = #tpu.dot_dimension_numbers<[1], [0], [0], [1], [0, 0, 1, 1], [], []>} : vector<2x144xbf16>, vector<144x512xbf16>, vector<2x512xf32> -> vector<2x512xf32>
    %81 = arith.addf %74, %80 : vector<2x512xf32>
    %82 = vector.extract_strided_slice %53 {offsets = [3, 0], sizes = [1, 144], strides = [1, 1]} : vector<32x144xf32> to vector<1x144xf32>
    %83 = vector.extract_strided_slice %55 {offsets = [3, 0], sizes = [1, 144], strides = [1, 1]} : vector<32x144xf32> to vector<1x144xf32>
    %84 = tpu.concatenate %82, %83 in 0 : vector<1x144xf32>, vector<1x144xf32> -> vector<2x144xf32>
    %85 = arith.truncf %84 : vector<2x144xf32> to vector<2x144xbf16>
    %c432 = arith.constant 432 : index
    %c0_42 = arith.constant 0 : index
    %86 = vector.load %arg14[%c432, %c0_42] : memref<4608x512xbf16, #tpu.memory_space<vmem>>, vector<144x512xbf16>
    %cst_43 = arith.constant dense<0.000000e+00> : vector<2x512xf32>
    %87 = tpu.matmul %85, %86, %cst_43 {dimension_numbers = #tpu.dot_dimension_numbers<[1], [0], [0], [1], [0, 0, 1, 1], [], []>} : vector<2x144xbf16>, vector<144x512xbf16>, vector<2x512xf32> -> vector<2x512xf32>
    %88 = arith.addf %81, %87 : vector<2x512xf32>
    %89 = vector.extract_strided_slice %53 {offsets = [4, 0], sizes = [1, 144], strides = [1, 1]} : vector<32x144xf32> to vector<1x144xf32>
    %90 = vector.extract_strided_slice %55 {offsets = [4, 0], sizes = [1, 144], strides = [1, 1]} : vector<32x144xf32> to vector<1x144xf32>
    %91 = tpu.concatenate %89, %90 in 0 : vector<1x144xf32>, vector<1x144xf32> -> vector<2x144xf32>
    %92 = arith.truncf %91 : vector<2x144xf32> to vector<2x144xbf16>
    %c576 = arith.constant 576 : index
    %c0_44 = arith.constant 0 : index
    %93 = vector.load %arg14[%c576, %c0_44] : memref<4608x512xbf16, #tpu.memory_space<vmem>>, vector<144x512xbf16>
    %cst_45 = arith.constant dense<0.000000e+00> : vector<2x512xf32>
    %94 = tpu.matmul %92, %93, %cst_45 {dimension_numbers = #tpu.dot_dimension_numbers<[1], [0], [0], [1], [0, 0, 1, 1], [], []>} : vector<2x144xbf16>, vector<144x512xbf16>, vector<2x512xf32> -> vector<2x512xf32>
    %95 = arith.addf %88, %94 : vector<2x512xf32>
    %96 = vector.extract_strided_slice %53 {offsets = [5, 0], sizes = [1, 144], strides = [1, 1]} : vector<32x144xf32> to vector<1x144xf32>
    %97 = vector.extract_strided_slice %55 {offsets = [5, 0], sizes = [1, 144], strides = [1, 1]} : vector<32x144xf32> to vector<1x144xf32>
    %98 = tpu.concatenate %96, %97 in 0 : vector<1x144xf32>, vector<1x144xf32> -> vector<2x144xf32>
    %99 = arith.truncf %98 : vector<2x144xf32> to vector<2x144xbf16>
    %c720 = arith.constant 720 : index
    %c0_46 = arith.constant 0 : index
    %100 = vector.load %arg14[%c720, %c0_46] : memref<4608x512xbf16, #tpu.memory_space<vmem>>, vector<144x512xbf16>
    %cst_47 = arith.constant dense<0.000000e+00> : vector<2x512xf32>
    %101 = tpu.matmul %99, %100, %cst_47 {dimension_numbers = #tpu.dot_dimension_numbers<[1], [0], [0], [1], [0, 0, 1, 1], [], []>} : vector<2x144xbf16>, vector<144x512xbf16>, vector<2x512xf32> -> vector<2x512xf32>
    %102 = arith.addf %95, %101 : vector<2x512xf32>
    %103 = vector.extract_strided_slice %53 {offsets = [6, 0], sizes = [1, 144], strides = [1, 1]} : vector<32x144xf32> to vector<1x144xf32>
    %104 = vector.extract_strided_slice %55 {offsets = [6, 0], sizes = [1, 144], strides = [1, 1]} : vector<32x144xf32> to vector<1x144xf32>
    %105 = tpu.concatenate %103, %104 in 0 : vector<1x144xf32>, vector<1x144xf32> -> vector<2x144xf32>
    %106 = arith.truncf %105 : vector<2x144xf32> to vector<2x144xbf16>
    %c864 = arith.constant 864 : index
    %c0_48 = arith.constant 0 : index
    %107 = vector.load %arg14[%c864, %c0_48] : memref<4608x512xbf16, #tpu.memory_space<vmem>>, vector<144x512xbf16>
    %cst_49 = arith.constant dense<0.000000e+00> : vector<2x512xf32>
    %108 = tpu.matmul %106, %107, %cst_49 {dimension_numbers = #tpu.dot_dimension_numbers<[1], [0], [0], [1], [0, 0, 1, 1], [], []>} : vector<2x144xbf16>, vector<144x512xbf16>, vector<2x512xf32> -> vector<2x512xf32>
    %109 = arith.addf %102, %108 : vector<2x512xf32>
    %110 = vector.extract_strided_slice %53 {offsets = [7, 0], sizes = [1, 144], strides = [1, 1]} : vector<32x144xf32> to vector<1x144xf32>
    %111 = vector.extract_strided_slice %55 {offsets = [7, 0], sizes = [1, 144], strides = [1, 1]} : vector<32x144xf32> to vector<1x144xf32>
    %112 = tpu.concatenate %110, %111 in 0 : vector<1x144xf32>, vector<1x144xf32> -> vector<2x144xf32>
    %113 = arith.truncf %112 : vector<2x144xf32> to vector<2x144xbf16>
    %c1008 = arith.constant 1008 : index
    %c0_50 = arith.constant 0 : index
    %114 = vector.load %arg14[%c1008, %c0_50] : memref<4608x512xbf16, #tpu.memory_space<vmem>>, vector<144x512xbf16>
    %cst_51 = arith.constant dense<0.000000e+00> : vector<2x512xf32>
    %115 = tpu.matmul %113, %114, %cst_51 {dimension_numbers = #tpu.dot_dimension_numbers<[1], [0], [0], [1], [0, 0, 1, 1], [], []>} : vector<2x144xbf16>, vector<144x512xbf16>, vector<2x512xf32> -> vector<2x512xf32>
    %116 = arith.addf %109, %115 : vector<2x512xf32>
    %c1_i32_52 = arith.constant 1 : i32
    %c1152_i32_53 = arith.constant 1152 : i32
    %c0_i32_54 = arith.constant 0 : i32
    %117 = tpu.memref_slice %arg7[%c1152_i32_53, %c0_i32_54] : memref<4608x512xbf16, #tpu.memory_space<any>> -> memref<1152x512xbf16, #tpu.memory_space<any>>
    %c1152_i32_55 = arith.constant 1152 : i32
    %c0_i32_56 = arith.constant 0 : i32
    %118 = tpu.memref_slice %arg14[%c1152_i32_55, %c0_i32_56] : memref<4608x512xbf16, #tpu.memory_space<vmem>> -> memref<1152x512xbf16, #tpu.memory_space<vmem>>
    %119 = tpu.memref_slice %arg15[%c1_i32_52] : memref<4x!tpu.dma_semaphore, #tpu.memory_space<semaphore_mem>> -> memref<1x!tpu.dma_semaphore, #tpu.memory_space<semaphore_mem>>
    %120 = tpu.memref_squeeze %119 : memref<1x!tpu.dma_semaphore, #tpu.memory_space<semaphore_mem>> -> memref<!tpu.dma_semaphore, #tpu.memory_space<semaphore_mem>>
    tpu.wait_dma2 semaphore(%120 : memref<!tpu.dma_semaphore, #tpu.memory_space<semaphore_mem>>) src(%117 : memref<1152x512xbf16, #tpu.memory_space<any>>) dst(%118 : memref<1152x512xbf16, #tpu.memory_space<vmem>>)
    %121 = vector.extract_strided_slice %53 {offsets = [8, 0], sizes = [1, 144], strides = [1, 1]} : vector<32x144xf32> to vector<1x144xf32>
    %122 = vector.extract_strided_slice %55 {offsets = [8, 0], sizes = [1, 144], strides = [1, 1]} : vector<32x144xf32> to vector<1x144xf32>
    %123 = tpu.concatenate %121, %122 in 0 : vector<1x144xf32>, vector<1x144xf32> -> vector<2x144xf32>
    %124 = arith.truncf %123 : vector<2x144xf32> to vector<2x144xbf16>
    %c1152 = arith.constant 1152 : index
    %c0_57 = arith.constant 0 : index
    %125 = vector.load %arg14[%c1152, %c0_57] : memref<4608x512xbf16, #tpu.memory_space<vmem>>, vector<144x512xbf16>
    %cst_58 = arith.constant dense<0.000000e+00> : vector<2x512xf32>
    %126 = tpu.matmul %124, %125, %cst_58 {dimension_numbers = #tpu.dot_dimension_numbers<[1], [0], [0], [1], [0, 0, 1, 1], [], []>} : vector<2x144xbf16>, vector<144x512xbf16>, vector<2x512xf32> -> vector<2x512xf32>
    %127 = arith.addf %116, %126 : vector<2x512xf32>
    %128 = vector.extract_strided_slice %53 {offsets = [9, 0], sizes = [1, 144], strides = [1, 1]} : vector<32x144xf32> to vector<1x144xf32>
    %129 = vector.extract_strided_slice %55 {offsets = [9, 0], sizes = [1, 144], strides = [1, 1]} : vector<32x144xf32> to vector<1x144xf32>
    %130 = tpu.concatenate %128, %129 in 0 : vector<1x144xf32>, vector<1x144xf32> -> vector<2x144xf32>
    %131 = arith.truncf %130 : vector<2x144xf32> to vector<2x144xbf16>
    %c1296 = arith.constant 1296 : index
    %c0_59 = arith.constant 0 : index
    %132 = vector.load %arg14[%c1296, %c0_59] : memref<4608x512xbf16, #tpu.memory_space<vmem>>, vector<144x512xbf16>
    %cst_60 = arith.constant dense<0.000000e+00> : vector<2x512xf32>
    %133 = tpu.matmul %131, %132, %cst_60 {dimension_numbers = #tpu.dot_dimension_numbers<[1], [0], [0], [1], [0, 0, 1, 1], [], []>} : vector<2x144xbf16>, vector<144x512xbf16>, vector<2x512xf32> -> vector<2x512xf32>
    %134 = arith.addf %127, %133 : vector<2x512xf32>
    %135 = vector.extract_strided_slice %53 {offsets = [10, 0], sizes = [1, 144], strides = [1, 1]} : vector<32x144xf32> to vector<1x144xf32>
    %136 = vector.extract_strided_slice %55 {offsets = [10, 0], sizes = [1, 144], strides = [1, 1]} : vector<32x144xf32> to vector<1x144xf32>
    %137 = tpu.concatenate %135, %136 in 0 : vector<1x144xf32>, vector<1x144xf32> -> vector<2x144xf32>
    %138 = arith.truncf %137 : vector<2x144xf32> to vector<2x144xbf16>
    %c1440 = arith.constant 1440 : index
    %c0_61 = arith.constant 0 : index
    %139 = vector.load %arg14[%c1440, %c0_61] : memref<4608x512xbf16, #tpu.memory_space<vmem>>, vector<144x512xbf16>
    %cst_62 = arith.constant dense<0.000000e+00> : vector<2x512xf32>
    %140 = tpu.matmul %138, %139, %cst_62 {dimension_numbers = #tpu.dot_dimension_numbers<[1], [0], [0], [1], [0, 0, 1, 1], [], []>} : vector<2x144xbf16>, vector<144x512xbf16>, vector<2x512xf32> -> vector<2x512xf32>
    %141 = arith.addf %134, %140 : vector<2x512xf32>
    %142 = vector.extract_strided_slice %53 {offsets = [11, 0], sizes = [1, 144], strides = [1, 1]} : vector<32x144xf32> to vector<1x144xf32>
    %143 = vector.extract_strided_slice %55 {offsets = [11, 0], sizes = [1, 144], strides = [1, 1]} : vector<32x144xf32> to vector<1x144xf32>
    %144 = tpu.concatenate %142, %143 in 0 : vector<1x144xf32>, vector<1x144xf32> -> vector<2x144xf32>
    %145 = arith.truncf %144 : vector<2x144xf32> to vector<2x144xbf16>
    %c1584 = arith.constant 1584 : index
    %c0_63 = arith.constant 0 : index
    %146 = vector.load %arg14[%c1584, %c0_63] : memref<4608x512xbf16, #tpu.memory_space<vmem>>, vector<144x512xbf16>
    %cst_64 = arith.constant dense<0.000000e+00> : vector<2x512xf32>
    %147 = tpu.matmul %145, %146, %cst_64 {dimension_numbers = #tpu.dot_dimension_numbers<[1], [0], [0], [1], [0, 0, 1, 1], [], []>} : vector<2x144xbf16>, vector<144x512xbf16>, vector<2x512xf32> -> vector<2x512xf32>
    %148 = arith.addf %141, %147 : vector<2x512xf32>
    %149 = vector.extract_strided_slice %53 {offsets = [12, 0], sizes = [1, 144], strides = [1, 1]} : vector<32x144xf32> to vector<1x144xf32>
    %150 = vector.extract_strided_slice %55 {offsets = [12, 0], sizes = [1, 144], strides = [1, 1]} : vector<32x144xf32> to vector<1x144xf32>
    %151 = tpu.concatenate %149, %150 in 0 : vector<1x144xf32>, vector<1x144xf32> -> vector<2x144xf32>
    %152 = arith.truncf %151 : vector<2x144xf32> to vector<2x144xbf16>
    %c1728 = arith.constant 1728 : index
    %c0_65 = arith.constant 0 : index
    %153 = vector.load %arg14[%c1728, %c0_65] : memref<4608x512xbf16, #tpu.memory_space<vmem>>, vector<144x512xbf16>
    %cst_66 = arith.constant dense<0.000000e+00> : vector<2x512xf32>
    %154 = tpu.matmul %152, %153, %cst_66 {dimension_numbers = #tpu.dot_dimension_numbers<[1], [0], [0], [1], [0, 0, 1, 1], [], []>} : vector<2x144xbf16>, vector<144x512xbf16>, vector<2x512xf32> -> vector<2x512xf32>
    %155 = arith.addf %148, %154 : vector<2x512xf32>
    %156 = vector.extract_strided_slice %53 {offsets = [13, 0], sizes = [1, 144], strides = [1, 1]} : vector<32x144xf32> to vector<1x144xf32>
    %157 = vector.extract_strided_slice %55 {offsets = [13, 0], sizes = [1, 144], strides = [1, 1]} : vector<32x144xf32> to vector<1x144xf32>
    %158 = tpu.concatenate %156, %157 in 0 : vector<1x144xf32>, vector<1x144xf32> -> vector<2x144xf32>
    %159 = arith.truncf %158 : vector<2x144xf32> to vector<2x144xbf16>
    %c1872 = arith.constant 1872 : index
    %c0_67 = arith.constant 0 : index
    %160 = vector.load %arg14[%c1872, %c0_67] : memref<4608x512xbf16, #tpu.memory_space<vmem>>, vector<144x512xbf16>
    %cst_68 = arith.constant dense<0.000000e+00> : vector<2x512xf32>
    %161 = tpu.matmul %159, %160, %cst_68 {dimension_numbers = #tpu.dot_dimension_numbers<[1], [0], [0], [1], [0, 0, 1, 1], [], []>} : vector<2x144xbf16>, vector<144x512xbf16>, vector<2x512xf32> -> vector<2x512xf32>
    %162 = arith.addf %155, %161 : vector<2x512xf32>
    %163 = vector.extract_strided_slice %53 {offsets = [14, 0], sizes = [1, 144], strides = [1, 1]} : vector<32x144xf32> to vector<1x144xf32>
    %164 = vector.extract_strided_slice %55 {offsets = [14, 0], sizes = [1, 144], strides = [1, 1]} : vector<32x144xf32> to vector<1x144xf32>
    %165 = tpu.concatenate %163, %164 in 0 : vector<1x144xf32>, vector<1x144xf32> -> vector<2x144xf32>
    %166 = arith.truncf %165 : vector<2x144xf32> to vector<2x144xbf16>
    %c2016 = arith.constant 2016 : index
    %c0_69 = arith.constant 0 : index
    %167 = vector.load %arg14[%c2016, %c0_69] : memref<4608x512xbf16, #tpu.memory_space<vmem>>, vector<144x512xbf16>
    %cst_70 = arith.constant dense<0.000000e+00> : vector<2x512xf32>
    %168 = tpu.matmul %166, %167, %cst_70 {dimension_numbers = #tpu.dot_dimension_numbers<[1], [0], [0], [1], [0, 0, 1, 1], [], []>} : vector<2x144xbf16>, vector<144x512xbf16>, vector<2x512xf32> -> vector<2x512xf32>
    %169 = arith.addf %162, %168 : vector<2x512xf32>
    %170 = vector.extract_strided_slice %53 {offsets = [15, 0], sizes = [1, 144], strides = [1, 1]} : vector<32x144xf32> to vector<1x144xf32>
    %171 = vector.extract_strided_slice %55 {offsets = [15, 0], sizes = [1, 144], strides = [1, 1]} : vector<32x144xf32> to vector<1x144xf32>
    %172 = tpu.concatenate %170, %171 in 0 : vector<1x144xf32>, vector<1x144xf32> -> vector<2x144xf32>
    %173 = arith.truncf %172 : vector<2x144xf32> to vector<2x144xbf16>
    %c2160 = arith.constant 2160 : index
    %c0_71 = arith.constant 0 : index
    %174 = vector.load %arg14[%c2160, %c0_71] : memref<4608x512xbf16, #tpu.memory_space<vmem>>, vector<144x512xbf16>
    %cst_72 = arith.constant dense<0.000000e+00> : vector<2x512xf32>
    %175 = tpu.matmul %173, %174, %cst_72 {dimension_numbers = #tpu.dot_dimension_numbers<[1], [0], [0], [1], [0, 0, 1, 1], [], []>} : vector<2x144xbf16>, vector<144x512xbf16>, vector<2x512xf32> -> vector<2x512xf32>
    %176 = arith.addf %169, %175 : vector<2x512xf32>
    %c2_i32_73 = arith.constant 2 : i32
    %c2304_i32_74 = arith.constant 2304 : i32
    %c0_i32_75 = arith.constant 0 : i32
    %177 = tpu.memref_slice %arg7[%c2304_i32_74, %c0_i32_75] : memref<4608x512xbf16, #tpu.memory_space<any>> -> memref<1152x512xbf16, #tpu.memory_space<any>>
    %c2304_i32_76 = arith.constant 2304 : i32
    %c0_i32_77 = arith.constant 0 : i32
    %178 = tpu.memref_slice %arg14[%c2304_i32_76, %c0_i32_77] : memref<4608x512xbf16, #tpu.memory_space<vmem>> -> memref<1152x512xbf16, #tpu.memory_space<vmem>>
    %179 = tpu.memref_slice %arg15[%c2_i32_73] : memref<4x!tpu.dma_semaphore, #tpu.memory_space<semaphore_mem>> -> memref<1x!tpu.dma_semaphore, #tpu.memory_space<semaphore_mem>>
    %180 = tpu.memref_squeeze %179 : memref<1x!tpu.dma_semaphore, #tpu.memory_space<semaphore_mem>> -> memref<!tpu.dma_semaphore, #tpu.memory_space<semaphore_mem>>
    tpu.wait_dma2 semaphore(%180 : memref<!tpu.dma_semaphore, #tpu.memory_space<semaphore_mem>>) src(%177 : memref<1152x512xbf16, #tpu.memory_space<any>>) dst(%178 : memref<1152x512xbf16, #tpu.memory_space<vmem>>)
    %181 = vector.extract_strided_slice %53 {offsets = [16, 0], sizes = [1, 144], strides = [1, 1]} : vector<32x144xf32> to vector<1x144xf32>
    %182 = vector.extract_strided_slice %55 {offsets = [16, 0], sizes = [1, 144], strides = [1, 1]} : vector<32x144xf32> to vector<1x144xf32>
    %183 = tpu.concatenate %181, %182 in 0 : vector<1x144xf32>, vector<1x144xf32> -> vector<2x144xf32>
    %184 = arith.truncf %183 : vector<2x144xf32> to vector<2x144xbf16>
    %c2304 = arith.constant 2304 : index
    %c0_78 = arith.constant 0 : index
    %185 = vector.load %arg14[%c2304, %c0_78] : memref<4608x512xbf16, #tpu.memory_space<vmem>>, vector<144x512xbf16>
    %cst_79 = arith.constant dense<0.000000e+00> : vector<2x512xf32>
    %186 = tpu.matmul %184, %185, %cst_79 {dimension_numbers = #tpu.dot_dimension_numbers<[1], [0], [0], [1], [0, 0, 1, 1], [], []>} : vector<2x144xbf16>, vector<144x512xbf16>, vector<2x512xf32> -> vector<2x512xf32>
    %187 = arith.addf %176, %186 : vector<2x512xf32>
    %188 = vector.extract_strided_slice %53 {offsets = [17, 0], sizes = [1, 144], strides = [1, 1]} : vector<32x144xf32> to vector<1x144xf32>
    %189 = vector.extract_strided_slice %55 {offsets = [17, 0], sizes = [1, 144], strides = [1, 1]} : vector<32x144xf32> to vector<1x144xf32>
    %190 = tpu.concatenate %188, %189 in 0 : vector<1x144xf32>, vector<1x144xf32> -> vector<2x144xf32>
    %191 = arith.truncf %190 : vector<2x144xf32> to vector<2x144xbf16>
    %c2448 = arith.constant 2448 : index
    %c0_80 = arith.constant 0 : index
    %192 = vector.load %arg14[%c2448, %c0_80] : memref<4608x512xbf16, #tpu.memory_space<vmem>>, vector<144x512xbf16>
    %cst_81 = arith.constant dense<0.000000e+00> : vector<2x512xf32>
    %193 = tpu.matmul %191, %192, %cst_81 {dimension_numbers = #tpu.dot_dimension_numbers<[1], [0], [0], [1], [0, 0, 1, 1], [], []>} : vector<2x144xbf16>, vector<144x512xbf16>, vector<2x512xf32> -> vector<2x512xf32>
    %194 = arith.addf %187, %193 : vector<2x512xf32>
    %195 = vector.extract_strided_slice %53 {offsets = [18, 0], sizes = [1, 144], strides = [1, 1]} : vector<32x144xf32> to vector<1x144xf32>
    %196 = vector.extract_strided_slice %55 {offsets = [18, 0], sizes = [1, 144], strides = [1, 1]} : vector<32x144xf32> to vector<1x144xf32>
    %197 = tpu.concatenate %195, %196 in 0 : vector<1x144xf32>, vector<1x144xf32> -> vector<2x144xf32>
    %198 = arith.truncf %197 : vector<2x144xf32> to vector<2x144xbf16>
    %c2592 = arith.constant 2592 : index
    %c0_82 = arith.constant 0 : index
    %199 = vector.load %arg14[%c2592, %c0_82] : memref<4608x512xbf16, #tpu.memory_space<vmem>>, vector<144x512xbf16>
    %cst_83 = arith.constant dense<0.000000e+00> : vector<2x512xf32>
    %200 = tpu.matmul %198, %199, %cst_83 {dimension_numbers = #tpu.dot_dimension_numbers<[1], [0], [0], [1], [0, 0, 1, 1], [], []>} : vector<2x144xbf16>, vector<144x512xbf16>, vector<2x512xf32> -> vector<2x512xf32>
    %201 = arith.addf %194, %200 : vector<2x512xf32>
    %202 = vector.extract_strided_slice %53 {offsets = [19, 0], sizes = [1, 144], strides = [1, 1]} : vector<32x144xf32> to vector<1x144xf32>
    %203 = vector.extract_strided_slice %55 {offsets = [19, 0], sizes = [1, 144], strides = [1, 1]} : vector<32x144xf32> to vector<1x144xf32>
    %204 = tpu.concatenate %202, %203 in 0 : vector<1x144xf32>, vector<1x144xf32> -> vector<2x144xf32>
    %205 = arith.truncf %204 : vector<2x144xf32> to vector<2x144xbf16>
    %c2736 = arith.constant 2736 : index
    %c0_84 = arith.constant 0 : index
    %206 = vector.load %arg14[%c2736, %c0_84] : memref<4608x512xbf16, #tpu.memory_space<vmem>>, vector<144x512xbf16>
    %cst_85 = arith.constant dense<0.000000e+00> : vector<2x512xf32>
    %207 = tpu.matmul %205, %206, %cst_85 {dimension_numbers = #tpu.dot_dimension_numbers<[1], [0], [0], [1], [0, 0, 1, 1], [], []>} : vector<2x144xbf16>, vector<144x512xbf16>, vector<2x512xf32> -> vector<2x512xf32>
    %208 = arith.addf %201, %207 : vector<2x512xf32>
    %209 = vector.extract_strided_slice %53 {offsets = [20, 0], sizes = [1, 144], strides = [1, 1]} : vector<32x144xf32> to vector<1x144xf32>
    %210 = vector.extract_strided_slice %55 {offsets = [20, 0], sizes = [1, 144], strides = [1, 1]} : vector<32x144xf32> to vector<1x144xf32>
    %211 = tpu.concatenate %209, %210 in 0 : vector<1x144xf32>, vector<1x144xf32> -> vector<2x144xf32>
    %212 = arith.truncf %211 : vector<2x144xf32> to vector<2x144xbf16>
    %c2880 = arith.constant 2880 : index
    %c0_86 = arith.constant 0 : index
    %213 = vector.load %arg14[%c2880, %c0_86] : memref<4608x512xbf16, #tpu.memory_space<vmem>>, vector<144x512xbf16>
    %cst_87 = arith.constant dense<0.000000e+00> : vector<2x512xf32>
    %214 = tpu.matmul %212, %213, %cst_87 {dimension_numbers = #tpu.dot_dimension_numbers<[1], [0], [0], [1], [0, 0, 1, 1], [], []>} : vector<2x144xbf16>, vector<144x512xbf16>, vector<2x512xf32> -> vector<2x512xf32>
    %215 = arith.addf %208, %214 : vector<2x512xf32>
    %216 = vector.extract_strided_slice %53 {offsets = [21, 0], sizes = [1, 144], strides = [1, 1]} : vector<32x144xf32> to vector<1x144xf32>
    %217 = vector.extract_strided_slice %55 {offsets = [21, 0], sizes = [1, 144], strides = [1, 1]} : vector<32x144xf32> to vector<1x144xf32>
    %218 = tpu.concatenate %216, %217 in 0 : vector<1x144xf32>, vector<1x144xf32> -> vector<2x144xf32>
    %219 = arith.truncf %218 : vector<2x144xf32> to vector<2x144xbf16>
    %c3024 = arith.constant 3024 : index
    %c0_88 = arith.constant 0 : index
    %220 = vector.load %arg14[%c3024, %c0_88] : memref<4608x512xbf16, #tpu.memory_space<vmem>>, vector<144x512xbf16>
    %cst_89 = arith.constant dense<0.000000e+00> : vector<2x512xf32>
    %221 = tpu.matmul %219, %220, %cst_89 {dimension_numbers = #tpu.dot_dimension_numbers<[1], [0], [0], [1], [0, 0, 1, 1], [], []>} : vector<2x144xbf16>, vector<144x512xbf16>, vector<2x512xf32> -> vector<2x512xf32>
    %222 = arith.addf %215, %221 : vector<2x512xf32>
    %223 = vector.extract_strided_slice %53 {offsets = [22, 0], sizes = [1, 144], strides = [1, 1]} : vector<32x144xf32> to vector<1x144xf32>
    %224 = vector.extract_strided_slice %55 {offsets = [22, 0], sizes = [1, 144], strides = [1, 1]} : vector<32x144xf32> to vector<1x144xf32>
    %225 = tpu.concatenate %223, %224 in 0 : vector<1x144xf32>, vector<1x144xf32> -> vector<2x144xf32>
    %226 = arith.truncf %225 : vector<2x144xf32> to vector<2x144xbf16>
    %c3168 = arith.constant 3168 : index
    %c0_90 = arith.constant 0 : index
    %227 = vector.load %arg14[%c3168, %c0_90] : memref<4608x512xbf16, #tpu.memory_space<vmem>>, vector<144x512xbf16>
    %cst_91 = arith.constant dense<0.000000e+00> : vector<2x512xf32>
    %228 = tpu.matmul %226, %227, %cst_91 {dimension_numbers = #tpu.dot_dimension_numbers<[1], [0], [0], [1], [0, 0, 1, 1], [], []>} : vector<2x144xbf16>, vector<144x512xbf16>, vector<2x512xf32> -> vector<2x512xf32>
    %229 = arith.addf %222, %228 : vector<2x512xf32>
    %230 = vector.extract_strided_slice %53 {offsets = [23, 0], sizes = [1, 144], strides = [1, 1]} : vector<32x144xf32> to vector<1x144xf32>
    %231 = vector.extract_strided_slice %55 {offsets = [23, 0], sizes = [1, 144], strides = [1, 1]} : vector<32x144xf32> to vector<1x144xf32>
    %232 = tpu.concatenate %230, %231 in 0 : vector<1x144xf32>, vector<1x144xf32> -> vector<2x144xf32>
    %233 = arith.truncf %232 : vector<2x144xf32> to vector<2x144xbf16>
    %c3312 = arith.constant 3312 : index
    %c0_92 = arith.constant 0 : index
    %234 = vector.load %arg14[%c3312, %c0_92] : memref<4608x512xbf16, #tpu.memory_space<vmem>>, vector<144x512xbf16>
    %cst_93 = arith.constant dense<0.000000e+00> : vector<2x512xf32>
    %235 = tpu.matmul %233, %234, %cst_93 {dimension_numbers = #tpu.dot_dimension_numbers<[1], [0], [0], [1], [0, 0, 1, 1], [], []>} : vector<2x144xbf16>, vector<144x512xbf16>, vector<2x512xf32> -> vector<2x512xf32>
    %236 = arith.addf %229, %235 : vector<2x512xf32>
    %c3_i32_94 = arith.constant 3 : i32
    %c3456_i32_95 = arith.constant 3456 : i32
    %c0_i32_96 = arith.constant 0 : i32
    %237 = tpu.memref_slice %arg7[%c3456_i32_95, %c0_i32_96] : memref<4608x512xbf16, #tpu.memory_space<any>> -> memref<1152x512xbf16, #tpu.memory_space<any>>
    %c3456_i32_97 = arith.constant 3456 : i32
    %c0_i32_98 = arith.constant 0 : i32
    %238 = tpu.memref_slice %arg14[%c3456_i32_97, %c0_i32_98] : memref<4608x512xbf16, #tpu.memory_space<vmem>> -> memref<1152x512xbf16, #tpu.memory_space<vmem>>
    %239 = tpu.memref_slice %arg15[%c3_i32_94] : memref<4x!tpu.dma_semaphore, #tpu.memory_space<semaphore_mem>> -> memref<1x!tpu.dma_semaphore, #tpu.memory_space<semaphore_mem>>
    %240 = tpu.memref_squeeze %239 : memref<1x!tpu.dma_semaphore, #tpu.memory_space<semaphore_mem>> -> memref<!tpu.dma_semaphore, #tpu.memory_space<semaphore_mem>>
    tpu.wait_dma2 semaphore(%240 : memref<!tpu.dma_semaphore, #tpu.memory_space<semaphore_mem>>) src(%237 : memref<1152x512xbf16, #tpu.memory_space<any>>) dst(%238 : memref<1152x512xbf16, #tpu.memory_space<vmem>>)
    %241 = vector.extract_strided_slice %53 {offsets = [24, 0], sizes = [1, 144], strides = [1, 1]} : vector<32x144xf32> to vector<1x144xf32>
    %242 = vector.extract_strided_slice %55 {offsets = [24, 0], sizes = [1, 144], strides = [1, 1]} : vector<32x144xf32> to vector<1x144xf32>
    %243 = tpu.concatenate %241, %242 in 0 : vector<1x144xf32>, vector<1x144xf32> -> vector<2x144xf32>
    %244 = arith.truncf %243 : vector<2x144xf32> to vector<2x144xbf16>
    %c3456 = arith.constant 3456 : index
    %c0_99 = arith.constant 0 : index
    %245 = vector.load %arg14[%c3456, %c0_99] : memref<4608x512xbf16, #tpu.memory_space<vmem>>, vector<144x512xbf16>
    %cst_100 = arith.constant dense<0.000000e+00> : vector<2x512xf32>
    %246 = tpu.matmul %244, %245, %cst_100 {dimension_numbers = #tpu.dot_dimension_numbers<[1], [0], [0], [1], [0, 0, 1, 1], [], []>} : vector<2x144xbf16>, vector<144x512xbf16>, vector<2x512xf32> -> vector<2x512xf32>
    %247 = arith.addf %236, %246 : vector<2x512xf32>
    %248 = vector.extract_strided_slice %53 {offsets = [25, 0], sizes = [1, 144], strides = [1, 1]} : vector<32x144xf32> to vector<1x144xf32>
    %249 = vector.extract_strided_slice %55 {offsets = [25, 0], sizes = [1, 144], strides = [1, 1]} : vector<32x144xf32> to vector<1x144xf32>
    %250 = tpu.concatenate %248, %249 in 0 : vector<1x144xf32>, vector<1x144xf32> -> vector<2x144xf32>
    %251 = arith.truncf %250 : vector<2x144xf32> to vector<2x144xbf16>
    %c3600 = arith.constant 3600 : index
    %c0_101 = arith.constant 0 : index
    %252 = vector.load %arg14[%c3600, %c0_101] : memref<4608x512xbf16, #tpu.memory_space<vmem>>, vector<144x512xbf16>
    %cst_102 = arith.constant dense<0.000000e+00> : vector<2x512xf32>
    %253 = tpu.matmul %251, %252, %cst_102 {dimension_numbers = #tpu.dot_dimension_numbers<[1], [0], [0], [1], [0, 0, 1, 1], [], []>} : vector<2x144xbf16>, vector<144x512xbf16>, vector<2x512xf32> -> vector<2x512xf32>
    %254 = arith.addf %247, %253 : vector<2x512xf32>
    %255 = vector.extract_strided_slice %53 {offsets = [26, 0], sizes = [1, 144], strides = [1, 1]} : vector<32x144xf32> to vector<1x144xf32>
    %256 = vector.extract_strided_slice %55 {offsets = [26, 0], sizes = [1, 144], strides = [1, 1]} : vector<32x144xf32> to vector<1x144xf32>
    %257 = tpu.concatenate %255, %256 in 0 : vector<1x144xf32>, vector<1x144xf32> -> vector<2x144xf32>
    %258 = arith.truncf %257 : vector<2x144xf32> to vector<2x144xbf16>
    %c3744 = arith.constant 3744 : index
    %c0_103 = arith.constant 0 : index
    %259 = vector.load %arg14[%c3744, %c0_103] : memref<4608x512xbf16, #tpu.memory_space<vmem>>, vector<144x512xbf16>
    %cst_104 = arith.constant dense<0.000000e+00> : vector<2x512xf32>
    %260 = tpu.matmul %258, %259, %cst_104 {dimension_numbers = #tpu.dot_dimension_numbers<[1], [0], [0], [1], [0, 0, 1, 1], [], []>} : vector<2x144xbf16>, vector<144x512xbf16>, vector<2x512xf32> -> vector<2x512xf32>
    %261 = arith.addf %254, %260 : vector<2x512xf32>
    %262 = vector.extract_strided_slice %53 {offsets = [27, 0], sizes = [1, 144], strides = [1, 1]} : vector<32x144xf32> to vector<1x144xf32>
    %263 = vector.extract_strided_slice %55 {offsets = [27, 0], sizes = [1, 144], strides = [1, 1]} : vector<32x144xf32> to vector<1x144xf32>
    %264 = tpu.concatenate %262, %263 in 0 : vector<1x144xf32>, vector<1x144xf32> -> vector<2x144xf32>
    %265 = arith.truncf %264 : vector<2x144xf32> to vector<2x144xbf16>
    %c3888 = arith.constant 3888 : index
    %c0_105 = arith.constant 0 : index
    %266 = vector.load %arg14[%c3888, %c0_105] : memref<4608x512xbf16, #tpu.memory_space<vmem>>, vector<144x512xbf16>
    %cst_106 = arith.constant dense<0.000000e+00> : vector<2x512xf32>
    %267 = tpu.matmul %265, %266, %cst_106 {dimension_numbers = #tpu.dot_dimension_numbers<[1], [0], [0], [1], [0, 0, 1, 1], [], []>} : vector<2x144xbf16>, vector<144x512xbf16>, vector<2x512xf32> -> vector<2x512xf32>
    %268 = arith.addf %261, %267 : vector<2x512xf32>
    %269 = vector.extract_strided_slice %53 {offsets = [28, 0], sizes = [1, 144], strides = [1, 1]} : vector<32x144xf32> to vector<1x144xf32>
    %270 = vector.extract_strided_slice %55 {offsets = [28, 0], sizes = [1, 144], strides = [1, 1]} : vector<32x144xf32> to vector<1x144xf32>
    %271 = tpu.concatenate %269, %270 in 0 : vector<1x144xf32>, vector<1x144xf32> -> vector<2x144xf32>
    %272 = arith.truncf %271 : vector<2x144xf32> to vector<2x144xbf16>
    %c4032 = arith.constant 4032 : index
    %c0_107 = arith.constant 0 : index
    %273 = vector.load %arg14[%c4032, %c0_107] : memref<4608x512xbf16, #tpu.memory_space<vmem>>, vector<144x512xbf16>
    %cst_108 = arith.constant dense<0.000000e+00> : vector<2x512xf32>
    %274 = tpu.matmul %272, %273, %cst_108 {dimension_numbers = #tpu.dot_dimension_numbers<[1], [0], [0], [1], [0, 0, 1, 1], [], []>} : vector<2x144xbf16>, vector<144x512xbf16>, vector<2x512xf32> -> vector<2x512xf32>
    %275 = arith.addf %268, %274 : vector<2x512xf32>
    %276 = vector.extract_strided_slice %53 {offsets = [29, 0], sizes = [1, 144], strides = [1, 1]} : vector<32x144xf32> to vector<1x144xf32>
    %277 = vector.extract_strided_slice %55 {offsets = [29, 0], sizes = [1, 144], strides = [1, 1]} : vector<32x144xf32> to vector<1x144xf32>
    %278 = tpu.concatenate %276, %277 in 0 : vector<1x144xf32>, vector<1x144xf32> -> vector<2x144xf32>
    %279 = arith.truncf %278 : vector<2x144xf32> to vector<2x144xbf16>
    %c4176 = arith.constant 4176 : index
    %c0_109 = arith.constant 0 : index
    %280 = vector.load %arg14[%c4176, %c0_109] : memref<4608x512xbf16, #tpu.memory_space<vmem>>, vector<144x512xbf16>
    %cst_110 = arith.constant dense<0.000000e+00> : vector<2x512xf32>
    %281 = tpu.matmul %279, %280, %cst_110 {dimension_numbers = #tpu.dot_dimension_numbers<[1], [0], [0], [1], [0, 0, 1, 1], [], []>} : vector<2x144xbf16>, vector<144x512xbf16>, vector<2x512xf32> -> vector<2x512xf32>
    %282 = arith.addf %275, %281 : vector<2x512xf32>
    %283 = vector.extract_strided_slice %53 {offsets = [30, 0], sizes = [1, 144], strides = [1, 1]} : vector<32x144xf32> to vector<1x144xf32>
    %284 = vector.extract_strided_slice %55 {offsets = [30, 0], sizes = [1, 144], strides = [1, 1]} : vector<32x144xf32> to vector<1x144xf32>
    %285 = tpu.concatenate %283, %284 in 0 : vector<1x144xf32>, vector<1x144xf32> -> vector<2x144xf32>
    %286 = arith.truncf %285 : vector<2x144xf32> to vector<2x144xbf16>
    %c4320 = arith.constant 4320 : index
    %c0_111 = arith.constant 0 : index
    %287 = vector.load %arg14[%c4320, %c0_111] : memref<4608x512xbf16, #tpu.memory_space<vmem>>, vector<144x512xbf16>
    %cst_112 = arith.constant dense<0.000000e+00> : vector<2x512xf32>
    %288 = tpu.matmul %286, %287, %cst_112 {dimension_numbers = #tpu.dot_dimension_numbers<[1], [0], [0], [1], [0, 0, 1, 1], [], []>} : vector<2x144xbf16>, vector<144x512xbf16>, vector<2x512xf32> -> vector<2x512xf32>
    %289 = arith.addf %282, %288 : vector<2x512xf32>
    %290 = vector.extract_strided_slice %53 {offsets = [31, 0], sizes = [1, 144], strides = [1, 1]} : vector<32x144xf32> to vector<1x144xf32>
    %291 = vector.extract_strided_slice %55 {offsets = [31, 0], sizes = [1, 144], strides = [1, 1]} : vector<32x144xf32> to vector<1x144xf32>
    %292 = tpu.concatenate %290, %291 in 0 : vector<1x144xf32>, vector<1x144xf32> -> vector<2x144xf32>
    %293 = arith.truncf %292 : vector<2x144xf32> to vector<2x144xbf16>
    %c4464 = arith.constant 4464 : index
    %c0_113 = arith.constant 0 : index
    %294 = vector.load %arg14[%c4464, %c0_113] : memref<4608x512xbf16, #tpu.memory_space<vmem>>, vector<144x512xbf16>
    %cst_114 = arith.constant dense<0.000000e+00> : vector<2x512xf32>
    %295 = tpu.matmul %293, %294, %cst_114 {dimension_numbers = #tpu.dot_dimension_numbers<[1], [0], [0], [1], [0, 0, 1, 1], [], []>} : vector<2x144xbf16>, vector<144x512xbf16>, vector<2x512xf32> -> vector<2x512xf32>
    %296 = arith.addf %289, %295 : vector<2x512xf32>
    %c0_115 = arith.constant 0 : index
    %c0_116 = arith.constant 0 : index
    %297 = vector.load %arg8[%c0_115, %c0_116] : memref<1x512xf32, #tpu.memory_space<vmem>>, vector<1x512xf32>
    %298 = vector.broadcast %297 : vector<1x512xf32> to vector<2x512xf32>
    %299 = arith.addf %296, %298 : vector<2x512xf32>
    %cst_117 = arith.constant 0.000000e+00 : f32
    %300 = vector.broadcast %cst_117 : f32 to vector<2x512xf32>
    %301 = arith.maximumf %299, %300 : vector<2x512xf32>
    %c0_118 = arith.constant 0 : index
    %c0_119 = arith.constant 0 : index
    %302 = vector.load %arg9[%c0_118, %c0_119] : memref<512x128xf32, #tpu.memory_space<vmem>>, vector<512x128xf32>
    %cst_120 = arith.constant dense<0.000000e+00> : vector<2x128xf32>
    %303 = tpu.matmul %301, %302, %cst_120 {dimension_numbers = #tpu.dot_dimension_numbers<[1], [0], [0], [1], [0, 0, 1, 1], [], []>} : vector<2x512xf32>, vector<512x128xf32>, vector<2x128xf32> -> vector<2x128xf32>
    %c0_121 = arith.constant 0 : index
    %c0_122 = arith.constant 0 : index
    %304 = vector.load %arg10[%c0_121, %c0_122] : memref<1x128xf32, #tpu.memory_space<vmem>>, vector<1x128xf32>
    %305 = vector.broadcast %304 : vector<1x128xf32> to vector<2x128xf32>
    %306 = arith.addf %303, %305 : vector<2x128xf32>
    %cst_123 = arith.constant 0.000000e+00 : f32
    %307 = vector.broadcast %cst_123 : f32 to vector<2x128xf32>
    %308 = arith.maximumf %306, %307 : vector<2x128xf32>
    %c0_124 = arith.constant 0 : index
    %c0_125 = arith.constant 0 : index
    %309 = vector.load %arg11[%c0_124, %c0_125] : memref<128x4xf32, #tpu.memory_space<vmem>>, vector<128x4xf32>
    %cst_126 = arith.constant dense<0.000000e+00> : vector<2x4xf32>
    %310 = tpu.matmul %308, %309, %cst_126 {dimension_numbers = #tpu.dot_dimension_numbers<[1], [0], [0], [1], [0, 0, 1, 1], [], []>} : vector<2x128xf32>, vector<128x4xf32>, vector<2x4xf32> -> vector<2x4xf32>
    %c0_127 = arith.constant 0 : index
    %c0_128 = arith.constant 0 : index
    %311 = vector.load %arg12[%c0_127, %c0_128] : memref<1x4xf32, #tpu.memory_space<vmem>>, vector<1x4xf32>
    %312 = vector.broadcast %311 : vector<1x4xf32> to vector<2x4xf32>
    %313 = arith.addf %310, %312 : vector<2x4xf32>
    %c0_129 = arith.constant 0 : index
    %c0_130 = arith.constant 0 : index
    %314 = vector.load %arg13[%c0_129, %c0_130] : memref<2x4xf32, #tpu.memory_space<vmem>>, vector<2x4xf32>
    tpu.vector_store %arg13[%c0_129, %c0_130], %313 {strides = array<i32>} : memref<2x4xf32, #tpu.memory_space<vmem>>, vector<2x4xf32>,
    return
  }
  func.func @transform_0(%arg0: i32) -> (i32, i32) {
    %c0_i32 = arith.constant 0 : i32
    %c0_i32_0 = arith.constant 0 : i32
    %c0_i32_1 = arith.constant 0 : i32
    return %c0_i32, %c0_i32_0 : i32, i32
  }
  func.func @transform_1(%arg0: i32) -> (i32, i32) {
    %c0_i32 = arith.constant 0 : i32
    %c0_i32_0 = arith.constant 0 : i32
    %c0_i32_1 = arith.constant 0 : i32
    return %c0_i32, %c0_i32_0 : i32, i32
  }
  func.func @transform_2(%arg0: i32) -> (i32, i32) {
    %c0_i32 = arith.constant 0 : i32
    %c0_i32_0 = arith.constant 0 : i32
    %c0_i32_1 = arith.constant 0 : i32
    return %c0_i32, %c0_i32_0 : i32, i32
  }
  func.func @transform_3(%arg0: i32) -> (i32, i32) {
    %c0_i32 = arith.constant 0 : i32
    %c0_i32_0 = arith.constant 0 : i32
    %c0_i32_1 = arith.constant 0 : i32
    return %c0_i32, %c0_i32_0 : i32, i32
  }
  func.func @transform_4(%arg0: i32) -> (i32, i32) {
    %c0_i32 = arith.constant 0 : i32
    %c0_i32_0 = arith.constant 0 : i32
    %c0_i32_1 = arith.constant 0 : i32
    return %c0_i32, %c0_i32_0 : i32, i32
  }
  func.func @transform_5(%arg0: i32) -> (i32, i32) {
    %c0_i32 = arith.constant 0 : i32
    %c0_i32_0 = arith.constant 0 : i32
    %c0_i32_1 = arith.constant 0 : i32
    return %c0_i32, %c0_i32_0 : i32, i32
  }
  func.func @transform_7(%arg0: i32) -> (i32, i32) {
    %c0_i32 = arith.constant 0 : i32
    %c0_i32_0 = arith.constant 0 : i32
    %c0_i32_1 = arith.constant 0 : i32
    return %c0_i32, %c0_i32_0 : i32, i32
  }
  func.func @transform_8(%arg0: i32) -> (i32, i32) {
    %c0_i32 = arith.constant 0 : i32
    %c0_i32_0 = arith.constant 0 : i32
    %c0_i32_1 = arith.constant 0 : i32
    return %c0_i32, %c0_i32_0 : i32, i32
  }
  func.func @transform_9(%arg0: i32) -> (i32, i32) {
    %c0_i32 = arith.constant 0 : i32
    %c0_i32_0 = arith.constant 0 : i32
    %c0_i32_1 = arith.constant 0 : i32
    return %c0_i32, %c0_i32_0 : i32, i32
  }
  func.func @transform_10(%arg0: i32) -> (i32, i32) {
    %c0_i32 = arith.constant 0 : i32
    %c0_i32_0 = arith.constant 0 : i32
    %c0_i32_1 = arith.constant 0 : i32
    return %c0_i32, %c0_i32_0 : i32, i32
  }
  func.func @transform_11(%arg0: i32) -> (i32, i32) {
    %c0_i32 = arith.constant 0 : i32
    %c0_i32_0 = arith.constant 0 : i32
    %c0_i32_1 = arith.constant 0 : i32
    return %c0_i32, %c0_i32_0 : i32, i32
  }
  func.func @transform_12(%arg0: i32) -> (i32, i32) {
    %c0_i32 = arith.constant 0 : i32
    %c0_i32_0 = arith.constant 0 : i32
    %c0_i32_1 = arith.constant 0 : i32
    return %c0_i32, %c0_i32_0 : i32, i32
  }
}

</mosaic_0001>

<llo_original>
// kernel: _lambda_.1
$region0: #{_lambda_.1}
  #allocation0 [shape = 'u32[]', space=smem, size = 0x4, offset = 0x4, fixed_abs, tag = 'smem constant byte address 0x4 - core index']
  #allocation1 [shape = 'u32[72,128]{1,0:T(1,128)}', space=vmem, size = 0x9000, scoped, tag = 'internal scratch']
  #allocation2 [shape = 'bf16[4608,512]{1,0:T(8,128)(2,1)}', space=vmem, size = 0x480000, scoped, tag = 'scratch operand']
  #allocation3 [shape = 's32[4]{0}', space=sflag, size = 0x10, scoped, tag = 'scratch operand']
  #allocation14 [shape = 's32[]', space=sflag, size = 0x4, offset = 0, fixed_abs, tag = 'sflag constant byte address 0x0 - dummy sync flag']
  #allocation15 [shape = 's32[]', space=sflag, size = 0x4, offset = 0, fixed_abs, tag = 'sflag constant byte address 0x0 - dummy sync flag']
  #allocation16 [shape = 'u32[]', space=smem, size = 0x4, offset = 0x44, fixed_abs, tag = 'smem constant byte address 0x44 - assertion arg 0']
  #allocation17 [shape = 'u32[]', space=smem, size = 0x4, offset = 0x48, fixed_abs, tag = 'smem constant byte address 0x48 - assertion arg 1']
  #allocation18 [shape = 's32[]', space=sflag, size = 0x4, offset = 0, fixed_abs, tag = 'sflag constant byte address 0x0 - dummy sync flag']
  #allocation19 [shape = 's32[]', space=sflag, size = 0x4, offset = 0, fixed_abs, tag = 'sflag constant byte address 0x0 - dummy sync flag']
  #allocation20 [shape = 's32[]', space=sflag, size = 0x4, offset = 0, fixed_abs, tag = 'sflag constant byte address 0x0 - dummy sync flag']
  #allocation21 [shape = 's32[]', space=sflag, size = 0x4, offset = 0, fixed_abs, tag = 'sflag constant byte address 0x0 - dummy sync flag']
  #allocation22 [shape = 's32[]', space=sflag, size = 0x4, offset = 0, fixed_abs, tag = 'sflag constant byte address 0x0 - dummy sync flag']
  #allocation23 [shape = 's32[]', space=sflag, size = 0x4, offset = 0, fixed_abs, tag = 'sflag constant byte address 0x0 - dummy sync flag']
  %s0 = inlined_call_operand.vmem [shape: f32[1,768], index: 0, kind: input, shape index: {}]
  %s1 = inlined_call_operand.vmem [shape: f32[16,9], index: 1, kind: input, shape index: {}]
  %s2 = inlined_call_operand.vmem [shape: f32[16,1], index: 2, kind: input, shape index: {}]
  %s3 = inlined_call_operand.vmem [shape: f32[32,144], index: 3, kind: input, shape index: {}]
  %s4 = inlined_call_operand.vmem [shape: f32[32,1], index: 4, kind: input, shape index: {}]
  %s5 = inlined_call_operand.hbm [shape: f32[256,144], index: 5, kind: input, shape index: {}]
  %s6 = inlined_call_operand.hbm [shape: bf16[4608,512], index: 6, kind: input, shape index: {}]
  %s7 = inlined_call_operand.hbm [shape: f32[1,512], index: 7, kind: input, shape index: {}]
  %s8 = inlined_call_operand.hbm [shape: f32[512,128], index: 8, kind: input, shape index: {}]
  %s9 = inlined_call_operand.hbm [shape: f32[1,128], index: 9, kind: input, shape index: {}]
  %s10 = inlined_call_operand.vmem [shape: f32[128,4], index: 10, kind: input, shape index: {}]
  %s11 = inlined_call_operand.hbm [shape: f32[1,4], index: 11, kind: input, shape index: {}]
  %s12 = inlined_call_operand.hbm [shape: f32[2,4], index: 12, kind: output, shape index: {}]
  %s13 = sld [smem:[#allocation0]]
  $region90: #{_lambda_.1} parent=0
    _
  %s15 = ssub.s32 1, %s13
  %s16 = scalar_select 0, %s15, %s13
  $region1: #{_lambda_.1} parent=0
    #allocation4 [shape = 'u8[262144]{0}', space=vmem, size = 0x40000, scoped, tag = 'input window, operand 5, single buffered']
    #allocation5 [shape = 's32[1]{0}', space=sflag, size = 0x4, scoped, tag = 'scoped memory for _lambda_.1']
    #allocation6 [shape = 's32[1]{0}', space=sflag, size = 0x4, scoped, tag = 'scoped memory for _lambda_.1']
    #allocation7 [shape = 'u8[2048]{0}', space=vmem, size = 0x800, scoped, tag = 'input window, operand 7, single buffered']
    #allocation8 [shape = 's32[1]{0}', space=sflag, size = 0x4, scoped, tag = 'scoped memory for _lambda_.1']
    #allocation9 [shape = 'u8[262144]{0}', space=vmem, size = 0x40000, scoped, tag = 'input window, operand 8, single buffered']
    #allocation10 [shape = 'u8[512]{0}', space=vmem, size = 0x400, scoped, tag = 'input window, operand 9, single buffered']
    #allocation11 [shape = 's32[1]{0}', space=sflag, size = 0x4, scoped, tag = 'scoped memory for _lambda_.1']
    #allocation12 [shape = 'u8[512]{0}', space=vmem, size = 0x400, scoped, tag = 'input window, operand 11, single buffered']
    #allocation13 [shape = 'u8[1024]{0}', space=vmem, size = 0x400, scoped, tag = 'output window, operand 0, single buffered']
    %17 = vsyncpa [#allocation5], 0
    %18 = vsyncpa [#allocation8], 0
    %19 = vsyncpa [#allocation11], 0
    %20 = vsyncpa [#allocation6], 0
    // Predicated region
    $region2: #{_lambda_.1} parent=1 // pred_check
      _
    $region3: #{_lambda_.1} parent=1 // pred_check_branch
      %22 = sbr.rel (0) target = $region5
    $region4: #{_lambda_.1} parent=1 // pred_region
      _
    $region5: #{_lambda_.1} parent=1 // pred_fallthru
      _
    // Predicated region
    $region6: #{_lambda_.1} parent=1 // pred_check
      _
    $region7: #{_lambda_.1} parent=1 // pred_check_branch
      %24 = sbr.rel (0) target = $region9
    $region8: #{_lambda_.1} parent=1 // pred_region
      _
    $region9: #{_lambda_.1} parent=1 // pred_fallthru
      _
    // Predicated region
    $region10: #{_lambda_.1} parent=1 // pred_check
      _
    $region11: #{_lambda_.1} parent=1 // pred_check_branch
      %26 = sbr.rel (0) target = $region13
    $region12: #{_lambda_.1} parent=1 // pred_region
      _
    $region13: #{_lambda_.1} parent=1 // pred_fallthru
      _
    // Predicated region
    $region14: #{_lambda_.1} parent=1 // pred_check
      _
    $region15: #{_lambda_.1} parent=1 // pred_check_branch
      %28 = sbr.rel (0) target = $region17
    $region16: #{_lambda_.1} parent=1 // pred_region
      _
    $region17: #{_lambda_.1} parent=1 // pred_fallthru
      _
    // Predicated region
    $region18: #{_lambda_.1} parent=1 // pred_check
      _
    $region19: #{_lambda_.1} parent=1 // pred_check_branch
      %30 = sbr.rel (0) target = $region21
    $region20: #{_lambda_.1} parent=1 // pred_region
      _
    $region21: #{_lambda_.1} parent=1 // pred_fallthru
      _
    // Predicated region
    $region22: #{_lambda_.1} parent=1 // pred_check
      _
    $region23: #{_lambda_.1} parent=1 // pred_check_branch
      %32 = sbr.rel (0) target = $region25
    $region24: #{_lambda_.1} parent=1 // pred_region
      %34 = vsyncadd [#allocation5], 0
      %s35 = sshll.u32 %s5, 4
      %s36 = int_to_ptr.hbm [resolvable:$true] %s35
      %s37 = sshll.u32 [#allocation4], 4
      %s38 = int_to_ptr.vmem [resolvable:$true] %s37
      %43 = dma.hbm_to_vmem [thread:$0]  %s36, 8192, %s38, [#allocation5], 256, 256, 16
    $region25: #{_lambda_.1} parent=1 // pred_fallthru
      _
    // Predicated region
    $region26: #{_lambda_.1} parent=1 // pred_check
      _
    $region27: #{_lambda_.1} parent=1 // pred_check_branch
      %45 = sbr.rel (0) target = $region29
    $region28: #{_lambda_.1} parent=1 // pred_region
      %47 = vsyncadd [#allocation8], 0
      %s49 = sshll.u32 %s7, 4
      %s50 = int_to_ptr.hbm [resolvable:$true] %s49
      %s51 = sshll.u32 [#allocation7], 4
      %s52 = int_to_ptr.vmem [resolvable:$true] %s51
      %54 = dma.hbm_to_vmem [thread:$0]  %s50, 64, %s52, [#allocation8]
    $region29: #{_lambda_.1} parent=1 // pred_fallthru
      _
    // Predicated region
    $region30: #{_lambda_.1} parent=1 // pred_check
      _
    $region31: #{_lambda_.1} parent=1 // pred_check_branch
      %56 = sbr.rel (0) target = $region33
    $region32: #{_lambda_.1} parent=1 // pred_region
      %58 = vsyncadd [#allocation8], 0
      %s59 = sshll.u32 %s8, 4
      %s60 = int_to_ptr.hbm [resolvable:$true] %s59
      %s61 = sshll.u32 [#allocation9], 4
      %s62 = int_to_ptr.vmem [resolvable:$true] %s61
      %67 = dma.hbm_to_vmem [thread:$0]  %s60, 8192, %s62, [#allocation8], 128, 128, 8
    $region33: #{_lambda_.1} parent=1 // pred_fallthru
      _
    // Predicated region
    $region34: #{_lambda_.1} parent=1 // pred_check
      _
    $region35: #{_lambda_.1} parent=1 // pred_check_branch
      %69 = sbr.rel (0) target = $region37
    $region36: #{_lambda_.1} parent=1 // pred_region
      %71 = vsyncadd [#allocation11], 0
      %s73 = sshll.u32 %s9, 4
      %s74 = int_to_ptr.hbm [resolvable:$true] %s73
      %s75 = sshll.u32 [#allocation10], 4
      %s76 = int_to_ptr.vmem [resolvable:$true] %s75
      %78 = dma.hbm_to_vmem [thread:$0]  %s74, 16, %s76, [#allocation11]
    $region37: #{_lambda_.1} parent=1 // pred_fallthru
      _
    // Predicated region
    $region38: #{_lambda_.1} parent=1 // pred_check
      _
    $region39: #{_lambda_.1} parent=1 // pred_check_branch
      %80 = sbr.rel (0) target = $region41
    $region40: #{_lambda_.1} parent=1 // pred_region
      _
    $region41: #{_lambda_.1} parent=1 // pred_fallthru
      _
    // Predicated region
    $region42: #{_lambda_.1} parent=1 // pred_check
      _
    $region43: #{_lambda_.1} parent=1 // pred_check_branch
      %82 = sbr.rel (0) target = $region45
    $region44: #{_lambda_.1} parent=1 // pred_region
      %84 = vsyncadd [#allocation11], 0
      %s86 = sshll.u32 %s11, 4
      %s87 = int_to_ptr.hbm [resolvable:$true] %s86
      %s88 = sshll.u32 [#allocation12], 4
      %s89 = int_to_ptr.vmem [resolvable:$true] %s88
      %91 = dma.hbm_to_vmem [thread:$0]  %s87, 16, %s89, [#allocation11]
    $region45: #{_lambda_.1} parent=1 // pred_fallthru
      _
    // Predicated region
    $region46: #{_lambda_.1} parent=1 // pred_check
      _
    $region47: #{_lambda_.1} parent=1 // pred_check_branch
      %93 = sbr.rel (0) target = $region49
    $region48: #{_lambda_.1} parent=1 // pred_region
      %95 = dma.done [#allocation5], 8192
    $region49: #{_lambda_.1} parent=1 // pred_fallthru
      _
    // Predicated region
    $region50: #{_lambda_.1} parent=1 // pred_check
      _
    $region51: #{_lambda_.1} parent=1 // pred_check_branch
      %97 = sbr.rel (0) target = $region53
    $region52: #{_lambda_.1} parent=1 // pred_region
      %99 = dma.done [#allocation8], 64
    $region53: #{_lambda_.1} parent=1 // pred_fallthru
      _
    // Predicated region
    $region54: #{_lambda_.1} parent=1 // pred_check
      _
    $region55: #{_lambda_.1} parent=1 // pred_check_branch
      %101 = sbr.rel (0) target = $region57
    $region56: #{_lambda_.1} parent=1 // pred_region
      %103 = dma.done [#allocation8], 8192
    $region57: #{_lambda_.1} parent=1 // pred_fallthru
      _
    // Predicated region
    $region58: #{_lambda_.1} parent=1 // pred_check
      _
    $region59: #{_lambda_.1} parent=1 // pred_check_branch
      %105 = sbr.rel (0) target = $region61
    $region60: #{_lambda_.1} parent=1 // pred_region
      %107 = dma.done [#allocation11], 16
    $region61: #{_lambda_.1} parent=1 // pred_fallthru
      _
    // Predicated region
    $region62: #{_lambda_.1} parent=1 // pred_check
      _
    $region63: #{_lambda_.1} parent=1 // pred_check_branch
      %109 = sbr.rel (0) target = $region65
    $region64: #{_lambda_.1} parent=1 // pred_region
      %111 = dma.done [#allocation11], 16
    $region65: #{_lambda_.1} parent=1 // pred_fallthru
      _
    // Predicated region
    $region66: #{_lambda_.1} parent=1 // pred_check
      _
    $region67: #{_lambda_.1} parent=1 // pred_check_branch
      %114 = sbr.rel target = $region69
    $region68: #{_lambda_.1} parent=1 // pred_region
      %115 = sst [smem:[#allocation16]] [#allocation15]
      %116 = sst [smem:[#allocation17]] [#allocation14]
    $region69: #{_lambda_.1} parent=1 // pred_fallthru
      _
    %118 = shalt.err (0)
    %s120 = sshll.u32 %s6, 4
    %s121 = int_to_ptr.hbm [resolvable:$true] %s120
    %s122 = sshll.u32 [#allocation2], 4
    %s123 = int_to_ptr.vmem [resolvable:$true] %s122
    %125 = dma.hbm_to_vmem [thread:$0]  %s121, 36864, %s123, [#allocation3]
    %s126 = scalar_lea.hbm %s6, 2304
    %s127 = scalar_lea.vmem [#allocation2], 2304
    %s128 = scalar_lea.sflag [#allocation3], 1
    // Predicated region
    $region70: #{_lambda_.1} parent=1 // pred_check
      _
    $region71: #{_lambda_.1} parent=1 // pred_check_branch
      %130 = sbr.rel target = $region73
    $region72: #{_lambda_.1} parent=1 // pred_region
      %131 = sst [smem:[#allocation16]] [#allocation19]
      %132 = sst [smem:[#allocation17]] [#allocation18]
    $region73: #{_lambda_.1} parent=1 // pred_fallthru
      _
    %134 = shalt.err (0)
    %s136 = sshll.u32 %s126, 4
    %s137 = int_to_ptr.hbm [resolvable:$true] %s136
    %s138 = sshll.u32 %s127, 4
    %s139 = int_to_ptr.vmem [resolvable:$true] %s138
    %141 = dma.hbm_to_vmem [thread:$0]  %s137, 36864, %s139, %s128
    %s142 = scalar_lea.hbm %s6, 4608
    %s143 = scalar_lea.vmem [#allocation2], 4608
    %s144 = scalar_lea.sflag [#allocation3], 2
    // Predicated region
    $region74: #{_lambda_.1} parent=1 // pred_check
      _
    $region75: #{_lambda_.1} parent=1 // pred_check_branch
      %146 = sbr.rel target = $region77
    $region76: #{_lambda_.1} parent=1 // pred_region
      %147 = sst [smem:[#allocation16]] [#allocation21]
      %148 = sst [smem:[#allocation17]] [#allocation20]
    $region77: #{_lambda_.1} parent=1 // pred_fallthru
      _
    %150 = shalt.err (0)
    %s152 = sshll.u32 %s142, 4
    %s153 = int_to_ptr.hbm [resolvable:$true] %s152
    %s154 = sshll.u32 %s143, 4
    %s155 = int_to_ptr.vmem [resolvable:$true] %s154
    %157 = dma.hbm_to_vmem [thread:$0]  %s153, 36864, %s155, %s144
    %s158 = scalar_lea.hbm %s6, 6912
    %s159 = scalar_lea.vmem [#allocation2], 6912
    %s160 = scalar_lea.sflag [#allocation3], 3
    // Predicated region
    $region78: #{_lambda_.1} parent=1 // pred_check
      _
    $region79: #{_lambda_.1} parent=1 // pred_check_branch
      %162 = sbr.rel target = $region81
    $region80: #{_lambda_.1} parent=1 // pred_region
      %163 = sst [smem:[#allocation16]] [#allocation23]
      %164 = sst [smem:[#allocation17]] [#allocation22]
    $region81: #{_lambda_.1} parent=1 // pred_fallthru
      _
    %166 = shalt.err (0)
    %s168 = sshll.u32 %s158, 4
    %s169 = int_to_ptr.hbm [resolvable:$true] %s168
    %s170 = sshll.u32 %s159, 4
    %s171 = int_to_ptr.vmem [resolvable:$true] %s170
    %173 = dma.hbm_to_vmem [thread:$0]  %s169, 36864, %s171, %s160
    %v174 = vld [vmem:[%s0] sm:$0x3f]
    %v176 = vperm.slane %v174, 0
    %v177 = vperm.slane %v174, 1
    %v178 = vperm.slane %v174, 2
    %v179 = vperm.slane %v174, 3
    %v180 = vperm.slane %v174, 4
    %v186 = vperm.slane %v174, 5
    %187 = vrot.lane.b32.xlu0 %v176, 127
    %v188 = vpop.permute.xlu0 %187
    %189 = vrot.lane.b32.xlu0 %v177, 127
    %v190 = vpop.permute.xlu0 %189
    %191 = vrot.lane.b32.xlu0 %v178, 127
    %v192 = vpop.permute.xlu0 %191
    %193 = vrot.lane.b32.xlu0 %v179, 127
    %v194 = vpop.permute.xlu0 %193
    %195 = vrot.lane.b32.xlu0 %v180, 127
    %v196 = vpop.permute.xlu0 %195
    %197 = vrot.lane.b32.xlu0 %v186, 127
    %v198 = vpop.permute.xlu0 %197
    %vm199 = vcmask 1039360
    %v200 = vsel %vm199, %v188, %v190
    %v201 = vsel %vm199, %v190, %v192
    %v202 = vsel %vm199, %v192, %v194
    %v203 = vsel %vm199, %v194, %v196
    %v204 = vsel %vm199, %v196, %v198
    %210 = vrot.lane.b32.xlu0 %v176, 126
    %v211 = vpop.permute.xlu0 %210
    %212 = vrot.lane.b32.xlu0 %v177, 126
    %v213 = vpop.permute.xlu0 %212
    %214 = vrot.lane.b32.xlu0 %v178, 126
    %v215 = vpop.permute.xlu0 %214
    %216 = vrot.lane.b32.xlu0 %v179, 126
    %v217 = vpop.permute.xlu0 %216
    %218 = vrot.lane.b32.xlu0 %v180, 126
    %v219 = vpop.permute.xlu0 %218
    %220 = vrot.lane.b32.xlu0 %v186, 126
    %v221 = vpop.permute.xlu0 %220
    %vm222 = vcmask 1031168
    %v223 = vsel %vm222, %v211, %v213
    %v224 = vsel %vm222, %v213, %v215
    %v225 = vsel %vm222, %v215, %v217
    %v226 = vsel %vm222, %v217, %v219
    %v227 = vsel %vm222, %v219, %v221
    %233 = vrot.lane.b32.xlu0 %v176, 112
    %v234 = vpop.permute.xlu0 %233
    %235 = vrot.lane.b32.xlu0 %v177, 112
    %v236 = vpop.permute.xlu0 %235
    %237 = vrot.lane.b32.xlu0 %v178, 112
    %v238 = vpop.permute.xlu0 %237
    %239 = vrot.lane.b32.xlu0 %v179, 112
    %v240 = vpop.permute.xlu0 %239
    %241 = vrot.lane.b32.xlu0 %v180, 112
    %v242 = vpop.permute.xlu0 %241
    %243 = vrot.lane.b32.xlu0 %v186, 112
    %v244 = vpop.permute.xlu0 %243
    %vm245 = vcmask 916480
    %v246 = vsel %vm245, %v234, %v236
    %v247 = vsel %vm245, %v236, %v238
    %v248 = vsel %vm245, %v238, %v240
    %v249 = vsel %vm245, %v240, %v242
    %v250 = vsel %vm245, %v242, %v244
    %256 = vrot.lane.b32.xlu0 %v176, 111
    %v257 = vpop.permute.xlu0 %256
    %258 = vrot.lane.b32.xlu0 %v177, 111
    %v259 = vpop.permute.xlu0 %258
    %260 = vrot.lane.b32.xlu0 %v178, 111
    %v261 = vpop.permute.xlu0 %260
    %262 = vrot.lane.b32.xlu0 %v179, 111
    %v263 = vpop.permute.xlu0 %262
    %264 = vrot.lane.b32.xlu0 %v180, 111
    %v265 = vpop.permute.xlu0 %264
    %266 = vrot.lane.b32.xlu0 %v186, 111
    %v267 = vpop.permute.xlu0 %266
    %vm268 = vcmask 908288
    %v269 = vsel %vm268, %v257, %v259
    %v270 = vsel %vm268, %v259, %v261
    %v271 = vsel %vm268, %v261, %v263
    %v272 = vsel %vm268, %v263, %v265
    %v273 = vsel %vm268, %v265, %v267
    %279 = vrot.lane.b32.xlu0 %v176, 110
    %v280 = vpop.permute.xlu0 %279
    %281 = vrot.lane.b32.xlu0 %v177, 110
    %v282 = vpop.permute.xlu0 %281
    %283 = vrot.lane.b32.xlu0 %v178, 110
    %v284 = vpop.permute.xlu0 %283
    %285 = vrot.lane.b32.xlu0 %v179, 110
    %v286 = vpop.permute.xlu0 %285
    %287 = vrot.lane.b32.xlu0 %v180, 110
    %v288 = vpop.permute.xlu0 %287
    %289 = vrot.lane.b32.xlu0 %v186, 110
    %v290 = vpop.permute.xlu0 %289
    %vm291 = vcmask 900096
    %v292 = vsel %vm291, %v280, %v282
    %v293 = vsel %vm291, %v282, %v284
    %v294 = vsel %vm291, %v284, %v286
    %v295 = vsel %vm291, %v286, %v288
    %v296 = vsel %vm291, %v288, %v290
    %302 = vrot.lane.b32.xlu0 %v176, 96
    %v303 = vpop.permute.xlu0 %302
    %304 = vrot.lane.b32.xlu0 %v177, 96
    %v305 = vpop.permute.xlu0 %304
    %306 = vrot.lane.b32.xlu0 %v178, 96
    %v307 = vpop.permute.xlu0 %306
    %308 = vrot.lane.b32.xlu0 %v179, 96
    %v309 = vpop.permute.xlu0 %308
    %310 = vrot.lane.b32.xlu0 %v180, 96
    %v311 = vpop.permute.xlu0 %310
    %312 = vrot.lane.b32.xlu0 %v186, 96
    %v313 = vpop.permute.xlu0 %312
    %vm314 = vcmask 785408
    %v315 = vsel %vm314, %v303, %v305
    %v316 = vsel %vm314, %v305, %v307
    %v317 = vsel %vm314, %v307, %v309
    %v318 = vsel %vm314, %v309, %v311
    %v319 = vsel %vm314, %v311, %v313
    %325 = vrot.lane.b32.xlu0 %v176, 95
    %v326 = vpop.permute.xlu0 %325
    %327 = vrot.lane.b32.xlu0 %v177, 95
    %v328 = vpop.permute.xlu0 %327
    %329 = vrot.lane.b32.xlu0 %v178, 95
    %v330 = vpop.permute.xlu0 %329
    %331 = vrot.lane.b32.xlu0 %v179, 95
    %v332 = vpop.permute.xlu0 %331
    %333 = vrot.lane.b32.xlu0 %v180, 95
    %v334 = vpop.permute.xlu0 %333
    %335 = vrot.lane.b32.xlu0 %v186, 95
    %v336 = vpop.permute.xlu0 %335
    %vm337 = vcmask 777216
    %v338 = vsel %vm337, %v326, %v328
    %v339 = vsel %vm337, %v328, %v330
    %v340 = vsel %vm337, %v330, %v332
    %v341 = vsel %vm337, %v332, %v334
    %v342 = vsel %vm337, %v334, %v336
    %348 = vrot.lane.b32.xlu0 %v176, 94
    %v349 = vpop.permute.xlu0 %348
    %350 = vrot.lane.b32.xlu0 %v177, 94
    %v351 = vpop.permute.xlu0 %350
    %352 = vrot.lane.b32.xlu0 %v178, 94
    %v353 = vpop.permute.xlu0 %352
    %354 = vrot.lane.b32.xlu0 %v179, 94
    %v355 = vpop.permute.xlu0 %354
    %356 = vrot.lane.b32.xlu0 %v180, 94
    %v357 = vpop.permute.xlu0 %356
    %358 = vrot.lane.b32.xlu0 %v186, 94
    %v359 = vpop.permute.xlu0 %358
    %vm360 = vcmask 769024
    %v361 = vsel %vm360, %v349, %v351
    %v362 = vsel %vm360, %v351, %v353
    %v363 = vsel %vm360, %v353, %v355
    %v364 = vsel %vm360, %v355, %v357
    %v365 = vsel %vm360, %v357, %v359
    %vm366 = vcmask 1040384
    %v367 = vsel %vm366, %v176, %v200
    %v368 = vsel %vm366, %v177, %v201
    %v369 = vsel %vm366, %v178, %v202
    %v370 = vsel %vm366, %v179, %v203
    %v371 = vsel %vm366, %v180, %v204
    %vm372 = vcmask 1041408
    %v373 = vsel %vm372, %v367, %v223
    %v374 = vsel %vm372, %v368, %v224
    %v375 = vsel %vm372, %v369, %v225
    %v376 = vsel %vm372, %v370, %v226
    %v377 = vsel %vm372, %v371, %v227
    %vm378 = vcmask 1042432
    %v379 = vsel %vm378, %v373, %v246
    %v380 = vsel %vm378, %v374, %v247
    %v381 = vsel %vm378, %v375, %v248
    %v382 = vsel %vm378, %v376, %v249
    %v383 = vsel %vm378, %v377, %v250
    %vm384 = vcmask 1043456
    %v385 = vsel %vm384, %v379, %v269
    %v386 = vsel %vm384, %v380, %v270
    %v387 = vsel %vm384, %v381, %v271
    %v388 = vsel %vm384, %v382, %v272
    %v389 = vsel %vm384, %v383, %v273
    %vm390 = vcmask 1044480
    %v391 = vsel %vm390, %v385, %v292
    %v392 = vsel %vm390, %v386, %v293
    %v393 = vsel %vm390, %v387, %v294
    %v394 = vsel %vm390, %v388, %v295
    %v395 = vsel %vm390, %v389, %v296
    %vm396 = vcmask 1045504
    %v397 = vsel %vm396, %v391, %v315
    %v398 = vsel %vm396, %v392, %v316
    %v399 = vsel %vm396, %v393, %v317
    %v400 = vsel %vm396, %v394, %v318
    %v401 = vsel %vm396, %v395, %v319
    %vm402 = vcmask 1046528
    %v403 = vsel %vm402, %v397, %v338
    %v404 = vsel %vm402, %v398, %v339
    %v405 = vsel %vm402, %v399, %v340
    %v406 = vsel %vm402, %v400, %v341
    %v407 = vsel %vm402, %v401, %v342
    %v408 = vld [vmem:[%s1] sm:$0xff]
    %v409 = vld [vmem:[%s1 + $0x8] sm:$0xff]
    %v410 = vld [vmem:[%s2] sm:$0xff]
    %v411 = vld [vmem:[%s2 + $0x8] sm:$0xff]
    %413 = vset.pattern.permute.xlu0 0
    %414 = vperm.xlu0 %413, %v410
    %v415 = vpop.permute.xlu0 %414
    %418 = vset.pattern.permute.xlu0 0
    %419 = vperm.xlu0 %418, %v411
    %v420 = vpop.permute.xlu0 %419
    %vm422 = vcmask 72704
    %v424 = vsel %vm422, %v408, 0
    %v427 = vsel %vm422, %v409, 0
    %v429 = vsel %vm366, %v361, 0
    %v431 = vsel %vm366, %v362, 0
    %v433 = vsel %vm366, %v363, 0
    %v435 = vsel %vm366, %v364, 0
    %v437 = vsel %vm366, %v365, 0
    %439 = vmatpush.msra.mxu0 0.0
    %440 = vmatpush.msra.mxu0 0.0
    %441 = vmatpush.msra.mxu0 0.0
    %442 = vmatpush.msra.mxu0 0.0
    %443 = vmatpush.msra.mxu0 0.0
    %444 = vmatpush.msra.mxu0 0.0
    %445 = vmatpush.msra.mxu0 0.0
    %446 = vmatpush.msra.mxu0 0.0
    %447 = vmatpush.msra.mxu0 0.0
    %448 = vmatpush.msra.mxu0 0.0
    %449 = vmatpush.msra.mxu0 0.0
    %450 = vmatpush.msra.mxu0 0.0
    %451 = vmatpush.msra.mxu0 0.0
    %452 = vmatpush.msra.mxu0 0.0
    %453 = vmatpush.msra.mxu0 %v429
    %454 = vmatpush.msra.mxu0 %v403
    %455 = vmatmul.f32.gmra.mxu0 %v424
    %v456 = vpop.f32.mrf.mxu0
    %v457 = vadd.f32 %v415, %v456
    %458 = vmatmul.f32.gmra.mxu0 %v427
    %v459 = vpop.f32.mrf.mxu0
    %v460 = vadd.f32 %v420, %v459
    %461 = vdwg.mxu0
    %462 = vmatpush.msra.mxu0 0.0
    %463 = vmatpush.msra.mxu0 0.0
    %464 = vmatpush.msra.mxu0 0.0
    %465 = vmatpush.msra.mxu0 0.0
    %466 = vmatpush.msra.mxu0 0.0
    %467 = vmatpush.msra.mxu0 0.0
    %468 = vmatpush.msra.mxu0 0.0
    %469 = vmatpush.msra.mxu0 0.0
    %470 = vmatpush.msra.mxu0 0.0
    %471 = vmatpush.msra.mxu0 0.0
    %472 = vmatpush.msra.mxu0 0.0
    %473 = vmatpush.msra.mxu0 0.0
    %474 = vmatpush.msra.mxu0 0.0
    %475 = vmatpush.msra.mxu0 0.0
    %476 = vmatpush.msra.mxu0 %v431
    %477 = vmatpush.msra.mxu0 %v404
    %478 = vmatmul.f32.gmra.mxu0 %v424
    %v479 = vpop.f32.mrf.mxu0
    %v480 = vadd.f32 %v415, %v479
    %481 = vmatmul.f32.gmra.mxu0 %v427
    %v482 = vpop.f32.mrf.mxu0
    %v483 = vadd.f32 %v420, %v482
    %484 = vdwg.mxu0
    %485 = vmatpush.msra.mxu0 0.0
    %486 = vmatpush.msra.mxu0 0.0
    %487 = vmatpush.msra.mxu0 0.0
    %488 = vmatpush.msra.mxu0 0.0
    %489 = vmatpush.msra.mxu0 0.0
    %490 = vmatpush.msra.mxu0 0.0
    %491 = vmatpush.msra.mxu0 0.0
    %492 = vmatpush.msra.mxu0 0.0
    %493 = vmatpush.msra.mxu0 0.0
    %494 = vmatpush.msra.mxu0 0.0
    %495 = vmatpush.msra.mxu0 0.0
    %496 = vmatpush.msra.mxu0 0.0
    %497 = vmatpush.msra.mxu0 0.0
    %498 = vmatpush.msra.mxu0 0.0
    %499 = vmatpush.msra.mxu0 %v433
    %500 = vmatpush.msra.mxu0 %v405
    %501 = vmatmul.f32.gmra.mxu0 %v424
    %v502 = vpop.f32.mrf.mxu0
    %v503 = vadd.f32 %v415, %v502
    %504 = vmatmul.f32.gmra.mxu0 %v427
    %v505 = vpop.f32.mrf.mxu0
    %v506 = vadd.f32 %v420, %v505
    %507 = vdwg.mxu0
    %508 = vmatpush.msra.mxu0 0.0
    %509 = vmatpush.msra.mxu0 0.0
    %510 = vmatpush.msra.mxu0 0.0
    %511 = vmatpush.msra.mxu0 0.0
    %512 = vmatpush.msra.mxu0 0.0
    %513 = vmatpush.msra.mxu0 0.0
    %514 = vmatpush.msra.mxu0 0.0
    %515 = vmatpush.msra.mxu0 0.0
    %516 = vmatpush.msra.mxu0 0.0
    %517 = vmatpush.msra.mxu0 0.0
    %518 = vmatpush.msra.mxu0 0.0
    %519 = vmatpush.msra.mxu0 0.0
    %520 = vmatpush.msra.mxu0 0.0
    %521 = vmatpush.msra.mxu0 0.0
    %522 = vmatpush.msra.mxu0 %v435
    %523 = vmatpush.msra.mxu0 %v406
    %524 = vmatmul.f32.gmra.mxu0 %v424
    %v525 = vpop.f32.mrf.mxu0
    %v526 = vadd.f32 %v415, %v525
    %527 = vmatmul.f32.gmra.mxu0 %v427
    %v528 = vpop.f32.mrf.mxu0
    %v529 = vadd.f32 %v420, %v528
    %530 = vdwg.mxu0
    %531 = vmatpush.msra.mxu0 0.0
    %532 = vmatpush.msra.mxu0 0.0
    %533 = vmatpush.msra.mxu0 0.0
    %534 = vmatpush.msra.mxu0 0.0
    %535 = vmatpush.msra.mxu0 0.0
    %536 = vmatpush.msra.mxu0 0.0
    %537 = vmatpush.msra.mxu0 0.0
    %538 = vmatpush.msra.mxu0 0.0
    %539 = vmatpush.msra.mxu0 0.0
    %540 = vmatpush.msra.mxu0 0.0
    %541 = vmatpush.msra.mxu0 0.0
    %542 = vmatpush.msra.mxu0 0.0
    %543 = vmatpush.msra.mxu0 0.0
    %544 = vmatpush.msra.mxu0 0.0
    %545 = vmatpush.msra.mxu0 %v437
    %546 = vmatpush.msra.mxu0 %v407
    %547 = vmatmul.f32.gmra.mxu0 %v424
    %v548 = vpop.f32.mrf.mxu0
    %v549 = vadd.f32 %v415, %v548
    %550 = vmatmul.f32.gmra.mxu0 %v427
    %v551 = vpop.f32.mrf.mxu0
    %v552 = vadd.f32 %v420, %v551
    %553 = vdwg.mxu0
    %v554 = vmax.f32 %v457, 0.0
    %v555 = vmax.f32 %v480, 0.0
    %v556 = vmax.f32 %v503, 0.0
    %v557 = vmax.f32 %v526, 0.0
    %v558 = vmax.f32 %v549, 0.0
    %v559 = vmax.f32 %v460, 0.0
    %v560 = vmax.f32 %v483, 0.0
    %v561 = vmax.f32 %v506, 0.0
    %v562 = vmax.f32 %v529, 0.0
    %v563 = vmax.f32 %v552, 0.0
    %574 = vrot.lane.b32.xlu0 %v554, 127
    %v575 = vpop.permute.xlu0 %574
    %576 = vrot.lane.b32.xlu0 %v555, 127
    %v577 = vpop.permute.xlu0 %576
    %578 = vrot.lane.b32.xlu0 %v556, 127
    %v579 = vpop.permute.xlu0 %578
    %580 = vrot.lane.b32.xlu0 %v557, 127
    %v581 = vpop.permute.xlu0 %580
    %582 = vrot.lane.b32.xlu0 %v558, 127
    %v583 = vpop.permute.xlu0 %582
    %584 = vrot.lane.b32.xlu0 %v559, 127
    %v585 = vpop.permute.xlu0 %584
    %586 = vrot.lane.b32.xlu0 %v560, 127
    %v587 = vpop.permute.xlu0 %586
    %588 = vrot.lane.b32.xlu0 %v561, 127
    %v589 = vpop.permute.xlu0 %588
    %590 = vrot.lane.b32.xlu0 %v562, 127
    %v591 = vpop.permute.xlu0 %590
    %592 = vrot.lane.b32.xlu0 %v563, 127
    %v593 = vpop.permute.xlu0 %592
    %v594 = vsel %vm199, %v575, %v577
    %v595 = vsel %vm199, %v577, %v579
    %v596 = vsel %vm199, %v579, %v581
    %v597 = vsel %vm199, %v581, %v583
    %v598 = vsel %vm199, %v585, %v587
    %v599 = vsel %vm199, %v587, %v589
    %v600 = vsel %vm199, %v589, %v591
    %v601 = vsel %vm199, %v591, %v593
    %610 = vrot.lane.b32.xlu0 %v554, 126
    %v611 = vpop.permute.xlu0 %610
    %612 = vrot.lane.b32.xlu0 %v555, 126
    %v613 = vpop.permute.xlu0 %612
    %614 = vrot.lane.b32.xlu0 %v556, 126
    %v615 = vpop.permute.xlu0 %614
    %616 = vrot.lane.b32.xlu0 %v557, 126
    %v617 = vpop.permute.xlu0 %616
    %618 = vrot.lane.b32.xlu0 %v558, 126
    %v619 = vpop.permute.xlu0 %618
    %620 = vrot.lane.b32.xlu0 %v559, 126
    %v621 = vpop.permute.xlu0 %620
    %622 = vrot.lane.b32.xlu0 %v560, 126
    %v623 = vpop.permute.xlu0 %622
    %624 = vrot.lane.b32.xlu0 %v561, 126
    %v625 = vpop.permute.xlu0 %624
    %626 = vrot.lane.b32.xlu0 %v562, 126
    %v627 = vpop.permute.xlu0 %626
    %628 = vrot.lane.b32.xlu0 %v563, 126
    %v629 = vpop.permute.xlu0 %628
    %v630 = vsel %vm222, %v611, %v613
    %v631 = vsel %vm222, %v613, %v615
    %v632 = vsel %vm222, %v615, %v617
    %v633 = vsel %vm222, %v617, %v619
    %v634 = vsel %vm222, %v621, %v623
    %v635 = vsel %vm222, %v623, %v625
    %v636 = vsel %vm222, %v625, %v627
    %v637 = vsel %vm222, %v627, %v629
    %646 = vrot.lane.b32.xlu0 %v554, 112
    %v647 = vpop.permute.xlu0 %646
    %648 = vrot.lane.b32.xlu0 %v555, 112
    %v649 = vpop.permute.xlu0 %648
    %650 = vrot.lane.b32.xlu0 %v556, 112
    %v651 = vpop.permute.xlu0 %650
    %652 = vrot.lane.b32.xlu0 %v557, 112
    %v653 = vpop.permute.xlu0 %652
    %654 = vrot.lane.b32.xlu0 %v558, 112
    %v655 = vpop.permute.xlu0 %654
    %656 = vrot.lane.b32.xlu0 %v559, 112
    %v657 = vpop.permute.xlu0 %656
    %658 = vrot.lane.b32.xlu0 %v560, 112
    %v659 = vpop.permute.xlu0 %658
    %660 = vrot.lane.b32.xlu0 %v561, 112
    %v661 = vpop.permute.xlu0 %660
    %662 = vrot.lane.b32.xlu0 %v562, 112
    %v663 = vpop.permute.xlu0 %662
    %664 = vrot.lane.b32.xlu0 %v563, 112
    %v665 = vpop.permute.xlu0 %664
    %v666 = vsel %vm245, %v647, %v649
    %v667 = vsel %vm245, %v649, %v651
    %v668 = vsel %vm245, %v651, %v653
    %v669 = vsel %vm245, %v653, %v655
    %v670 = vsel %vm245, %v657, %v659
    %v671 = vsel %vm245, %v659, %v661
    %v672 = vsel %vm245, %v661, %v663
    %v673 = vsel %vm245, %v663, %v665
    %682 = vrot.lane.b32.xlu0 %v554, 111
    %v683 = vpop.permute.xlu0 %682
    %684 = vrot.lane.b32.xlu0 %v555, 111
    %v685 = vpop.permute.xlu0 %684
    %686 = vrot.lane.b32.xlu0 %v556, 111
    %v687 = vpop.permute.xlu0 %686
    %688 = vrot.lane.b32.xlu0 %v557, 111
    %v689 = vpop.permute.xlu0 %688
    %690 = vrot.lane.b32.xlu0 %v558, 111
    %v691 = vpop.permute.xlu0 %690
    %692 = vrot.lane.b32.xlu0 %v559, 111
    %v693 = vpop.permute.xlu0 %692
    %694 = vrot.lane.b32.xlu0 %v560, 111
    %v695 = vpop.permute.xlu0 %694
    %696 = vrot.lane.b32.xlu0 %v561, 111
    %v697 = vpop.permute.xlu0 %696
    %698 = vrot.lane.b32.xlu0 %v562, 111
    %v699 = vpop.permute.xlu0 %698
    %700 = vrot.lane.b32.xlu0 %v563, 111
    %v701 = vpop.permute.xlu0 %700
    %v702 = vsel %vm268, %v683, %v685
    %v703 = vsel %vm268, %v685, %v687
    %v704 = vsel %vm268, %v687, %v689
    %v705 = vsel %vm268, %v689, %v691
    %v706 = vsel %vm268, %v693, %v695
    %v707 = vsel %vm268, %v695, %v697
    %v708 = vsel %vm268, %v697, %v699
    %v709 = vsel %vm268, %v699, %v701
    %718 = vrot.lane.b32.xlu0 %v554, 110
    %v719 = vpop.permute.xlu0 %718
    %720 = vrot.lane.b32.xlu0 %v555, 110
    %v721 = vpop.permute.xlu0 %720
    %722 = vrot.lane.b32.xlu0 %v556, 110
    %v723 = vpop.permute.xlu0 %722
    %724 = vrot.lane.b32.xlu0 %v557, 110
    %v725 = vpop.permute.xlu0 %724
    %726 = vrot.lane.b32.xlu0 %v558, 110
    %v727 = vpop.permute.xlu0 %726
    %728 = vrot.lane.b32.xlu0 %v559, 110
    %v729 = vpop.permute.xlu0 %728
    %730 = vrot.lane.b32.xlu0 %v560, 110
    %v731 = vpop.permute.xlu0 %730
    %732 = vrot.lane.b32.xlu0 %v561, 110
    %v733 = vpop.permute.xlu0 %732
    %734 = vrot.lane.b32.xlu0 %v562, 110
    %v735 = vpop.permute.xlu0 %734
    %736 = vrot.lane.b32.xlu0 %v563, 110
    %v737 = vpop.permute.xlu0 %736
    %v738 = vsel %vm291, %v719, %v721
    %v739 = vsel %vm291, %v721, %v723
    %v740 = vsel %vm291, %v723, %v725
    %v741 = vsel %vm291, %v725, %v727
    %v742 = vsel %vm291, %v729, %v731
    %v743 = vsel %vm291, %v731, %v733
    %v744 = vsel %vm291, %v733, %v735
    %v745 = vsel %vm291, %v735, %v737
    %754 = vrot.lane.b32.xlu0 %v554, 96
    %v755 = vpop.permute.xlu0 %754
    %756 = vrot.lane.b32.xlu0 %v555, 96
    %v757 = vpop.permute.xlu0 %756
    %758 = vrot.lane.b32.xlu0 %v556, 96
    %v759 = vpop.permute.xlu0 %758
    %760 = vrot.lane.b32.xlu0 %v557, 96
    %v761 = vpop.permute.xlu0 %760
    %762 = vrot.lane.b32.xlu0 %v558, 96
    %v763 = vpop.permute.xlu0 %762
    %764 = vrot.lane.b32.xlu0 %v559, 96
    %v765 = vpop.permute.xlu0 %764
    %766 = vrot.lane.b32.xlu0 %v560, 96
    %v767 = vpop.permute.xlu0 %766
    %768 = vrot.lane.b32.xlu0 %v561, 96
    %v769 = vpop.permute.xlu0 %768
    %770 = vrot.lane.b32.xlu0 %v562, 96
    %v771 = vpop.permute.xlu0 %770
    %772 = vrot.lane.b32.xlu0 %v563, 96
    %v773 = vpop.permute.xlu0 %772
    %v774 = vsel %vm314, %v755, %v757
    %v775 = vsel %vm314, %v757, %v759
    %v776 = vsel %vm314, %v759, %v761
    %v777 = vsel %vm314, %v761, %v763
    %v778 = vsel %vm314, %v765, %v767
    %v779 = vsel %vm314, %v767, %v769
    %v780 = vsel %vm314, %v769, %v771
    %v781 = vsel %vm314, %v771, %v773
    %790 = vrot.lane.b32.xlu0 %v554, 95
    %v791 = vpop.permute.xlu0 %790
    %792 = vrot.lane.b32.xlu0 %v555, 95
    %v793 = vpop.permute.xlu0 %792
    %794 = vrot.lane.b32.xlu0 %v556, 95
    %v795 = vpop.permute.xlu0 %794
    %796 = vrot.lane.b32.xlu0 %v557, 95
    %v797 = vpop.permute.xlu0 %796
    %798 = vrot.lane.b32.xlu0 %v558, 95
    %v799 = vpop.permute.xlu0 %798
    %800 = vrot.lane.b32.xlu0 %v559, 95
    %v801 = vpop.permute.xlu0 %800
    %802 = vrot.lane.b32.xlu0 %v560, 95
    %v803 = vpop.permute.xlu0 %802
    %804 = vrot.lane.b32.xlu0 %v561, 95
    %v805 = vpop.permute.xlu0 %804
    %806 = vrot.lane.b32.xlu0 %v562, 95
    %v807 = vpop.permute.xlu0 %806
    %808 = vrot.lane.b32.xlu0 %v563, 95
    %v809 = vpop.permute.xlu0 %808
    %v810 = vsel %vm337, %v791, %v793
    %v811 = vsel %vm337, %v793, %v795
    %v812 = vsel %vm337, %v795, %v797
    %v813 = vsel %vm337, %v797, %v799
    %v814 = vsel %vm337, %v801, %v803
    %v815 = vsel %vm337, %v803, %v805
    %v816 = vsel %vm337, %v805, %v807
    %v817 = vsel %vm337, %v807, %v809
    %826 = vrot.lane.b32.xlu0 %v554, 94
    %v827 = vpop.permute.xlu0 %826
    %828 = vrot.lane.b32.xlu0 %v555, 94
    %v829 = vpop.permute.xlu0 %828
    %830 = vrot.lane.b32.xlu0 %v556, 94
    %v831 = vpop.permute.xlu0 %830
    %832 = vrot.lane.b32.xlu0 %v557, 94
    %v833 = vpop.permute.xlu0 %832
    %834 = vrot.lane.b32.xlu0 %v558, 94
    %v835 = vpop.permute.xlu0 %834
    %836 = vrot.lane.b32.xlu0 %v559, 94
    %v837 = vpop.permute.xlu0 %836
    %838 = vrot.lane.b32.xlu0 %v560, 94
    %v839 = vpop.permute.xlu0 %838
    %840 = vrot.lane.b32.xlu0 %v561, 94
    %v841 = vpop.permute.xlu0 %840
    %842 = vrot.lane.b32.xlu0 %v562, 94
    %v843 = vpop.permute.xlu0 %842
    %844 = vrot.lane.b32.xlu0 %v563, 94
    %v845 = vpop.permute.xlu0 %844
    %v846 = vsel %vm360, %v827, %v829
    %v847 = vsel %vm360, %v829, %v831
    %v848 = vsel %vm360, %v831, %v833
    %v849 = vsel %vm360, %v833, %v835
    %v850 = vsel %vm360, %v837, %v839
    %v851 = vsel %vm360, %v839, %v841
    %v852 = vsel %vm360, %v841, %v843
    %v853 = vsel %vm360, %v843, %v845
    %v862 = vld [vmem:[%s3] sm:$0xff]
    %v863 = vld [vmem:[%s3 + $0x8] sm:$0xff]
    %v864 = vld [vmem:[%s3 + $0x10] sm:$0xff]
    %v865 = vld [vmem:[%s3 + $0x18] sm:$0xff]
    %v866 = vld [vmem:[%s3 + $0x20] sm:$0xff]
    %v867 = vld [vmem:[%s3 + $0x28] sm:$0xff]
    %v868 = vld [vmem:[%s3 + $0x30] sm:$0xff]
    %v869 = vld [vmem:[%s3 + $0x38] sm:$0xff]
    %v870 = vld [vmem:[%s4] sm:$0xff]
    %v871 = vld [vmem:[%s4 + $0x8] sm:$0xff]
    %v872 = vld [vmem:[%s4 + $0x10] sm:$0xff]
    %v873 = vld [vmem:[%s4 + $0x18] sm:$0xff]
    %875 = vset.pattern.permute.xlu0 0
    %876 = vperm.xlu0 %875, %v870
    %v877 = vpop.permute.xlu0 %876
    %880 = vset.pattern.permute.xlu0 0
    %881 = vperm.xlu0 %880, %v871
    %v882 = vpop.permute.xlu0 %881
    %885 = vset.pattern.permute.xlu0 0
    %886 = vperm.xlu0 %885, %v872
    %v887 = vpop.permute.xlu0 %886
    %890 = vset.pattern.permute.xlu0 0
    %891 = vperm.xlu0 %890, %v873
    %v892 = vpop.permute.xlu0 %891
    %vm894 = vcmask 130048
    %v896 = vsel %vm894, %v863, 0
    %v899 = vsel %vm894, %v865, 0
    %v902 = vsel %vm894, %v867, 0
    %v905 = vsel %vm894, %v869, 0
    %907 = vmatpush.msra.mxu0 %v814
    %908 = vmatpush.msra.mxu0 %v810
    %909 = vmatpush.msra.mxu0 %v778
    %910 = vmatpush.msra.mxu0 %v774
    %911 = vmatpush.msra.mxu0 %v742
    %912 = vmatpush.msra.mxu0 %v738
    %913 = vmatpush.msra.mxu0 %v706
    %914 = vmatpush.msra.mxu0 %v702
    %915 = vmatpush.msra.mxu0 %v670
    %916 = vmatpush.msra.mxu0 %v666
    %917 = vmatpush.msra.mxu0 %v634
    %918 = vmatpush.msra.mxu0 %v630
    %919 = vmatpush.msra.mxu0 %v598
    %920 = vmatpush.msra.mxu0 %v594
    %921 = vmatpush.msra.mxu0 %v559
    %922 = vmatpush.msra.mxu0 %v554
    %923 = vmatmul.f32.gmra.mxu0 %v862
    %v924 = vpop.f32.mrf.mxu0
    %v925 = vadd.f32 %v877, %v924
    %926 = vmatmul.f32.gmra.mxu0 %v864
    %v927 = vpop.f32.mrf.mxu0
    %v928 = vadd.f32 %v882, %v927
    %929 = vmatmul.f32.gmra.mxu0 %v866
    %v930 = vpop.f32.mrf.mxu0
    %v931 = vadd.f32 %v887, %v930
    %932 = vmatmul.f32.gmra.mxu0 %v868
    %v933 = vpop.f32.mrf.mxu0
    %v934 = vadd.f32 %v892, %v933
    %935 = vdwg.mxu0
    %936 = vmatpush.msra.mxu0 0.0
    %937 = vmatpush.msra.mxu0 0.0
    %938 = vmatpush.msra.mxu0 0.0
    %939 = vmatpush.msra.mxu0 0.0
    %940 = vmatpush.msra.mxu0 0.0
    %941 = vmatpush.msra.mxu0 0.0
    %942 = vmatpush.msra.mxu0 0.0
    %943 = vmatpush.msra.mxu0 0.0
    %944 = vmatpush.msra.mxu0 0.0
    %945 = vmatpush.msra.mxu0 0.0
    %946 = vmatpush.msra.mxu0 0.0
    %947 = vmatpush.msra.mxu0 0.0
    %948 = vmatpush.msra.mxu0 0.0
    %949 = vmatpush.msra.mxu0 0.0
    %950 = vmatpush.msra.mxu0 %v850
    %951 = vmatpush.msra.mxu0 %v846
    %952 = vmatmul.f32.gmra.mxu0 %v896
    %v953 = vpop.f32.mrf.mxu0
    %v954 = vadd.f32 %v925, %v953
    %955 = vmatmul.f32.gmra.mxu0 %v899
    %v956 = vpop.f32.mrf.mxu0
    %v957 = vadd.f32 %v928, %v956
    %958 = vmatmul.f32.gmra.mxu0 %v902
    %v959 = vpop.f32.mrf.mxu0
    %v960 = vadd.f32 %v931, %v959
    %961 = vmatmul.f32.gmra.mxu0 %v905
    %v962 = vpop.f32.mrf.mxu0
    %v963 = vadd.f32 %v934, %v962
    %964 = vdwg.mxu0
    %965 = vmatpush.msra.mxu0 %v815
    %966 = vmatpush.msra.mxu0 %v811
    %967 = vmatpush.msra.mxu0 %v779
    %968 = vmatpush.msra.mxu0 %v775
    %969 = vmatpush.msra.mxu0 %v743
    %970 = vmatpush.msra.mxu0 %v739
    %971 = vmatpush.msra.mxu0 %v707
    %972 = vmatpush.msra.mxu0 %v703
    %973 = vmatpush.msra.mxu0 %v671
    %974 = vmatpush.msra.mxu0 %v667
    %975 = vmatpush.msra.mxu0 %v635
    %976 = vmatpush.msra.mxu0 %v631
    %977 = vmatpush.msra.mxu0 %v599
    %978 = vmatpush.msra.mxu0 %v595
    %979 = vmatpush.msra.mxu0 %v560
    %980 = vmatpush.msra.mxu0 %v555
    %981 = vmatmul.f32.gmra.mxu0 %v862
    %v982 = vpop.f32.mrf.mxu0
    %v983 = vadd.f32 %v877, %v982
    %984 = vmatmul.f32.gmra.mxu0 %v864
    %v985 = vpop.f32.mrf.mxu0
    %v986 = vadd.f32 %v882, %v985
    %987 = vmatmul.f32.gmra.mxu0 %v866
    %v988 = vpop.f32.mrf.mxu0
    %v989 = vadd.f32 %v887, %v988
    %990 = vmatmul.f32.gmra.mxu0 %v868
    %v991 = vpop.f32.mrf.mxu0
    %v992 = vadd.f32 %v892, %v991
    %993 = vdwg.mxu0
    %994 = vmatpush.msra.mxu0 0.0
    %995 = vmatpush.msra.mxu0 0.0
    %996 = vmatpush.msra.mxu0 0.0
    %997 = vmatpush.msra.mxu0 0.0
    %998 = vmatpush.msra.mxu0 0.0
    %999 = vmatpush.msra.mxu0 0.0
    %1000 = vmatpush.msra.mxu0 0.0
    %1001 = vmatpush.msra.mxu0 0.0
    %1002 = vmatpush.msra.mxu0 0.0
    %1003 = vmatpush.msra.mxu0 0.0
    %1004 = vmatpush.msra.mxu0 0.0
    %1005 = vmatpush.msra.mxu0 0.0
    %1006 = vmatpush.msra.mxu0 0.0
    %1007 = vmatpush.msra.mxu0 0.0
    %1008 = vmatpush.msra.mxu0 %v851
    %1009 = vmatpush.msra.mxu0 %v847
    %1010 = vmatmul.f32.gmra.mxu0 %v896
    %v1011 = vpop.f32.mrf.mxu0
    %v1012 = vadd.f32 %v983, %v1011
    %1013 = vmatmul.f32.gmra.mxu0 %v899
    %v1014 = vpop.f32.mrf.mxu0
    %v1015 = vadd.f32 %v986, %v1014
    %1016 = vmatmul.f32.gmra.mxu0 %v902
    %v1017 = vpop.f32.mrf.mxu0
    %v1018 = vadd.f32 %v989, %v1017
    %1019 = vmatmul.f32.gmra.mxu0 %v905
    %v1020 = vpop.f32.mrf.mxu0
    %v1021 = vadd.f32 %v992, %v1020
    %1022 = vdwg.mxu0
    %1023 = vmatpush.msra.mxu0 %v816
    %1024 = vmatpush.msra.mxu0 %v812
    %1025 = vmatpush.msra.mxu0 %v780
    %1026 = vmatpush.msra.mxu0 %v776
    %1027 = vmatpush.msra.mxu0 %v744
    %1028 = vmatpush.msra.mxu0 %v740
    %1029 = vmatpush.msra.mxu0 %v708
    %1030 = vmatpush.msra.mxu0 %v704
    %1031 = vmatpush.msra.mxu0 %v672
    %1032 = vmatpush.msra.mxu0 %v668
    %1033 = vmatpush.msra.mxu0 %v636
    %1034 = vmatpush.msra.mxu0 %v632
    %1035 = vmatpush.msra.mxu0 %v600
    %1036 = vmatpush.msra.mxu0 %v596
    %1037 = vmatpush.msra.mxu0 %v561
    %1038 = vmatpush.msra.mxu0 %v556
    %1039 = vmatmul.f32.gmra.mxu0 %v862
    %v1040 = vpop.f32.mrf.mxu0
    %v1041 = vadd.f32 %v877, %v1040
    %1042 = vmatmul.f32.gmra.mxu0 %v864
    %v1043 = vpop.f32.mrf.mxu0
    %v1044 = vadd.f32 %v882, %v1043
    %1045 = vmatmul.f32.gmra.mxu0 %v866
    %v1046 = vpop.f32.mrf.mxu0
    %v1047 = vadd.f32 %v887, %v1046
    %1048 = vmatmul.f32.gmra.mxu0 %v868
    %v1049 = vpop.f32.mrf.mxu0
    %v1050 = vadd.f32 %v892, %v1049
    %1051 = vdwg.mxu0
    %1052 = vmatpush.msra.mxu0 0.0
    %1053 = vmatpush.msra.mxu0 0.0
    %1054 = vmatpush.msra.mxu0 0.0
    %1055 = vmatpush.msra.mxu0 0.0
    %1056 = vmatpush.msra.mxu0 0.0
    %1057 = vmatpush.msra.mxu0 0.0
    %1058 = vmatpush.msra.mxu0 0.0
    %1059 = vmatpush.msra.mxu0 0.0
    %1060 = vmatpush.msra.mxu0 0.0
    %1061 = vmatpush.msra.mxu0 0.0
    %1062 = vmatpush.msra.mxu0 0.0
    %1063 = vmatpush.msra.mxu0 0.0
    %1064 = vmatpush.msra.mxu0 0.0
    %1065 = vmatpush.msra.mxu0 0.0
    %1066 = vmatpush.msra.mxu0 %v852
    %1067 = vmatpush.msra.mxu0 %v848
    %1068 = vmatmul.f32.gmra.mxu0 %v896
    %v1069 = vpop.f32.mrf.mxu0
    %v1070 = vadd.f32 %v1041, %v1069
    %1071 = vmatmul.f32.gmra.mxu0 %v899
    %v1072 = vpop.f32.mrf.mxu0
    %v1073 = vadd.f32 %v1044, %v1072
    %1074 = vmatmul.f32.gmra.mxu0 %v902
    %v1075 = vpop.f32.mrf.mxu0
    %v1076 = vadd.f32 %v1047, %v1075
    %1077 = vmatmul.f32.gmra.mxu0 %v905
    %v1078 = vpop.f32.mrf.mxu0
    %v1079 = vadd.f32 %v1050, %v1078
    %1080 = vdwg.mxu0
    %1081 = vmatpush.msra.mxu0 %v817
    %1082 = vmatpush.msra.mxu0 %v813
    %1083 = vmatpush.msra.mxu0 %v781
    %1084 = vmatpush.msra.mxu0 %v777
    %1085 = vmatpush.msra.mxu0 %v745
    %1086 = vmatpush.msra.mxu0 %v741
    %1087 = vmatpush.msra.mxu0 %v709
    %1088 = vmatpush.msra.mxu0 %v705
    %1089 = vmatpush.msra.mxu0 %v673
    %1090 = vmatpush.msra.mxu0 %v669
    %1091 = vmatpush.msra.mxu0 %v637
    %1092 = vmatpush.msra.mxu0 %v633
    %1093 = vmatpush.msra.mxu0 %v601
    %1094 = vmatpush.msra.mxu0 %v597
    %1095 = vmatpush.msra.mxu0 %v562
    %1096 = vmatpush.msra.mxu0 %v557
    %1097 = vmatmul.f32.gmra.mxu0 %v862
    %v1098 = vpop.f32.mrf.mxu0
    %v1099 = vadd.f32 %v877, %v1098
    %1100 = vmatmul.f32.gmra.mxu0 %v864
    %v1101 = vpop.f32.mrf.mxu0
    %v1102 = vadd.f32 %v882, %v1101
    %1103 = vmatmul.f32.gmra.mxu0 %v866
    %v1104 = vpop.f32.mrf.mxu0
    %v1105 = vadd.f32 %v887, %v1104
    %1106 = vmatmul.f32.gmra.mxu0 %v868
    %v1107 = vpop.f32.mrf.mxu0
    %v1108 = vadd.f32 %v892, %v1107
    %1109 = vdwg.mxu0
    %1110 = vmatpush.msra.mxu0 0.0
    %1111 = vmatpush.msra.mxu0 0.0
    %1112 = vmatpush.msra.mxu0 0.0
    %1113 = vmatpush.msra.mxu0 0.0
    %1114 = vmatpush.msra.mxu0 0.0
    %1115 = vmatpush.msra.mxu0 0.0
    %1116 = vmatpush.msra.mxu0 0.0
    %1117 = vmatpush.msra.mxu0 0.0
    %1118 = vmatpush.msra.mxu0 0.0
    %1119 = vmatpush.msra.mxu0 0.0
    %1120 = vmatpush.msra.mxu0 0.0
    %1121 = vmatpush.msra.mxu0 0.0
    %1122 = vmatpush.msra.mxu0 0.0
    %1123 = vmatpush.msra.mxu0 0.0
    %1124 = vmatpush.msra.mxu0 %v853
    %1125 = vmatpush.msra.mxu0 %v849
    %1126 = vmatmul.f32.gmra.mxu0 %v896
    %v1127 = vpop.f32.mrf.mxu0
    %v1128 = vadd.f32 %v1099, %v1127
    %1129 = vmatmul.f32.gmra.mxu0 %v899
    %v1130 = vpop.f32.mrf.mxu0
    %v1131 = vadd.f32 %v1102, %v1130
    %1132 = vmatmul.f32.gmra.mxu0 %v902
    %v1133 = vpop.f32.mrf.mxu0
    %v1134 = vadd.f32 %v1105, %v1133
    %1135 = vmatmul.f32.gmra.mxu0 %v905
    %v1136 = vpop.f32.mrf.mxu0
    %v1137 = vadd.f32 %v1108, %v1136
    %1138 = vdwg.mxu0
    %v1139 = vmax.f32 %v954, 0.0
    %v1140 = vmax.f32 %v1012, 0.0
    %v1141 = vmax.f32 %v1070, 0.0
    %v1142 = vmax.f32 %v1128, 0.0
    %v1143 = vmax.f32 %v957, 0.0
    %v1144 = vmax.f32 %v1015, 0.0
    %v1145 = vmax.f32 %v1073, 0.0
    %v1146 = vmax.f32 %v1131, 0.0
    %v1147 = vmax.f32 %v960, 0.0
    %v1148 = vmax.f32 %v1018, 0.0
    %v1149 = vmax.f32 %v1076, 0.0
    %v1150 = vmax.f32 %v1134, 0.0
    %v1151 = vmax.f32 %v963, 0.0
    %v1152 = vmax.f32 %v1021, 0.0
    %v1153 = vmax.f32 %v1079, 0.0
    %v1154 = vmax.f32 %v1137, 0.0
    %v1155 = vld [vmem:[#allocation4] sm:$0xff]
    %v1156 = vld [vmem:[#allocation4 + $0x8] sm:$0xff]
    %v1157 = vld [vmem:[#allocation4 + $0x10] sm:$0xff]
    %v1158 = vld [vmem:[#allocation4 + $0x18] sm:$0xff]
    %v1159 = vld [vmem:[#allocation4 + $0x20] sm:$0xff]
    %v1160 = vld [vmem:[#allocation4 + $0x28] sm:$0xff]
    %v1161 = vld [vmem:[#allocation4 + $0x30] sm:$0xff]
    %v1162 = vld [vmem:[#allocation4 + $0x38] sm:$0xff]
    %v1163 = vld [vmem:[#allocation4 + $0x40] sm:$0xff]
    %v1164 = vld [vmem:[#allocation4 + $0x48] sm:$0xff]
    %v1165 = vld [vmem:[#allocation4 + $0x50] sm:$0xff]
    %v1166 = vld [vmem:[#allocation4 + $0x58] sm:$0xff]
    %v1167 = vld [vmem:[#allocation4 + $0x60] sm:$0xff]
    %v1168 = vld [vmem:[#allocation4 + $0x68] sm:$0xff]
    %v1169 = vld [vmem:[#allocation4 + $0x70] sm:$0xff]
    %v1170 = vld [vmem:[#allocation4 + $0x78] sm:$0xff]
    %v1171 = vld [vmem:[#allocation4 + $0x80] sm:$0xff]
    %v1172 = vld [vmem:[#allocation4 + $0x88] sm:$0xff]
    %v1173 = vld [vmem:[#allocation4 + $0x90] sm:$0xff]
    %v1174 = vld [vmem:[#allocation4 + $0x98] sm:$0xff]
    %v1175 = vld [vmem:[#allocation4 + $0xa0] sm:$0xff]
    %v1176 = vld [vmem:[#allocation4 + $0xa8] sm:$0xff]
    %v1177 = vld [vmem:[#allocation4 + $0xb0] sm:$0xff]
    %v1178 = vld [vmem:[#allocation4 + $0xb8] sm:$0xff]
    %v1179 = vld [vmem:[#allocation4 + $0xc0] sm:$0xff]
    %v1180 = vld [vmem:[#allocation4 + $0xc8] sm:$0xff]
    %v1181 = vld [vmem:[#allocation4 + $0xd0] sm:$0xff]
    %v1182 = vld [vmem:[#allocation4 + $0xd8] sm:$0xff]
    %v1183 = vld [vmem:[#allocation4 + $0xe0] sm:$0xff]
    %v1184 = vld [vmem:[#allocation4 + $0xe8] sm:$0xff]
    %v1185 = vld [vmem:[#allocation4 + $0xf0] sm:$0xff]
    %v1186 = vld [vmem:[#allocation4 + $0xf8] sm:$0xff]
    %v1187 = vld [vmem:[#allocation4 + $0x100] sm:$0xff]
    %v1188 = vld [vmem:[#allocation4 + $0x108] sm:$0xff]
    %v1189 = vld [vmem:[#allocation4 + $0x110] sm:$0xff]
    %v1190 = vld [vmem:[#allocation4 + $0x118] sm:$0xff]
    %v1191 = vld [vmem:[#allocation4 + $0x120] sm:$0xff]
    %v1192 = vld [vmem:[#allocation4 + $0x128] sm:$0xff]
    %v1193 = vld [vmem:[#allocation4 + $0x130] sm:$0xff]
    %v1194 = vld [vmem:[#allocation4 + $0x138] sm:$0xff]
    %v1195 = vld [vmem:[#allocation4 + $0x140] sm:$0xff]
    %v1196 = vld [vmem:[#allocation4 + $0x148] sm:$0xff]
    %v1197 = vld [vmem:[#allocation4 + $0x150] sm:$0xff]
    %v1198 = vld [vmem:[#allocation4 + $0x158] sm:$0xff]
    %v1199 = vld [vmem:[#allocation4 + $0x160] sm:$0xff]
    %v1200 = vld [vmem:[#allocation4 + $0x168] sm:$0xff]
    %v1201 = vld [vmem:[#allocation4 + $0x170] sm:$0xff]
    %v1202 = vld [vmem:[#allocation4 + $0x178] sm:$0xff]
    %v1203 = vld [vmem:[#allocation4 + $0x180] sm:$0xff]
    %v1204 = vld [vmem:[#allocation4 + $0x188] sm:$0xff]
    %v1205 = vld [vmem:[#allocation4 + $0x190] sm:$0xff]
    %v1206 = vld [vmem:[#allocation4 + $0x198] sm:$0xff]
    %v1207 = vld [vmem:[#allocation4 + $0x1a0] sm:$0xff]
    %v1208 = vld [vmem:[#allocation4 + $0x1a8] sm:$0xff]
    %v1209 = vld [vmem:[#allocation4 + $0x1b0] sm:$0xff]
    %v1210 = vld [vmem:[#allocation4 + $0x1b8] sm:$0xff]
    %v1211 = vld [vmem:[#allocation4 + $0x1c0] sm:$0xff]
    %v1212 = vld [vmem:[#allocation4 + $0x1c8] sm:$0xff]
    %v1213 = vld [vmem:[#allocation4 + $0x1d0] sm:$0xff]
    %v1214 = vld [vmem:[#allocation4 + $0x1d8] sm:$0xff]
    %v1215 = vld [vmem:[#allocation4 + $0x1e0] sm:$0xff]
    %v1216 = vld [vmem:[#allocation4 + $0x1e8] sm:$0xff]
    %v1217 = vld [vmem:[#allocation4 + $0x1f0] sm:$0xff]
    %v1218 = vld [vmem:[#allocation4 + $0x1f8] sm:$0xff]
    %1219 = vmatpush.msra.mxu0 %v1185
    %1220 = vmatpush.msra.mxu0 %v1183
    %1221 = vmatpush.msra.mxu0 %v1181
    %1222 = vmatpush.msra.mxu0 %v1179
    %1223 = vmatpush.msra.mxu0 %v1177
    %1224 = vmatpush.msra.mxu0 %v1175
    %1225 = vmatpush.msra.mxu0 %v1173
    %1226 = vmatpush.msra.mxu0 %v1171
    %1227 = vmatpush.msra.mxu0 %v1169
    %1228 = vmatpush.msra.mxu0 %v1167
    %1229 = vmatpush.msra.mxu0 %v1165
    %1230 = vmatpush.msra.mxu0 %v1163
    %1231 = vmatpush.msra.mxu0 %v1161
    %1232 = vmatpush.msra.mxu0 %v1159
    %1233 = vmatpush.msra.mxu0 %v1157
    %1234 = vmatpush.msra.mxu0 %v1155
    %1235 = vmatmul.f32.gmra.mxu0 %v1139
    %v1236 = vpop.f32.mrf.mxu0
    %v1237 = vadd.f32 0.0, %v1236
    %1238 = vmatmul.f32.gmra.mxu0 %v1143
    %v1239 = vpop.f32.mrf.mxu0
    %v1240 = vadd.f32 0.0, %v1239
    %1241 = vmatmul.f32.gmra.mxu0 %v1147
    %v1242 = vpop.f32.mrf.mxu0
    %v1243 = vadd.f32 0.0, %v1242
    %1244 = vmatmul.f32.gmra.mxu0 %v1151
    %v1245 = vpop.f32.mrf.mxu0
    %v1246 = vadd.f32 0.0, %v1245
    %1247 = vdwg.mxu0
    %1248 = vmatpush.msra.mxu0 %v1217
    %1249 = vmatpush.msra.mxu0 %v1215
    %1250 = vmatpush.msra.mxu0 %v1213
    %1251 = vmatpush.msra.mxu0 %v1211
    %1252 = vmatpush.msra.mxu0 %v1209
    %1253 = vmatpush.msra.mxu0 %v1207
    %1254 = vmatpush.msra.mxu0 %v1205
    %1255 = vmatpush.msra.mxu0 %v1203
    %1256 = vmatpush.msra.mxu0 %v1201
    %1257 = vmatpush.msra.mxu0 %v1199
    %1258 = vmatpush.msra.mxu0 %v1197
    %1259 = vmatpush.msra.mxu0 %v1195
    %1260 = vmatpush.msra.mxu0 %v1193
    %1261 = vmatpush.msra.mxu0 %v1191
    %1262 = vmatpush.msra.mxu0 %v1189
    %1263 = vmatpush.msra.mxu0 %v1187
    %1264 = vmatmul.f32.gmra.mxu0 %v1140
    %v1265 = vpop.f32.mrf.mxu0
    %v1266 = vadd.f32 %v1237, %v1265
    %1267 = vmatmul.f32.gmra.mxu0 %v1144
    %v1268 = vpop.f32.mrf.mxu0
    %v1269 = vadd.f32 %v1240, %v1268
    %1270 = vmatmul.f32.gmra.mxu0 %v1148
    %v1271 = vpop.f32.mrf.mxu0
    %v1272 = vadd.f32 %v1243, %v1271
    %1273 = vmatmul.f32.gmra.mxu0 %v1152
    %v1274 = vpop.f32.mrf.mxu0
    %v1275 = vadd.f32 %v1246, %v1274
    %1276 = vdwg.mxu0
    %1277 = vmatpush.msra.mxu0 %v1186
    %1278 = vmatpush.msra.mxu0 %v1184
    %1279 = vmatpush.msra.mxu0 %v1182
    %1280 = vmatpush.msra.mxu0 %v1180
    %1281 = vmatpush.msra.mxu0 %v1178
    %1282 = vmatpush.msra.mxu0 %v1176
    %1283 = vmatpush.msra.mxu0 %v1174
    %1284 = vmatpush.msra.mxu0 %v1172
    %1285 = vmatpush.msra.mxu0 %v1170
    %1286 = vmatpush.msra.mxu0 %v1168
    %1287 = vmatpush.msra.mxu0 %v1166
    %1288 = vmatpush.msra.mxu0 %v1164
    %1289 = vmatpush.msra.mxu0 %v1162
    %1290 = vmatpush.msra.mxu0 %v1160
    %1291 = vmatpush.msra.mxu0 %v1158
    %1292 = vmatpush.msra.mxu0 %v1156
    %1293 = vmatmul.f32.gmra.mxu0 %v1139
    %v1294 = vpop.f32.mrf.mxu0
    %v1295 = vadd.f32 0.0, %v1294
    %1296 = vmatmul.f32.gmra.mxu0 %v1143
    %v1297 = vpop.f32.mrf.mxu0
    %v1298 = vadd.f32 0.0, %v1297
    %1299 = vmatmul.f32.gmra.mxu0 %v1147
    %v1300 = vpop.f32.mrf.mxu0
    %v1301 = vadd.f32 0.0, %v1300
    %1302 = vmatmul.f32.gmra.mxu0 %v1151
    %v1303 = vpop.f32.mrf.mxu0
    %v1304 = vadd.f32 0.0, %v1303
    %1305 = vdwg.mxu0
    %1306 = vmatpush.msra.mxu0 %v1218
    %1307 = vmatpush.msra.mxu0 %v1216
    %1308 = vmatpush.msra.mxu0 %v1214
    %1309 = vmatpush.msra.mxu0 %v1212
    %1310 = vmatpush.msra.mxu0 %v1210
    %1311 = vmatpush.msra.mxu0 %v1208
    %1312 = vmatpush.msra.mxu0 %v1206
    %1313 = vmatpush.msra.mxu0 %v1204
    %1314 = vmatpush.msra.mxu0 %v1202
    %1315 = vmatpush.msra.mxu0 %v1200
    %1316 = vmatpush.msra.mxu0 %v1198
    %1317 = vmatpush.msra.mxu0 %v1196
    %1318 = vmatpush.msra.mxu0 %v1194
    %1319 = vmatpush.msra.mxu0 %v1192
    %1320 = vmatpush.msra.mxu0 %v1190
    %1321 = vmatpush.msra.mxu0 %v1188
    %1322 = vmatmul.f32.gmra.mxu0 %v1140
    %v1323 = vpop.f32.mrf.mxu0
    %v1324 = vadd.f32 %v1295, %v1323
    %1325 = vmatmul.f32.gmra.mxu0 %v1144
    %v1326 = vpop.f32.mrf.mxu0
    %v1327 = vadd.f32 %v1298, %v1326
    %1328 = vmatmul.f32.gmra.mxu0 %v1148
    %v1329 = vpop.f32.mrf.mxu0
    %v1330 = vadd.f32 %v1301, %v1329
    %1331 = vmatmul.f32.gmra.mxu0 %v1152
    %v1332 = vpop.f32.mrf.mxu0
    %v1333 = vadd.f32 %v1304, %v1332
    %1334 = vdwg.mxu0
    %1335 = vmatpush.msra.mxu0 %v1185
    %1336 = vmatpush.msra.mxu0 %v1183
    %1337 = vmatpush.msra.mxu0 %v1181
    %1338 = vmatpush.msra.mxu0 %v1179
    %1339 = vmatpush.msra.mxu0 %v1177
    %1340 = vmatpush.msra.mxu0 %v1175
    %1341 = vmatpush.msra.mxu0 %v1173
    %1342 = vmatpush.msra.mxu0 %v1171
    %1343 = vmatpush.msra.mxu0 %v1169
    %1344 = vmatpush.msra.mxu0 %v1167
    %1345 = vmatpush.msra.mxu0 %v1165
    %1346 = vmatpush.msra.mxu0 %v1163
    %1347 = vmatpush.msra.mxu0 %v1161
    %1348 = vmatpush.msra.mxu0 %v1159
    %1349 = vmatpush.msra.mxu0 %v1157
    %1350 = vmatpush.msra.mxu0 %v1155
    %1351 = vmatmul.f32.gmra.mxu0 %v1141
    %v1352 = vpop.f32.mrf.mxu0
    %v1353 = vadd.f32 0.0, %v1352
    %1354 = vmatmul.f32.gmra.mxu0 %v1145
    %v1355 = vpop.f32.mrf.mxu0
    %v1356 = vadd.f32 0.0, %v1355
    %1357 = vmatmul.f32.gmra.mxu0 %v1149
    %v1358 = vpop.f32.mrf.mxu0
    %v1359 = vadd.f32 0.0, %v1358
    %1360 = vmatmul.f32.gmra.mxu0 %v1153
    %v1361 = vpop.f32.mrf.mxu0
    %v1362 = vadd.f32 0.0, %v1361
    %1363 = vdwg.mxu0
    %1364 = vmatpush.msra.mxu0 %v1217
    %1365 = vmatpush.msra.mxu0 %v1215
    %1366 = vmatpush.msra.mxu0 %v1213
    %1367 = vmatpush.msra.mxu0 %v1211
    %1368 = vmatpush.msra.mxu0 %v1209
    %1369 = vmatpush.msra.mxu0 %v1207
    %1370 = vmatpush.msra.mxu0 %v1205
    %1371 = vmatpush.msra.mxu0 %v1203
    %1372 = vmatpush.msra.mxu0 %v1201
    %1373 = vmatpush.msra.mxu0 %v1199
    %1374 = vmatpush.msra.mxu0 %v1197
    %1375 = vmatpush.msra.mxu0 %v1195
    %1376 = vmatpush.msra.mxu0 %v1193
    %1377 = vmatpush.msra.mxu0 %v1191
    %1378 = vmatpush.msra.mxu0 %v1189
    %1379 = vmatpush.msra.mxu0 %v1187
    %1380 = vmatmul.f32.gmra.mxu0 %v1142
    %v1381 = vpop.f32.mrf.mxu0
    %v1382 = vadd.f32 %v1353, %v1381
    %1383 = vmatmul.f32.gmra.mxu0 %v1146
    %v1384 = vpop.f32.mrf.mxu0
    %v1385 = vadd.f32 %v1356, %v1384
    %1386 = vmatmul.f32.gmra.mxu0 %v1150
    %v1387 = vpop.f32.mrf.mxu0
    %v1388 = vadd.f32 %v1359, %v1387
    %1389 = vmatmul.f32.gmra.mxu0 %v1154
    %v1390 = vpop.f32.mrf.mxu0
    %v1391 = vadd.f32 %v1362, %v1390
    %1392 = vdwg.mxu0
    %1393 = vmatpush.msra.mxu0 %v1186
    %1394 = vmatpush.msra.mxu0 %v1184
    %1395 = vmatpush.msra.mxu0 %v1182
    %1396 = vmatpush.msra.mxu0 %v1180
    %1397 = vmatpush.msra.mxu0 %v1178
    %1398 = vmatpush.msra.mxu0 %v1176
    %1399 = vmatpush.msra.mxu0 %v1174
    %1400 = vmatpush.msra.mxu0 %v1172
    %1401 = vmatpush.msra.mxu0 %v1170
    %1402 = vmatpush.msra.mxu0 %v1168
    %1403 = vmatpush.msra.mxu0 %v1166
    %1404 = vmatpush.msra.mxu0 %v1164
    %1405 = vmatpush.msra.mxu0 %v1162
    %1406 = vmatpush.msra.mxu0 %v1160
    %1407 = vmatpush.msra.mxu0 %v1158
    %1408 = vmatpush.msra.mxu0 %v1156
    %1409 = vmatmul.f32.gmra.mxu0 %v1141
    %v1410 = vpop.f32.mrf.mxu0
    %v1411 = vadd.f32 0.0, %v1410
    %1412 = vmatmul.f32.gmra.mxu0 %v1145
    %v1413 = vpop.f32.mrf.mxu0
    %v1414 = vadd.f32 0.0, %v1413
    %1415 = vmatmul.f32.gmra.mxu0 %v1149
    %v1416 = vpop.f32.mrf.mxu0
    %v1417 = vadd.f32 0.0, %v1416
    %1418 = vmatmul.f32.gmra.mxu0 %v1153
    %v1419 = vpop.f32.mrf.mxu0
    %v1420 = vadd.f32 0.0, %v1419
    %1421 = vdwg.mxu0
    %1422 = vmatpush.msra.mxu0 %v1218
    %1423 = vmatpush.msra.mxu0 %v1216
    %1424 = vmatpush.msra.mxu0 %v1214
    %1425 = vmatpush.msra.mxu0 %v1212
    %1426 = vmatpush.msra.mxu0 %v1210
    %1427 = vmatpush.msra.mxu0 %v1208
    %1428 = vmatpush.msra.mxu0 %v1206
    %1429 = vmatpush.msra.mxu0 %v1204
    %1430 = vmatpush.msra.mxu0 %v1202
    %1431 = vmatpush.msra.mxu0 %v1200
    %1432 = vmatpush.msra.mxu0 %v1198
    %1433 = vmatpush.msra.mxu0 %v1196
    %1434 = vmatpush.msra.mxu0 %v1194
    %1435 = vmatpush.msra.mxu0 %v1192
    %1436 = vmatpush.msra.mxu0 %v1190
    %1437 = vmatpush.msra.mxu0 %v1188
    %1438 = vmatmul.f32.gmra.mxu0 %v1142
    %v1439 = vpop.f32.mrf.mxu0
    %v1440 = vadd.f32 %v1411, %v1439
    %1441 = vmatmul.f32.gmra.mxu0 %v1146
    %v1442 = vpop.f32.mrf.mxu0
    %v1443 = vadd.f32 %v1414, %v1442
    %1444 = vmatmul.f32.gmra.mxu0 %v1150
    %v1445 = vpop.f32.mrf.mxu0
    %v1446 = vadd.f32 %v1417, %v1445
    %1447 = vmatmul.f32.gmra.mxu0 %v1154
    %v1448 = vpop.f32.mrf.mxu0
    %v1449 = vadd.f32 %v1420, %v1448
    %1450 = vdwg.mxu0
    %s1451 = smul.u32 4, 144
    %s1452 = smul.u32 %s1451, 4
    %s1453 = sshll.u32 %s1452, 4
    %1454 = dma.done [#allocation3], %s1453
    %v1457 = vrot.slane %v1382, 7
    %v1458 = vrot.slane %v1440, 7
    %v1461 = vsel %vm366, %v1266, %v1457
    %v1462 = vsel %vm366, %v1324, %v1458
    %v1463 = vpack.c.bf16 %v1461, %v1461
    %v1464 = vpack.c.bf16 %v1462, %v1462
    %v1465 = vld [vmem:[#allocation2] sm:$0xff]
    %v1466 = vld [vmem:[#allocation2 + $0x8] sm:$0xff]
    %v1467 = vld [vmem:[#allocation2 + $0x10] sm:$0xff]
    %v1468 = vld [vmem:[#allocation2 + $0x18] sm:$0xff]
    %v1469 = vld [vmem:[#allocation2 + $0x20] sm:$0xff]
    %v1470 = vld [vmem:[#allocation2 + $0x28] sm:$0xff]
    %v1471 = vld [vmem:[#allocation2 + $0x30] sm:$0xff]
    %v1472 = vld [vmem:[#allocation2 + $0x38] sm:$0xff]
    %v1473 = vld [vmem:[#allocation2 + $0x40] sm:$0xff]
    %v1474 = vld [vmem:[#allocation2 + $0x48] sm:$0xff]
    %v1475 = vld [vmem:[#allocation2 + $0x50] sm:$0xff]
    %v1476 = vld [vmem:[#allocation2 + $0x58] sm:$0xff]
    %v1477 = vld [vmem:[#allocation2 + $0x60] sm:$0xff]
    %v1478 = vld [vmem:[#allocation2 + $0x68] sm:$0xff]
    %v1479 = vld [vmem:[#allocation2 + $0x70] sm:$0xff]
    %v1480 = vld [vmem:[#allocation2 + $0x78] sm:$0xff]
    %v1481 = vld [vmem:[#allocation2 + $0x80] sm:$0xff]
    %v1482 = vld [vmem:[#allocation2 + $0x88] sm:$0xff]
    %v1483 = vld [vmem:[#allocation2 + $0x90] sm:$0xff]
    %v1484 = vld [vmem:[#allocation2 + $0x98] sm:$0xff]
    %v1485 = vld [vmem:[#allocation2 + $0xa0] sm:$0xff]
    %v1486 = vld [vmem:[#allocation2 + $0xa8] sm:$0xff]
    %v1487 = vld [vmem:[#allocation2 + $0xb0] sm:$0xff]
    %v1488 = vld [vmem:[#allocation2 + $0xb8] sm:$0xff]
    %v1489 = vld [vmem:[#allocation2 + $0xc0] sm:$0xff]
    %v1490 = vld [vmem:[#allocation2 + $0xc8] sm:$0xff]
    %v1491 = vld [vmem:[#allocation2 + $0xd0] sm:$0xff]
    %v1492 = vld [vmem:[#allocation2 + $0xd8] sm:$0xff]
    %v1493 = vld [vmem:[#allocation2 + $0xe0] sm:$0xff]
    %v1494 = vld [vmem:[#allocation2 + $0xe8] sm:$0xff]
    %v1495 = vld [vmem:[#allocation2 + $0xf0] sm:$0xff]
    %v1496 = vld [vmem:[#allocation2 + $0xf8] sm:$0xff]
    %v1497 = vld [vmem:[#allocation2 + $0x100] sm:$0xff]
    %v1498 = vld [vmem:[#allocation2 + $0x108] sm:$0xff]
    %v1499 = vld [vmem:[#allocation2 + $0x110] sm:$0xff]
    %v1500 = vld [vmem:[#allocation2 + $0x118] sm:$0xff]
    %v1503 = vrot.slane %v1266, 1
    %v1504 = vrot.slane %v1324, 1
    %v1507 = vsel %vm366, %v1503, %v1382
    %v1508 = vsel %vm366, %v1504, %v1440
    %v1509 = vpack.c.bf16 %v1507, %v1507
    %v1510 = vpack.c.bf16 %v1508, %v1508
    %v1511 = vld [vmem:[#allocation2 + $0x120] sm:$0xff]
    %v1512 = vld [vmem:[#allocation2 + $0x128] sm:$0xff]
    %v1513 = vld [vmem:[#allocation2 + $0x130] sm:$0xff]
    %v1514 = vld [vmem:[#allocation2 + $0x138] sm:$0xff]
    %v1515 = vld [vmem:[#allocation2 + $0x140] sm:$0xff]
    %v1516 = vld [vmem:[#allocation2 + $0x148] sm:$0xff]
    %v1517 = vld [vmem:[#allocation2 + $0x150] sm:$0xff]
    %v1518 = vld [vmem:[#allocation2 + $0x158] sm:$0xff]
    %v1519 = vld [vmem:[#allocation2 + $0x160] sm:$0xff]
    %v1520 = vld [vmem:[#allocation2 + $0x168] sm:$0xff]
    %v1521 = vld [vmem:[#allocation2 + $0x170] sm:$0xff]
    %v1522 = vld [vmem:[#allocation2 + $0x178] sm:$0xff]
    %v1523 = vld [vmem:[#allocation2 + $0x180] sm:$0xff]
    %v1524 = vld [vmem:[#allocation2 + $0x188] sm:$0xff]
    %v1525 = vld [vmem:[#allocation2 + $0x190] sm:$0xff]
    %v1526 = vld [vmem:[#allocation2 + $0x198] sm:$0xff]
    %v1527 = vld [vmem:[#allocation2 + $0x1a0] sm:$0xff]
    %v1528 = vld [vmem:[#allocation2 + $0x1a8] sm:$0xff]
    %v1529 = vld [vmem:[#allocation2 + $0x1b0] sm:$0xff]
    %v1530 = vld [vmem:[#allocation2 + $0x1b8] sm:$0xff]
    %v1531 = vld [vmem:[#allocation2 + $0x1c0] sm:$0xff]
    %v1532 = vld [vmem:[#allocation2 + $0x1c8] sm:$0xff]
    %v1533 = vld [vmem:[#allocation2 + $0x1d0] sm:$0xff]
    %v1534 = vld [vmem:[#allocation2 + $0x1d8] sm:$0xff]
    %v1535 = vld [vmem:[#allocation2 + $0x1e0] sm:$0xff]
    %v1536 = vld [vmem:[#allocation2 + $0x1e8] sm:$0xff]
    %v1537 = vld [vmem:[#allocation2 + $0x1f0] sm:$0xff]
    %v1538 = vld [vmem:[#allocation2 + $0x1f8] sm:$0xff]
    %v1539 = vld [vmem:[#allocation2 + $0x200] sm:$0xff]
    %v1540 = vld [vmem:[#allocation2 + $0x208] sm:$0xff]
    %v1541 = vld [vmem:[#allocation2 + $0x210] sm:$0xff]
    %v1542 = vld [vmem:[#allocation2 + $0x218] sm:$0xff]
    %v1543 = vld [vmem:[#allocation2 + $0x220] sm:$0xff]
    %v1544 = vld [vmem:[#allocation2 + $0x228] sm:$0xff]
    %v1545 = vld [vmem:[#allocation2 + $0x230] sm:$0xff]
    %v1546 = vld [vmem:[#allocation2 + $0x238] sm:$0xff]
    %v1583 = vunpack.c.l.b16 %v1511
    %v1584 = vunpack.c.h.b16 %v1511
    %v1585 = vunpack.c.l.b16 %v1512
    %v1586 = vunpack.c.h.b16 %v1512
    %v1587 = vunpack.c.l.b16 %v1513
    %v1588 = vunpack.c.h.b16 %v1513
    %v1589 = vunpack.c.l.b16 %v1514
    %v1590 = vunpack.c.h.b16 %v1514
    %v1591 = vunpack.c.l.b16 %v1515
    %v1592 = vunpack.c.h.b16 %v1515
    %v1593 = vunpack.c.l.b16 %v1516
    %v1594 = vunpack.c.h.b16 %v1516
    %v1595 = vunpack.c.l.b16 %v1517
    %v1596 = vunpack.c.h.b16 %v1517
    %v1597 = vunpack.c.l.b16 %v1518
    %v1598 = vunpack.c.h.b16 %v1518
    %v1599 = vunpack.c.l.b16 %v1519
    %v1600 = vunpack.c.h.b16 %v1519
    %v1601 = vunpack.c.l.b16 %v1520
    %v1602 = vunpack.c.h.b16 %v1520
    %v1603 = vunpack.c.l.b16 %v1521
    %v1604 = vunpack.c.h.b16 %v1521
    %v1605 = vunpack.c.l.b16 %v1522
    %v1606 = vunpack.c.h.b16 %v1522
    %v1607 = vunpack.c.l.b16 %v1523
    %v1608 = vunpack.c.h.b16 %v1523
    %v1609 = vunpack.c.l.b16 %v1524
    %v1610 = vunpack.c.h.b16 %v1524
    %v1611 = vunpack.c.l.b16 %v1525
    %v1612 = vunpack.c.h.b16 %v1525
    %v1613 = vunpack.c.l.b16 %v1526
    %v1614 = vunpack.c.h.b16 %v1526
    %v1615 = vunpack.c.l.b16 %v1527
    %v1616 = vunpack.c.h.b16 %v1527
    %v1617 = vunpack.c.l.b16 %v1528
    %v1618 = vunpack.c.h.b16 %v1528
    %v1619 = vunpack.c.l.b16 %v1529
    %v1620 = vunpack.c.h.b16 %v1529
    %v1621 = vunpack.c.l.b16 %v1530
    %v1622 = vunpack.c.h.b16 %v1530
    %v1623 = vunpack.c.l.b16 %v1531
    %v1624 = vunpack.c.h.b16 %v1531
    %v1625 = vunpack.c.l.b16 %v1532
    %v1626 = vunpack.c.h.b16 %v1532
    %v1627 = vunpack.c.l.b16 %v1533
    %v1628 = vunpack.c.h.b16 %v1533
    %v1629 = vunpack.c.l.b16 %v1534
    %v1630 = vunpack.c.h.b16 %v1534
    %v1631 = vunpack.c.l.b16 %v1535
    %v1632 = vunpack.c.h.b16 %v1535
    %v1633 = vunpack.c.l.b16 %v1536
    %v1634 = vunpack.c.h.b16 %v1536
    %v1635 = vunpack.c.l.b16 %v1537
    %v1636 = vunpack.c.h.b16 %v1537
    %v1637 = vunpack.c.l.b16 %v1538
    %v1638 = vunpack.c.h.b16 %v1538
    %v1639 = vunpack.c.l.b16 %v1539
    %v1640 = vunpack.c.h.b16 %v1539
    %v1641 = vunpack.c.l.b16 %v1540
    %v1642 = vunpack.c.h.b16 %v1540
    %v1643 = vunpack.c.l.b16 %v1541
    %v1644 = vunpack.c.h.b16 %v1541
    %v1645 = vunpack.c.l.b16 %v1542
    %v1646 = vunpack.c.h.b16 %v1542
    %v1647 = vunpack.c.l.b16 %v1543
    %v1648 = vunpack.c.h.b16 %v1543
    %v1649 = vunpack.c.l.b16 %v1544
    %v1650 = vunpack.c.h.b16 %v1544
    %v1651 = vunpack.c.l.b16 %v1545
    %v1652 = vunpack.c.h.b16 %v1545
    %v1653 = vunpack.c.l.b16 %v1546
    %v1654 = vunpack.c.h.b16 %v1546
    %v1655 = vpack.c.b16 %v1587, %v1583
    %v1656 = vpack.c.b16 %v1588, %v1584
    %v1657 = vpack.c.b16 %v1589, %v1585
    %v1658 = vpack.c.b16 %v1590, %v1586
    %v1659 = vpack.c.b16 %v1595, %v1591
    %v1660 = vpack.c.b16 %v1596, %v1592
    %v1661 = vpack.c.b16 %v1597, %v1593
    %v1662 = vpack.c.b16 %v1598, %v1594
    %v1663 = vpack.c.b16 %v1603, %v1599
    %v1664 = vpack.c.b16 %v1604, %v1600
    %v1665 = vpack.c.b16 %v1605, %v1601
    %v1666 = vpack.c.b16 %v1606, %v1602
    %v1667 = vpack.c.b16 %v1611, %v1607
    %v1668 = vpack.c.b16 %v1612, %v1608
    %v1669 = vpack.c.b16 %v1613, %v1609
    %v1670 = vpack.c.b16 %v1614, %v1610
    %v1671 = vpack.c.b16 %v1619, %v1615
    %v1672 = vpack.c.b16 %v1620, %v1616
    %v1673 = vpack.c.b16 %v1621, %v1617
    %v1674 = vpack.c.b16 %v1622, %v1618
    %v1675 = vpack.c.b16 %v1627, %v1623
    %v1676 = vpack.c.b16 %v1628, %v1624
    %v1677 = vpack.c.b16 %v1629, %v1625
    %v1678 = vpack.c.b16 %v1630, %v1626
    %v1679 = vpack.c.b16 %v1635, %v1631
    %v1680 = vpack.c.b16 %v1636, %v1632
    %v1681 = vpack.c.b16 %v1637, %v1633
    %v1682 = vpack.c.b16 %v1638, %v1634
    %v1683 = vpack.c.b16 %v1643, %v1639
    %v1684 = vpack.c.b16 %v1644, %v1640
    %v1685 = vpack.c.b16 %v1645, %v1641
    %v1686 = vpack.c.b16 %v1646, %v1642
    %v1687 = vpack.c.b16 %v1651, %v1647
    %v1688 = vpack.c.b16 %v1652, %v1648
    %v1689 = vpack.c.b16 %v1653, %v1649
    %v1690 = vpack.c.b16 %v1654, %v1650
    %v1728 = vsel %vm894, %v1510, 0
    %1730 = vmatpush.bf16.msra.mxu0 %v1683
    %1731 = vmatpush.bf16.msra.mxu0 %v1679
    %1732 = vmatpush.bf16.msra.mxu0 %v1675
    %1733 = vmatpush.bf16.msra.mxu0 %v1671
    %1734 = vmatpush.bf16.msra.mxu0 %v1667
    %1735 = vmatpush.bf16.msra.mxu0 %v1663
    %1736 = vmatpush.bf16.msra.mxu0 %v1659
    %1737 = vmatpush.bf16.msra.mxu0 %v1655
    %1738 = vmatmul.bf16.gmra.mxu0 %v1509
    %v1739 = vpop.f32.mrf.mxu0
    %v1740 = vadd.f32 0.0, %v1739
    %v1741 = vpop.f32.mrf.mxu0
    %1742 = vdwg.mxu0
    %1743 = vmatpush.bf16.msra.mxu0 0
    %1744 = vmatpush.bf16.msra.mxu0 0
    %1745 = vmatpush.bf16.msra.mxu0 0
    %1746 = vmatpush.bf16.msra.mxu0 0
    %1747 = vmatpush.bf16.msra.mxu0 0
    %1748 = vmatpush.bf16.msra.mxu0 0
    %1749 = vmatpush.bf16.msra.mxu0 0
    %1750 = vmatpush.bf16.msra.mxu0 %v1687
    %1751 = vmatmul.bf16.gmra.mxu0 %v1728
    %v1752 = vpop.f32.mrf.mxu0
    %v1753 = vadd.f32 %v1740, %v1752
    %v1754 = vpop.f32.mrf.mxu0
    %1755 = vdwg.mxu0
    %1756 = vmatpush.bf16.msra.mxu0 %v1684
    %1757 = vmatpush.bf16.msra.mxu0 %v1680
    %1758 = vmatpush.bf16.msra.mxu0 %v1676
    %1759 = vmatpush.bf16.msra.mxu0 %v1672
    %1760 = vmatpush.bf16.msra.mxu0 %v1668
    %1761 = vmatpush.bf16.msra.mxu0 %v1664
    %1762 = vmatpush.bf16.msra.mxu0 %v1660
    %1763 = vmatpush.bf16.msra.mxu0 %v1656
    %1764 = vmatmul.bf16.gmra.mxu0 %v1509
    %v1765 = vpop.f32.mrf.mxu0
    %v1766 = vadd.f32 0.0, %v1765
    %v1767 = vpop.f32.mrf.mxu0
    %1768 = vdwg.mxu0
    %1769 = vmatpush.bf16.msra.mxu0 0
    %1770 = vmatpush.bf16.msra.mxu0 0
    %1771 = vmatpush.bf16.msra.mxu0 0
    %1772 = vmatpush.bf16.msra.mxu0 0
    %1773 = vmatpush.bf16.msra.mxu0 0
    %1774 = vmatpush.bf16.msra.mxu0 0
    %1775 = vmatpush.bf16.msra.mxu0 0
    %1776 = vmatpush.bf16.msra.mxu0 %v1688
    %1777 = vmatmul.bf16.gmra.mxu0 %v1728
    %v1778 = vpop.f32.mrf.mxu0
    %v1779 = vadd.f32 %v1766, %v1778
    %v1780 = vpop.f32.mrf.mxu0
    %1781 = vdwg.mxu0
    %1782 = vmatpush.bf16.msra.mxu0 %v1685
    %1783 = vmatpush.bf16.msra.mxu0 %v1681
    %1784 = vmatpush.bf16.msra.mxu0 %v1677
    %1785 = vmatpush.bf16.msra.mxu0 %v1673
    %1786 = vmatpush.bf16.msra.mxu0 %v1669
    %1787 = vmatpush.bf16.msra.mxu0 %v1665
    %1788 = vmatpush.bf16.msra.mxu0 %v1661
    %1789 = vmatpush.bf16.msra.mxu0 %v1657
    %1790 = vmatmul.bf16.gmra.mxu0 %v1509
    %v1791 = vpop.f32.mrf.mxu0
    %v1792 = vadd.f32 0.0, %v1791
    %v1793 = vpop.f32.mrf.mxu0
    %1794 = vdwg.mxu0
    %1795 = vmatpush.bf16.msra.mxu0 0
    %1796 = vmatpush.bf16.msra.mxu0 0
    %1797 = vmatpush.bf16.msra.mxu0 0
    %1798 = vmatpush.bf16.msra.mxu0 0
    %1799 = vmatpush.bf16.msra.mxu0 0
    %1800 = vmatpush.bf16.msra.mxu0 0
    %1801 = vmatpush.bf16.msra.mxu0 0
    %1802 = vmatpush.bf16.msra.mxu0 %v1689
    %1803 = vmatmul.bf16.gmra.mxu0 %v1728
    %v1804 = vpop.f32.mrf.mxu0
    %v1805 = vadd.f32 %v1792, %v1804
    %v1806 = vpop.f32.mrf.mxu0
    %1807 = vdwg.mxu0
    %1808 = vmatpush.bf16.msra.mxu0 %v1686
    %1809 = vmatpush.bf16.msra.mxu0 %v1682
    %1810 = vmatpush.bf16.msra.mxu0 %v1678
    %1811 = vmatpush.bf16.msra.mxu0 %v1674
    %1812 = vmatpush.bf16.msra.mxu0 %v1670
    %1813 = vmatpush.bf16.msra.mxu0 %v1666
    %1814 = vmatpush.bf16.msra.mxu0 %v1662
    %1815 = vmatpush.bf16.msra.mxu0 %v1658
    %1816 = vmatmul.bf16.gmra.mxu0 %v1509
    %v1817 = vpop.f32.mrf.mxu0
    %v1818 = vadd.f32 0.0, %v1817
    %v1819 = vpop.f32.mrf.mxu0
    %1820 = vdwg.mxu0
    %1821 = vmatpush.bf16.msra.mxu0 0
    %1822 = vmatpush.bf16.msra.mxu0 0
    %1823 = vmatpush.bf16.msra.mxu0 0
    %1824 = vmatpush.bf16.msra.mxu0 0
    %1825 = vmatpush.bf16.msra.mxu0 0
    %1826 = vmatpush.bf16.msra.mxu0 0
    %1827 = vmatpush.bf16.msra.mxu0 0
    %1828 = vmatpush.bf16.msra.mxu0 %v1690
    %1829 = vmatmul.bf16.gmra.mxu0 %v1728
    %v1830 = vpop.f32.mrf.mxu0
    %v1831 = vadd.f32 %v1818, %v1830
    %v1832 = vpop.f32.mrf.mxu0
    %1833 = vdwg.mxu0
    %v1870 = vunpack.c.l.b16 %v1465
    %v1871 = vunpack.c.h.b16 %v1465
    %v1872 = vunpack.c.l.b16 %v1466
    %v1873 = vunpack.c.h.b16 %v1466
    %v1874 = vunpack.c.l.b16 %v1467
    %v1875 = vunpack.c.h.b16 %v1467
    %v1876 = vunpack.c.l.b16 %v1468
    %v1877 = vunpack.c.h.b16 %v1468
    %v1878 = vunpack.c.l.b16 %v1469
    %v1879 = vunpack.c.h.b16 %v1469
    %v1880 = vunpack.c.l.b16 %v1470
    %v1881 = vunpack.c.h.b16 %v1470
    %v1882 = vunpack.c.l.b16 %v1471
    %v1883 = vunpack.c.h.b16 %v1471
    %v1884 = vunpack.c.l.b16 %v1472
    %v1885 = vunpack.c.h.b16 %v1472
    %v1886 = vunpack.c.l.b16 %v1473
    %v1887 = vunpack.c.h.b16 %v1473
    %v1888 = vunpack.c.l.b16 %v1474
    %v1889 = vunpack.c.h.b16 %v1474
    %v1890 = vunpack.c.l.b16 %v1475
    %v1891 = vunpack.c.h.b16 %v1475
    %v1892 = vunpack.c.l.b16 %v1476
    %v1893 = vunpack.c.h.b16 %v1476
    %v1894 = vunpack.c.l.b16 %v1477
    %v1895 = vunpack.c.h.b16 %v1477
    %v1896 = vunpack.c.l.b16 %v1478
    %v1897 = vunpack.c.h.b16 %v1478
    %v1898 = vunpack.c.l.b16 %v1479
    %v1899 = vunpack.c.h.b16 %v1479
    %v1900 = vunpack.c.l.b16 %v1480
    %v1901 = vunpack.c.h.b16 %v1480
    %v1902 = vunpack.c.l.b16 %v1481
    %v1903 = vunpack.c.h.b16 %v1481
    %v1904 = vunpack.c.l.b16 %v1482
    %v1905 = vunpack.c.h.b16 %v1482
    %v1906 = vunpack.c.l.b16 %v1483
    %v1907 = vunpack.c.h.b16 %v1483
    %v1908 = vunpack.c.l.b16 %v1484
    %v1909 = vunpack.c.h.b16 %v1484
    %v1910 = vunpack.c.l.b16 %v1485
    %v1911 = vunpack.c.h.b16 %v1485
    %v1912 = vunpack.c.l.b16 %v1486
    %v1913 = vunpack.c.h.b16 %v1486
    %v1914 = vunpack.c.l.b16 %v1487
    %v1915 = vunpack.c.h.b16 %v1487
    %v1916 = vunpack.c.l.b16 %v1488
    %v1917 = vunpack.c.h.b16 %v1488
    %v1918 = vunpack.c.l.b16 %v1489
    %v1919 = vunpack.c.h.b16 %v1489
    %v1920 = vunpack.c.l.b16 %v1490
    %v1921 = vunpack.c.h.b16 %v1490
    %v1922 = vunpack.c.l.b16 %v1491
    %v1923 = vunpack.c.h.b16 %v1491
    %v1924 = vunpack.c.l.b16 %v1492
    %v1925 = vunpack.c.h.b16 %v1492
    %v1926 = vunpack.c.l.b16 %v1493
    %v1927 = vunpack.c.h.b16 %v1493
    %v1928 = vunpack.c.l.b16 %v1494
    %v1929 = vunpack.c.h.b16 %v1494
    %v1930 = vunpack.c.l.b16 %v1495
    %v1931 = vunpack.c.h.b16 %v1495
    %v1932 = vunpack.c.l.b16 %v1496
    %v1933 = vunpack.c.h.b16 %v1496
    %v1934 = vunpack.c.l.b16 %v1497
    %v1935 = vunpack.c.h.b16 %v1497
    %v1936 = vunpack.c.l.b16 %v1498
    %v1937 = vunpack.c.h.b16 %v1498
    %v1938 = vunpack.c.l.b16 %v1499
    %v1939 = vunpack.c.h.b16 %v1499
    %v1940 = vunpack.c.l.b16 %v1500
    %v1941 = vunpack.c.h.b16 %v1500
    %v1942 = vpack.c.b16 %v1874, %v1870
    %v1943 = vpack.c.b16 %v1875, %v1871
    %v1944 = vpack.c.b16 %v1876, %v1872
    %v1945 = vpack.c.b16 %v1877, %v1873
    %v1946 = vpack.c.b16 %v1882, %v1878
    %v1947 = vpack.c.b16 %v1883, %v1879
    %v1948 = vpack.c.b16 %v1884, %v1880
    %v1949 = vpack.c.b16 %v1885, %v1881
    %v1950 = vpack.c.b16 %v1890, %v1886
    %v1951 = vpack.c.b16 %v1891, %v1887
    %v1952 = vpack.c.b16 %v1892, %v1888
    %v1953 = vpack.c.b16 %v1893, %v1889
    %v1954 = vpack.c.b16 %v1898, %v1894
    %v1955 = vpack.c.b16 %v1899, %v1895
    %v1956 = vpack.c.b16 %v1900, %v1896
    %v1957 = vpack.c.b16 %v1901, %v1897
    %v1958 = vpack.c.b16 %v1906, %v1902
    %v1959 = vpack.c.b16 %v1907, %v1903
    %v1960 = vpack.c.b16 %v1908, %v1904
    %v1961 = vpack.c.b16 %v1909, %v1905
    %v1962 = vpack.c.b16 %v1914, %v1910
    %v1963 = vpack.c.b16 %v1915, %v1911
    %v1964 = vpack.c.b16 %v1916, %v1912
    %v1965 = vpack.c.b16 %v1917, %v1913
    %v1966 = vpack.c.b16 %v1922, %v1918
    %v1967 = vpack.c.b16 %v1923, %v1919
    %v1968 = vpack.c.b16 %v1924, %v1920
    %v1969 = vpack.c.b16 %v1925, %v1921
    %v1970 = vpack.c.b16 %v1930, %v1926
    %v1971 = vpack.c.b16 %v1931, %v1927
    %v1972 = vpack.c.b16 %v1932, %v1928
    %v1973 = vpack.c.b16 %v1933, %v1929
    %v1974 = vpack.c.b16 %v1938, %v1934
    %v1975 = vpack.c.b16 %v1939, %v1935
    %v1976 = vpack.c.b16 %v1940, %v1936
    %v1977 = vpack.c.b16 %v1941, %v1937
    %v2015 = vsel %vm894, %v1464, 0
    %2017 = vmatpush.bf16.msra.mxu0 %v1970
    %2018 = vmatpush.bf16.msra.mxu0 %v1966
    %2019 = vmatpush.bf16.msra.mxu0 %v1962
    %2020 = vmatpush.bf16.msra.mxu0 %v1958
    %2021 = vmatpush.bf16.msra.mxu0 %v1954
    %2022 = vmatpush.bf16.msra.mxu0 %v1950
    %2023 = vmatpush.bf16.msra.mxu0 %v1946
    %2024 = vmatpush.bf16.msra.mxu0 %v1942
    %2025 = vmatmul.bf16.gmra.mxu0 %v1463
    %v2026 = vpop.f32.mrf.mxu0
    %v2027 = vadd.f32 %v1753, %v2026
    %v2028 = vpop.f32.mrf.mxu0
    %2029 = vdwg.mxu0
    %2030 = vmatpush.bf16.msra.mxu0 0
    %2031 = vmatpush.bf16.msra.mxu0 0
    %2032 = vmatpush.bf16.msra.mxu0 0
    %2033 = vmatpush.bf16.msra.mxu0 0
    %2034 = vmatpush.bf16.msra.mxu0 0
    %2035 = vmatpush.bf16.msra.mxu0 0
    %2036 = vmatpush.bf16.msra.mxu0 0
    %2037 = vmatpush.bf16.msra.mxu0 %v1974
    %2038 = vmatmul.bf16.gmra.mxu0 %v2015
    %v2039 = vpop.f32.mrf.mxu0
    %v2040 = vadd.f32 %v2027, %v2039
    %v2041 = vpop.f32.mrf.mxu0
    %2042 = vdwg.mxu0
    %2043 = vmatpush.bf16.msra.mxu0 %v1971
    %2044 = vmatpush.bf16.msra.mxu0 %v1967
    %2045 = vmatpush.bf16.msra.mxu0 %v1963
    %2046 = vmatpush.bf16.msra.mxu0 %v1959
    %2047 = vmatpush.bf16.msra.mxu0 %v1955
    %2048 = vmatpush.bf16.msra.mxu0 %v1951
    %2049 = vmatpush.bf16.msra.mxu0 %v1947
    %2050 = vmatpush.bf16.msra.mxu0 %v1943
    %2051 = vmatmul.bf16.gmra.mxu0 %v1463
    %v2052 = vpop.f32.mrf.mxu0
    %v2053 = vadd.f32 %v1779, %v2052
    %v2054 = vpop.f32.mrf.mxu0
    %2055 = vdwg.mxu0
    %2056 = vmatpush.bf16.msra.mxu0 0
    %2057 = vmatpush.bf16.msra.mxu0 0
    %2058 = vmatpush.bf16.msra.mxu0 0
    %2059 = vmatpush.bf16.msra.mxu0 0
    %2060 = vmatpush.bf16.msra.mxu0 0
    %2061 = vmatpush.bf16.msra.mxu0 0
    %2062 = vmatpush.bf16.msra.mxu0 0
    %2063 = vmatpush.bf16.msra.mxu0 %v1975
    %2064 = vmatmul.bf16.gmra.mxu0 %v2015
    %v2065 = vpop.f32.mrf.mxu0
    %v2066 = vadd.f32 %v2053, %v2065
    %v2067 = vpop.f32.mrf.mxu0
    %2068 = vdwg.mxu0
    %2069 = vmatpush.bf16.msra.mxu0 %v1972
    %2070 = vmatpush.bf16.msra.mxu0 %v1968
    %2071 = vmatpush.bf16.msra.mxu0 %v1964
    %2072 = vmatpush.bf16.msra.mxu0 %v1960
    %2073 = vmatpush.bf16.msra.mxu0 %v1956
    %2074 = vmatpush.bf16.msra.mxu0 %v1952
    %2075 = vmatpush.bf16.msra.mxu0 %v1948
    %2076 = vmatpush.bf16.msra.mxu0 %v1944
    %2077 = vmatmul.bf16.gmra.mxu0 %v1463
    %v2078 = vpop.f32.mrf.mxu0
    %v2079 = vadd.f32 %v1805, %v2078
    %v2080 = vpop.f32.mrf.mxu0
    %2081 = vdwg.mxu0
    %2082 = vmatpush.bf16.msra.mxu0 0
    %2083 = vmatpush.bf16.msra.mxu0 0
    %2084 = vmatpush.bf16.msra.mxu0 0
    %2085 = vmatpush.bf16.msra.mxu0 0
    %2086 = vmatpush.bf16.msra.mxu0 0
    %2087 = vmatpush.bf16.msra.mxu0 0
    %2088 = vmatpush.bf16.msra.mxu0 0
    %2089 = vmatpush.bf16.msra.mxu0 %v1976
    %2090 = vmatmul.bf16.gmra.mxu0 %v2015
    %v2091 = vpop.f32.mrf.mxu0
    %v2092 = vadd.f32 %v2079, %v2091
    %v2093 = vpop.f32.mrf.mxu0
    %2094 = vdwg.mxu0
    %2095 = vmatpush.bf16.msra.mxu0 %v1973
    %2096 = vmatpush.bf16.msra.mxu0 %v1969
    %2097 = vmatpush.bf16.msra.mxu0 %v1965
    %2098 = vmatpush.bf16.msra.mxu0 %v1961
    %2099 = vmatpush.bf16.msra.mxu0 %v1957
    %2100 = vmatpush.bf16.msra.mxu0 %v1953
    %2101 = vmatpush.bf16.msra.mxu0 %v1949
    %2102 = vmatpush.bf16.msra.mxu0 %v1945
    %2103 = vmatmul.bf16.gmra.mxu0 %v1463
    %v2104 = vpop.f32.mrf.mxu0
    %v2105 = vadd.f32 %v1831, %v2104
    %v2106 = vpop.f32.mrf.mxu0
    %2107 = vdwg.mxu0
    %2108 = vmatpush.bf16.msra.mxu0 0
    %2109 = vmatpush.bf16.msra.mxu0 0
    %2110 = vmatpush.bf16.msra.mxu0 0
    %2111 = vmatpush.bf16.msra.mxu0 0
    %2112 = vmatpush.bf16.msra.mxu0 0
    %2113 = vmatpush.bf16.msra.mxu0 0
    %2114 = vmatpush.bf16.msra.mxu0 0
    %2115 = vmatpush.bf16.msra.mxu0 %v1977
    %2116 = vmatmul.bf16.gmra.mxu0 %v2015
    %v2117 = vpop.f32.mrf.mxu0
    %v2118 = vadd.f32 %v2105, %v2117
    %v2119 = vpop.f32.mrf.mxu0
    %2120 = vdwg.mxu0
    %v2121 = vrot.slane %v1266, 2
    %v2122 = vrot.slane %v1324, 2
    %v2125 = vrot.slane %v1382, 1
    %v2126 = vrot.slane %v1440, 1
    %v2129 = vsel %vm366, %v2121, %v2125
    %v2130 = vsel %vm366, %v2122, %v2126
    %v2131 = vpack.c.bf16 %v2129, %v2129
    %v2132 = vpack.c.bf16 %v2130, %v2130
    %v2133 = vld [vmem:[#allocation2 + $0x240] sm:$0xff]
    %v2134 = vld [vmem:[#allocation2 + $0x248] sm:$0xff]
    %v2135 = vld [vmem:[#allocation2 + $0x250] sm:$0xff]
    %v2136 = vld [vmem:[#allocation2 + $0x258] sm:$0xff]
    %v2137 = vld [vmem:[#allocation2 + $0x260] sm:$0xff]
    %v2138 = vld [vmem:[#allocation2 + $0x268] sm:$0xff]
    %v2139 = vld [vmem:[#allocation2 + $0x270] sm:$0xff]
    %v2140 = vld [vmem:[#allocation2 + $0x278] sm:$0xff]
    %v2141 = vld [vmem:[#allocation2 + $0x280] sm:$0xff]
    %v2142 = vld [vmem:[#allocation2 + $0x288] sm:$0xff]
    %v2143 = vld [vmem:[#allocation2 + $0x290] sm:$0xff]
    %v2144 = vld [vmem:[#allocation2 + $0x298] sm:$0xff]
    %v2145 = vld [vmem:[#allocation2 + $0x2a0] sm:$0xff]
    %v2146 = vld [vmem:[#allocation2 + $0x2a8] sm:$0xff]
    %v2147 = vld [vmem:[#allocation2 + $0x2b0] sm:$0xff]
    %v2148 = vld [vmem:[#allocation2 + $0x2b8] sm:$0xff]
    %v2149 = vld [vmem:[#allocation2 + $0x2c0] sm:$0xff]
    %v2150 = vld [vmem:[#allocation2 + $0x2c8] sm:$0xff]
    %v2151 = vld [vmem:[#allocation2 + $0x2d0] sm:$0xff]
    %v2152 = vld [vmem:[#allocation2 + $0x2d8] sm:$0xff]
    %v2153 = vld [vmem:[#allocation2 + $0x2e0] sm:$0xff]
    %v2154 = vld [vmem:[#allocation2 + $0x2e8] sm:$0xff]
    %v2155 = vld [vmem:[#allocation2 + $0x2f0] sm:$0xff]
    %v2156 = vld [vmem:[#allocation2 + $0x2f8] sm:$0xff]
    %v2157 = vld [vmem:[#allocation2 + $0x300] sm:$0xff]
    %v2158 = vld [vmem:[#allocation2 + $0x308] sm:$0xff]
    %v2159 = vld [vmem:[#allocation2 + $0x310] sm:$0xff]
    %v2160 = vld [vmem:[#allocation2 + $0x318] sm:$0xff]
    %v2161 = vld [vmem:[#allocation2 + $0x320] sm:$0xff]
    %v2162 = vld [vmem:[#allocation2 + $0x328] sm:$0xff]
    %v2163 = vld [vmem:[#allocation2 + $0x330] sm:$0xff]
    %v2164 = vld [vmem:[#allocation2 + $0x338] sm:$0xff]
    %v2165 = vld [vmem:[#allocation2 + $0x340] sm:$0xff]
    %v2166 = vld [vmem:[#allocation2 + $0x348] sm:$0xff]
    %v2167 = vld [vmem:[#allocation2 + $0x350] sm:$0xff]
    %v2168 = vld [vmem:[#allocation2 + $0x358] sm:$0xff]
    %v2205 = vunpack.c.l.b16 %v2133
    %v2206 = vunpack.c.h.b16 %v2133
    %v2207 = vunpack.c.l.b16 %v2134
    %v2208 = vunpack.c.h.b16 %v2134
    %v2209 = vunpack.c.l.b16 %v2135
    %v2210 = vunpack.c.h.b16 %v2135
    %v2211 = vunpack.c.l.b16 %v2136
    %v2212 = vunpack.c.h.b16 %v2136
    %v2213 = vunpack.c.l.b16 %v2137
    %v2214 = vunpack.c.h.b16 %v2137
    %v2215 = vunpack.c.l.b16 %v2138
    %v2216 = vunpack.c.h.b16 %v2138
    %v2217 = vunpack.c.l.b16 %v2139
    %v2218 = vunpack.c.h.b16 %v2139
    %v2219 = vunpack.c.l.b16 %v2140
    %v2220 = vunpack.c.h.b16 %v2140
    %v2221 = vunpack.c.l.b16 %v2141
    %v2222 = vunpack.c.h.b16 %v2141
    %v2223 = vunpack.c.l.b16 %v2142
    %v2224 = vunpack.c.h.b16 %v2142
    %v2225 = vunpack.c.l.b16 %v2143
    %v2226 = vunpack.c.h.b16 %v2143
    %v2227 = vunpack.c.l.b16 %v2144
    %v2228 = vunpack.c.h.b16 %v2144
    %v2229 = vunpack.c.l.b16 %v2145
    %v2230 = vunpack.c.h.b16 %v2145
    %v2231 = vunpack.c.l.b16 %v2146
    %v2232 = vunpack.c.h.b16 %v2146
    %v2233 = vunpack.c.l.b16 %v2147
    %v2234 = vunpack.c.h.b16 %v2147
    %v2235 = vunpack.c.l.b16 %v2148
    %v2236 = vunpack.c.h.b16 %v2148
    %v2237 = vunpack.c.l.b16 %v2149
    %v2238 = vunpack.c.h.b16 %v2149
    %v2239 = vunpack.c.l.b16 %v2150
    %v2240 = vunpack.c.h.b16 %v2150
    %v2241 = vunpack.c.l.b16 %v2151
    %v2242 = vunpack.c.h.b16 %v2151
    %v2243 = vunpack.c.l.b16 %v2152
    %v2244 = vunpack.c.h.b16 %v2152
    %v2245 = vunpack.c.l.b16 %v2153
    %v2246 = vunpack.c.h.b16 %v2153
    %v2247 = vunpack.c.l.b16 %v2154
    %v2248 = vunpack.c.h.b16 %v2154
    %v2249 = vunpack.c.l.b16 %v2155
    %v2250 = vunpack.c.h.b16 %v2155
    %v2251 = vunpack.c.l.b16 %v2156
    %v2252 = vunpack.c.h.b16 %v2156
    %v2253 = vunpack.c.l.b16 %v2157
    %v2254 = vunpack.c.h.b16 %v2157
    %v2255 = vunpack.c.l.b16 %v2158
    %v2256 = vunpack.c.h.b16 %v2158
    %v2257 = vunpack.c.l.b16 %v2159
    %v2258 = vunpack.c.h.b16 %v2159
    %v2259 = vunpack.c.l.b16 %v2160
    %v2260 = vunpack.c.h.b16 %v2160
    %v2261 = vunpack.c.l.b16 %v2161
    %v2262 = vunpack.c.h.b16 %v2161
    %v2263 = vunpack.c.l.b16 %v2162
    %v2264 = vunpack.c.h.b16 %v2162
    %v2265 = vunpack.c.l.b16 %v2163
    %v2266 = vunpack.c.h.b16 %v2163
    %v2267 = vunpack.c.l.b16 %v2164
    %v2268 = vunpack.c.h.b16 %v2164
    %v2269 = vunpack.c.l.b16 %v2165
    %v2270 = vunpack.c.h.b16 %v2165
    %v2271 = vunpack.c.l.b16 %v2166
    %v2272 = vunpack.c.h.b16 %v2166
    %v2273 = vunpack.c.l.b16 %v2167
    %v2274 = vunpack.c.h.b16 %v2167
    %v2275 = vunpack.c.l.b16 %v2168
    %v2276 = vunpack.c.h.b16 %v2168
    %v2277 = vpack.c.b16 %v2209, %v2205
    %v2278 = vpack.c.b16 %v2210, %v2206
    %v2279 = vpack.c.b16 %v2211, %v2207
    %v2280 = vpack.c.b16 %v2212, %v2208
    %v2281 = vpack.c.b16 %v2217, %v2213
    %v2282 = vpack.c.b16 %v2218, %v2214
    %v2283 = vpack.c.b16 %v2219, %v2215
    %v2284 = vpack.c.b16 %v2220, %v2216
    %v2285 = vpack.c.b16 %v2225, %v2221
    %v2286 = vpack.c.b16 %v2226, %v2222
    %v2287 = vpack.c.b16 %v2227, %v2223
    %v2288 = vpack.c.b16 %v2228, %v2224
    %v2289 = vpack.c.b16 %v2233, %v2229
    %v2290 = vpack.c.b16 %v2234, %v2230
    %v2291 = vpack.c.b16 %v2235, %v2231
    %v2292 = vpack.c.b16 %v2236, %v2232
    %v2293 = vpack.c.b16 %v2241, %v2237
    %v2294 = vpack.c.b16 %v2242, %v2238
    %v2295 = vpack.c.b16 %v2243, %v2239
    %v2296 = vpack.c.b16 %v2244, %v2240
    %v2297 = vpack.c.b16 %v2249, %v2245
    %v2298 = vpack.c.b16 %v2250, %v2246
    %v2299 = vpack.c.b16 %v2251, %v2247
    %v2300 = vpack.c.b16 %v2252, %v2248
    %v2301 = vpack.c.b16 %v2257, %v2253
    %v2302 = vpack.c.b16 %v2258, %v2254
    %v2303 = vpack.c.b16 %v2259, %v2255
    %v2304 = vpack.c.b16 %v2260, %v2256
    %v2305 = vpack.c.b16 %v2265, %v2261
    %v2306 = vpack.c.b16 %v2266, %v2262
    %v2307 = vpack.c.b16 %v2267, %v2263
    %v2308 = vpack.c.b16 %v2268, %v2264
    %v2309 = vpack.c.b16 %v2273, %v2269
    %v2310 = vpack.c.b16 %v2274, %v2270
    %v2311 = vpack.c.b16 %v2275, %v2271
    %v2312 = vpack.c.b16 %v2276, %v2272
    %v2350 = vsel %vm894, %v2132, 0
    %2352 = vmatpush.bf16.msra.mxu0 %v2305
    %2353 = vmatpush.bf16.msra.mxu0 %v2301
    %2354 = vmatpush.bf16.msra.mxu0 %v2297
    %2355 = vmatpush.bf16.msra.mxu0 %v2293
    %2356 = vmatpush.bf16.msra.mxu0 %v2289
    %2357 = vmatpush.bf16.msra.mxu0 %v2285
    %2358 = vmatpush.bf16.msra.mxu0 %v2281
    %2359 = vmatpush.bf16.msra.mxu0 %v2277
    %2360 = vmatmul.bf16.gmra.mxu0 %v2131
    %v2361 = vpop.f32.mrf.mxu0
    %v2362 = vadd.f32 0.0, %v2361
    %v2363 = vpop.f32.mrf.mxu0
    %2364 = vdwg.mxu0
    %2365 = vmatpush.bf16.msra.mxu0 0
    %2366 = vmatpush.bf16.msra.mxu0 0
    %2367 = vmatpush.bf16.msra.mxu0 0
    %2368 = vmatpush.bf16.msra.mxu0 0
    %2369 = vmatpush.bf16.msra.mxu0 0
    %2370 = vmatpush.bf16.msra.mxu0 0
    %2371 = vmatpush.bf16.msra.mxu0 0
    %2372 = vmatpush.bf16.msra.mxu0 %v2309
    %2373 = vmatmul.bf16.gmra.mxu0 %v2350
    %v2374 = vpop.f32.mrf.mxu0
    %v2375 = vadd.f32 %v2362, %v2374
    %v2376 = vpop.f32.mrf.mxu0
    %2377 = vdwg.mxu0
    %2378 = vmatpush.bf16.msra.mxu0 %v2306
    %2379 = vmatpush.bf16.msra.mxu0 %v2302
    %2380 = vmatpush.bf16.msra.mxu0 %v2298
    %2381 = vmatpush.bf16.msra.mxu0 %v2294
    %2382 = vmatpush.bf16.msra.mxu0 %v2290
    %2383 = vmatpush.bf16.msra.mxu0 %v2286
    %2384 = vmatpush.bf16.msra.mxu0 %v2282
    %2385 = vmatpush.bf16.msra.mxu0 %v2278
    %2386 = vmatmul.bf16.gmra.mxu0 %v2131
    %v2387 = vpop.f32.mrf.mxu0
    %v2388 = vadd.f32 0.0, %v2387
    %v2389 = vpop.f32.mrf.mxu0
    %2390 = vdwg.mxu0
    %2391 = vmatpush.bf16.msra.mxu0 0
    %2392 = vmatpush.bf16.msra.mxu0 0
    %2393 = vmatpush.bf16.msra.mxu0 0
    %2394 = vmatpush.bf16.msra.mxu0 0
    %2395 = vmatpush.bf16.msra.mxu0 0
    %2396 = vmatpush.bf16.msra.mxu0 0
    %2397 = vmatpush.bf16.msra.mxu0 0
    %2398 = vmatpush.bf16.msra.mxu0 %v2310
    %2399 = vmatmul.bf16.gmra.mxu0 %v2350
    %v2400 = vpop.f32.mrf.mxu0
    %v2401 = vadd.f32 %v2388, %v2400
    %v2402 = vpop.f32.mrf.mxu0
    %2403 = vdwg.mxu0
    %2404 = vmatpush.bf16.msra.mxu0 %v2307
    %2405 = vmatpush.bf16.msra.mxu0 %v2303
    %2406 = vmatpush.bf16.msra.mxu0 %v2299
    %2407 = vmatpush.bf16.msra.mxu0 %v2295
    %2408 = vmatpush.bf16.msra.mxu0 %v2291
    %2409 = vmatpush.bf16.msra.mxu0 %v2287
    %2410 = vmatpush.bf16.msra.mxu0 %v2283
    %2411 = vmatpush.bf16.msra.mxu0 %v2279
    %2412 = vmatmul.bf16.gmra.mxu0 %v2131
    %v2413 = vpop.f32.mrf.mxu0
    %v2414 = vadd.f32 0.0, %v2413
    %v2415 = vpop.f32.mrf.mxu0
    %2416 = vdwg.mxu0
    %2417 = vmatpush.bf16.msra.mxu0 0
    %2418 = vmatpush.bf16.msra.mxu0 0
    %2419 = vmatpush.bf16.msra.mxu0 0
    %2420 = vmatpush.bf16.msra.mxu0 0
    %2421 = vmatpush.bf16.msra.mxu0 0
    %2422 = vmatpush.bf16.msra.mxu0 0
    %2423 = vmatpush.bf16.msra.mxu0 0
    %2424 = vmatpush.bf16.msra.mxu0 %v2311
    %2425 = vmatmul.bf16.gmra.mxu0 %v2350
    %v2426 = vpop.f32.mrf.mxu0
    %v2427 = vadd.f32 %v2414, %v2426
    %v2428 = vpop.f32.mrf.mxu0
    %2429 = vdwg.mxu0
    %2430 = vmatpush.bf16.msra.mxu0 %v2308
    %2431 = vmatpush.bf16.msra.mxu0 %v2304
    %2432 = vmatpush.bf16.msra.mxu0 %v2300
    %2433 = vmatpush.bf16.msra.mxu0 %v2296
    %2434 = vmatpush.bf16.msra.mxu0 %v2292
    %2435 = vmatpush.bf16.msra.mxu0 %v2288
    %2436 = vmatpush.bf16.msra.mxu0 %v2284
    %2437 = vmatpush.bf16.msra.mxu0 %v2280
    %2438 = vmatmul.bf16.gmra.mxu0 %v2131
    %v2439 = vpop.f32.mrf.mxu0
    %v2440 = vadd.f32 0.0, %v2439
    %v2441 = vpop.f32.mrf.mxu0
    %2442 = vdwg.mxu0
    %2443 = vmatpush.bf16.msra.mxu0 0
    %2444 = vmatpush.bf16.msra.mxu0 0
    %2445 = vmatpush.bf16.msra.mxu0 0
    %2446 = vmatpush.bf16.msra.mxu0 0
    %2447 = vmatpush.bf16.msra.mxu0 0
    %2448 = vmatpush.bf16.msra.mxu0 0
    %2449 = vmatpush.bf16.msra.mxu0 0
    %2450 = vmatpush.bf16.msra.mxu0 %v2312
    %2451 = vmatmul.bf16.gmra.mxu0 %v2350
    %v2452 = vpop.f32.mrf.mxu0
    %v2453 = vadd.f32 %v2440, %v2452
    %v2454 = vpop.f32.mrf.mxu0
    %2455 = vdwg.mxu0
    %v2456 = vadd.f32 %v2040, %v2375
    %v2457 = vadd.f32 %v2066, %v2401
    %v2458 = vadd.f32 %v2092, %v2427
    %v2459 = vadd.f32 %v2118, %v2453
    %v2460 = vrot.slane %v1266, 3
    %v2461 = vrot.slane %v1324, 3
    %v2464 = vrot.slane %v1382, 2
    %v2465 = vrot.slane %v1440, 2
    %v2468 = vsel %vm366, %v2460, %v2464
    %v2469 = vsel %vm366, %v2461, %v2465
    %v2470 = vpack.c.bf16 %v2468, %v2468
    %v2471 = vpack.c.bf16 %v2469, %v2469
    %v2472 = vld [vmem:[#allocation2 + $0x360] sm:$0xff]
    %v2473 = vld [vmem:[#allocation2 + $0x368] sm:$0xff]
    %v2474 = vld [vmem:[#allocation2 + $0x370] sm:$0xff]
    %v2475 = vld [vmem:[#allocation2 + $0x378] sm:$0xff]
    %v2476 = vld [vmem:[#allocation2 + $0x380] sm:$0xff]
    %v2477 = vld [vmem:[#allocation2 + $0x388] sm:$0xff]
    %v2478 = vld [vmem:[#allocation2 + $0x390] sm:$0xff]
    %v2479 = vld [vmem:[#allocation2 + $0x398] sm:$0xff]
    %v2480 = vld [vmem:[#allocation2 + $0x3a0] sm:$0xff]
    %v2481 = vld [vmem:[#allocation2 + $0x3a8] sm:$0xff]
    %v2482 = vld [vmem:[#allocation2 + $0x3b0] sm:$0xff]
    %v2483 = vld [vmem:[#allocation2 + $0x3b8] sm:$0xff]
    %v2484 = vld [vmem:[#allocation2 + $0x3c0] sm:$0xff]
    %v2485 = vld [vmem:[#allocation2 + $0x3c8] sm:$0xff]
    %v2486 = vld [vmem:[#allocation2 + $0x3d0] sm:$0xff]
    %v2487 = vld [vmem:[#allocation2 + $0x3d8] sm:$0xff]
    %v2488 = vld [vmem:[#allocation2 + $0x3e0] sm:$0xff]
    %v2489 = vld [vmem:[#allocation2 + $0x3e8] sm:$0xff]
    %v2490 = vld [vmem:[#allocation2 + $0x3f0] sm:$0xff]
    %v2491 = vld [vmem:[#allocation2 + $0x3f8] sm:$0xff]
    %v2492 = vld [vmem:[#allocation2 + $0x400] sm:$0xff]
    %v2493 = vld [vmem:[#allocation2 + $0x408] sm:$0xff]
    %v2494 = vld [vmem:[#allocation2 + $0x410] sm:$0xff]
    %v2495 = vld [vmem:[#allocation2 + $0x418] sm:$0xff]
    %v2496 = vld [vmem:[#allocation2 + $0x420] sm:$0xff]
    %v2497 = vld [vmem:[#allocation2 + $0x428] sm:$0xff]
    %v2498 = vld [vmem:[#allocation2 + $0x430] sm:$0xff]
    %v2499 = vld [vmem:[#allocation2 + $0x438] sm:$0xff]
    %v2500 = vld [vmem:[#allocation2 + $0x440] sm:$0xff]
    %v2501 = vld [vmem:[#allocation2 + $0x448] sm:$0xff]
    %v2502 = vld [vmem:[#allocation2 + $0x450] sm:$0xff]
    %v2503 = vld [vmem:[#allocation2 + $0x458] sm:$0xff]
    %v2504 = vld [vmem:[#allocation2 + $0x460] sm:$0xff]
    %v2505 = vld [vmem:[#allocation2 + $0x468] sm:$0xff]
    %v2506 = vld [vmem:[#allocation2 + $0x470] sm:$0xff]
    %v2507 = vld [vmem:[#allocation2 + $0x478] sm:$0xff]
    %v2544 = vunpack.c.l.b16 %v2472
    %v2545 = vunpack.c.h.b16 %v2472
    %v2546 = vunpack.c.l.b16 %v2473
    %v2547 = vunpack.c.h.b16 %v2473
    %v2548 = vunpack.c.l.b16 %v2474
    %v2549 = vunpack.c.h.b16 %v2474
    %v2550 = vunpack.c.l.b16 %v2475
    %v2551 = vunpack.c.h.b16 %v2475
    %v2552 = vunpack.c.l.b16 %v2476
    %v2553 = vunpack.c.h.b16 %v2476
    %v2554 = vunpack.c.l.b16 %v2477
    %v2555 = vunpack.c.h.b16 %v2477
    %v2556 = vunpack.c.l.b16 %v2478
    %v2557 = vunpack.c.h.b16 %v2478
    %v2558 = vunpack.c.l.b16 %v2479
    %v2559 = vunpack.c.h.b16 %v2479
    %v2560 = vunpack.c.l.b16 %v2480
    %v2561 = vunpack.c.h.b16 %v2480
    %v2562 = vunpack.c.l.b16 %v2481
    %v2563 = vunpack.c.h.b16 %v2481
    %v2564 = vunpack.c.l.b16 %v2482
    %v2565 = vunpack.c.h.b16 %v2482
    %v2566 = vunpack.c.l.b16 %v2483
    %v2567 = vunpack.c.h.b16 %v2483
    %v2568 = vunpack.c.l.b16 %v2484
    %v2569 = vunpack.c.h.b16 %v2484
    %v2570 = vunpack.c.l.b16 %v2485
    %v2571 = vunpack.c.h.b16 %v2485
    %v2572 = vunpack.c.l.b16 %v2486
    %v2573 = vunpack.c.h.b16 %v2486
    %v2574 = vunpack.c.l.b16 %v2487
    %v2575 = vunpack.c.h.b16 %v2487
    %v2576 = vunpack.c.l.b16 %v2488
    %v2577 = vunpack.c.h.b16 %v2488
    %v2578 = vunpack.c.l.b16 %v2489
    %v2579 = vunpack.c.h.b16 %v2489
    %v2580 = vunpack.c.l.b16 %v2490
    %v2581 = vunpack.c.h.b16 %v2490
    %v2582 = vunpack.c.l.b16 %v2491
    %v2583 = vunpack.c.h.b16 %v2491
    %v2584 = vunpack.c.l.b16 %v2492
    %v2585 = vunpack.c.h.b16 %v2492
    %v2586 = vunpack.c.l.b16 %v2493
    %v2587 = vunpack.c.h.b16 %v2493
    %v2588 = vunpack.c.l.b16 %v2494
    %v2589 = vunpack.c.h.b16 %v2494
    %v2590 = vunpack.c.l.b16 %v2495
    %v2591 = vunpack.c.h.b16 %v2495
    %v2592 = vunpack.c.l.b16 %v2496
    %v2593 = vunpack.c.h.b16 %v2496
    %v2594 = vunpack.c.l.b16 %v2497
    %v2595 = vunpack.c.h.b16 %v2497
    %v2596 = vunpack.c.l.b16 %v2498
    %v2597 = vunpack.c.h.b16 %v2498
    %v2598 = vunpack.c.l.b16 %v2499
    %v2599 = vunpack.c.h.b16 %v2499
    %v2600 = vunpack.c.l.b16 %v2500
    %v2601 = vunpack.c.h.b16 %v2500
    %v2602 = vunpack.c.l.b16 %v2501
    %v2603 = vunpack.c.h.b16 %v2501
    %v2604 = vunpack.c.l.b16 %v2502
    %v2605 = vunpack.c.h.b16 %v2502
    %v2606 = vunpack.c.l.b16 %v2503
    %v2607 = vunpack.c.h.b16 %v2503
    %v2608 = vunpack.c.l.b16 %v2504
    %v2609 = vunpack.c.h.b16 %v2504
    %v2610 = vunpack.c.l.b16 %v2505
    %v2611 = vunpack.c.h.b16 %v2505
    %v2612 = vunpack.c.l.b16 %v2506
    %v2613 = vunpack.c.h.b16 %v2506
    %v2614 = vunpack.c.l.b16 %v2507
    %v2615 = vunpack.c.h.b16 %v2507
    %v2616 = vpack.c.b16 %v2548, %v2544
    %v2617 = vpack.c.b16 %v2549, %v2545
    %v2618 = vpack.c.b16 %v2550, %v2546
    %v2619 = vpack.c.b16 %v2551, %v2547
    %v2620 = vpack.c.b16 %v2556, %v2552
    %v2621 = vpack.c.b16 %v2557, %v2553
    %v2622 = vpack.c.b16 %v2558, %v2554
    %v2623 = vpack.c.b16 %v2559, %v2555
    %v2624 = vpack.c.b16 %v2564, %v2560
    %v2625 = vpack.c.b16 %v2565, %v2561
    %v2626 = vpack.c.b16 %v2566, %v2562
    %v2627 = vpack.c.b16 %v2567, %v2563
    %v2628 = vpack.c.b16 %v2572, %v2568
    %v2629 = vpack.c.b16 %v2573, %v2569
    %v2630 = vpack.c.b16 %v2574, %v2570
    %v2631 = vpack.c.b16 %v2575, %v2571
    %v2632 = vpack.c.b16 %v2580, %v2576
    %v2633 = vpack.c.b16 %v2581, %v2577
    %v2634 = vpack.c.b16 %v2582, %v2578
    %v2635 = vpack.c.b16 %v2583, %v2579
    %v2636 = vpack.c.b16 %v2588, %v2584
    %v2637 = vpack.c.b16 %v2589, %v2585
    %v2638 = vpack.c.b16 %v2590, %v2586
    %v2639 = vpack.c.b16 %v2591, %v2587
    %v2640 = vpack.c.b16 %v2596, %v2592
    %v2641 = vpack.c.b16 %v2597, %v2593
    %v2642 = vpack.c.b16 %v2598, %v2594
    %v2643 = vpack.c.b16 %v2599, %v2595
    %v2644 = vpack.c.b16 %v2604, %v2600
    %v2645 = vpack.c.b16 %v2605, %v2601
    %v2646 = vpack.c.b16 %v2606, %v2602
    %v2647 = vpack.c.b16 %v2607, %v2603
    %v2648 = vpack.c.b16 %v2612, %v2608
    %v2649 = vpack.c.b16 %v2613, %v2609
    %v2650 = vpack.c.b16 %v2614, %v2610
    %v2651 = vpack.c.b16 %v2615, %v2611
    %v2689 = vsel %vm894, %v2471, 0
    %2691 = vmatpush.bf16.msra.mxu0 %v2644
    %2692 = vmatpush.bf16.msra.mxu0 %v2640
    %2693 = vmatpush.bf16.msra.mxu0 %v2636
    %2694 = vmatpush.bf16.msra.mxu0 %v2632
    %2695 = vmatpush.bf16.msra.mxu0 %v2628
    %2696 = vmatpush.bf16.msra.mxu0 %v2624
    %2697 = vmatpush.bf16.msra.mxu0 %v2620
    %2698 = vmatpush.bf16.msra.mxu0 %v2616
    %2699 = vmatmul.bf16.gmra.mxu0 %v2470
    %v2700 = vpop.f32.mrf.mxu0
    %v2701 = vadd.f32 0.0, %v2700
    %v2702 = vpop.f32.mrf.mxu0
    %2703 = vdwg.mxu0
    %2704 = vmatpush.bf16.msra.mxu0 0
    %2705 = vmatpush.bf16.msra.mxu0 0
    %2706 = vmatpush.bf16.msra.mxu0 0
    %2707 = vmatpush.bf16.msra.mxu0 0
    %2708 = vmatpush.bf16.msra.mxu0 0
    %2709 = vmatpush.bf16.msra.mxu0 0
    %2710 = vmatpush.bf16.msra.mxu0 0
    %2711 = vmatpush.bf16.msra.mxu0 %v2648
    %2712 = vmatmul.bf16.gmra.mxu0 %v2689
    %v2713 = vpop.f32.mrf.mxu0
    %v2714 = vadd.f32 %v2701, %v2713
    %v2715 = vpop.f32.mrf.mxu0
    %2716 = vdwg.mxu0
    %2717 = vmatpush.bf16.msra.mxu0 %v2645
    %2718 = vmatpush.bf16.msra.mxu0 %v2641
    %2719 = vmatpush.bf16.msra.mxu0 %v2637
    %2720 = vmatpush.bf16.msra.mxu0 %v2633
    %2721 = vmatpush.bf16.msra.mxu0 %v2629
    %2722 = vmatpush.bf16.msra.mxu0 %v2625
    %2723 = vmatpush.bf16.msra.mxu0 %v2621
    %2724 = vmatpush.bf16.msra.mxu0 %v2617
    %2725 = vmatmul.bf16.gmra.mxu0 %v2470
    %v2726 = vpop.f32.mrf.mxu0
    %v2727 = vadd.f32 0.0, %v2726
    %v2728 = vpop.f32.mrf.mxu0
    %2729 = vdwg.mxu0
    %2730 = vmatpush.bf16.msra.mxu0 0
    %2731 = vmatpush.bf16.msra.mxu0 0
    %2732 = vmatpush.bf16.msra.mxu0 0
    %2733 = vmatpush.bf16.msra.mxu0 0
    %2734 = vmatpush.bf16.msra.mxu0 0
    %2735 = vmatpush.bf16.msra.mxu0 0
    %2736 = vmatpush.bf16.msra.mxu0 0
    %2737 = vmatpush.bf16.msra.mxu0 %v2649
    %2738 = vmatmul.bf16.gmra.mxu0 %v2689
    %v2739 = vpop.f32.mrf.mxu0
    %v2740 = vadd.f32 %v2727, %v2739
    %v2741 = vpop.f32.mrf.mxu0
    %2742 = vdwg.mxu0
    %2743 = vmatpush.bf16.msra.mxu0 %v2646
    %2744 = vmatpush.bf16.msra.mxu0 %v2642
    %2745 = vmatpush.bf16.msra.mxu0 %v2638
    %2746 = vmatpush.bf16.msra.mxu0 %v2634
    %2747 = vmatpush.bf16.msra.mxu0 %v2630
    %2748 = vmatpush.bf16.msra.mxu0 %v2626
    %2749 = vmatpush.bf16.msra.mxu0 %v2622
    %2750 = vmatpush.bf16.msra.mxu0 %v2618
    %2751 = vmatmul.bf16.gmra.mxu0 %v2470
    %v2752 = vpop.f32.mrf.mxu0
    %v2753 = vadd.f32 0.0, %v2752
    %v2754 = vpop.f32.mrf.mxu0
    %2755 = vdwg.mxu0
    %2756 = vmatpush.bf16.msra.mxu0 0
    %2757 = vmatpush.bf16.msra.mxu0 0
    %2758 = vmatpush.bf16.msra.mxu0 0
    %2759 = vmatpush.bf16.msra.mxu0 0
    %2760 = vmatpush.bf16.msra.mxu0 0
    %2761 = vmatpush.bf16.msra.mxu0 0
    %2762 = vmatpush.bf16.msra.mxu0 0
    %2763 = vmatpush.bf16.msra.mxu0 %v2650
    %2764 = vmatmul.bf16.gmra.mxu0 %v2689
    %v2765 = vpop.f32.mrf.mxu0
    %v2766 = vadd.f32 %v2753, %v2765
    %v2767 = vpop.f32.mrf.mxu0
    %2768 = vdwg.mxu0
    %2769 = vmatpush.bf16.msra.mxu0 %v2647
    %2770 = vmatpush.bf16.msra.mxu0 %v2643
    %2771 = vmatpush.bf16.msra.mxu0 %v2639
    %2772 = vmatpush.bf16.msra.mxu0 %v2635
    %2773 = vmatpush.bf16.msra.mxu0 %v2631
    %2774 = vmatpush.bf16.msra.mxu0 %v2627
    %2775 = vmatpush.bf16.msra.mxu0 %v2623
    %2776 = vmatpush.bf16.msra.mxu0 %v2619
    %2777 = vmatmul.bf16.gmra.mxu0 %v2470
    %v2778 = vpop.f32.mrf.mxu0
    %v2779 = vadd.f32 0.0, %v2778
    %v2780 = vpop.f32.mrf.mxu0
    %2781 = vdwg.mxu0
    %2782 = vmatpush.bf16.msra.mxu0 0
    %2783 = vmatpush.bf16.msra.mxu0 0
    %2784 = vmatpush.bf16.msra.mxu0 0
    %2785 = vmatpush.bf16.msra.mxu0 0
    %2786 = vmatpush.bf16.msra.mxu0 0
    %2787 = vmatpush.bf16.msra.mxu0 0
    %2788 = vmatpush.bf16.msra.mxu0 0
    %2789 = vmatpush.bf16.msra.mxu0 %v2651
    %2790 = vmatmul.bf16.gmra.mxu0 %v2689
    %v2791 = vpop.f32.mrf.mxu0
    %v2792 = vadd.f32 %v2779, %v2791
    %v2793 = vpop.f32.mrf.mxu0
    %2794 = vdwg.mxu0
    %v2795 = vadd.f32 %v2456, %v2714
    %v2796 = vadd.f32 %v2457, %v2740
    %v2797 = vadd.f32 %v2458, %v2766
    %v2798 = vadd.f32 %v2459, %v2792
    %v2799 = vrot.slane %v1266, 4
    %v2800 = vrot.slane %v1324, 4
    %v2803 = vrot.slane %v1382, 3
    %v2804 = vrot.slane %v1440, 3
    %v2807 = vsel %vm366, %v2799, %v2803
    %v2808 = vsel %vm366, %v2800, %v2804
    %v2809 = vpack.c.bf16 %v2807, %v2807
    %v2810 = vpack.c.bf16 %v2808, %v2808
    %v2811 = vld [vmem:[#allocation2 + $0x480] sm:$0xff]
    %v2812 = vld [vmem:[#allocation2 + $0x488] sm:$0xff]
    %v2813 = vld [vmem:[#allocation2 + $0x490] sm:$0xff]
    %v2814 = vld [vmem:[#allocation2 + $0x498] sm:$0xff]
    %v2815 = vld [vmem:[#allocation2 + $0x4a0] sm:$0xff]
    %v2816 = vld [vmem:[#allocation2 + $0x4a8] sm:$0xff]
    %v2817 = vld [vmem:[#allocation2 + $0x4b0] sm:$0xff]
    %v2818 = vld [vmem:[#allocation2 + $0x4b8] sm:$0xff]
    %v2819 = vld [vmem:[#allocation2 + $0x4c0] sm:$0xff]
    %v2820 = vld [vmem:[#allocation2 + $0x4c8] sm:$0xff]
    %v2821 = vld [vmem:[#allocation2 + $0x4d0] sm:$0xff]
    %v2822 = vld [vmem:[#allocation2 + $0x4d8] sm:$0xff]
    %v2823 = vld [vmem:[#allocation2 + $0x4e0] sm:$0xff]
    %v2824 = vld [vmem:[#allocation2 + $0x4e8] sm:$0xff]
    %v2825 = vld [vmem:[#allocation2 + $0x4f0] sm:$0xff]
    %v2826 = vld [vmem:[#allocation2 + $0x4f8] sm:$0xff]
    %v2827 = vld [vmem:[#allocation2 + $0x500] sm:$0xff]
    %v2828 = vld [vmem:[#allocation2 + $0x508] sm:$0xff]
    %v2829 = vld [vmem:[#allocation2 + $0x510] sm:$0xff]
    %v2830 = vld [vmem:[#allocation2 + $0x518] sm:$0xff]
    %v2831 = vld [vmem:[#allocation2 + $0x520] sm:$0xff]
    %v2832 = vld [vmem:[#allocation2 + $0x528] sm:$0xff]
    %v2833 = vld [vmem:[#allocation2 + $0x530] sm:$0xff]
    %v2834 = vld [vmem:[#allocation2 + $0x538] sm:$0xff]
    %v2835 = vld [vmem:[#allocation2 + $0x540] sm:$0xff]
    %v2836 = vld [vmem:[#allocation2 + $0x548] sm:$0xff]
    %v2837 = vld [vmem:[#allocation2 + $0x550] sm:$0xff]
    %v2838 = vld [vmem:[#allocation2 + $0x558] sm:$0xff]
    %v2839 = vld [vmem:[#allocation2 + $0x560] sm:$0xff]
    %v2840 = vld [vmem:[#allocation2 + $0x568] sm:$0xff]
    %v2841 = vld [vmem:[#allocation2 + $0x570] sm:$0xff]
    %v2842 = vld [vmem:[#allocation2 + $0x578] sm:$0xff]
    %v2843 = vld [vmem:[#allocation2 + $0x580] sm:$0xff]
    %v2844 = vld [vmem:[#allocation2 + $0x588] sm:$0xff]
    %v2845 = vld [vmem:[#allocation2 + $0x590] sm:$0xff]
    %v2846 = vld [vmem:[#allocation2 + $0x598] sm:$0xff]
    %v2883 = vunpack.c.l.b16 %v2811
    %v2884 = vunpack.c.h.b16 %v2811
    %v2885 = vunpack.c.l.b16 %v2812
    %v2886 = vunpack.c.h.b16 %v2812
    %v2887 = vunpack.c.l.b16 %v2813
    %v2888 = vunpack.c.h.b16 %v2813
    %v2889 = vunpack.c.l.b16 %v2814
    %v2890 = vunpack.c.h.b16 %v2814
    %v2891 = vunpack.c.l.b16 %v2815
    %v2892 = vunpack.c.h.b16 %v2815
    %v2893 = vunpack.c.l.b16 %v2816
    %v2894 = vunpack.c.h.b16 %v2816
    %v2895 = vunpack.c.l.b16 %v2817
    %v2896 = vunpack.c.h.b16 %v2817
    %v2897 = vunpack.c.l.b16 %v2818
    %v2898 = vunpack.c.h.b16 %v2818
    %v2899 = vunpack.c.l.b16 %v2819
    %v2900 = vunpack.c.h.b16 %v2819
    %v2901 = vunpack.c.l.b16 %v2820
    %v2902 = vunpack.c.h.b16 %v2820
    %v2903 = vunpack.c.l.b16 %v2821
    %v2904 = vunpack.c.h.b16 %v2821
    %v2905 = vunpack.c.l.b16 %v2822
    %v2906 = vunpack.c.h.b16 %v2822
    %v2907 = vunpack.c.l.b16 %v2823
    %v2908 = vunpack.c.h.b16 %v2823
    %v2909 = vunpack.c.l.b16 %v2824
    %v2910 = vunpack.c.h.b16 %v2824
    %v2911 = vunpack.c.l.b16 %v2825
    %v2912 = vunpack.c.h.b16 %v2825
    %v2913 = vunpack.c.l.b16 %v2826
    %v2914 = vunpack.c.h.b16 %v2826
    %v2915 = vunpack.c.l.b16 %v2827
    %v2916 = vunpack.c.h.b16 %v2827
    %v2917 = vunpack.c.l.b16 %v2828
    %v2918 = vunpack.c.h.b16 %v2828
    %v2919 = vunpack.c.l.b16 %v2829
    %v2920 = vunpack.c.h.b16 %v2829
    %v2921 = vunpack.c.l.b16 %v2830
    %v2922 = vunpack.c.h.b16 %v2830
    %v2923 = vunpack.c.l.b16 %v2831
    %v2924 = vunpack.c.h.b16 %v2831
    %v2925 = vunpack.c.l.b16 %v2832
    %v2926 = vunpack.c.h.b16 %v2832
    %v2927 = vunpack.c.l.b16 %v2833
    %v2928 = vunpack.c.h.b16 %v2833
    %v2929 = vunpack.c.l.b16 %v2834
    %v2930 = vunpack.c.h.b16 %v2834
    %v2931 = vunpack.c.l.b16 %v2835
    %v2932 = vunpack.c.h.b16 %v2835
    %v2933 = vunpack.c.l.b16 %v2836
    %v2934 = vunpack.c.h.b16 %v2836
    %v2935 = vunpack.c.l.b16 %v2837
    %v2936 = vunpack.c.h.b16 %v2837
    %v2937 = vunpack.c.l.b16 %v2838
    %v2938 = vunpack.c.h.b16 %v2838
    %v2939 = vunpack.c.l.b16 %v2839
    %v2940 = vunpack.c.h.b16 %v2839
    %v2941 = vunpack.c.l.b16 %v2840
    %v2942 = vunpack.c.h.b16 %v2840
    %v2943 = vunpack.c.l.b16 %v2841
    %v2944 = vunpack.c.h.b16 %v2841
    %v2945 = vunpack.c.l.b16 %v2842
    %v2946 = vunpack.c.h.b16 %v2842
    %v2947 = vunpack.c.l.b16 %v2843
    %v2948 = vunpack.c.h.b16 %v2843
    %v2949 = vunpack.c.l.b16 %v2844
    %v2950 = vunpack.c.h.b16 %v2844
    %v2951 = vunpack.c.l.b16 %v2845
    %v2952 = vunpack.c.h.b16 %v2845
    %v2953 = vunpack.c.l.b16 %v2846
    %v2954 = vunpack.c.h.b16 %v2846
    %v2955 = vpack.c.b16 %v2887, %v2883
    %v2956 = vpack.c.b16 %v2888, %v2884
    %v2957 = vpack.c.b16 %v2889, %v2885
    %v2958 = vpack.c.b16 %v2890, %v2886
    %v2959 = vpack.c.b16 %v2895, %v2891
    %v2960 = vpack.c.b16 %v2896, %v2892
    %v2961 = vpack.c.b16 %v2897, %v2893
    %v2962 = vpack.c.b16 %v2898, %v2894
    %v2963 = vpack.c.b16 %v2903, %v2899
    %v2964 = vpack.c.b16 %v2904, %v2900
    %v2965 = vpack.c.b16 %v2905, %v2901
    %v2966 = vpack.c.b16 %v2906, %v2902
    %v2967 = vpack.c.b16 %v2911, %v2907
    %v2968 = vpack.c.b16 %v2912, %v2908
    %v2969 = vpack.c.b16 %v2913, %v2909
    %v2970 = vpack.c.b16 %v2914, %v2910
    %v2971 = vpack.c.b16 %v2919, %v2915
    %v2972 = vpack.c.b16 %v2920, %v2916
    %v2973 = vpack.c.b16 %v2921, %v2917
    %v2974 = vpack.c.b16 %v2922, %v2918
    %v2975 = vpack.c.b16 %v2927, %v2923
    %v2976 = vpack.c.b16 %v2928, %v2924
    %v2977 = vpack.c.b16 %v2929, %v2925
    %v2978 = vpack.c.b16 %v2930, %v2926
    %v2979 = vpack.c.b16 %v2935, %v2931
    %v2980 = vpack.c.b16 %v2936, %v2932
    %v2981 = vpack.c.b16 %v2937, %v2933
    %v2982 = vpack.c.b16 %v2938, %v2934
    %v2983 = vpack.c.b16 %v2943, %v2939
    %v2984 = vpack.c.b16 %v2944, %v2940
    %v2985 = vpack.c.b16 %v2945, %v2941
    %v2986 = vpack.c.b16 %v2946, %v2942
    %v2987 = vpack.c.b16 %v2951, %v2947
    %v2988 = vpack.c.b16 %v2952, %v2948
    %v2989 = vpack.c.b16 %v2953, %v2949
    %v2990 = vpack.c.b16 %v2954, %v2950
    %v3028 = vsel %vm894, %v2810, 0
    %3030 = vmatpush.bf16.msra.mxu0 %v2983
    %3031 = vmatpush.bf16.msra.mxu0 %v2979
    %3032 = vmatpush.bf16.msra.mxu0 %v2975
    %3033 = vmatpush.bf16.msra.mxu0 %v2971
    %3034 = vmatpush.bf16.msra.mxu0 %v2967
    %3035 = vmatpush.bf16.msra.mxu0 %v2963
    %3036 = vmatpush.bf16.msra.mxu0 %v2959
    %3037 = vmatpush.bf16.msra.mxu0 %v2955
    %3038 = vmatmul.bf16.gmra.mxu0 %v2809
    %v3039 = vpop.f32.mrf.mxu0
    %v3040 = vadd.f32 0.0, %v3039
    %v3041 = vpop.f32.mrf.mxu0
    %3042 = vdwg.mxu0
    %3043 = vmatpush.bf16.msra.mxu0 0
    %3044 = vmatpush.bf16.msra.mxu0 0
    %3045 = vmatpush.bf16.msra.mxu0 0
    %3046 = vmatpush.bf16.msra.mxu0 0
    %3047 = vmatpush.bf16.msra.mxu0 0
    %3048 = vmatpush.bf16.msra.mxu0 0
    %3049 = vmatpush.bf16.msra.mxu0 0
    %3050 = vmatpush.bf16.msra.mxu0 %v2987
    %3051 = vmatmul.bf16.gmra.mxu0 %v3028
    %v3052 = vpop.f32.mrf.mxu0
    %v3053 = vadd.f32 %v3040, %v3052
    %v3054 = vpop.f32.mrf.mxu0
    %3055 = vdwg.mxu0
    %3056 = vmatpush.bf16.msra.mxu0 %v2984
    %3057 = vmatpush.bf16.msra.mxu0 %v2980
    %3058 = vmatpush.bf16.msra.mxu0 %v2976
    %3059 = vmatpush.bf16.msra.mxu0 %v2972
    %3060 = vmatpush.bf16.msra.mxu0 %v2968
    %3061 = vmatpush.bf16.msra.mxu0 %v2964
    %3062 = vmatpush.bf16.msra.mxu0 %v2960
    %3063 = vmatpush.bf16.msra.mxu0 %v2956
    %3064 = vmatmul.bf16.gmra.mxu0 %v2809
    %v3065 = vpop.f32.mrf.mxu0
    %v3066 = vadd.f32 0.0, %v3065
    %v3067 = vpop.f32.mrf.mxu0
    %3068 = vdwg.mxu0
    %3069 = vmatpush.bf16.msra.mxu0 0
    %3070 = vmatpush.bf16.msra.mxu0 0
    %3071 = vmatpush.bf16.msra.mxu0 0
    %3072 = vmatpush.bf16.msra.mxu0 0
    %3073 = vmatpush.bf16.msra.mxu0 0
    %3074 = vmatpush.bf16.msra.mxu0 0
    %3075 = vmatpush.bf16.msra.mxu0 0
    %3076 = vmatpush.bf16.msra.mxu0 %v2988
    %3077 = vmatmul.bf16.gmra.mxu0 %v3028
    %v3078 = vpop.f32.mrf.mxu0
    %v3079 = vadd.f32 %v3066, %v3078
    %v3080 = vpop.f32.mrf.mxu0
    %3081 = vdwg.mxu0
    %3082 = vmatpush.bf16.msra.mxu0 %v2985
    %3083 = vmatpush.bf16.msra.mxu0 %v2981
    %3084 = vmatpush.bf16.msra.mxu0 %v2977
    %3085 = vmatpush.bf16.msra.mxu0 %v2973
    %3086 = vmatpush.bf16.msra.mxu0 %v2969
    %3087 = vmatpush.bf16.msra.mxu0 %v2965
    %3088 = vmatpush.bf16.msra.mxu0 %v2961
    %3089 = vmatpush.bf16.msra.mxu0 %v2957
    %3090 = vmatmul.bf16.gmra.mxu0 %v2809
    %v3091 = vpop.f32.mrf.mxu0
    %v3092 = vadd.f32 0.0, %v3091
    %v3093 = vpop.f32.mrf.mxu0
    %3094 = vdwg.mxu0
    %3095 = vmatpush.bf16.msra.mxu0 0
    %3096 = vmatpush.bf16.msra.mxu0 0
    %3097 = vmatpush.bf16.msra.mxu0 0
    %3098 = vmatpush.bf16.msra.mxu0 0
    %3099 = vmatpush.bf16.msra.mxu0 0
    %3100 = vmatpush.bf16.msra.mxu0 0
    %3101 = vmatpush.bf16.msra.mxu0 0
    %3102 = vmatpush.bf16.msra.mxu0 %v2989
    %3103 = vmatmul.bf16.gmra.mxu0 %v3028
    %v3104 = vpop.f32.mrf.mxu0
    %v3105 = vadd.f32 %v3092, %v3104
    %v3106 = vpop.f32.mrf.mxu0
    %3107 = vdwg.mxu0
    %3108 = vmatpush.bf16.msra.mxu0 %v2986
    %3109 = vmatpush.bf16.msra.mxu0 %v2982
    %3110 = vmatpush.bf16.msra.mxu0 %v2978
    %3111 = vmatpush.bf16.msra.mxu0 %v2974
    %3112 = vmatpush.bf16.msra.mxu0 %v2970
    %3113 = vmatpush.bf16.msra.mxu0 %v2966
    %3114 = vmatpush.bf16.msra.mxu0 %v2962
    %3115 = vmatpush.bf16.msra.mxu0 %v2958
    %3116 = vmatmul.bf16.gmra.mxu0 %v2809
    %v3117 = vpop.f32.mrf.mxu0
    %v3118 = vadd.f32 0.0, %v3117
    %v3119 = vpop.f32.mrf.mxu0
    %3120 = vdwg.mxu0
    %3121 = vmatpush.bf16.msra.mxu0 0
    %3122 = vmatpush.bf16.msra.mxu0 0
    %3123 = vmatpush.bf16.msra.mxu0 0
    %3124 = vmatpush.bf16.msra.mxu0 0
    %3125 = vmatpush.bf16.msra.mxu0 0
    %3126 = vmatpush.bf16.msra.mxu0 0
    %3127 = vmatpush.bf16.msra.mxu0 0
    %3128 = vmatpush.bf16.msra.mxu0 %v2990
    %3129 = vmatmul.bf16.gmra.mxu0 %v3028
    %v3130 = vpop.f32.mrf.mxu0
    %v3131 = vadd.f32 %v3118, %v3130
    %v3132 = vpop.f32.mrf.mxu0
    %3133 = vdwg.mxu0
    %v3134 = vadd.f32 %v2795, %v3053
    %v3135 = vadd.f32 %v2796, %v3079
    %v3136 = vadd.f32 %v2797, %v3105
    %v3137 = vadd.f32 %v2798, %v3131
    %v3138 = vrot.slane %v1266, 5
    %v3139 = vrot.slane %v1324, 5
    %v3142 = vrot.slane %v1382, 4
    %v3143 = vrot.slane %v1440, 4
    %v3146 = vsel %vm366, %v3138, %v3142
    %v3147 = vsel %vm366, %v3139, %v3143
    %v3148 = vpack.c.bf16 %v3146, %v3146
    %v3149 = vpack.c.bf16 %v3147, %v3147
    %v3150 = vld [vmem:[#allocation2 + $0x5a0] sm:$0xff]
    %v3151 = vld [vmem:[#allocation2 + $0x5a8] sm:$0xff]
    %v3152 = vld [vmem:[#allocation2 + $0x5b0] sm:$0xff]
    %v3153 = vld [vmem:[#allocation2 + $0x5b8] sm:$0xff]
    %v3154 = vld [vmem:[#allocation2 + $0x5c0] sm:$0xff]
    %v3155 = vld [vmem:[#allocation2 + $0x5c8] sm:$0xff]
    %v3156 = vld [vmem:[#allocation2 + $0x5d0] sm:$0xff]
    %v3157 = vld [vmem:[#allocation2 + $0x5d8] sm:$0xff]
    %v3158 = vld [vmem:[#allocation2 + $0x5e0] sm:$0xff]
    %v3159 = vld [vmem:[#allocation2 + $0x5e8] sm:$0xff]
    %v3160 = vld [vmem:[#allocation2 + $0x5f0] sm:$0xff]
    %v3161 = vld [vmem:[#allocation2 + $0x5f8] sm:$0xff]
    %v3162 = vld [vmem:[#allocation2 + $0x600] sm:$0xff]
    %v3163 = vld [vmem:[#allocation2 + $0x608] sm:$0xff]
    %v3164 = vld [vmem:[#allocation2 + $0x610] sm:$0xff]
    %v3165 = vld [vmem:[#allocation2 + $0x618] sm:$0xff]
    %v3166 = vld [vmem:[#allocation2 + $0x620] sm:$0xff]
    %v3167 = vld [vmem:[#allocation2 + $0x628] sm:$0xff]
    %v3168 = vld [vmem:[#allocation2 + $0x630] sm:$0xff]
    %v3169 = vld [vmem:[#allocation2 + $0x638] sm:$0xff]
    %v3170 = vld [vmem:[#allocation2 + $0x640] sm:$0xff]
    %v3171 = vld [vmem:[#allocation2 + $0x648] sm:$0xff]
    %v3172 = vld [vmem:[#allocation2 + $0x650] sm:$0xff]
    %v3173 = vld [vmem:[#allocation2 + $0x658] sm:$0xff]
    %v3174 = vld [vmem:[#allocation2 + $0x660] sm:$0xff]
    %v3175 = vld [vmem:[#allocation2 + $0x668] sm:$0xff]
    %v3176 = vld [vmem:[#allocation2 + $0x670] sm:$0xff]
    %v3177 = vld [vmem:[#allocation2 + $0x678] sm:$0xff]
    %v3178 = vld [vmem:[#allocation2 + $0x680] sm:$0xff]
    %v3179 = vld [vmem:[#allocation2 + $0x688] sm:$0xff]
    %v3180 = vld [vmem:[#allocation2 + $0x690] sm:$0xff]
    %v3181 = vld [vmem:[#allocation2 + $0x698] sm:$0xff]
    %v3182 = vld [vmem:[#allocation2 + $0x6a0] sm:$0xff]
    %v3183 = vld [vmem:[#allocation2 + $0x6a8] sm:$0xff]
    %v3184 = vld [vmem:[#allocation2 + $0x6b0] sm:$0xff]
    %v3185 = vld [vmem:[#allocation2 + $0x6b8] sm:$0xff]
    %v3222 = vunpack.c.l.b16 %v3150
    %v3223 = vunpack.c.h.b16 %v3150
    %v3224 = vunpack.c.l.b16 %v3151
    %v3225 = vunpack.c.h.b16 %v3151
    %v3226 = vunpack.c.l.b16 %v3152
    %v3227 = vunpack.c.h.b16 %v3152
    %v3228 = vunpack.c.l.b16 %v3153
    %v3229 = vunpack.c.h.b16 %v3153
    %v3230 = vunpack.c.l.b16 %v3154
    %v3231 = vunpack.c.h.b16 %v3154
    %v3232 = vunpack.c.l.b16 %v3155
    %v3233 = vunpack.c.h.b16 %v3155
    %v3234 = vunpack.c.l.b16 %v3156
    %v3235 = vunpack.c.h.b16 %v3156
    %v3236 = vunpack.c.l.b16 %v3157
    %v3237 = vunpack.c.h.b16 %v3157
    %v3238 = vunpack.c.l.b16 %v3158
    %v3239 = vunpack.c.h.b16 %v3158
    %v3240 = vunpack.c.l.b16 %v3159
    %v3241 = vunpack.c.h.b16 %v3159
    %v3242 = vunpack.c.l.b16 %v3160
    %v3243 = vunpack.c.h.b16 %v3160
    %v3244 = vunpack.c.l.b16 %v3161
    %v3245 = vunpack.c.h.b16 %v3161
    %v3246 = vunpack.c.l.b16 %v3162
    %v3247 = vunpack.c.h.b16 %v3162
    %v3248 = vunpack.c.l.b16 %v3163
    %v3249 = vunpack.c.h.b16 %v3163
    %v3250 = vunpack.c.l.b16 %v3164
    %v3251 = vunpack.c.h.b16 %v3164
    %v3252 = vunpack.c.l.b16 %v3165
    %v3253 = vunpack.c.h.b16 %v3165
    %v3254 = vunpack.c.l.b16 %v3166
    %v3255 = vunpack.c.h.b16 %v3166
    %v3256 = vunpack.c.l.b16 %v3167
    %v3257 = vunpack.c.h.b16 %v3167
    %v3258 = vunpack.c.l.b16 %v3168
    %v3259 = vunpack.c.h.b16 %v3168
    %v3260 = vunpack.c.l.b16 %v3169
    %v3261 = vunpack.c.h.b16 %v3169
    %v3262 = vunpack.c.l.b16 %v3170
    %v3263 = vunpack.c.h.b16 %v3170
    %v3264 = vunpack.c.l.b16 %v3171
    %v3265 = vunpack.c.h.b16 %v3171
    %v3266 = vunpack.c.l.b16 %v3172
    %v3267 = vunpack.c.h.b16 %v3172
    %v3268 = vunpack.c.l.b16 %v3173
    %v3269 = vunpack.c.h.b16 %v3173
    %v3270 = vunpack.c.l.b16 %v3174
    %v3271 = vunpack.c.h.b16 %v3174
    %v3272 = vunpack.c.l.b16 %v3175
    %v3273 = vunpack.c.h.b16 %v3175
    %v3274 = vunpack.c.l.b16 %v3176
    %v3275 = vunpack.c.h.b16 %v3176
    %v3276 = vunpack.c.l.b16 %v3177
    %v3277 = vunpack.c.h.b16 %v3177
    %v3278 = vunpack.c.l.b16 %v3178
    %v3279 = vunpack.c.h.b16 %v3178
    %v3280 = vunpack.c.l.b16 %v3179
    %v3281 = vunpack.c.h.b16 %v3179
    %v3282 = vunpack.c.l.b16 %v3180
    %v3283 = vunpack.c.h.b16 %v3180
    %v3284 = vunpack.c.l.b16 %v3181
    %v3285 = vunpack.c.h.b16 %v3181
    %v3286 = vunpack.c.l.b16 %v3182
    %v3287 = vunpack.c.h.b16 %v3182
    %v3288 = vunpack.c.l.b16 %v3183
    %v3289 = vunpack.c.h.b16 %v3183
    %v3290 = vunpack.c.l.b16 %v3184
    %v3291 = vunpack.c.h.b16 %v3184
    %v3292 = vunpack.c.l.b16 %v3185
    %v3293 = vunpack.c.h.b16 %v3185
    %v3294 = vpack.c.b16 %v3226, %v3222
    %v3295 = vpack.c.b16 %v3227, %v3223
    %v3296 = vpack.c.b16 %v3228, %v3224
    %v3297 = vpack.c.b16 %v3229, %v3225
    %v3298 = vpack.c.b16 %v3234, %v3230
    %v3299 = vpack.c.b16 %v3235, %v3231
    %v3300 = vpack.c.b16 %v3236, %v3232
    %v3301 = vpack.c.b16 %v3237, %v3233
    %v3302 = vpack.c.b16 %v3242, %v3238
    %v3303 = vpack.c.b16 %v3243, %v3239
    %v3304 = vpack.c.b16 %v3244, %v3240
    %v3305 = vpack.c.b16 %v3245, %v3241
    %v3306 = vpack.c.b16 %v3250, %v3246
    %v3307 = vpack.c.b16 %v3251, %v3247
    %v3308 = vpack.c.b16 %v3252, %v3248
    %v3309 = vpack.c.b16 %v3253, %v3249
    %v3310 = vpack.c.b16 %v3258, %v3254
    %v3311 = vpack.c.b16 %v3259, %v3255
    %v3312 = vpack.c.b16 %v3260, %v3256
    %v3313 = vpack.c.b16 %v3261, %v3257
    %v3314 = vpack.c.b16 %v3266, %v3262
    %v3315 = vpack.c.b16 %v3267, %v3263
    %v3316 = vpack.c.b16 %v3268, %v3264
    %v3317 = vpack.c.b16 %v3269, %v3265
    %v3318 = vpack.c.b16 %v3274, %v3270
    %v3319 = vpack.c.b16 %v3275, %v3271
    %v3320 = vpack.c.b16 %v3276, %v3272
    %v3321 = vpack.c.b16 %v3277, %v3273
    %v3322 = vpack.c.b16 %v3282, %v3278
    %v3323 = vpack.c.b16 %v3283, %v3279
    %v3324 = vpack.c.b16 %v3284, %v3280
    %v3325 = vpack.c.b16 %v3285, %v3281
    %v3326 = vpack.c.b16 %v3290, %v3286
    %v3327 = vpack.c.b16 %v3291, %v3287
    %v3328 = vpack.c.b16 %v3292, %v3288
    %v3329 = vpack.c.b16 %v3293, %v3289
    %v3367 = vsel %vm894, %v3149, 0
    %3369 = vmatpush.bf16.msra.mxu0 %v3322
    %3370 = vmatpush.bf16.msra.mxu0 %v3318
    %3371 = vmatpush.bf16.msra.mxu0 %v3314
    %3372 = vmatpush.bf16.msra.mxu0 %v3310
    %3373 = vmatpush.bf16.msra.mxu0 %v3306
    %3374 = vmatpush.bf16.msra.mxu0 %v3302
    %3375 = vmatpush.bf16.msra.mxu0 %v3298
    %3376 = vmatpush.bf16.msra.mxu0 %v3294
    %3377 = vmatmul.bf16.gmra.mxu0 %v3148
    %v3378 = vpop.f32.mrf.mxu0
    %v3379 = vadd.f32 0.0, %v3378
    %v3380 = vpop.f32.mrf.mxu0
    %3381 = vdwg.mxu0
    %3382 = vmatpush.bf16.msra.mxu0 0
    %3383 = vmatpush.bf16.msra.mxu0 0
    %3384 = vmatpush.bf16.msra.mxu0 0
    %3385 = vmatpush.bf16.msra.mxu0 0
    %3386 = vmatpush.bf16.msra.mxu0 0
    %3387 = vmatpush.bf16.msra.mxu0 0
    %3388 = vmatpush.bf16.msra.mxu0 0
    %3389 = vmatpush.bf16.msra.mxu0 %v3326
    %3390 = vmatmul.bf16.gmra.mxu0 %v3367
    %v3391 = vpop.f32.mrf.mxu0
    %v3392 = vadd.f32 %v3379, %v3391
    %v3393 = vpop.f32.mrf.mxu0
    %3394 = vdwg.mxu0
    %3395 = vmatpush.bf16.msra.mxu0 %v3323
    %3396 = vmatpush.bf16.msra.mxu0 %v3319
    %3397 = vmatpush.bf16.msra.mxu0 %v3315
    %3398 = vmatpush.bf16.msra.mxu0 %v3311
    %3399 = vmatpush.bf16.msra.mxu0 %v3307
    %3400 = vmatpush.bf16.msra.mxu0 %v3303
    %3401 = vmatpush.bf16.msra.mxu0 %v3299
    %3402 = vmatpush.bf16.msra.mxu0 %v3295
    %3403 = vmatmul.bf16.gmra.mxu0 %v3148
    %v3404 = vpop.f32.mrf.mxu0
    %v3405 = vadd.f32 0.0, %v3404
    %v3406 = vpop.f32.mrf.mxu0
    %3407 = vdwg.mxu0
    %3408 = vmatpush.bf16.msra.mxu0 0
    %3409 = vmatpush.bf16.msra.mxu0 0
    %3410 = vmatpush.bf16.msra.mxu0 0
    %3411 = vmatpush.bf16.msra.mxu0 0
    %3412 = vmatpush.bf16.msra.mxu0 0
    %3413 = vmatpush.bf16.msra.mxu0 0
    %3414 = vmatpush.bf16.msra.mxu0 0
    %3415 = vmatpush.bf16.msra.mxu0 %v3327
    %3416 = vmatmul.bf16.gmra.mxu0 %v3367
    %v3417 = vpop.f32.mrf.mxu0
    %v3418 = vadd.f32 %v3405, %v3417
    %v3419 = vpop.f32.mrf.mxu0
    %3420 = vdwg.mxu0
    %3421 = vmatpush.bf16.msra.mxu0 %v3324
    %3422 = vmatpush.bf16.msra.mxu0 %v3320
    %3423 = vmatpush.bf16.msra.mxu0 %v3316
    %3424 = vmatpush.bf16.msra.mxu0 %v3312
    %3425 = vmatpush.bf16.msra.mxu0 %v3308
    %3426 = vmatpush.bf16.msra.mxu0 %v3304
    %3427 = vmatpush.bf16.msra.mxu0 %v3300
    %3428 = vmatpush.bf16.msra.mxu0 %v3296
    %3429 = vmatmul.bf16.gmra.mxu0 %v3148
    %v3430 = vpop.f32.mrf.mxu0
    %v3431 = vadd.f32 0.0, %v3430
    %v3432 = vpop.f32.mrf.mxu0
    %3433 = vdwg.mxu0
    %3434 = vmatpush.bf16.msra.mxu0 0
    %3435 = vmatpush.bf16.msra.mxu0 0
    %3436 = vmatpush.bf16.msra.mxu0 0
    %3437 = vmatpush.bf16.msra.mxu0 0
    %3438 = vmatpush.bf16.msra.mxu0 0
    %3439 = vmatpush.bf16.msra.mxu0 0
    %3440 = vmatpush.bf16.msra.mxu0 0
    %3441 = vmatpush.bf16.msra.mxu0 %v3328
    %3442 = vmatmul.bf16.gmra.mxu0 %v3367
    %v3443 = vpop.f32.mrf.mxu0
    %v3444 = vadd.f32 %v3431, %v3443
    %v3445 = vpop.f32.mrf.mxu0
    %3446 = vdwg.mxu0
    %3447 = vmatpush.bf16.msra.mxu0 %v3325
    %3448 = vmatpush.bf16.msra.mxu0 %v3321
    %3449 = vmatpush.bf16.msra.mxu0 %v3317
    %3450 = vmatpush.bf16.msra.mxu0 %v3313
    %3451 = vmatpush.bf16.msra.mxu0 %v3309
    %3452 = vmatpush.bf16.msra.mxu0 %v3305
    %3453 = vmatpush.bf16.msra.mxu0 %v3301
    %3454 = vmatpush.bf16.msra.mxu0 %v3297
    %3455 = vmatmul.bf16.gmra.mxu0 %v3148
    %v3456 = vpop.f32.mrf.mxu0
    %v3457 = vadd.f32 0.0, %v3456
    %v3458 = vpop.f32.mrf.mxu0
    %3459 = vdwg.mxu0
    %3460 = vmatpush.bf16.msra.mxu0 0
    %3461 = vmatpush.bf16.msra.mxu0 0
    %3462 = vmatpush.bf16.msra.mxu0 0
    %3463 = vmatpush.bf16.msra.mxu0 0
    %3464 = vmatpush.bf16.msra.mxu0 0
    %3465 = vmatpush.bf16.msra.mxu0 0
    %3466 = vmatpush.bf16.msra.mxu0 0
    %3467 = vmatpush.bf16.msra.mxu0 %v3329
    %3468 = vmatmul.bf16.gmra.mxu0 %v3367
    %v3469 = vpop.f32.mrf.mxu0
    %v3470 = vadd.f32 %v3457, %v3469
    %v3471 = vpop.f32.mrf.mxu0
    %3472 = vdwg.mxu0
    %v3473 = vadd.f32 %v3134, %v3392
    %v3474 = vadd.f32 %v3135, %v3418
    %v3475 = vadd.f32 %v3136, %v3444
    %v3476 = vadd.f32 %v3137, %v3470
    %v3477 = vrot.slane %v1266, 6
    %v3478 = vrot.slane %v1324, 6
    %v3481 = vrot.slane %v1382, 5
    %v3482 = vrot.slane %v1440, 5
    %v3485 = vsel %vm366, %v3477, %v3481
    %v3486 = vsel %vm366, %v3478, %v3482
    %v3487 = vpack.c.bf16 %v3485, %v3485
    %v3488 = vpack.c.bf16 %v3486, %v3486
    %v3489 = vld [vmem:[#allocation2 + $0x6c0] sm:$0xff]
    %v3490 = vld [vmem:[#allocation2 + $0x6c8] sm:$0xff]
    %v3491 = vld [vmem:[#allocation2 + $0x6d0] sm:$0xff]
    %v3492 = vld [vmem:[#allocation2 + $0x6d8] sm:$0xff]
    %v3493 = vld [vmem:[#allocation2 + $0x6e0] sm:$0xff]
    %v3494 = vld [vmem:[#allocation2 + $0x6e8] sm:$0xff]
    %v3495 = vld [vmem:[#allocation2 + $0x6f0] sm:$0xff]
    %v3496 = vld [vmem:[#allocation2 + $0x6f8] sm:$0xff]
    %v3497 = vld [vmem:[#allocation2 + $0x700] sm:$0xff]
    %v3498 = vld [vmem:[#allocation2 + $0x708] sm:$0xff]
    %v3499 = vld [vmem:[#allocation2 + $0x710] sm:$0xff]
    %v3500 = vld [vmem:[#allocation2 + $0x718] sm:$0xff]
    %v3501 = vld [vmem:[#allocation2 + $0x720] sm:$0xff]
    %v3502 = vld [vmem:[#allocation2 + $0x728] sm:$0xff]
    %v3503 = vld [vmem:[#allocation2 + $0x730] sm:$0xff]
    %v3504 = vld [vmem:[#allocation2 + $0x738] sm:$0xff]
    %v3505 = vld [vmem:[#allocation2 + $0x740] sm:$0xff]
    %v3506 = vld [vmem:[#allocation2 + $0x748] sm:$0xff]
    %v3507 = vld [vmem:[#allocation2 + $0x750] sm:$0xff]
    %v3508 = vld [vmem:[#allocation2 + $0x758] sm:$0xff]
    %v3509 = vld [vmem:[#allocation2 + $0x760] sm:$0xff]
    %v3510 = vld [vmem:[#allocation2 + $0x768] sm:$0xff]
    %v3511 = vld [vmem:[#allocation2 + $0x770] sm:$0xff]
    %v3512 = vld [vmem:[#allocation2 + $0x778] sm:$0xff]
    %v3513 = vld [vmem:[#allocation2 + $0x780] sm:$0xff]
    %v3514 = vld [vmem:[#allocation2 + $0x788] sm:$0xff]
    %v3515 = vld [vmem:[#allocation2 + $0x790] sm:$0xff]
    %v3516 = vld [vmem:[#allocation2 + $0x798] sm:$0xff]
    %v3517 = vld [vmem:[#allocation2 + $0x7a0] sm:$0xff]
    %v3518 = vld [vmem:[#allocation2 + $0x7a8] sm:$0xff]
    %v3519 = vld [vmem:[#allocation2 + $0x7b0] sm:$0xff]
    %v3520 = vld [vmem:[#allocation2 + $0x7b8] sm:$0xff]
    %v3521 = vld [vmem:[#allocation2 + $0x7c0] sm:$0xff]
    %v3522 = vld [vmem:[#allocation2 + $0x7c8] sm:$0xff]
    %v3523 = vld [vmem:[#allocation2 + $0x7d0] sm:$0xff]
    %v3524 = vld [vmem:[#allocation2 + $0x7d8] sm:$0xff]
    %v3561 = vunpack.c.l.b16 %v3489
    %v3562 = vunpack.c.h.b16 %v3489
    %v3563 = vunpack.c.l.b16 %v3490
    %v3564 = vunpack.c.h.b16 %v3490
    %v3565 = vunpack.c.l.b16 %v3491
    %v3566 = vunpack.c.h.b16 %v3491
    %v3567 = vunpack.c.l.b16 %v3492
    %v3568 = vunpack.c.h.b16 %v3492
    %v3569 = vunpack.c.l.b16 %v3493
    %v3570 = vunpack.c.h.b16 %v3493
    %v3571 = vunpack.c.l.b16 %v3494
    %v3572 = vunpack.c.h.b16 %v3494
    %v3573 = vunpack.c.l.b16 %v3495
    %v3574 = vunpack.c.h.b16 %v3495
    %v3575 = vunpack.c.l.b16 %v3496
    %v3576 = vunpack.c.h.b16 %v3496
    %v3577 = vunpack.c.l.b16 %v3497
    %v3578 = vunpack.c.h.b16 %v3497
    %v3579 = vunpack.c.l.b16 %v3498
    %v3580 = vunpack.c.h.b16 %v3498
    %v3581 = vunpack.c.l.b16 %v3499
    %v3582 = vunpack.c.h.b16 %v3499
    %v3583 = vunpack.c.l.b16 %v3500
    %v3584 = vunpack.c.h.b16 %v3500
    %v3585 = vunpack.c.l.b16 %v3501
    %v3586 = vunpack.c.h.b16 %v3501
    %v3587 = vunpack.c.l.b16 %v3502
    %v3588 = vunpack.c.h.b16 %v3502
    %v3589 = vunpack.c.l.b16 %v3503
    %v3590 = vunpack.c.h.b16 %v3503
    %v3591 = vunpack.c.l.b16 %v3504
    %v3592 = vunpack.c.h.b16 %v3504
    %v3593 = vunpack.c.l.b16 %v3505
    %v3594 = vunpack.c.h.b16 %v3505
    %v3595 = vunpack.c.l.b16 %v3506
    %v3596 = vunpack.c.h.b16 %v3506
    %v3597 = vunpack.c.l.b16 %v3507
    %v3598 = vunpack.c.h.b16 %v3507
    %v3599 = vunpack.c.l.b16 %v3508
    %v3600 = vunpack.c.h.b16 %v3508
    %v3601 = vunpack.c.l.b16 %v3509
    %v3602 = vunpack.c.h.b16 %v3509
    %v3603 = vunpack.c.l.b16 %v3510
    %v3604 = vunpack.c.h.b16 %v3510
    %v3605 = vunpack.c.l.b16 %v3511
    %v3606 = vunpack.c.h.b16 %v3511
    %v3607 = vunpack.c.l.b16 %v3512
    %v3608 = vunpack.c.h.b16 %v3512
    %v3609 = vunpack.c.l.b16 %v3513
    %v3610 = vunpack.c.h.b16 %v3513
    %v3611 = vunpack.c.l.b16 %v3514
    %v3612 = vunpack.c.h.b16 %v3514
    %v3613 = vunpack.c.l.b16 %v3515
    %v3614 = vunpack.c.h.b16 %v3515
    %v3615 = vunpack.c.l.b16 %v3516
    %v3616 = vunpack.c.h.b16 %v3516
    %v3617 = vunpack.c.l.b16 %v3517
    %v3618 = vunpack.c.h.b16 %v3517
    %v3619 = vunpack.c.l.b16 %v3518
    %v3620 = vunpack.c.h.b16 %v3518
    %v3621 = vunpack.c.l.b16 %v3519
    %v3622 = vunpack.c.h.b16 %v3519
    %v3623 = vunpack.c.l.b16 %v3520
    %v3624 = vunpack.c.h.b16 %v3520
    %v3625 = vunpack.c.l.b16 %v3521
    %v3626 = vunpack.c.h.b16 %v3521
    %v3627 = vunpack.c.l.b16 %v3522
    %v3628 = vunpack.c.h.b16 %v3522
    %v3629 = vunpack.c.l.b16 %v3523
    %v3630 = vunpack.c.h.b16 %v3523
    %v3631 = vunpack.c.l.b16 %v3524
    %v3632 = vunpack.c.h.b16 %v3524
    %v3633 = vpack.c.b16 %v3565, %v3561
    %v3634 = vpack.c.b16 %v3566, %v3562
    %v3635 = vpack.c.b16 %v3567, %v3563
    %v3636 = vpack.c.b16 %v3568, %v3564
    %v3637 = vpack.c.b16 %v3573, %v3569
    %v3638 = vpack.c.b16 %v3574, %v3570
    %v3639 = vpack.c.b16 %v3575, %v3571
    %v3640 = vpack.c.b16 %v3576, %v3572
    %v3641 = vpack.c.b16 %v3581, %v3577
    %v3642 = vpack.c.b16 %v3582, %v3578
    %v3643 = vpack.c.b16 %v3583, %v3579
    %v3644 = vpack.c.b16 %v3584, %v3580
    %v3645 = vpack.c.b16 %v3589, %v3585
    %v3646 = vpack.c.b16 %v3590, %v3586
    %v3647 = vpack.c.b16 %v3591, %v3587
    %v3648 = vpack.c.b16 %v3592, %v3588
    %v3649 = vpack.c.b16 %v3597, %v3593
    %v3650 = vpack.c.b16 %v3598, %v3594
    %v3651 = vpack.c.b16 %v3599, %v3595
    %v3652 = vpack.c.b16 %v3600, %v3596
    %v3653 = vpack.c.b16 %v3605, %v3601
    %v3654 = vpack.c.b16 %v3606, %v3602
    %v3655 = vpack.c.b16 %v3607, %v3603
    %v3656 = vpack.c.b16 %v3608, %v3604
    %v3657 = vpack.c.b16 %v3613, %v3609
    %v3658 = vpack.c.b16 %v3614, %v3610
    %v3659 = vpack.c.b16 %v3615, %v3611
    %v3660 = vpack.c.b16 %v3616, %v3612
    %v3661 = vpack.c.b16 %v3621, %v3617
    %v3662 = vpack.c.b16 %v3622, %v3618
    %v3663 = vpack.c.b16 %v3623, %v3619
    %v3664 = vpack.c.b16 %v3624, %v3620
    %v3665 = vpack.c.b16 %v3629, %v3625
    %v3666 = vpack.c.b16 %v3630, %v3626
    %v3667 = vpack.c.b16 %v3631, %v3627
    %v3668 = vpack.c.b16 %v3632, %v3628
    %v3706 = vsel %vm894, %v3488, 0
    %3708 = vmatpush.bf16.msra.mxu0 %v3661
    %3709 = vmatpush.bf16.msra.mxu0 %v3657
    %3710 = vmatpush.bf16.msra.mxu0 %v3653
    %3711 = vmatpush.bf16.msra.mxu0 %v3649
    %3712 = vmatpush.bf16.msra.mxu0 %v3645
    %3713 = vmatpush.bf16.msra.mxu0 %v3641
    %3714 = vmatpush.bf16.msra.mxu0 %v3637
    %3715 = vmatpush.bf16.msra.mxu0 %v3633
    %3716 = vmatmul.bf16.gmra.mxu0 %v3487
    %v3717 = vpop.f32.mrf.mxu0
    %v3718 = vadd.f32 0.0, %v3717
    %v3719 = vpop.f32.mrf.mxu0
    %3720 = vdwg.mxu0
    %3721 = vmatpush.bf16.msra.mxu0 0
    %3722 = vmatpush.bf16.msra.mxu0 0
    %3723 = vmatpush.bf16.msra.mxu0 0
    %3724 = vmatpush.bf16.msra.mxu0 0
    %3725 = vmatpush.bf16.msra.mxu0 0
    %3726 = vmatpush.bf16.msra.mxu0 0
    %3727 = vmatpush.bf16.msra.mxu0 0
    %3728 = vmatpush.bf16.msra.mxu0 %v3665
    %3729 = vmatmul.bf16.gmra.mxu0 %v3706
    %v3730 = vpop.f32.mrf.mxu0
    %v3731 = vadd.f32 %v3718, %v3730
    %v3732 = vpop.f32.mrf.mxu0
    %3733 = vdwg.mxu0
    %3734 = vmatpush.bf16.msra.mxu0 %v3662
    %3735 = vmatpush.bf16.msra.mxu0 %v3658
    %3736 = vmatpush.bf16.msra.mxu0 %v3654
    %3737 = vmatpush.bf16.msra.mxu0 %v3650
    %3738 = vmatpush.bf16.msra.mxu0 %v3646
    %3739 = vmatpush.bf16.msra.mxu0 %v3642
    %3740 = vmatpush.bf16.msra.mxu0 %v3638
    %3741 = vmatpush.bf16.msra.mxu0 %v3634
    %3742 = vmatmul.bf16.gmra.mxu0 %v3487
    %v3743 = vpop.f32.mrf.mxu0
    %v3744 = vadd.f32 0.0, %v3743
    %v3745 = vpop.f32.mrf.mxu0
    %3746 = vdwg.mxu0
    %3747 = vmatpush.bf16.msra.mxu0 0
    %3748 = vmatpush.bf16.msra.mxu0 0
    %3749 = vmatpush.bf16.msra.mxu0 0
    %3750 = vmatpush.bf16.msra.mxu0 0
    %3751 = vmatpush.bf16.msra.mxu0 0
    %3752 = vmatpush.bf16.msra.mxu0 0
    %3753 = vmatpush.bf16.msra.mxu0 0
    %3754 = vmatpush.bf16.msra.mxu0 %v3666
    %3755 = vmatmul.bf16.gmra.mxu0 %v3706
    %v3756 = vpop.f32.mrf.mxu0
    %v3757 = vadd.f32 %v3744, %v3756
    %v3758 = vpop.f32.mrf.mxu0
    %3759 = vdwg.mxu0
    %3760 = vmatpush.bf16.msra.mxu0 %v3663
    %3761 = vmatpush.bf16.msra.mxu0 %v3659
    %3762 = vmatpush.bf16.msra.mxu0 %v3655
    %3763 = vmatpush.bf16.msra.mxu0 %v3651
    %3764 = vmatpush.bf16.msra.mxu0 %v3647
    %3765 = vmatpush.bf16.msra.mxu0 %v3643
    %3766 = vmatpush.bf16.msra.mxu0 %v3639
    %3767 = vmatpush.bf16.msra.mxu0 %v3635
    %3768 = vmatmul.bf16.gmra.mxu0 %v3487
    %v3769 = vpop.f32.mrf.mxu0
    %v3770 = vadd.f32 0.0, %v3769
    %v3771 = vpop.f32.mrf.mxu0
    %3772 = vdwg.mxu0
    %3773 = vmatpush.bf16.msra.mxu0 0
    %3774 = vmatpush.bf16.msra.mxu0 0
    %3775 = vmatpush.bf16.msra.mxu0 0
    %3776 = vmatpush.bf16.msra.mxu0 0
    %3777 = vmatpush.bf16.msra.mxu0 0
    %3778 = vmatpush.bf16.msra.mxu0 0
    %3779 = vmatpush.bf16.msra.mxu0 0
    %3780 = vmatpush.bf16.msra.mxu0 %v3667
    %3781 = vmatmul.bf16.gmra.mxu0 %v3706
    %v3782 = vpop.f32.mrf.mxu0
    %v3783 = vadd.f32 %v3770, %v3782
    %v3784 = vpop.f32.mrf.mxu0
    %3785 = vdwg.mxu0
    %3786 = vmatpush.bf16.msra.mxu0 %v3664
    %3787 = vmatpush.bf16.msra.mxu0 %v3660
    %3788 = vmatpush.bf16.msra.mxu0 %v3656
    %3789 = vmatpush.bf16.msra.mxu0 %v3652
    %3790 = vmatpush.bf16.msra.mxu0 %v3648
    %3791 = vmatpush.bf16.msra.mxu0 %v3644
    %3792 = vmatpush.bf16.msra.mxu0 %v3640
    %3793 = vmatpush.bf16.msra.mxu0 %v3636
    %3794 = vmatmul.bf16.gmra.mxu0 %v3487
    %v3795 = vpop.f32.mrf.mxu0
    %v3796 = vadd.f32 0.0, %v3795
    %v3797 = vpop.f32.mrf.mxu0
    %3798 = vdwg.mxu0
    %3799 = vmatpush.bf16.msra.mxu0 0
    %3800 = vmatpush.bf16.msra.mxu0 0
    %3801 = vmatpush.bf16.msra.mxu0 0
    %3802 = vmatpush.bf16.msra.mxu0 0
    %3803 = vmatpush.bf16.msra.mxu0 0
    %3804 = vmatpush.bf16.msra.mxu0 0
    %3805 = vmatpush.bf16.msra.mxu0 0
    %3806 = vmatpush.bf16.msra.mxu0 %v3668
    %3807 = vmatmul.bf16.gmra.mxu0 %v3706
    %v3808 = vpop.f32.mrf.mxu0
    %v3809 = vadd.f32 %v3796, %v3808
    %v3810 = vpop.f32.mrf.mxu0
    %3811 = vdwg.mxu0
    %v3812 = vadd.f32 %v3473, %v3731
    %v3813 = vadd.f32 %v3474, %v3757
    %v3814 = vadd.f32 %v3475, %v3783
    %v3815 = vadd.f32 %v3476, %v3809
    %v3816 = vrot.slane %v1266, 7
    %v3817 = vrot.slane %v1324, 7
    %v3820 = vrot.slane %v1382, 6
    %v3821 = vrot.slane %v1440, 6
    %v3824 = vsel %vm366, %v3816, %v3820
    %v3825 = vsel %vm366, %v3817, %v3821
    %v3826 = vpack.c.bf16 %v3824, %v3824
    %v3827 = vpack.c.bf16 %v3825, %v3825
    %v3828 = vld [vmem:[#allocation2 + $0x7e0] sm:$0xff]
    %v3829 = vld [vmem:[#allocation2 + $0x7e8] sm:$0xff]
    %v3830 = vld [vmem:[#allocation2 + $0x7f0] sm:$0xff]
    %v3831 = vld [vmem:[#allocation2 + $0x7f8] sm:$0xff]
    %v3832 = vld [vmem:[#allocation2 + $0x800] sm:$0xff]
    %v3833 = vld [vmem:[#allocation2 + $0x808] sm:$0xff]
    %v3834 = vld [vmem:[#allocation2 + $0x810] sm:$0xff]
    %v3835 = vld [vmem:[#allocation2 + $0x818] sm:$0xff]
    %v3836 = vld [vmem:[#allocation2 + $0x820] sm:$0xff]
    %v3837 = vld [vmem:[#allocation2 + $0x828] sm:$0xff]
    %v3838 = vld [vmem:[#allocation2 + $0x830] sm:$0xff]
    %v3839 = vld [vmem:[#allocation2 + $0x838] sm:$0xff]
    %v3840 = vld [vmem:[#allocation2 + $0x840] sm:$0xff]
    %v3841 = vld [vmem:[#allocation2 + $0x848] sm:$0xff]
    %v3842 = vld [vmem:[#allocation2 + $0x850] sm:$0xff]
    %v3843 = vld [vmem:[#allocation2 + $0x858] sm:$0xff]
    %v3844 = vld [vmem:[#allocation2 + $0x860] sm:$0xff]
    %v3845 = vld [vmem:[#allocation2 + $0x868] sm:$0xff]
    %v3846 = vld [vmem:[#allocation2 + $0x870] sm:$0xff]
    %v3847 = vld [vmem:[#allocation2 + $0x878] sm:$0xff]
    %v3848 = vld [vmem:[#allocation2 + $0x880] sm:$0xff]
    %v3849 = vld [vmem:[#allocation2 + $0x888] sm:$0xff]
    %v3850 = vld [vmem:[#allocation2 + $0x890] sm:$0xff]
    %v3851 = vld [vmem:[#allocation2 + $0x898] sm:$0xff]
    %v3852 = vld [vmem:[#allocation2 + $0x8a0] sm:$0xff]
    %v3853 = vld [vmem:[#allocation2 + $0x8a8] sm:$0xff]
    %v3854 = vld [vmem:[#allocation2 + $0x8b0] sm:$0xff]
    %v3855 = vld [vmem:[#allocation2 + $0x8b8] sm:$0xff]
    %v3856 = vld [vmem:[#allocation2 + $0x8c0] sm:$0xff]
    %v3857 = vld [vmem:[#allocation2 + $0x8c8] sm:$0xff]
    %v3858 = vld [vmem:[#allocation2 + $0x8d0] sm:$0xff]
    %v3859 = vld [vmem:[#allocation2 + $0x8d8] sm:$0xff]
    %v3860 = vld [vmem:[#allocation2 + $0x8e0] sm:$0xff]
    %v3861 = vld [vmem:[#allocation2 + $0x8e8] sm:$0xff]
    %v3862 = vld [vmem:[#allocation2 + $0x8f0] sm:$0xff]
    %v3863 = vld [vmem:[#allocation2 + $0x8f8] sm:$0xff]
    %v3900 = vunpack.c.l.b16 %v3828
    %v3901 = vunpack.c.h.b16 %v3828
    %v3902 = vunpack.c.l.b16 %v3829
    %v3903 = vunpack.c.h.b16 %v3829
    %v3904 = vunpack.c.l.b16 %v3830
    %v3905 = vunpack.c.h.b16 %v3830
    %v3906 = vunpack.c.l.b16 %v3831
    %v3907 = vunpack.c.h.b16 %v3831
    %v3908 = vunpack.c.l.b16 %v3832
    %v3909 = vunpack.c.h.b16 %v3832
    %v3910 = vunpack.c.l.b16 %v3833
    %v3911 = vunpack.c.h.b16 %v3833
    %v3912 = vunpack.c.l.b16 %v3834
    %v3913 = vunpack.c.h.b16 %v3834
    %v3914 = vunpack.c.l.b16 %v3835
    %v3915 = vunpack.c.h.b16 %v3835
    %v3916 = vunpack.c.l.b16 %v3836
    %v3917 = vunpack.c.h.b16 %v3836
    %v3918 = vunpack.c.l.b16 %v3837
    %v3919 = vunpack.c.h.b16 %v3837
    %v3920 = vunpack.c.l.b16 %v3838
    %v3921 = vunpack.c.h.b16 %v3838
    %v3922 = vunpack.c.l.b16 %v3839
    %v3923 = vunpack.c.h.b16 %v3839
    %v3924 = vunpack.c.l.b16 %v3840
    %v3925 = vunpack.c.h.b16 %v3840
    %v3926 = vunpack.c.l.b16 %v3841
    %v3927 = vunpack.c.h.b16 %v3841
    %v3928 = vunpack.c.l.b16 %v3842
    %v3929 = vunpack.c.h.b16 %v3842
    %v3930 = vunpack.c.l.b16 %v3843
    %v3931 = vunpack.c.h.b16 %v3843
    %v3932 = vunpack.c.l.b16 %v3844
    %v3933 = vunpack.c.h.b16 %v3844
    %v3934 = vunpack.c.l.b16 %v3845
    %v3935 = vunpack.c.h.b16 %v3845
    %v3936 = vunpack.c.l.b16 %v3846
    %v3937 = vunpack.c.h.b16 %v3846
    %v3938 = vunpack.c.l.b16 %v3847
    %v3939 = vunpack.c.h.b16 %v3847
    %v3940 = vunpack.c.l.b16 %v3848
    %v3941 = vunpack.c.h.b16 %v3848
    %v3942 = vunpack.c.l.b16 %v3849
    %v3943 = vunpack.c.h.b16 %v3849
    %v3944 = vunpack.c.l.b16 %v3850
    %v3945 = vunpack.c.h.b16 %v3850
    %v3946 = vunpack.c.l.b16 %v3851
    %v3947 = vunpack.c.h.b16 %v3851
    %v3948 = vunpack.c.l.b16 %v3852
    %v3949 = vunpack.c.h.b16 %v3852
    %v3950 = vunpack.c.l.b16 %v3853
    %v3951 = vunpack.c.h.b16 %v3853
    %v3952 = vunpack.c.l.b16 %v3854
    %v3953 = vunpack.c.h.b16 %v3854
    %v3954 = vunpack.c.l.b16 %v3855
    %v3955 = vunpack.c.h.b16 %v3855
    %v3956 = vunpack.c.l.b16 %v3856
    %v3957 = vunpack.c.h.b16 %v3856
    %v3958 = vunpack.c.l.b16 %v3857
    %v3959 = vunpack.c.h.b16 %v3857
    %v3960 = vunpack.c.l.b16 %v3858
    %v3961 = vunpack.c.h.b16 %v3858
    %v3962 = vunpack.c.l.b16 %v3859
    %v3963 = vunpack.c.h.b16 %v3859
    %v3964 = vunpack.c.l.b16 %v3860
    %v3965 = vunpack.c.h.b16 %v3860
    %v3966 = vunpack.c.l.b16 %v3861
    %v3967 = vunpack.c.h.b16 %v3861
    %v3968 = vunpack.c.l.b16 %v3862
    %v3969 = vunpack.c.h.b16 %v3862
    %v3970 = vunpack.c.l.b16 %v3863
    %v3971 = vunpack.c.h.b16 %v3863
    %v3972 = vpack.c.b16 %v3904, %v3900
    %v3973 = vpack.c.b16 %v3905, %v3901
    %v3974 = vpack.c.b16 %v3906, %v3902
    %v3975 = vpack.c.b16 %v3907, %v3903
    %v3976 = vpack.c.b16 %v3912, %v3908
    %v3977 = vpack.c.b16 %v3913, %v3909
    %v3978 = vpack.c.b16 %v3914, %v3910
    %v3979 = vpack.c.b16 %v3915, %v3911
    %v3980 = vpack.c.b16 %v3920, %v3916
    %v3981 = vpack.c.b16 %v3921, %v3917
    %v3982 = vpack.c.b16 %v3922, %v3918
    %v3983 = vpack.c.b16 %v3923, %v3919
    %v3984 = vpack.c.b16 %v3928, %v3924
    %v3985 = vpack.c.b16 %v3929, %v3925
    %v3986 = vpack.c.b16 %v3930, %v3926
    %v3987 = vpack.c.b16 %v3931, %v3927
    %v3988 = vpack.c.b16 %v3936, %v3932
    %v3989 = vpack.c.b16 %v3937, %v3933
    %v3990 = vpack.c.b16 %v3938, %v3934
    %v3991 = vpack.c.b16 %v3939, %v3935
    %v3992 = vpack.c.b16 %v3944, %v3940
    %v3993 = vpack.c.b16 %v3945, %v3941
    %v3994 = vpack.c.b16 %v3946, %v3942
    %v3995 = vpack.c.b16 %v3947, %v3943
    %v3996 = vpack.c.b16 %v3952, %v3948
    %v3997 = vpack.c.b16 %v3953, %v3949
    %v3998 = vpack.c.b16 %v3954, %v3950
    %v3999 = vpack.c.b16 %v3955, %v3951
    %v4000 = vpack.c.b16 %v3960, %v3956
    %v4001 = vpack.c.b16 %v3961, %v3957
    %v4002 = vpack.c.b16 %v3962, %v3958
    %v4003 = vpack.c.b16 %v3963, %v3959
    %v4004 = vpack.c.b16 %v3968, %v3964
    %v4005 = vpack.c.b16 %v3969, %v3965
    %v4006 = vpack.c.b16 %v3970, %v3966
    %v4007 = vpack.c.b16 %v3971, %v3967
    %v4045 = vsel %vm894, %v3827, 0
    %4047 = vmatpush.bf16.msra.mxu0 %v4000
    %4048 = vmatpush.bf16.msra.mxu0 %v3996
    %4049 = vmatpush.bf16.msra.mxu0 %v3992
    %4050 = vmatpush.bf16.msra.mxu0 %v3988
    %4051 = vmatpush.bf16.msra.mxu0 %v3984
    %4052 = vmatpush.bf16.msra.mxu0 %v3980
    %4053 = vmatpush.bf16.msra.mxu0 %v3976
    %4054 = vmatpush.bf16.msra.mxu0 %v3972
    %4055 = vmatmul.bf16.gmra.mxu0 %v3826
    %v4056 = vpop.f32.mrf.mxu0
    %v4057 = vadd.f32 0.0, %v4056
    %v4058 = vpop.f32.mrf.mxu0
    %4059 = vdwg.mxu0
    %4060 = vmatpush.bf16.msra.mxu0 0
    %4061 = vmatpush.bf16.msra.mxu0 0
    %4062 = vmatpush.bf16.msra.mxu0 0
    %4063 = vmatpush.bf16.msra.mxu0 0
    %4064 = vmatpush.bf16.msra.mxu0 0
    %4065 = vmatpush.bf16.msra.mxu0 0
    %4066 = vmatpush.bf16.msra.mxu0 0
    %4067 = vmatpush.bf16.msra.mxu0 %v4004
    %4068 = vmatmul.bf16.gmra.mxu0 %v4045
    %v4069 = vpop.f32.mrf.mxu0
    %v4070 = vadd.f32 %v4057, %v4069
    %v4071 = vpop.f32.mrf.mxu0
    %4072 = vdwg.mxu0
    %4073 = vmatpush.bf16.msra.mxu0 %v4001
    %4074 = vmatpush.bf16.msra.mxu0 %v3997
    %4075 = vmatpush.bf16.msra.mxu0 %v3993
    %4076 = vmatpush.bf16.msra.mxu0 %v3989
    %4077 = vmatpush.bf16.msra.mxu0 %v3985
    %4078 = vmatpush.bf16.msra.mxu0 %v3981
    %4079 = vmatpush.bf16.msra.mxu0 %v3977
    %4080 = vmatpush.bf16.msra.mxu0 %v3973
    %4081 = vmatmul.bf16.gmra.mxu0 %v3826
    %v4082 = vpop.f32.mrf.mxu0
    %v4083 = vadd.f32 0.0, %v4082
    %v4084 = vpop.f32.mrf.mxu0
    %4085 = vdwg.mxu0
    %4086 = vmatpush.bf16.msra.mxu0 0
    %4087 = vmatpush.bf16.msra.mxu0 0
    %4088 = vmatpush.bf16.msra.mxu0 0
    %4089 = vmatpush.bf16.msra.mxu0 0
    %4090 = vmatpush.bf16.msra.mxu0 0
    %4091 = vmatpush.bf16.msra.mxu0 0
    %4092 = vmatpush.bf16.msra.mxu0 0
    %4093 = vmatpush.bf16.msra.mxu0 %v4005
    %4094 = vmatmul.bf16.gmra.mxu0 %v4045
    %v4095 = vpop.f32.mrf.mxu0
    %v4096 = vadd.f32 %v4083, %v4095
    %v4097 = vpop.f32.mrf.mxu0
    %4098 = vdwg.mxu0
    %4099 = vmatpush.bf16.msra.mxu0 %v4002
    %4100 = vmatpush.bf16.msra.mxu0 %v3998
    %4101 = vmatpush.bf16.msra.mxu0 %v3994
    %4102 = vmatpush.bf16.msra.mxu0 %v3990
    %4103 = vmatpush.bf16.msra.mxu0 %v3986
    %4104 = vmatpush.bf16.msra.mxu0 %v3982
    %4105 = vmatpush.bf16.msra.mxu0 %v3978
    %4106 = vmatpush.bf16.msra.mxu0 %v3974
    %4107 = vmatmul.bf16.gmra.mxu0 %v3826
    %v4108 = vpop.f32.mrf.mxu0
    %v4109 = vadd.f32 0.0, %v4108
    %v4110 = vpop.f32.mrf.mxu0
    %4111 = vdwg.mxu0
    %4112 = vmatpush.bf16.msra.mxu0 0
    %4113 = vmatpush.bf16.msra.mxu0 0
    %4114 = vmatpush.bf16.msra.mxu0 0
    %4115 = vmatpush.bf16.msra.mxu0 0
    %4116 = vmatpush.bf16.msra.mxu0 0
    %4117 = vmatpush.bf16.msra.mxu0 0
    %4118 = vmatpush.bf16.msra.mxu0 0
    %4119 = vmatpush.bf16.msra.mxu0 %v4006
    %4120 = vmatmul.bf16.gmra.mxu0 %v4045
    %v4121 = vpop.f32.mrf.mxu0
    %v4122 = vadd.f32 %v4109, %v4121
    %v4123 = vpop.f32.mrf.mxu0
    %4124 = vdwg.mxu0
    %4125 = vmatpush.bf16.msra.mxu0 %v4003
    %4126 = vmatpush.bf16.msra.mxu0 %v3999
    %4127 = vmatpush.bf16.msra.mxu0 %v3995
    %4128 = vmatpush.bf16.msra.mxu0 %v3991
    %4129 = vmatpush.bf16.msra.mxu0 %v3987
    %4130 = vmatpush.bf16.msra.mxu0 %v3983
    %4131 = vmatpush.bf16.msra.mxu0 %v3979
    %4132 = vmatpush.bf16.msra.mxu0 %v3975
    %4133 = vmatmul.bf16.gmra.mxu0 %v3826
    %v4134 = vpop.f32.mrf.mxu0
    %v4135 = vadd.f32 0.0, %v4134
    %v4136 = vpop.f32.mrf.mxu0
    %4137 = vdwg.mxu0
    %4138 = vmatpush.bf16.msra.mxu0 0
    %4139 = vmatpush.bf16.msra.mxu0 0
    %4140 = vmatpush.bf16.msra.mxu0 0
    %4141 = vmatpush.bf16.msra.mxu0 0
    %4142 = vmatpush.bf16.msra.mxu0 0
    %4143 = vmatpush.bf16.msra.mxu0 0
    %4144 = vmatpush.bf16.msra.mxu0 0
    %4145 = vmatpush.bf16.msra.mxu0 %v4007
    %4146 = vmatmul.bf16.gmra.mxu0 %v4045
    %v4147 = vpop.f32.mrf.mxu0
    %v4148 = vadd.f32 %v4135, %v4147
    %v4149 = vpop.f32.mrf.mxu0
    %4150 = vdwg.mxu0
    %v4151 = vadd.f32 %v3812, %v4070
    %v4152 = vadd.f32 %v3813, %v4096
    %v4153 = vadd.f32 %v3814, %v4122
    %v4154 = vadd.f32 %v3815, %v4148
    %s4155 = sshll.u32 %s1452, 4
    %4156 = dma.done %s128, %s4155
    %v4159 = vrot.slane %v1385, 7
    %v4160 = vrot.slane %v1443, 7
    %v4163 = vsel %vm366, %v1269, %v4159
    %v4164 = vsel %vm366, %v1327, %v4160
    %v4165 = vpack.c.bf16 %v4163, %v4163
    %v4166 = vpack.c.bf16 %v4164, %v4164
    %v4167 = vld [vmem:[#allocation2 + $0x900] sm:$0xff]
    %v4168 = vld [vmem:[#allocation2 + $0x908] sm:$0xff]
    %v4169 = vld [vmem:[#allocation2 + $0x910] sm:$0xff]
    %v4170 = vld [vmem:[#allocation2 + $0x918] sm:$0xff]
    %v4171 = vld [vmem:[#allocation2 + $0x920] sm:$0xff]
    %v4172 = vld [vmem:[#allocation2 + $0x928] sm:$0xff]
    %v4173 = vld [vmem:[#allocation2 + $0x930] sm:$0xff]
    %v4174 = vld [vmem:[#allocation2 + $0x938] sm:$0xff]
    %v4175 = vld [vmem:[#allocation2 + $0x940] sm:$0xff]
    %v4176 = vld [vmem:[#allocation2 + $0x948] sm:$0xff]
    %v4177 = vld [vmem:[#allocation2 + $0x950] sm:$0xff]
    %v4178 = vld [vmem:[#allocation2 + $0x958] sm:$0xff]
    %v4179 = vld [vmem:[#allocation2 + $0x960] sm:$0xff]
    %v4180 = vld [vmem:[#allocation2 + $0x968] sm:$0xff]
    %v4181 = vld [vmem:[#allocation2 + $0x970] sm:$0xff]
    %v4182 = vld [vmem:[#allocation2 + $0x978] sm:$0xff]
    %v4183 = vld [vmem:[#allocation2 + $0x980] sm:$0xff]
    %v4184 = vld [vmem:[#allocation2 + $0x988] sm:$0xff]
    %v4185 = vld [vmem:[#allocation2 + $0x990] sm:$0xff]
    %v4186 = vld [vmem:[#allocation2 + $0x998] sm:$0xff]
    %v4187 = vld [vmem:[#allocation2 + $0x9a0] sm:$0xff]
    %v4188 = vld [vmem:[#allocation2 + $0x9a8] sm:$0xff]
    %v4189 = vld [vmem:[#allocation2 + $0x9b0] sm:$0xff]
    %v4190 = vld [vmem:[#allocation2 + $0x9b8] sm:$0xff]
    %v4191 = vld [vmem:[#allocation2 + $0x9c0] sm:$0xff]
    %v4192 = vld [vmem:[#allocation2 + $0x9c8] sm:$0xff]
    %v4193 = vld [vmem:[#allocation2 + $0x9d0] sm:$0xff]
    %v4194 = vld [vmem:[#allocation2 + $0x9d8] sm:$0xff]
    %v4195 = vld [vmem:[#allocation2 + $0x9e0] sm:$0xff]
    %v4196 = vld [vmem:[#allocation2 + $0x9e8] sm:$0xff]
    %v4197 = vld [vmem:[#allocation2 + $0x9f0] sm:$0xff]
    %v4198 = vld [vmem:[#allocation2 + $0x9f8] sm:$0xff]
    %v4199 = vld [vmem:[#allocation2 + $0xa00] sm:$0xff]
    %v4200 = vld [vmem:[#allocation2 + $0xa08] sm:$0xff]
    %v4201 = vld [vmem:[#allocation2 + $0xa10] sm:$0xff]
    %v4202 = vld [vmem:[#allocation2 + $0xa18] sm:$0xff]
    %v4239 = vunpack.c.l.b16 %v4167
    %v4240 = vunpack.c.h.b16 %v4167
    %v4241 = vunpack.c.l.b16 %v4168
    %v4242 = vunpack.c.h.b16 %v4168
    %v4243 = vunpack.c.l.b16 %v4169
    %v4244 = vunpack.c.h.b16 %v4169
    %v4245 = vunpack.c.l.b16 %v4170
    %v4246 = vunpack.c.h.b16 %v4170
    %v4247 = vunpack.c.l.b16 %v4171
    %v4248 = vunpack.c.h.b16 %v4171
    %v4249 = vunpack.c.l.b16 %v4172
    %v4250 = vunpack.c.h.b16 %v4172
    %v4251 = vunpack.c.l.b16 %v4173
    %v4252 = vunpack.c.h.b16 %v4173
    %v4253 = vunpack.c.l.b16 %v4174
    %v4254 = vunpack.c.h.b16 %v4174
    %v4255 = vunpack.c.l.b16 %v4175
    %v4256 = vunpack.c.h.b16 %v4175
    %v4257 = vunpack.c.l.b16 %v4176
    %v4258 = vunpack.c.h.b16 %v4176
    %v4259 = vunpack.c.l.b16 %v4177
    %v4260 = vunpack.c.h.b16 %v4177
    %v4261 = vunpack.c.l.b16 %v4178
    %v4262 = vunpack.c.h.b16 %v4178
    %v4263 = vunpack.c.l.b16 %v4179
    %v4264 = vunpack.c.h.b16 %v4179
    %v4265 = vunpack.c.l.b16 %v4180
    %v4266 = vunpack.c.h.b16 %v4180
    %v4267 = vunpack.c.l.b16 %v4181
    %v4268 = vunpack.c.h.b16 %v4181
    %v4269 = vunpack.c.l.b16 %v4182
    %v4270 = vunpack.c.h.b16 %v4182
    %v4271 = vunpack.c.l.b16 %v4183
    %v4272 = vunpack.c.h.b16 %v4183
    %v4273 = vunpack.c.l.b16 %v4184
    %v4274 = vunpack.c.h.b16 %v4184
    %v4275 = vunpack.c.l.b16 %v4185
    %v4276 = vunpack.c.h.b16 %v4185
    %v4277 = vunpack.c.l.b16 %v4186
    %v4278 = vunpack.c.h.b16 %v4186
    %v4279 = vunpack.c.l.b16 %v4187
    %v4280 = vunpack.c.h.b16 %v4187
    %v4281 = vunpack.c.l.b16 %v4188
    %v4282 = vunpack.c.h.b16 %v4188
    %v4283 = vunpack.c.l.b16 %v4189
    %v4284 = vunpack.c.h.b16 %v4189
    %v4285 = vunpack.c.l.b16 %v4190
    %v4286 = vunpack.c.h.b16 %v4190
    %v4287 = vunpack.c.l.b16 %v4191
    %v4288 = vunpack.c.h.b16 %v4191
    %v4289 = vunpack.c.l.b16 %v4192
    %v4290 = vunpack.c.h.b16 %v4192
    %v4291 = vunpack.c.l.b16 %v4193
    %v4292 = vunpack.c.h.b16 %v4193
    %v4293 = vunpack.c.l.b16 %v4194
    %v4294 = vunpack.c.h.b16 %v4194
    %v4295 = vunpack.c.l.b16 %v4195
    %v4296 = vunpack.c.h.b16 %v4195
    %v4297 = vunpack.c.l.b16 %v4196
    %v4298 = vunpack.c.h.b16 %v4196
    %v4299 = vunpack.c.l.b16 %v4197
    %v4300 = vunpack.c.h.b16 %v4197
    %v4301 = vunpack.c.l.b16 %v4198
    %v4302 = vunpack.c.h.b16 %v4198
    %v4303 = vunpack.c.l.b16 %v4199
    %v4304 = vunpack.c.h.b16 %v4199
    %v4305 = vunpack.c.l.b16 %v4200
    %v4306 = vunpack.c.h.b16 %v4200
    %v4307 = vunpack.c.l.b16 %v4201
    %v4308 = vunpack.c.h.b16 %v4201
    %v4309 = vunpack.c.l.b16 %v4202
    %v4310 = vunpack.c.h.b16 %v4202
    %v4311 = vpack.c.b16 %v4243, %v4239
    %v4312 = vpack.c.b16 %v4244, %v4240
    %v4313 = vpack.c.b16 %v4245, %v4241
    %v4314 = vpack.c.b16 %v4246, %v4242
    %v4315 = vpack.c.b16 %v4251, %v4247
    %v4316 = vpack.c.b16 %v4252, %v4248
    %v4317 = vpack.c.b16 %v4253, %v4249
    %v4318 = vpack.c.b16 %v4254, %v4250
    %v4319 = vpack.c.b16 %v4259, %v4255
    %v4320 = vpack.c.b16 %v4260, %v4256
    %v4321 = vpack.c.b16 %v4261, %v4257
    %v4322 = vpack.c.b16 %v4262, %v4258
    %v4323 = vpack.c.b16 %v4267, %v4263
    %v4324 = vpack.c.b16 %v4268, %v4264
    %v4325 = vpack.c.b16 %v4269, %v4265
    %v4326 = vpack.c.b16 %v4270, %v4266
    %v4327 = vpack.c.b16 %v4275, %v4271
    %v4328 = vpack.c.b16 %v4276, %v4272
    %v4329 = vpack.c.b16 %v4277, %v4273
    %v4330 = vpack.c.b16 %v4278, %v4274
    %v4331 = vpack.c.b16 %v4283, %v4279
    %v4332 = vpack.c.b16 %v4284, %v4280
    %v4333 = vpack.c.b16 %v4285, %v4281
    %v4334 = vpack.c.b16 %v4286, %v4282
    %v4335 = vpack.c.b16 %v4291, %v4287
    %v4336 = vpack.c.b16 %v4292, %v4288
    %v4337 = vpack.c.b16 %v4293, %v4289
    %v4338 = vpack.c.b16 %v4294, %v4290
    %v4339 = vpack.c.b16 %v4299, %v4295
    %v4340 = vpack.c.b16 %v4300, %v4296
    %v4341 = vpack.c.b16 %v4301, %v4297
    %v4342 = vpack.c.b16 %v4302, %v4298
    %v4343 = vpack.c.b16 %v4307, %v4303
    %v4344 = vpack.c.b16 %v4308, %v4304
    %v4345 = vpack.c.b16 %v4309, %v4305
    %v4346 = vpack.c.b16 %v4310, %v4306
    %v4384 = vsel %vm894, %v4166, 0
    %4386 = vmatpush.bf16.msra.mxu0 %v4339
    %4387 = vmatpush.bf16.msra.mxu0 %v4335
    %4388 = vmatpush.bf16.msra.mxu0 %v4331
    %4389 = vmatpush.bf16.msra.mxu0 %v4327
    %4390 = vmatpush.bf16.msra.mxu0 %v4323
    %4391 = vmatpush.bf16.msra.mxu0 %v4319
    %4392 = vmatpush.bf16.msra.mxu0 %v4315
    %4393 = vmatpush.bf16.msra.mxu0 %v4311
    %4394 = vmatmul.bf16.gmra.mxu0 %v4165
    %v4395 = vpop.f32.mrf.mxu0
    %v4396 = vadd.f32 0.0, %v4395
    %v4397 = vpop.f32.mrf.mxu0
    %4398 = vdwg.mxu0
    %4399 = vmatpush.bf16.msra.mxu0 0
    %4400 = vmatpush.bf16.msra.mxu0 0
    %4401 = vmatpush.bf16.msra.mxu0 0
    %4402 = vmatpush.bf16.msra.mxu0 0
    %4403 = vmatpush.bf16.msra.mxu0 0
    %4404 = vmatpush.bf16.msra.mxu0 0
    %4405 = vmatpush.bf16.msra.mxu0 0
    %4406 = vmatpush.bf16.msra.mxu0 %v4343
    %4407 = vmatmul.bf16.gmra.mxu0 %v4384
    %v4408 = vpop.f32.mrf.mxu0
    %v4409 = vadd.f32 %v4396, %v4408
    %v4410 = vpop.f32.mrf.mxu0
    %4411 = vdwg.mxu0
    %4412 = vmatpush.bf16.msra.mxu0 %v4340
    %4413 = vmatpush.bf16.msra.mxu0 %v4336
    %4414 = vmatpush.bf16.msra.mxu0 %v4332
    %4415 = vmatpush.bf16.msra.mxu0 %v4328
    %4416 = vmatpush.bf16.msra.mxu0 %v4324
    %4417 = vmatpush.bf16.msra.mxu0 %v4320
    %4418 = vmatpush.bf16.msra.mxu0 %v4316
    %4419 = vmatpush.bf16.msra.mxu0 %v4312
    %4420 = vmatmul.bf16.gmra.mxu0 %v4165
    %v4421 = vpop.f32.mrf.mxu0
    %v4422 = vadd.f32 0.0, %v4421
    %v4423 = vpop.f32.mrf.mxu0
    %4424 = vdwg.mxu0
    %4425 = vmatpush.bf16.msra.mxu0 0
    %4426 = vmatpush.bf16.msra.mxu0 0
    %4427 = vmatpush.bf16.msra.mxu0 0
    %4428 = vmatpush.bf16.msra.mxu0 0
    %4429 = vmatpush.bf16.msra.mxu0 0
    %4430 = vmatpush.bf16.msra.mxu0 0
    %4431 = vmatpush.bf16.msra.mxu0 0
    %4432 = vmatpush.bf16.msra.mxu0 %v4344
    %4433 = vmatmul.bf16.gmra.mxu0 %v4384
    %v4434 = vpop.f32.mrf.mxu0
    %v4435 = vadd.f32 %v4422, %v4434
    %v4436 = vpop.f32.mrf.mxu0
    %4437 = vdwg.mxu0
    %4438 = vmatpush.bf16.msra.mxu0 %v4341
    %4439 = vmatpush.bf16.msra.mxu0 %v4337
    %4440 = vmatpush.bf16.msra.mxu0 %v4333
    %4441 = vmatpush.bf16.msra.mxu0 %v4329
    %4442 = vmatpush.bf16.msra.mxu0 %v4325
    %4443 = vmatpush.bf16.msra.mxu0 %v4321
    %4444 = vmatpush.bf16.msra.mxu0 %v4317
    %4445 = vmatpush.bf16.msra.mxu0 %v4313
    %4446 = vmatmul.bf16.gmra.mxu0 %v4165
    %v4447 = vpop.f32.mrf.mxu0
    %v4448 = vadd.f32 0.0, %v4447
    %v4449 = vpop.f32.mrf.mxu0
    %4450 = vdwg.mxu0
    %4451 = vmatpush.bf16.msra.mxu0 0
    %4452 = vmatpush.bf16.msra.mxu0 0
    %4453 = vmatpush.bf16.msra.mxu0 0
    %4454 = vmatpush.bf16.msra.mxu0 0
    %4455 = vmatpush.bf16.msra.mxu0 0
    %4456 = vmatpush.bf16.msra.mxu0 0
    %4457 = vmatpush.bf16.msra.mxu0 0
    %4458 = vmatpush.bf16.msra.mxu0 %v4345
    %4459 = vmatmul.bf16.gmra.mxu0 %v4384
    %v4460 = vpop.f32.mrf.mxu0
    %v4461 = vadd.f32 %v4448, %v4460
    %v4462 = vpop.f32.mrf.mxu0
    %4463 = vdwg.mxu0
    %4464 = vmatpush.bf16.msra.mxu0 %v4342
    %4465 = vmatpush.bf16.msra.mxu0 %v4338
    %4466 = vmatpush.bf16.msra.mxu0 %v4334
    %4467 = vmatpush.bf16.msra.mxu0 %v4330
    %4468 = vmatpush.bf16.msra.mxu0 %v4326
    %4469 = vmatpush.bf16.msra.mxu0 %v4322
    %4470 = vmatpush.bf16.msra.mxu0 %v4318
    %4471 = vmatpush.bf16.msra.mxu0 %v4314
    %4472 = vmatmul.bf16.gmra.mxu0 %v4165
    %v4473 = vpop.f32.mrf.mxu0
    %v4474 = vadd.f32 0.0, %v4473
    %v4475 = vpop.f32.mrf.mxu0
    %4476 = vdwg.mxu0
    %4477 = vmatpush.bf16.msra.mxu0 0
    %4478 = vmatpush.bf16.msra.mxu0 0
    %4479 = vmatpush.bf16.msra.mxu0 0
    %4480 = vmatpush.bf16.msra.mxu0 0
    %4481 = vmatpush.bf16.msra.mxu0 0
    %4482 = vmatpush.bf16.msra.mxu0 0
    %4483 = vmatpush.bf16.msra.mxu0 0
    %4484 = vmatpush.bf16.msra.mxu0 %v4346
    %4485 = vmatmul.bf16.gmra.mxu0 %v4384
    %v4486 = vpop.f32.mrf.mxu0
    %v4487 = vadd.f32 %v4474, %v4486
    %v4488 = vpop.f32.mrf.mxu0
    %4489 = vdwg.mxu0
    %v4490 = vadd.f32 %v4151, %v4409
    %v4491 = vadd.f32 %v4152, %v4435
    %v4492 = vadd.f32 %v4153, %v4461
    %v4493 = vadd.f32 %v4154, %v4487
    %v4496 = vrot.slane %v1269, 1
    %v4497 = vrot.slane %v1327, 1
    %v4500 = vsel %vm366, %v4496, %v1385
    %v4501 = vsel %vm366, %v4497, %v1443
    %v4502 = vpack.c.bf16 %v4500, %v4500
    %v4503 = vpack.c.bf16 %v4501, %v4501
    %v4504 = vld [vmem:[#allocation2 + $0xa20] sm:$0xff]
    %v4505 = vld [vmem:[#allocation2 + $0xa28] sm:$0xff]
    %v4506 = vld [vmem:[#allocation2 + $0xa30] sm:$0xff]
    %v4507 = vld [vmem:[#allocation2 + $0xa38] sm:$0xff]
    %v4508 = vld [vmem:[#allocation2 + $0xa40] sm:$0xff]
    %v4509 = vld [vmem:[#allocation2 + $0xa48] sm:$0xff]
    %v4510 = vld [vmem:[#allocation2 + $0xa50] sm:$0xff]
    %v4511 = vld [vmem:[#allocation2 + $0xa58] sm:$0xff]
    %v4512 = vld [vmem:[#allocation2 + $0xa60] sm:$0xff]
    %v4513 = vld [vmem:[#allocation2 + $0xa68] sm:$0xff]
    %v4514 = vld [vmem:[#allocation2 + $0xa70] sm:$0xff]
    %v4515 = vld [vmem:[#allocation2 + $0xa78] sm:$0xff]
    %v4516 = vld [vmem:[#allocation2 + $0xa80] sm:$0xff]
    %v4517 = vld [vmem:[#allocation2 + $0xa88] sm:$0xff]
    %v4518 = vld [vmem:[#allocation2 + $0xa90] sm:$0xff]
    %v4519 = vld [vmem:[#allocation2 + $0xa98] sm:$0xff]
    %v4520 = vld [vmem:[#allocation2 + $0xaa0] sm:$0xff]
    %v4521 = vld [vmem:[#allocation2 + $0xaa8] sm:$0xff]
    %v4522 = vld [vmem:[#allocation2 + $0xab0] sm:$0xff]
    %v4523 = vld [vmem:[#allocation2 + $0xab8] sm:$0xff]
    %v4524 = vld [vmem:[#allocation2 + $0xac0] sm:$0xff]
    %v4525 = vld [vmem:[#allocation2 + $0xac8] sm:$0xff]
    %v4526 = vld [vmem:[#allocation2 + $0xad0] sm:$0xff]
    %v4527 = vld [vmem:[#allocation2 + $0xad8] sm:$0xff]
    %v4528 = vld [vmem:[#allocation2 + $0xae0] sm:$0xff]
    %v4529 = vld [vmem:[#allocation2 + $0xae8] sm:$0xff]
    %v4530 = vld [vmem:[#allocation2 + $0xaf0] sm:$0xff]
    %v4531 = vld [vmem:[#allocation2 + $0xaf8] sm:$0xff]
    %v4532 = vld [vmem:[#allocation2 + $0xb00] sm:$0xff]
    %v4533 = vld [vmem:[#allocation2 + $0xb08] sm:$0xff]
    %v4534 = vld [vmem:[#allocation2 + $0xb10] sm:$0xff]
    %v4535 = vld [vmem:[#allocation2 + $0xb18] sm:$0xff]
    %v4536 = vld [vmem:[#allocation2 + $0xb20] sm:$0xff]
    %v4537 = vld [vmem:[#allocation2 + $0xb28] sm:$0xff]
    %v4538 = vld [vmem:[#allocation2 + $0xb30] sm:$0xff]
    %v4539 = vld [vmem:[#allocation2 + $0xb38] sm:$0xff]
    %v4576 = vunpack.c.l.b16 %v4504
    %v4577 = vunpack.c.h.b16 %v4504
    %v4578 = vunpack.c.l.b16 %v4505
    %v4579 = vunpack.c.h.b16 %v4505
    %v4580 = vunpack.c.l.b16 %v4506
    %v4581 = vunpack.c.h.b16 %v4506
    %v4582 = vunpack.c.l.b16 %v4507
    %v4583 = vunpack.c.h.b16 %v4507
    %v4584 = vunpack.c.l.b16 %v4508
    %v4585 = vunpack.c.h.b16 %v4508
    %v4586 = vunpack.c.l.b16 %v4509
    %v4587 = vunpack.c.h.b16 %v4509
    %v4588 = vunpack.c.l.b16 %v4510
    %v4589 = vunpack.c.h.b16 %v4510
    %v4590 = vunpack.c.l.b16 %v4511
    %v4591 = vunpack.c.h.b16 %v4511
    %v4592 = vunpack.c.l.b16 %v4512
    %v4593 = vunpack.c.h.b16 %v4512
    %v4594 = vunpack.c.l.b16 %v4513
    %v4595 = vunpack.c.h.b16 %v4513
    %v4596 = vunpack.c.l.b16 %v4514
    %v4597 = vunpack.c.h.b16 %v4514
    %v4598 = vunpack.c.l.b16 %v4515
    %v4599 = vunpack.c.h.b16 %v4515
    %v4600 = vunpack.c.l.b16 %v4516
    %v4601 = vunpack.c.h.b16 %v4516
    %v4602 = vunpack.c.l.b16 %v4517
    %v4603 = vunpack.c.h.b16 %v4517
    %v4604 = vunpack.c.l.b16 %v4518
    %v4605 = vunpack.c.h.b16 %v4518
    %v4606 = vunpack.c.l.b16 %v4519
    %v4607 = vunpack.c.h.b16 %v4519
    %v4608 = vunpack.c.l.b16 %v4520
    %v4609 = vunpack.c.h.b16 %v4520
    %v4610 = vunpack.c.l.b16 %v4521
    %v4611 = vunpack.c.h.b16 %v4521
    %v4612 = vunpack.c.l.b16 %v4522
    %v4613 = vunpack.c.h.b16 %v4522
    %v4614 = vunpack.c.l.b16 %v4523
    %v4615 = vunpack.c.h.b16 %v4523
    %v4616 = vunpack.c.l.b16 %v4524
    %v4617 = vunpack.c.h.b16 %v4524
    %v4618 = vunpack.c.l.b16 %v4525
    %v4619 = vunpack.c.h.b16 %v4525
    %v4620 = vunpack.c.l.b16 %v4526
    %v4621 = vunpack.c.h.b16 %v4526
    %v4622 = vunpack.c.l.b16 %v4527
    %v4623 = vunpack.c.h.b16 %v4527
    %v4624 = vunpack.c.l.b16 %v4528
    %v4625 = vunpack.c.h.b16 %v4528
    %v4626 = vunpack.c.l.b16 %v4529
    %v4627 = vunpack.c.h.b16 %v4529
    %v4628 = vunpack.c.l.b16 %v4530
    %v4629 = vunpack.c.h.b16 %v4530
    %v4630 = vunpack.c.l.b16 %v4531
    %v4631 = vunpack.c.h.b16 %v4531
    %v4632 = vunpack.c.l.b16 %v4532
    %v4633 = vunpack.c.h.b16 %v4532
    %v4634 = vunpack.c.l.b16 %v4533
    %v4635 = vunpack.c.h.b16 %v4533
    %v4636 = vunpack.c.l.b16 %v4534
    %v4637 = vunpack.c.h.b16 %v4534
    %v4638 = vunpack.c.l.b16 %v4535
    %v4639 = vunpack.c.h.b16 %v4535
    %v4640 = vunpack.c.l.b16 %v4536
    %v4641 = vunpack.c.h.b16 %v4536
    %v4642 = vunpack.c.l.b16 %v4537
    %v4643 = vunpack.c.h.b16 %v4537
    %v4644 = vunpack.c.l.b16 %v4538
    %v4645 = vunpack.c.h.b16 %v4538
    %v4646 = vunpack.c.l.b16 %v4539
    %v4647 = vunpack.c.h.b16 %v4539
    %v4648 = vpack.c.b16 %v4580, %v4576
    %v4649 = vpack.c.b16 %v4581, %v4577
    %v4650 = vpack.c.b16 %v4582, %v4578
    %v4651 = vpack.c.b16 %v4583, %v4579
    %v4652 = vpack.c.b16 %v4588, %v4584
    %v4653 = vpack.c.b16 %v4589, %v4585
    %v4654 = vpack.c.b16 %v4590, %v4586
    %v4655 = vpack.c.b16 %v4591, %v4587
    %v4656 = vpack.c.b16 %v4596, %v4592
    %v4657 = vpack.c.b16 %v4597, %v4593
    %v4658 = vpack.c.b16 %v4598, %v4594
    %v4659 = vpack.c.b16 %v4599, %v4595
    %v4660 = vpack.c.b16 %v4604, %v4600
    %v4661 = vpack.c.b16 %v4605, %v4601
    %v4662 = vpack.c.b16 %v4606, %v4602
    %v4663 = vpack.c.b16 %v4607, %v4603
    %v4664 = vpack.c.b16 %v4612, %v4608
    %v4665 = vpack.c.b16 %v4613, %v4609
    %v4666 = vpack.c.b16 %v4614, %v4610
    %v4667 = vpack.c.b16 %v4615, %v4611
    %v4668 = vpack.c.b16 %v4620, %v4616
    %v4669 = vpack.c.b16 %v4621, %v4617
    %v4670 = vpack.c.b16 %v4622, %v4618
    %v4671 = vpack.c.b16 %v4623, %v4619
    %v4672 = vpack.c.b16 %v4628, %v4624
    %v4673 = vpack.c.b16 %v4629, %v4625
    %v4674 = vpack.c.b16 %v4630, %v4626
    %v4675 = vpack.c.b16 %v4631, %v4627
    %v4676 = vpack.c.b16 %v4636, %v4632
    %v4677 = vpack.c.b16 %v4637, %v4633
    %v4678 = vpack.c.b16 %v4638, %v4634
    %v4679 = vpack.c.b16 %v4639, %v4635
    %v4680 = vpack.c.b16 %v4644, %v4640
    %v4681 = vpack.c.b16 %v4645, %v4641
    %v4682 = vpack.c.b16 %v4646, %v4642
    %v4683 = vpack.c.b16 %v4647, %v4643
    %v4721 = vsel %vm894, %v4503, 0
    %4723 = vmatpush.bf16.msra.mxu0 %v4676
    %4724 = vmatpush.bf16.msra.mxu0 %v4672
    %4725 = vmatpush.bf16.msra.mxu0 %v4668
    %4726 = vmatpush.bf16.msra.mxu0 %v4664
    %4727 = vmatpush.bf16.msra.mxu0 %v4660
    %4728 = vmatpush.bf16.msra.mxu0 %v4656
    %4729 = vmatpush.bf16.msra.mxu0 %v4652
    %4730 = vmatpush.bf16.msra.mxu0 %v4648
    %4731 = vmatmul.bf16.gmra.mxu0 %v4502
    %v4732 = vpop.f32.mrf.mxu0
    %v4733 = vadd.f32 0.0, %v4732
    %v4734 = vpop.f32.mrf.mxu0
    %4735 = vdwg.mxu0
    %4736 = vmatpush.bf16.msra.mxu0 0
    %4737 = vmatpush.bf16.msra.mxu0 0
    %4738 = vmatpush.bf16.msra.mxu0 0
    %4739 = vmatpush.bf16.msra.mxu0 0
    %4740 = vmatpush.bf16.msra.mxu0 0
    %4741 = vmatpush.bf16.msra.mxu0 0
    %4742 = vmatpush.bf16.msra.mxu0 0
    %4743 = vmatpush.bf16.msra.mxu0 %v4680
    %4744 = vmatmul.bf16.gmra.mxu0 %v4721
    %v4745 = vpop.f32.mrf.mxu0
    %v4746 = vadd.f32 %v4733, %v4745
    %v4747 = vpop.f32.mrf.mxu0
    %4748 = vdwg.mxu0
    %4749 = vmatpush.bf16.msra.mxu0 %v4677
    %4750 = vmatpush.bf16.msra.mxu0 %v4673
    %4751 = vmatpush.bf16.msra.mxu0 %v4669
    %4752 = vmatpush.bf16.msra.mxu0 %v4665
    %4753 = vmatpush.bf16.msra.mxu0 %v4661
    %4754 = vmatpush.bf16.msra.mxu0 %v4657
    %4755 = vmatpush.bf16.msra.mxu0 %v4653
    %4756 = vmatpush.bf16.msra.mxu0 %v4649
    %4757 = vmatmul.bf16.gmra.mxu0 %v4502
    %v4758 = vpop.f32.mrf.mxu0
    %v4759 = vadd.f32 0.0, %v4758
    %v4760 = vpop.f32.mrf.mxu0
    %4761 = vdwg.mxu0
    %4762 = vmatpush.bf16.msra.mxu0 0
    %4763 = vmatpush.bf16.msra.mxu0 0
    %4764 = vmatpush.bf16.msra.mxu0 0
    %4765 = vmatpush.bf16.msra.mxu0 0
    %4766 = vmatpush.bf16.msra.mxu0 0
    %4767 = vmatpush.bf16.msra.mxu0 0
    %4768 = vmatpush.bf16.msra.mxu0 0
    %4769 = vmatpush.bf16.msra.mxu0 %v4681
    %4770 = vmatmul.bf16.gmra.mxu0 %v4721
    %v4771 = vpop.f32.mrf.mxu0
    %v4772 = vadd.f32 %v4759, %v4771
    %v4773 = vpop.f32.mrf.mxu0
    %4774 = vdwg.mxu0
    %4775 = vmatpush.bf16.msra.mxu0 %v4678
    %4776 = vmatpush.bf16.msra.mxu0 %v4674
    %4777 = vmatpush.bf16.msra.mxu0 %v4670
    %4778 = vmatpush.bf16.msra.mxu0 %v4666
    %4779 = vmatpush.bf16.msra.mxu0 %v4662
    %4780 = vmatpush.bf16.msra.mxu0 %v4658
    %4781 = vmatpush.bf16.msra.mxu0 %v4654
    %4782 = vmatpush.bf16.msra.mxu0 %v4650
    %4783 = vmatmul.bf16.gmra.mxu0 %v4502
    %v4784 = vpop.f32.mrf.mxu0
    %v4785 = vadd.f32 0.0, %v4784
    %v4786 = vpop.f32.mrf.mxu0
    %4787 = vdwg.mxu0
    %4788 = vmatpush.bf16.msra.mxu0 0
    %4789 = vmatpush.bf16.msra.mxu0 0
    %4790 = vmatpush.bf16.msra.mxu0 0
    %4791 = vmatpush.bf16.msra.mxu0 0
    %4792 = vmatpush.bf16.msra.mxu0 0
    %4793 = vmatpush.bf16.msra.mxu0 0
    %4794 = vmatpush.bf16.msra.mxu0 0
    %4795 = vmatpush.bf16.msra.mxu0 %v4682
    %4796 = vmatmul.bf16.gmra.mxu0 %v4721
    %v4797 = vpop.f32.mrf.mxu0
    %v4798 = vadd.f32 %v4785, %v4797
    %v4799 = vpop.f32.mrf.mxu0
    %4800 = vdwg.mxu0
    %4801 = vmatpush.bf16.msra.mxu0 %v4679
    %4802 = vmatpush.bf16.msra.mxu0 %v4675
    %4803 = vmatpush.bf16.msra.mxu0 %v4671
    %4804 = vmatpush.bf16.msra.mxu0 %v4667
    %4805 = vmatpush.bf16.msra.mxu0 %v4663
    %4806 = vmatpush.bf16.msra.mxu0 %v4659
    %4807 = vmatpush.bf16.msra.mxu0 %v4655
    %4808 = vmatpush.bf16.msra.mxu0 %v4651
    %4809 = vmatmul.bf16.gmra.mxu0 %v4502
    %v4810 = vpop.f32.mrf.mxu0
    %v4811 = vadd.f32 0.0, %v4810
    %v4812 = vpop.f32.mrf.mxu0
    %4813 = vdwg.mxu0
    %4814 = vmatpush.bf16.msra.mxu0 0
    %4815 = vmatpush.bf16.msra.mxu0 0
    %4816 = vmatpush.bf16.msra.mxu0 0
    %4817 = vmatpush.bf16.msra.mxu0 0
    %4818 = vmatpush.bf16.msra.mxu0 0
    %4819 = vmatpush.bf16.msra.mxu0 0
    %4820 = vmatpush.bf16.msra.mxu0 0
    %4821 = vmatpush.bf16.msra.mxu0 %v4683
    %4822 = vmatmul.bf16.gmra.mxu0 %v4721
    %v4823 = vpop.f32.mrf.mxu0
    %v4824 = vadd.f32 %v4811, %v4823
    %v4825 = vpop.f32.mrf.mxu0
    %4826 = vdwg.mxu0
    %v4827 = vadd.f32 %v4490, %v4746
    %v4828 = vadd.f32 %v4491, %v4772
    %v4829 = vadd.f32 %v4492, %v4798
    %v4830 = vadd.f32 %v4493, %v4824
    %v4831 = vrot.slane %v1269, 2
    %v4832 = vrot.slane %v1327, 2
    %v4835 = vrot.slane %v1385, 1
    %v4836 = vrot.slane %v1443, 1
    %v4839 = vsel %vm366, %v4831, %v4835
    %v4840 = vsel %vm366, %v4832, %v4836
    %v4841 = vpack.c.bf16 %v4839, %v4839
    %v4842 = vpack.c.bf16 %v4840, %v4840
    %v4843 = vld [vmem:[#allocation2 + $0xb40] sm:$0xff]
    %v4844 = vld [vmem:[#allocation2 + $0xb48] sm:$0xff]
    %v4845 = vld [vmem:[#allocation2 + $0xb50] sm:$0xff]
    %v4846 = vld [vmem:[#allocation2 + $0xb58] sm:$0xff]
    %v4847 = vld [vmem:[#allocation2 + $0xb60] sm:$0xff]
    %v4848 = vld [vmem:[#allocation2 + $0xb68] sm:$0xff]
    %v4849 = vld [vmem:[#allocation2 + $0xb70] sm:$0xff]
    %v4850 = vld [vmem:[#allocation2 + $0xb78] sm:$0xff]
    %v4851 = vld [vmem:[#allocation2 + $0xb80] sm:$0xff]
    %v4852 = vld [vmem:[#allocation2 + $0xb88] sm:$0xff]
    %v4853 = vld [vmem:[#allocation2 + $0xb90] sm:$0xff]
    %v4854 = vld [vmem:[#allocation2 + $0xb98] sm:$0xff]
    %v4855 = vld [vmem:[#allocation2 + $0xba0] sm:$0xff]
    %v4856 = vld [vmem:[#allocation2 + $0xba8] sm:$0xff]
    %v4857 = vld [vmem:[#allocation2 + $0xbb0] sm:$0xff]
    %v4858 = vld [vmem:[#allocation2 + $0xbb8] sm:$0xff]
    %v4859 = vld [vmem:[#allocation2 + $0xbc0] sm:$0xff]
    %v4860 = vld [vmem:[#allocation2 + $0xbc8] sm:$0xff]
    %v4861 = vld [vmem:[#allocation2 + $0xbd0] sm:$0xff]
    %v4862 = vld [vmem:[#allocation2 + $0xbd8] sm:$0xff]
    %v4863 = vld [vmem:[#allocation2 + $0xbe0] sm:$0xff]
    %v4864 = vld [vmem:[#allocation2 + $0xbe8] sm:$0xff]
    %v4865 = vld [vmem:[#allocation2 + $0xbf0] sm:$0xff]
    %v4866 = vld [vmem:[#allocation2 + $0xbf8] sm:$0xff]
    %v4867 = vld [vmem:[#allocation2 + $0xc00] sm:$0xff]
    %v4868 = vld [vmem:[#allocation2 + $0xc08] sm:$0xff]
    %v4869 = vld [vmem:[#allocation2 + $0xc10] sm:$0xff]
    %v4870 = vld [vmem:[#allocation2 + $0xc18] sm:$0xff]
    %v4871 = vld [vmem:[#allocation2 + $0xc20] sm:$0xff]
    %v4872 = vld [vmem:[#allocation2 + $0xc28] sm:$0xff]
    %v4873 = vld [vmem:[#allocation2 + $0xc30] sm:$0xff]
    %v4874 = vld [vmem:[#allocation2 + $0xc38] sm:$0xff]
    %v4875 = vld [vmem:[#allocation2 + $0xc40] sm:$0xff]
    %v4876 = vld [vmem:[#allocation2 + $0xc48] sm:$0xff]
    %v4877 = vld [vmem:[#allocation2 + $0xc50] sm:$0xff]
    %v4878 = vld [vmem:[#allocation2 + $0xc58] sm:$0xff]
    %v4915 = vunpack.c.l.b16 %v4843
    %v4916 = vunpack.c.h.b16 %v4843
    %v4917 = vunpack.c.l.b16 %v4844
    %v4918 = vunpack.c.h.b16 %v4844
    %v4919 = vunpack.c.l.b16 %v4845
    %v4920 = vunpack.c.h.b16 %v4845
    %v4921 = vunpack.c.l.b16 %v4846
    %v4922 = vunpack.c.h.b16 %v4846
    %v4923 = vunpack.c.l.b16 %v4847
    %v4924 = vunpack.c.h.b16 %v4847
    %v4925 = vunpack.c.l.b16 %v4848
    %v4926 = vunpack.c.h.b16 %v4848
    %v4927 = vunpack.c.l.b16 %v4849
    %v4928 = vunpack.c.h.b16 %v4849
    %v4929 = vunpack.c.l.b16 %v4850
    %v4930 = vunpack.c.h.b16 %v4850
    %v4931 = vunpack.c.l.b16 %v4851
    %v4932 = vunpack.c.h.b16 %v4851
    %v4933 = vunpack.c.l.b16 %v4852
    %v4934 = vunpack.c.h.b16 %v4852
    %v4935 = vunpack.c.l.b16 %v4853
    %v4936 = vunpack.c.h.b16 %v4853
    %v4937 = vunpack.c.l.b16 %v4854
    %v4938 = vunpack.c.h.b16 %v4854
    %v4939 = vunpack.c.l.b16 %v4855
    %v4940 = vunpack.c.h.b16 %v4855
    %v4941 = vunpack.c.l.b16 %v4856
    %v4942 = vunpack.c.h.b16 %v4856
    %v4943 = vunpack.c.l.b16 %v4857
    %v4944 = vunpack.c.h.b16 %v4857
    %v4945 = vunpack.c.l.b16 %v4858
    %v4946 = vunpack.c.h.b16 %v4858
    %v4947 = vunpack.c.l.b16 %v4859
    %v4948 = vunpack.c.h.b16 %v4859
    %v4949 = vunpack.c.l.b16 %v4860
    %v4950 = vunpack.c.h.b16 %v4860
    %v4951 = vunpack.c.l.b16 %v4861
    %v4952 = vunpack.c.h.b16 %v4861
    %v4953 = vunpack.c.l.b16 %v4862
    %v4954 = vunpack.c.h.b16 %v4862
    %v4955 = vunpack.c.l.b16 %v4863
    %v4956 = vunpack.c.h.b16 %v4863
    %v4957 = vunpack.c.l.b16 %v4864
    %v4958 = vunpack.c.h.b16 %v4864
    %v4959 = vunpack.c.l.b16 %v4865
    %v4960 = vunpack.c.h.b16 %v4865
    %v4961 = vunpack.c.l.b16 %v4866
    %v4962 = vunpack.c.h.b16 %v4866
    %v4963 = vunpack.c.l.b16 %v4867
    %v4964 = vunpack.c.h.b16 %v4867
    %v4965 = vunpack.c.l.b16 %v4868
    %v4966 = vunpack.c.h.b16 %v4868
    %v4967 = vunpack.c.l.b16 %v4869
    %v4968 = vunpack.c.h.b16 %v4869
    %v4969 = vunpack.c.l.b16 %v4870
    %v4970 = vunpack.c.h.b16 %v4870
    %v4971 = vunpack.c.l.b16 %v4871
    %v4972 = vunpack.c.h.b16 %v4871
    %v4973 = vunpack.c.l.b16 %v4872
    %v4974 = vunpack.c.h.b16 %v4872
    %v4975 = vunpack.c.l.b16 %v4873
    %v4976 = vunpack.c.h.b16 %v4873
    %v4977 = vunpack.c.l.b16 %v4874
    %v4978 = vunpack.c.h.b16 %v4874
    %v4979 = vunpack.c.l.b16 %v4875
    %v4980 = vunpack.c.h.b16 %v4875
    %v4981 = vunpack.c.l.b16 %v4876
    %v4982 = vunpack.c.h.b16 %v4876
    %v4983 = vunpack.c.l.b16 %v4877
    %v4984 = vunpack.c.h.b16 %v4877
    %v4985 = vunpack.c.l.b16 %v4878
    %v4986 = vunpack.c.h.b16 %v4878
    %v4987 = vpack.c.b16 %v4919, %v4915
    %v4988 = vpack.c.b16 %v4920, %v4916
    %v4989 = vpack.c.b16 %v4921, %v4917
    %v4990 = vpack.c.b16 %v4922, %v4918
    %v4991 = vpack.c.b16 %v4927, %v4923
    %v4992 = vpack.c.b16 %v4928, %v4924
    %v4993 = vpack.c.b16 %v4929, %v4925
    %v4994 = vpack.c.b16 %v4930, %v4926
    %v4995 = vpack.c.b16 %v4935, %v4931
    %v4996 = vpack.c.b16 %v4936, %v4932
    %v4997 = vpack.c.b16 %v4937, %v4933
    %v4998 = vpack.c.b16 %v4938, %v4934
    %v4999 = vpack.c.b16 %v4943, %v4939
    %v5000 = vpack.c.b16 %v4944, %v4940
    %v5001 = vpack.c.b16 %v4945, %v4941
    %v5002 = vpack.c.b16 %v4946, %v4942
    %v5003 = vpack.c.b16 %v4951, %v4947
    %v5004 = vpack.c.b16 %v4952, %v4948
    %v5005 = vpack.c.b16 %v4953, %v4949
    %v5006 = vpack.c.b16 %v4954, %v4950
    %v5007 = vpack.c.b16 %v4959, %v4955
    %v5008 = vpack.c.b16 %v4960, %v4956
    %v5009 = vpack.c.b16 %v4961, %v4957
    %v5010 = vpack.c.b16 %v4962, %v4958
    %v5011 = vpack.c.b16 %v4967, %v4963
    %v5012 = vpack.c.b16 %v4968, %v4964
    %v5013 = vpack.c.b16 %v4969, %v4965
    %v5014 = vpack.c.b16 %v4970, %v4966
    %v5015 = vpack.c.b16 %v4975, %v4971
    %v5016 = vpack.c.b16 %v4976, %v4972
    %v5017 = vpack.c.b16 %v4977, %v4973
    %v5018 = vpack.c.b16 %v4978, %v4974
    %v5019 = vpack.c.b16 %v4983, %v4979
    %v5020 = vpack.c.b16 %v4984, %v4980
    %v5021 = vpack.c.b16 %v4985, %v4981
    %v5022 = vpack.c.b16 %v4986, %v4982
    %v5060 = vsel %vm894, %v4842, 0
    %5062 = vmatpush.bf16.msra.mxu0 %v5015
    %5063 = vmatpush.bf16.msra.mxu0 %v5011
    %5064 = vmatpush.bf16.msra.mxu0 %v5007
    %5065 = vmatpush.bf16.msra.mxu0 %v5003
    %5066 = vmatpush.bf16.msra.mxu0 %v4999
    %5067 = vmatpush.bf16.msra.mxu0 %v4995
    %5068 = vmatpush.bf16.msra.mxu0 %v4991
    %5069 = vmatpush.bf16.msra.mxu0 %v4987
    %5070 = vmatmul.bf16.gmra.mxu0 %v4841
    %v5071 = vpop.f32.mrf.mxu0
    %v5072 = vadd.f32 0.0, %v5071
    %v5073 = vpop.f32.mrf.mxu0
    %5074 = vdwg.mxu0
    %5075 = vmatpush.bf16.msra.mxu0 0
    %5076 = vmatpush.bf16.msra.mxu0 0
    %5077 = vmatpush.bf16.msra.mxu0 0
    %5078 = vmatpush.bf16.msra.mxu0 0
    %5079 = vmatpush.bf16.msra.mxu0 0
    %5080 = vmatpush.bf16.msra.mxu0 0
    %5081 = vmatpush.bf16.msra.mxu0 0
    %5082 = vmatpush.bf16.msra.mxu0 %v5019
    %5083 = vmatmul.bf16.gmra.mxu0 %v5060
    %v5084 = vpop.f32.mrf.mxu0
    %v5085 = vadd.f32 %v5072, %v5084
    %v5086 = vpop.f32.mrf.mxu0
    %5087 = vdwg.mxu0
    %5088 = vmatpush.bf16.msra.mxu0 %v5016
    %5089 = vmatpush.bf16.msra.mxu0 %v5012
    %5090 = vmatpush.bf16.msra.mxu0 %v5008
    %5091 = vmatpush.bf16.msra.mxu0 %v5004
    %5092 = vmatpush.bf16.msra.mxu0 %v5000
    %5093 = vmatpush.bf16.msra.mxu0 %v4996
    %5094 = vmatpush.bf16.msra.mxu0 %v4992
    %5095 = vmatpush.bf16.msra.mxu0 %v4988
    %5096 = vmatmul.bf16.gmra.mxu0 %v4841
    %v5097 = vpop.f32.mrf.mxu0
    %v5098 = vadd.f32 0.0, %v5097
    %v5099 = vpop.f32.mrf.mxu0
    %5100 = vdwg.mxu0
    %5101 = vmatpush.bf16.msra.mxu0 0
    %5102 = vmatpush.bf16.msra.mxu0 0
    %5103 = vmatpush.bf16.msra.mxu0 0
    %5104 = vmatpush.bf16.msra.mxu0 0
    %5105 = vmatpush.bf16.msra.mxu0 0
    %5106 = vmatpush.bf16.msra.mxu0 0
    %5107 = vmatpush.bf16.msra.mxu0 0
    %5108 = vmatpush.bf16.msra.mxu0 %v5020
    %5109 = vmatmul.bf16.gmra.mxu0 %v5060
    %v5110 = vpop.f32.mrf.mxu0
    %v5111 = vadd.f32 %v5098, %v5110
    %v5112 = vpop.f32.mrf.mxu0
    %5113 = vdwg.mxu0
    %5114 = vmatpush.bf16.msra.mxu0 %v5017
    %5115 = vmatpush.bf16.msra.mxu0 %v5013
    %5116 = vmatpush.bf16.msra.mxu0 %v5009
    %5117 = vmatpush.bf16.msra.mxu0 %v5005
    %5118 = vmatpush.bf16.msra.mxu0 %v5001
    %5119 = vmatpush.bf16.msra.mxu0 %v4997
    %5120 = vmatpush.bf16.msra.mxu0 %v4993
    %5121 = vmatpush.bf16.msra.mxu0 %v4989
    %5122 = vmatmul.bf16.gmra.mxu0 %v4841
    %v5123 = vpop.f32.mrf.mxu0
    %v5124 = vadd.f32 0.0, %v5123
    %v5125 = vpop.f32.mrf.mxu0
    %5126 = vdwg.mxu0
    %5127 = vmatpush.bf16.msra.mxu0 0
    %5128 = vmatpush.bf16.msra.mxu0 0
    %5129 = vmatpush.bf16.msra.mxu0 0
    %5130 = vmatpush.bf16.msra.mxu0 0
    %5131 = vmatpush.bf16.msra.mxu0 0
    %5132 = vmatpush.bf16.msra.mxu0 0
    %5133 = vmatpush.bf16.msra.mxu0 0
    %5134 = vmatpush.bf16.msra.mxu0 %v5021
    %5135 = vmatmul.bf16.gmra.mxu0 %v5060
    %v5136 = vpop.f32.mrf.mxu0
    %v5137 = vadd.f32 %v5124, %v5136
    %v5138 = vpop.f32.mrf.mxu0
    %5139 = vdwg.mxu0
    %5140 = vmatpush.bf16.msra.mxu0 %v5018
    %5141 = vmatpush.bf16.msra.mxu0 %v5014
    %5142 = vmatpush.bf16.msra.mxu0 %v5010
    %5143 = vmatpush.bf16.msra.mxu0 %v5006
    %5144 = vmatpush.bf16.msra.mxu0 %v5002
    %5145 = vmatpush.bf16.msra.mxu0 %v4998
    %5146 = vmatpush.bf16.msra.mxu0 %v4994
    %5147 = vmatpush.bf16.msra.mxu0 %v4990
    %5148 = vmatmul.bf16.gmra.mxu0 %v4841
    %v5149 = vpop.f32.mrf.mxu0
    %v5150 = vadd.f32 0.0, %v5149
    %v5151 = vpop.f32.mrf.mxu0
    %5152 = vdwg.mxu0
    %5153 = vmatpush.bf16.msra.mxu0 0
    %5154 = vmatpush.bf16.msra.mxu0 0
    %5155 = vmatpush.bf16.msra.mxu0 0
    %5156 = vmatpush.bf16.msra.mxu0 0
    %5157 = vmatpush.bf16.msra.mxu0 0
    %5158 = vmatpush.bf16.msra.mxu0 0
    %5159 = vmatpush.bf16.msra.mxu0 0
    %5160 = vmatpush.bf16.msra.mxu0 %v5022
    %5161 = vmatmul.bf16.gmra.mxu0 %v5060
    %v5162 = vpop.f32.mrf.mxu0
    %v5163 = vadd.f32 %v5150, %v5162
    %v5164 = vpop.f32.mrf.mxu0
    %5165 = vdwg.mxu0
    %v5166 = vadd.f32 %v4827, %v5085
    %v5167 = vadd.f32 %v4828, %v5111
    %v5168 = vadd.f32 %v4829, %v5137
    %v5169 = vadd.f32 %v4830, %v5163
    %v5170 = vrot.slane %v1269, 3
    %v5171 = vrot.slane %v1327, 3
    %v5174 = vrot.slane %v1385, 2
    %v5175 = vrot.slane %v1443, 2
    %v5178 = vsel %vm366, %v5170, %v5174
    %v5179 = vsel %vm366, %v5171, %v5175
    %v5180 = vpack.c.bf16 %v5178, %v5178
    %v5181 = vpack.c.bf16 %v5179, %v5179
    %v5182 = vld [vmem:[#allocation2 + $0xc60] sm:$0xff]
    %v5183 = vld [vmem:[#allocation2 + $0xc68] sm:$0xff]
    %v5184 = vld [vmem:[#allocation2 + $0xc70] sm:$0xff]
    %v5185 = vld [vmem:[#allocation2 + $0xc78] sm:$0xff]
    %v5186 = vld [vmem:[#allocation2 + $0xc80] sm:$0xff]
    %v5187 = vld [vmem:[#allocation2 + $0xc88] sm:$0xff]
    %v5188 = vld [vmem:[#allocation2 + $0xc90] sm:$0xff]
    %v5189 = vld [vmem:[#allocation2 + $0xc98] sm:$0xff]
    %v5190 = vld [vmem:[#allocation2 + $0xca0] sm:$0xff]
    %v5191 = vld [vmem:[#allocation2 + $0xca8] sm:$0xff]
    %v5192 = vld [vmem:[#allocation2 + $0xcb0] sm:$0xff]
    %v5193 = vld [vmem:[#allocation2 + $0xcb8] sm:$0xff]
    %v5194 = vld [vmem:[#allocation2 + $0xcc0] sm:$0xff]
    %v5195 = vld [vmem:[#allocation2 + $0xcc8] sm:$0xff]
    %v5196 = vld [vmem:[#allocation2 + $0xcd0] sm:$0xff]
    %v5197 = vld [vmem:[#allocation2 + $0xcd8] sm:$0xff]
    %v5198 = vld [vmem:[#allocation2 + $0xce0] sm:$0xff]
    %v5199 = vld [vmem:[#allocation2 + $0xce8] sm:$0xff]
    %v5200 = vld [vmem:[#allocation2 + $0xcf0] sm:$0xff]
    %v5201 = vld [vmem:[#allocation2 + $0xcf8] sm:$0xff]
    %v5202 = vld [vmem:[#allocation2 + $0xd00] sm:$0xff]
    %v5203 = vld [vmem:[#allocation2 + $0xd08] sm:$0xff]
    %v5204 = vld [vmem:[#allocation2 + $0xd10] sm:$0xff]
    %v5205 = vld [vmem:[#allocation2 + $0xd18] sm:$0xff]
    %v5206 = vld [vmem:[#allocation2 + $0xd20] sm:$0xff]
    %v5207 = vld [vmem:[#allocation2 + $0xd28] sm:$0xff]
    %v5208 = vld [vmem:[#allocation2 + $0xd30] sm:$0xff]
    %v5209 = vld [vmem:[#allocation2 + $0xd38] sm:$0xff]
    %v5210 = vld [vmem:[#allocation2 + $0xd40] sm:$0xff]
    %v5211 = vld [vmem:[#allocation2 + $0xd48] sm:$0xff]
    %v5212 = vld [vmem:[#allocation2 + $0xd50] sm:$0xff]
    %v5213 = vld [vmem:[#allocation2 + $0xd58] sm:$0xff]
    %v5214 = vld [vmem:[#allocation2 + $0xd60] sm:$0xff]
    %v5215 = vld [vmem:[#allocation2 + $0xd68] sm:$0xff]
    %v5216 = vld [vmem:[#allocation2 + $0xd70] sm:$0xff]
    %v5217 = vld [vmem:[#allocation2 + $0xd78] sm:$0xff]
    %v5254 = vunpack.c.l.b16 %v5182
    %v5255 = vunpack.c.h.b16 %v5182
    %v5256 = vunpack.c.l.b16 %v5183
    %v5257 = vunpack.c.h.b16 %v5183
    %v5258 = vunpack.c.l.b16 %v5184
    %v5259 = vunpack.c.h.b16 %v5184
    %v5260 = vunpack.c.l.b16 %v5185
    %v5261 = vunpack.c.h.b16 %v5185
    %v5262 = vunpack.c.l.b16 %v5186
    %v5263 = vunpack.c.h.b16 %v5186
    %v5264 = vunpack.c.l.b16 %v5187
    %v5265 = vunpack.c.h.b16 %v5187
    %v5266 = vunpack.c.l.b16 %v5188
    %v5267 = vunpack.c.h.b16 %v5188
    %v5268 = vunpack.c.l.b16 %v5189
    %v5269 = vunpack.c.h.b16 %v5189
    %v5270 = vunpack.c.l.b16 %v5190
    %v5271 = vunpack.c.h.b16 %v5190
    %v5272 = vunpack.c.l.b16 %v5191
    %v5273 = vunpack.c.h.b16 %v5191
    %v5274 = vunpack.c.l.b16 %v5192
    %v5275 = vunpack.c.h.b16 %v5192
    %v5276 = vunpack.c.l.b16 %v5193
    %v5277 = vunpack.c.h.b16 %v5193
    %v5278 = vunpack.c.l.b16 %v5194
    %v5279 = vunpack.c.h.b16 %v5194
    %v5280 = vunpack.c.l.b16 %v5195
    %v5281 = vunpack.c.h.b16 %v5195
    %v5282 = vunpack.c.l.b16 %v5196
    %v5283 = vunpack.c.h.b16 %v5196
    %v5284 = vunpack.c.l.b16 %v5197
    %v5285 = vunpack.c.h.b16 %v5197
    %v5286 = vunpack.c.l.b16 %v5198
    %v5287 = vunpack.c.h.b16 %v5198
    %v5288 = vunpack.c.l.b16 %v5199
    %v5289 = vunpack.c.h.b16 %v5199
    %v5290 = vunpack.c.l.b16 %v5200
    %v5291 = vunpack.c.h.b16 %v5200
    %v5292 = vunpack.c.l.b16 %v5201
    %v5293 = vunpack.c.h.b16 %v5201
    %v5294 = vunpack.c.l.b16 %v5202
    %v5295 = vunpack.c.h.b16 %v5202
    %v5296 = vunpack.c.l.b16 %v5203
    %v5297 = vunpack.c.h.b16 %v5203
    %v5298 = vunpack.c.l.b16 %v5204
    %v5299 = vunpack.c.h.b16 %v5204
    %v5300 = vunpack.c.l.b16 %v5205
    %v5301 = vunpack.c.h.b16 %v5205
    %v5302 = vunpack.c.l.b16 %v5206
    %v5303 = vunpack.c.h.b16 %v5206
    %v5304 = vunpack.c.l.b16 %v5207
    %v5305 = vunpack.c.h.b16 %v5207
    %v5306 = vunpack.c.l.b16 %v5208
    %v5307 = vunpack.c.h.b16 %v5208
    %v5308 = vunpack.c.l.b16 %v5209
    %v5309 = vunpack.c.h.b16 %v5209
    %v5310 = vunpack.c.l.b16 %v5210
    %v5311 = vunpack.c.h.b16 %v5210
    %v5312 = vunpack.c.l.b16 %v5211
    %v5313 = vunpack.c.h.b16 %v5211
    %v5314 = vunpack.c.l.b16 %v5212
    %v5315 = vunpack.c.h.b16 %v5212
    %v5316 = vunpack.c.l.b16 %v5213
    %v5317 = vunpack.c.h.b16 %v5213
    %v5318 = vunpack.c.l.b16 %v5214
    %v5319 = vunpack.c.h.b16 %v5214
    %v5320 = vunpack.c.l.b16 %v5215
    %v5321 = vunpack.c.h.b16 %v5215
    %v5322 = vunpack.c.l.b16 %v5216
    %v5323 = vunpack.c.h.b16 %v5216
    %v5324 = vunpack.c.l.b16 %v5217
    %v5325 = vunpack.c.h.b16 %v5217
    %v5326 = vpack.c.b16 %v5258, %v5254
    %v5327 = vpack.c.b16 %v5259, %v5255
    %v5328 = vpack.c.b16 %v5260, %v5256
    %v5329 = vpack.c.b16 %v5261, %v5257
    %v5330 = vpack.c.b16 %v5266, %v5262
    %v5331 = vpack.c.b16 %v5267, %v5263
    %v5332 = vpack.c.b16 %v5268, %v5264
    %v5333 = vpack.c.b16 %v5269, %v5265
    %v5334 = vpack.c.b16 %v5274, %v5270
    %v5335 = vpack.c.b16 %v5275, %v5271
    %v5336 = vpack.c.b16 %v5276, %v5272
    %v5337 = vpack.c.b16 %v5277, %v5273
    %v5338 = vpack.c.b16 %v5282, %v5278
    %v5339 = vpack.c.b16 %v5283, %v5279
    %v5340 = vpack.c.b16 %v5284, %v5280
    %v5341 = vpack.c.b16 %v5285, %v5281
    %v5342 = vpack.c.b16 %v5290, %v5286
    %v5343 = vpack.c.b16 %v5291, %v5287
    %v5344 = vpack.c.b16 %v5292, %v5288
    %v5345 = vpack.c.b16 %v5293, %v5289
    %v5346 = vpack.c.b16 %v5298, %v5294
    %v5347 = vpack.c.b16 %v5299, %v5295
    %v5348 = vpack.c.b16 %v5300, %v5296
    %v5349 = vpack.c.b16 %v5301, %v5297
    %v5350 = vpack.c.b16 %v5306, %v5302
    %v5351 = vpack.c.b16 %v5307, %v5303
    %v5352 = vpack.c.b16 %v5308, %v5304
    %v5353 = vpack.c.b16 %v5309, %v5305
    %v5354 = vpack.c.b16 %v5314, %v5310
    %v5355 = vpack.c.b16 %v5315, %v5311
    %v5356 = vpack.c.b16 %v5316, %v5312
    %v5357 = vpack.c.b16 %v5317, %v5313
    %v5358 = vpack.c.b16 %v5322, %v5318
    %v5359 = vpack.c.b16 %v5323, %v5319
    %v5360 = vpack.c.b16 %v5324, %v5320
    %v5361 = vpack.c.b16 %v5325, %v5321
    %v5399 = vsel %vm894, %v5181, 0
    %5401 = vmatpush.bf16.msra.mxu0 %v5354
    %5402 = vmatpush.bf16.msra.mxu0 %v5350
    %5403 = vmatpush.bf16.msra.mxu0 %v5346
    %5404 = vmatpush.bf16.msra.mxu0 %v5342
    %5405 = vmatpush.bf16.msra.mxu0 %v5338
    %5406 = vmatpush.bf16.msra.mxu0 %v5334
    %5407 = vmatpush.bf16.msra.mxu0 %v5330
    %5408 = vmatpush.bf16.msra.mxu0 %v5326
    %5409 = vmatmul.bf16.gmra.mxu0 %v5180
    %v5410 = vpop.f32.mrf.mxu0
    %v5411 = vadd.f32 0.0, %v5410
    %v5412 = vpop.f32.mrf.mxu0
    %5413 = vdwg.mxu0
    %5414 = vmatpush.bf16.msra.mxu0 0
    %5415 = vmatpush.bf16.msra.mxu0 0
    %5416 = vmatpush.bf16.msra.mxu0 0
    %5417 = vmatpush.bf16.msra.mxu0 0
    %5418 = vmatpush.bf16.msra.mxu0 0
    %5419 = vmatpush.bf16.msra.mxu0 0
    %5420 = vmatpush.bf16.msra.mxu0 0
    %5421 = vmatpush.bf16.msra.mxu0 %v5358
    %5422 = vmatmul.bf16.gmra.mxu0 %v5399
    %v5423 = vpop.f32.mrf.mxu0
    %v5424 = vadd.f32 %v5411, %v5423
    %v5425 = vpop.f32.mrf.mxu0
    %5426 = vdwg.mxu0
    %5427 = vmatpush.bf16.msra.mxu0 %v5355
    %5428 = vmatpush.bf16.msra.mxu0 %v5351
    %5429 = vmatpush.bf16.msra.mxu0 %v5347
    %5430 = vmatpush.bf16.msra.mxu0 %v5343
    %5431 = vmatpush.bf16.msra.mxu0 %v5339
    %5432 = vmatpush.bf16.msra.mxu0 %v5335
    %5433 = vmatpush.bf16.msra.mxu0 %v5331
    %5434 = vmatpush.bf16.msra.mxu0 %v5327
    %5435 = vmatmul.bf16.gmra.mxu0 %v5180
    %v5436 = vpop.f32.mrf.mxu0
    %v5437 = vadd.f32 0.0, %v5436
    %v5438 = vpop.f32.mrf.mxu0
    %5439 = vdwg.mxu0
    %5440 = vmatpush.bf16.msra.mxu0 0
    %5441 = vmatpush.bf16.msra.mxu0 0
    %5442 = vmatpush.bf16.msra.mxu0 0
    %5443 = vmatpush.bf16.msra.mxu0 0
    %5444 = vmatpush.bf16.msra.mxu0 0
    %5445 = vmatpush.bf16.msra.mxu0 0
    %5446 = vmatpush.bf16.msra.mxu0 0
    %5447 = vmatpush.bf16.msra.mxu0 %v5359
    %5448 = vmatmul.bf16.gmra.mxu0 %v5399
    %v5449 = vpop.f32.mrf.mxu0
    %v5450 = vadd.f32 %v5437, %v5449
    %v5451 = vpop.f32.mrf.mxu0
    %5452 = vdwg.mxu0
    %5453 = vmatpush.bf16.msra.mxu0 %v5356
    %5454 = vmatpush.bf16.msra.mxu0 %v5352
    %5455 = vmatpush.bf16.msra.mxu0 %v5348
    %5456 = vmatpush.bf16.msra.mxu0 %v5344
    %5457 = vmatpush.bf16.msra.mxu0 %v5340
    %5458 = vmatpush.bf16.msra.mxu0 %v5336
    %5459 = vmatpush.bf16.msra.mxu0 %v5332
    %5460 = vmatpush.bf16.msra.mxu0 %v5328
    %5461 = vmatmul.bf16.gmra.mxu0 %v5180
    %v5462 = vpop.f32.mrf.mxu0
    %v5463 = vadd.f32 0.0, %v5462
    %v5464 = vpop.f32.mrf.mxu0
    %5465 = vdwg.mxu0
    %5466 = vmatpush.bf16.msra.mxu0 0
    %5467 = vmatpush.bf16.msra.mxu0 0
    %5468 = vmatpush.bf16.msra.mxu0 0
    %5469 = vmatpush.bf16.msra.mxu0 0
    %5470 = vmatpush.bf16.msra.mxu0 0
    %5471 = vmatpush.bf16.msra.mxu0 0
    %5472 = vmatpush.bf16.msra.mxu0 0
    %5473 = vmatpush.bf16.msra.mxu0 %v5360
    %5474 = vmatmul.bf16.gmra.mxu0 %v5399
    %v5475 = vpop.f32.mrf.mxu0
    %v5476 = vadd.f32 %v5463, %v5475
    %v5477 = vpop.f32.mrf.mxu0
    %5478 = vdwg.mxu0
    %5479 = vmatpush.bf16.msra.mxu0 %v5357
    %5480 = vmatpush.bf16.msra.mxu0 %v5353
    %5481 = vmatpush.bf16.msra.mxu0 %v5349
    %5482 = vmatpush.bf16.msra.mxu0 %v5345
    %5483 = vmatpush.bf16.msra.mxu0 %v5341
    %5484 = vmatpush.bf16.msra.mxu0 %v5337
    %5485 = vmatpush.bf16.msra.mxu0 %v5333
    %5486 = vmatpush.bf16.msra.mxu0 %v5329
    %5487 = vmatmul.bf16.gmra.mxu0 %v5180
    %v5488 = vpop.f32.mrf.mxu0
    %v5489 = vadd.f32 0.0, %v5488
    %v5490 = vpop.f32.mrf.mxu0
    %5491 = vdwg.mxu0
    %5492 = vmatpush.bf16.msra.mxu0 0
    %5493 = vmatpush.bf16.msra.mxu0 0
    %5494 = vmatpush.bf16.msra.mxu0 0
    %5495 = vmatpush.bf16.msra.mxu0 0
    %5496 = vmatpush.bf16.msra.mxu0 0
    %5497 = vmatpush.bf16.msra.mxu0 0
    %5498 = vmatpush.bf16.msra.mxu0 0
    %5499 = vmatpush.bf16.msra.mxu0 %v5361
    %5500 = vmatmul.bf16.gmra.mxu0 %v5399
    %v5501 = vpop.f32.mrf.mxu0
    %v5502 = vadd.f32 %v5489, %v5501
    %v5503 = vpop.f32.mrf.mxu0
    %5504 = vdwg.mxu0
    %v5505 = vadd.f32 %v5166, %v5424
    %v5506 = vadd.f32 %v5167, %v5450
    %v5507 = vadd.f32 %v5168, %v5476
    %v5508 = vadd.f32 %v5169, %v5502
    %v5509 = vrot.slane %v1269, 4
    %v5510 = vrot.slane %v1327, 4
    %v5513 = vrot.slane %v1385, 3
    %v5514 = vrot.slane %v1443, 3
    %v5517 = vsel %vm366, %v5509, %v5513
    %v5518 = vsel %vm366, %v5510, %v5514
    %v5519 = vpack.c.bf16 %v5517, %v5517
    %v5520 = vpack.c.bf16 %v5518, %v5518
    %v5521 = vld [vmem:[#allocation2 + $0xd80] sm:$0xff]
    %v5522 = vld [vmem:[#allocation2 + $0xd88] sm:$0xff]
    %v5523 = vld [vmem:[#allocation2 + $0xd90] sm:$0xff]
    %v5524 = vld [vmem:[#allocation2 + $0xd98] sm:$0xff]
    %v5525 = vld [vmem:[#allocation2 + $0xda0] sm:$0xff]
    %v5526 = vld [vmem:[#allocation2 + $0xda8] sm:$0xff]
    %v5527 = vld [vmem:[#allocation2 + $0xdb0] sm:$0xff]
    %v5528 = vld [vmem:[#allocation2 + $0xdb8] sm:$0xff]
    %v5529 = vld [vmem:[#allocation2 + $0xdc0] sm:$0xff]
    %v5530 = vld [vmem:[#allocation2 + $0xdc8] sm:$0xff]
    %v5531 = vld [vmem:[#allocation2 + $0xdd0] sm:$0xff]
    %v5532 = vld [vmem:[#allocation2 + $0xdd8] sm:$0xff]
    %v5533 = vld [vmem:[#allocation2 + $0xde0] sm:$0xff]
    %v5534 = vld [vmem:[#allocation2 + $0xde8] sm:$0xff]
    %v5535 = vld [vmem:[#allocation2 + $0xdf0] sm:$0xff]
    %v5536 = vld [vmem:[#allocation2 + $0xdf8] sm:$0xff]
    %v5537 = vld [vmem:[#allocation2 + $0xe00] sm:$0xff]
    %v5538 = vld [vmem:[#allocation2 + $0xe08] sm:$0xff]
    %v5539 = vld [vmem:[#allocation2 + $0xe10] sm:$0xff]
    %v5540 = vld [vmem:[#allocation2 + $0xe18] sm:$0xff]
    %v5541 = vld [vmem:[#allocation2 + $0xe20] sm:$0xff]
    %v5542 = vld [vmem:[#allocation2 + $0xe28] sm:$0xff]
    %v5543 = vld [vmem:[#allocation2 + $0xe30] sm:$0xff]
    %v5544 = vld [vmem:[#allocation2 + $0xe38] sm:$0xff]
    %v5545 = vld [vmem:[#allocation2 + $0xe40] sm:$0xff]
    %v5546 = vld [vmem:[#allocation2 + $0xe48] sm:$0xff]
    %v5547 = vld [vmem:[#allocation2 + $0xe50] sm:$0xff]
    %v5548 = vld [vmem:[#allocation2 + $0xe58] sm:$0xff]
    %v5549 = vld [vmem:[#allocation2 + $0xe60] sm:$0xff]
    %v5550 = vld [vmem:[#allocation2 + $0xe68] sm:$0xff]
    %v5551 = vld [vmem:[#allocation2 + $0xe70] sm:$0xff]
    %v5552 = vld [vmem:[#allocation2 + $0xe78] sm:$0xff]
    %v5553 = vld [vmem:[#allocation2 + $0xe80] sm:$0xff]
    %v5554 = vld [vmem:[#allocation2 + $0xe88] sm:$0xff]
    %v5555 = vld [vmem:[#allocation2 + $0xe90] sm:$0xff]
    %v5556 = vld [vmem:[#allocation2 + $0xe98] sm:$0xff]
    %v5593 = vunpack.c.l.b16 %v5521
    %v5594 = vunpack.c.h.b16 %v5521
    %v5595 = vunpack.c.l.b16 %v5522
    %v5596 = vunpack.c.h.b16 %v5522
    %v5597 = vunpack.c.l.b16 %v5523
    %v5598 = vunpack.c.h.b16 %v5523
    %v5599 = vunpack.c.l.b16 %v5524
    %v5600 = vunpack.c.h.b16 %v5524
    %v5601 = vunpack.c.l.b16 %v5525
    %v5602 = vunpack.c.h.b16 %v5525
    %v5603 = vunpack.c.l.b16 %v5526
    %v5604 = vunpack.c.h.b16 %v5526
    %v5605 = vunpack.c.l.b16 %v5527
    %v5606 = vunpack.c.h.b16 %v5527
    %v5607 = vunpack.c.l.b16 %v5528
    %v5608 = vunpack.c.h.b16 %v5528
    %v5609 = vunpack.c.l.b16 %v5529
    %v5610 = vunpack.c.h.b16 %v5529
    %v5611 = vunpack.c.l.b16 %v5530
    %v5612 = vunpack.c.h.b16 %v5530
    %v5613 = vunpack.c.l.b16 %v5531
    %v5614 = vunpack.c.h.b16 %v5531
    %v5615 = vunpack.c.l.b16 %v5532
    %v5616 = vunpack.c.h.b16 %v5532
    %v5617 = vunpack.c.l.b16 %v5533
    %v5618 = vunpack.c.h.b16 %v5533
    %v5619 = vunpack.c.l.b16 %v5534
    %v5620 = vunpack.c.h.b16 %v5534
    %v5621 = vunpack.c.l.b16 %v5535
    %v5622 = vunpack.c.h.b16 %v5535
    %v5623 = vunpack.c.l.b16 %v5536
    %v5624 = vunpack.c.h.b16 %v5536
    %v5625 = vunpack.c.l.b16 %v5537
    %v5626 = vunpack.c.h.b16 %v5537
    %v5627 = vunpack.c.l.b16 %v5538
    %v5628 = vunpack.c.h.b16 %v5538
    %v5629 = vunpack.c.l.b16 %v5539
    %v5630 = vunpack.c.h.b16 %v5539
    %v5631 = vunpack.c.l.b16 %v5540
    %v5632 = vunpack.c.h.b16 %v5540
    %v5633 = vunpack.c.l.b16 %v5541
    %v5634 = vunpack.c.h.b16 %v5541
    %v5635 = vunpack.c.l.b16 %v5542
    %v5636 = vunpack.c.h.b16 %v5542
    %v5637 = vunpack.c.l.b16 %v5543
    %v5638 = vunpack.c.h.b16 %v5543
    %v5639 = vunpack.c.l.b16 %v5544
    %v5640 = vunpack.c.h.b16 %v5544
    %v5641 = vunpack.c.l.b16 %v5545
    %v5642 = vunpack.c.h.b16 %v5545
    %v5643 = vunpack.c.l.b16 %v5546
    %v5644 = vunpack.c.h.b16 %v5546
    %v5645 = vunpack.c.l.b16 %v5547
    %v5646 = vunpack.c.h.b16 %v5547
    %v5647 = vunpack.c.l.b16 %v5548
    %v5648 = vunpack.c.h.b16 %v5548
    %v5649 = vunpack.c.l.b16 %v5549
    %v5650 = vunpack.c.h.b16 %v5549
    %v5651 = vunpack.c.l.b16 %v5550
    %v5652 = vunpack.c.h.b16 %v5550
    %v5653 = vunpack.c.l.b16 %v5551
    %v5654 = vunpack.c.h.b16 %v5551
    %v5655 = vunpack.c.l.b16 %v5552
    %v5656 = vunpack.c.h.b16 %v5552
    %v5657 = vunpack.c.l.b16 %v5553
    %v5658 = vunpack.c.h.b16 %v5553
    %v5659 = vunpack.c.l.b16 %v5554
    %v5660 = vunpack.c.h.b16 %v5554
    %v5661 = vunpack.c.l.b16 %v5555
    %v5662 = vunpack.c.h.b16 %v5555
    %v5663 = vunpack.c.l.b16 %v5556
    %v5664 = vunpack.c.h.b16 %v5556
    %v5665 = vpack.c.b16 %v5597, %v5593
    %v5666 = vpack.c.b16 %v5598, %v5594
    %v5667 = vpack.c.b16 %v5599, %v5595
    %v5668 = vpack.c.b16 %v5600, %v5596
    %v5669 = vpack.c.b16 %v5605, %v5601
    %v5670 = vpack.c.b16 %v5606, %v5602
    %v5671 = vpack.c.b16 %v5607, %v5603
    %v5672 = vpack.c.b16 %v5608, %v5604
    %v5673 = vpack.c.b16 %v5613, %v5609
    %v5674 = vpack.c.b16 %v5614, %v5610
    %v5675 = vpack.c.b16 %v5615, %v5611
    %v5676 = vpack.c.b16 %v5616, %v5612
    %v5677 = vpack.c.b16 %v5621, %v5617
    %v5678 = vpack.c.b16 %v5622, %v5618
    %v5679 = vpack.c.b16 %v5623, %v5619
    %v5680 = vpack.c.b16 %v5624, %v5620
    %v5681 = vpack.c.b16 %v5629, %v5625
    %v5682 = vpack.c.b16 %v5630, %v5626
    %v5683 = vpack.c.b16 %v5631, %v5627
    %v5684 = vpack.c.b16 %v5632, %v5628
    %v5685 = vpack.c.b16 %v5637, %v5633
    %v5686 = vpack.c.b16 %v5638, %v5634
    %v5687 = vpack.c.b16 %v5639, %v5635
    %v5688 = vpack.c.b16 %v5640, %v5636
    %v5689 = vpack.c.b16 %v5645, %v5641
    %v5690 = vpack.c.b16 %v5646, %v5642
    %v5691 = vpack.c.b16 %v5647, %v5643
    %v5692 = vpack.c.b16 %v5648, %v5644
    %v5693 = vpack.c.b16 %v5653, %v5649
    %v5694 = vpack.c.b16 %v5654, %v5650
    %v5695 = vpack.c.b16 %v5655, %v5651
    %v5696 = vpack.c.b16 %v5656, %v5652
    %v5697 = vpack.c.b16 %v5661, %v5657
    %v5698 = vpack.c.b16 %v5662, %v5658
    %v5699 = vpack.c.b16 %v5663, %v5659
    %v5700 = vpack.c.b16 %v5664, %v5660
    %v5738 = vsel %vm894, %v5520, 0
    %5740 = vmatpush.bf16.msra.mxu0 %v5693
    %5741 = vmatpush.bf16.msra.mxu0 %v5689
    %5742 = vmatpush.bf16.msra.mxu0 %v5685
    %5743 = vmatpush.bf16.msra.mxu0 %v5681
    %5744 = vmatpush.bf16.msra.mxu0 %v5677
    %5745 = vmatpush.bf16.msra.mxu0 %v5673
    %5746 = vmatpush.bf16.msra.mxu0 %v5669
    %5747 = vmatpush.bf16.msra.mxu0 %v5665
    %5748 = vmatmul.bf16.gmra.mxu0 %v5519
    %v5749 = vpop.f32.mrf.mxu0
    %v5750 = vadd.f32 0.0, %v5749
    %v5751 = vpop.f32.mrf.mxu0
    %5752 = vdwg.mxu0
    %5753 = vmatpush.bf16.msra.mxu0 0
    %5754 = vmatpush.bf16.msra.mxu0 0
    %5755 = vmatpush.bf16.msra.mxu0 0
    %5756 = vmatpush.bf16.msra.mxu0 0
    %5757 = vmatpush.bf16.msra.mxu0 0
    %5758 = vmatpush.bf16.msra.mxu0 0
    %5759 = vmatpush.bf16.msra.mxu0 0
    %5760 = vmatpush.bf16.msra.mxu0 %v5697
    %5761 = vmatmul.bf16.gmra.mxu0 %v5738
    %v5762 = vpop.f32.mrf.mxu0
    %v5763 = vadd.f32 %v5750, %v5762
    %v5764 = vpop.f32.mrf.mxu0
    %5765 = vdwg.mxu0
    %5766 = vmatpush.bf16.msra.mxu0 %v5694
    %5767 = vmatpush.bf16.msra.mxu0 %v5690
    %5768 = vmatpush.bf16.msra.mxu0 %v5686
    %5769 = vmatpush.bf16.msra.mxu0 %v5682
    %5770 = vmatpush.bf16.msra.mxu0 %v5678
    %5771 = vmatpush.bf16.msra.mxu0 %v5674
    %5772 = vmatpush.bf16.msra.mxu0 %v5670
    %5773 = vmatpush.bf16.msra.mxu0 %v5666
    %5774 = vmatmul.bf16.gmra.mxu0 %v5519
    %v5775 = vpop.f32.mrf.mxu0
    %v5776 = vadd.f32 0.0, %v5775
    %v5777 = vpop.f32.mrf.mxu0
    %5778 = vdwg.mxu0
    %5779 = vmatpush.bf16.msra.mxu0 0
    %5780 = vmatpush.bf16.msra.mxu0 0
    %5781 = vmatpush.bf16.msra.mxu0 0
    %5782 = vmatpush.bf16.msra.mxu0 0
    %5783 = vmatpush.bf16.msra.mxu0 0
    %5784 = vmatpush.bf16.msra.mxu0 0
    %5785 = vmatpush.bf16.msra.mxu0 0
    %5786 = vmatpush.bf16.msra.mxu0 %v5698
    %5787 = vmatmul.bf16.gmra.mxu0 %v5738
    %v5788 = vpop.f32.mrf.mxu0
    %v5789 = vadd.f32 %v5776, %v5788
    %v5790 = vpop.f32.mrf.mxu0
    %5791 = vdwg.mxu0
    %5792 = vmatpush.bf16.msra.mxu0 %v5695
    %5793 = vmatpush.bf16.msra.mxu0 %v5691
    %5794 = vmatpush.bf16.msra.mxu0 %v5687
    %5795 = vmatpush.bf16.msra.mxu0 %v5683
    %5796 = vmatpush.bf16.msra.mxu0 %v5679
    %5797 = vmatpush.bf16.msra.mxu0 %v5675
    %5798 = vmatpush.bf16.msra.mxu0 %v5671
    %5799 = vmatpush.bf16.msra.mxu0 %v5667
    %5800 = vmatmul.bf16.gmra.mxu0 %v5519
    %v5801 = vpop.f32.mrf.mxu0
    %v5802 = vadd.f32 0.0, %v5801
    %v5803 = vpop.f32.mrf.mxu0
    %5804 = vdwg.mxu0
    %5805 = vmatpush.bf16.msra.mxu0 0
    %5806 = vmatpush.bf16.msra.mxu0 0
    %5807 = vmatpush.bf16.msra.mxu0 0
    %5808 = vmatpush.bf16.msra.mxu0 0
    %5809 = vmatpush.bf16.msra.mxu0 0
    %5810 = vmatpush.bf16.msra.mxu0 0
    %5811 = vmatpush.bf16.msra.mxu0 0
    %5812 = vmatpush.bf16.msra.mxu0 %v5699
    %5813 = vmatmul.bf16.gmra.mxu0 %v5738
    %v5814 = vpop.f32.mrf.mxu0
    %v5815 = vadd.f32 %v5802, %v5814
    %v5816 = vpop.f32.mrf.mxu0
    %5817 = vdwg.mxu0
    %5818 = vmatpush.bf16.msra.mxu0 %v5696
    %5819 = vmatpush.bf16.msra.mxu0 %v5692
    %5820 = vmatpush.bf16.msra.mxu0 %v5688
    %5821 = vmatpush.bf16.msra.mxu0 %v5684
    %5822 = vmatpush.bf16.msra.mxu0 %v5680
    %5823 = vmatpush.bf16.msra.mxu0 %v5676
    %5824 = vmatpush.bf16.msra.mxu0 %v5672
    %5825 = vmatpush.bf16.msra.mxu0 %v5668
    %5826 = vmatmul.bf16.gmra.mxu0 %v5519
    %v5827 = vpop.f32.mrf.mxu0
    %v5828 = vadd.f32 0.0, %v5827
    %v5829 = vpop.f32.mrf.mxu0
    %5830 = vdwg.mxu0
    %5831 = vmatpush.bf16.msra.mxu0 0
    %5832 = vmatpush.bf16.msra.mxu0 0
    %5833 = vmatpush.bf16.msra.mxu0 0
    %5834 = vmatpush.bf16.msra.mxu0 0
    %5835 = vmatpush.bf16.msra.mxu0 0
    %5836 = vmatpush.bf16.msra.mxu0 0
    %5837 = vmatpush.bf16.msra.mxu0 0
    %5838 = vmatpush.bf16.msra.mxu0 %v5700
    %5839 = vmatmul.bf16.gmra.mxu0 %v5738
    %v5840 = vpop.f32.mrf.mxu0
    %v5841 = vadd.f32 %v5828, %v5840
    %v5842 = vpop.f32.mrf.mxu0
    %5843 = vdwg.mxu0
    %v5844 = vadd.f32 %v5505, %v5763
    %v5845 = vadd.f32 %v5506, %v5789
    %v5846 = vadd.f32 %v5507, %v5815
    %v5847 = vadd.f32 %v5508, %v5841
    %v5848 = vrot.slane %v1269, 5
    %v5849 = vrot.slane %v1327, 5
    %v5852 = vrot.slane %v1385, 4
    %v5853 = vrot.slane %v1443, 4
    %v5856 = vsel %vm366, %v5848, %v5852
    %v5857 = vsel %vm366, %v5849, %v5853
    %v5858 = vpack.c.bf16 %v5856, %v5856
    %v5859 = vpack.c.bf16 %v5857, %v5857
    %v5860 = vld [vmem:[#allocation2 + $0xea0] sm:$0xff]
    %v5861 = vld [vmem:[#allocation2 + $0xea8] sm:$0xff]
    %v5862 = vld [vmem:[#allocation2 + $0xeb0] sm:$0xff]
    %v5863 = vld [vmem:[#allocation2 + $0xeb8] sm:$0xff]
    %v5864 = vld [vmem:[#allocation2 + $0xec0] sm:$0xff]
    %v5865 = vld [vmem:[#allocation2 + $0xec8] sm:$0xff]
    %v5866 = vld [vmem:[#allocation2 + $0xed0] sm:$0xff]
    %v5867 = vld [vmem:[#allocation2 + $0xed8] sm:$0xff]
    %v5868 = vld [vmem:[#allocation2 + $0xee0] sm:$0xff]
    %v5869 = vld [vmem:[#allocation2 + $0xee8] sm:$0xff]
    %v5870 = vld [vmem:[#allocation2 + $0xef0] sm:$0xff]
    %v5871 = vld [vmem:[#allocation2 + $0xef8] sm:$0xff]
    %v5872 = vld [vmem:[#allocation2 + $0xf00] sm:$0xff]
    %v5873 = vld [vmem:[#allocation2 + $0xf08] sm:$0xff]
    %v5874 = vld [vmem:[#allocation2 + $0xf10] sm:$0xff]
    %v5875 = vld [vmem:[#allocation2 + $0xf18] sm:$0xff]
    %v5876 = vld [vmem:[#allocation2 + $0xf20] sm:$0xff]
    %v5877 = vld [vmem:[#allocation2 + $0xf28] sm:$0xff]
    %v5878 = vld [vmem:[#allocation2 + $0xf30] sm:$0xff]
    %v5879 = vld [vmem:[#allocation2 + $0xf38] sm:$0xff]
    %v5880 = vld [vmem:[#allocation2 + $0xf40] sm:$0xff]
    %v5881 = vld [vmem:[#allocation2 + $0xf48] sm:$0xff]
    %v5882 = vld [vmem:[#allocation2 + $0xf50] sm:$0xff]
    %v5883 = vld [vmem:[#allocation2 + $0xf58] sm:$0xff]
    %v5884 = vld [vmem:[#allocation2 + $0xf60] sm:$0xff]
    %v5885 = vld [vmem:[#allocation2 + $0xf68] sm:$0xff]
    %v5886 = vld [vmem:[#allocation2 + $0xf70] sm:$0xff]
    %v5887 = vld [vmem:[#allocation2 + $0xf78] sm:$0xff]
    %v5888 = vld [vmem:[#allocation2 + $0xf80] sm:$0xff]
    %v5889 = vld [vmem:[#allocation2 + $0xf88] sm:$0xff]
    %v5890 = vld [vmem:[#allocation2 + $0xf90] sm:$0xff]
    %v5891 = vld [vmem:[#allocation2 + $0xf98] sm:$0xff]
    %v5892 = vld [vmem:[#allocation2 + $0xfa0] sm:$0xff]
    %v5893 = vld [vmem:[#allocation2 + $0xfa8] sm:$0xff]
    %v5894 = vld [vmem:[#allocation2 + $0xfb0] sm:$0xff]
    %v5895 = vld [vmem:[#allocation2 + $0xfb8] sm:$0xff]
    %v5932 = vunpack.c.l.b16 %v5860
    %v5933 = vunpack.c.h.b16 %v5860
    %v5934 = vunpack.c.l.b16 %v5861
    %v5935 = vunpack.c.h.b16 %v5861
    %v5936 = vunpack.c.l.b16 %v5862
    %v5937 = vunpack.c.h.b16 %v5862
    %v5938 = vunpack.c.l.b16 %v5863
    %v5939 = vunpack.c.h.b16 %v5863
    %v5940 = vunpack.c.l.b16 %v5864
    %v5941 = vunpack.c.h.b16 %v5864
    %v5942 = vunpack.c.l.b16 %v5865
    %v5943 = vunpack.c.h.b16 %v5865
    %v5944 = vunpack.c.l.b16 %v5866
    %v5945 = vunpack.c.h.b16 %v5866
    %v5946 = vunpack.c.l.b16 %v5867
    %v5947 = vunpack.c.h.b16 %v5867
    %v5948 = vunpack.c.l.b16 %v5868
    %v5949 = vunpack.c.h.b16 %v5868
    %v5950 = vunpack.c.l.b16 %v5869
    %v5951 = vunpack.c.h.b16 %v5869
    %v5952 = vunpack.c.l.b16 %v5870
    %v5953 = vunpack.c.h.b16 %v5870
    %v5954 = vunpack.c.l.b16 %v5871
    %v5955 = vunpack.c.h.b16 %v5871
    %v5956 = vunpack.c.l.b16 %v5872
    %v5957 = vunpack.c.h.b16 %v5872
    %v5958 = vunpack.c.l.b16 %v5873
    %v5959 = vunpack.c.h.b16 %v5873
    %v5960 = vunpack.c.l.b16 %v5874
    %v5961 = vunpack.c.h.b16 %v5874
    %v5962 = vunpack.c.l.b16 %v5875
    %v5963 = vunpack.c.h.b16 %v5875
    %v5964 = vunpack.c.l.b16 %v5876
    %v5965 = vunpack.c.h.b16 %v5876
    %v5966 = vunpack.c.l.b16 %v5877
    %v5967 = vunpack.c.h.b16 %v5877
    %v5968 = vunpack.c.l.b16 %v5878
    %v5969 = vunpack.c.h.b16 %v5878
    %v5970 = vunpack.c.l.b16 %v5879
    %v5971 = vunpack.c.h.b16 %v5879
    %v5972 = vunpack.c.l.b16 %v5880
    %v5973 = vunpack.c.h.b16 %v5880
    %v5974 = vunpack.c.l.b16 %v5881
    %v5975 = vunpack.c.h.b16 %v5881
    %v5976 = vunpack.c.l.b16 %v5882
    %v5977 = vunpack.c.h.b16 %v5882
    %v5978 = vunpack.c.l.b16 %v5883
    %v5979 = vunpack.c.h.b16 %v5883
    %v5980 = vunpack.c.l.b16 %v5884
    %v5981 = vunpack.c.h.b16 %v5884
    %v5982 = vunpack.c.l.b16 %v5885
    %v5983 = vunpack.c.h.b16 %v5885
    %v5984 = vunpack.c.l.b16 %v5886
    %v5985 = vunpack.c.h.b16 %v5886
    %v5986 = vunpack.c.l.b16 %v5887
    %v5987 = vunpack.c.h.b16 %v5887
    %v5988 = vunpack.c.l.b16 %v5888
    %v5989 = vunpack.c.h.b16 %v5888
    %v5990 = vunpack.c.l.b16 %v5889
    %v5991 = vunpack.c.h.b16 %v5889
    %v5992 = vunpack.c.l.b16 %v5890
    %v5993 = vunpack.c.h.b16 %v5890
    %v5994 = vunpack.c.l.b16 %v5891
    %v5995 = vunpack.c.h.b16 %v5891
    %v5996 = vunpack.c.l.b16 %v5892
    %v5997 = vunpack.c.h.b16 %v5892
    %v5998 = vunpack.c.l.b16 %v5893
    %v5999 = vunpack.c.h.b16 %v5893
    %v6000 = vunpack.c.l.b16 %v5894
    %v6001 = vunpack.c.h.b16 %v5894
    %v6002 = vunpack.c.l.b16 %v5895
    %v6003 = vunpack.c.h.b16 %v5895
    %v6004 = vpack.c.b16 %v5936, %v5932
    %v6005 = vpack.c.b16 %v5937, %v5933
    %v6006 = vpack.c.b16 %v5938, %v5934
    %v6007 = vpack.c.b16 %v5939, %v5935
    %v6008 = vpack.c.b16 %v5944, %v5940
    %v6009 = vpack.c.b16 %v5945, %v5941
    %v6010 = vpack.c.b16 %v5946, %v5942
    %v6011 = vpack.c.b16 %v5947, %v5943
    %v6012 = vpack.c.b16 %v5952, %v5948
    %v6013 = vpack.c.b16 %v5953, %v5949
    %v6014 = vpack.c.b16 %v5954, %v5950
    %v6015 = vpack.c.b16 %v5955, %v5951
    %v6016 = vpack.c.b16 %v5960, %v5956
    %v6017 = vpack.c.b16 %v5961, %v5957
    %v6018 = vpack.c.b16 %v5962, %v5958
    %v6019 = vpack.c.b16 %v5963, %v5959
    %v6020 = vpack.c.b16 %v5968, %v5964
    %v6021 = vpack.c.b16 %v5969, %v5965
    %v6022 = vpack.c.b16 %v5970, %v5966
    %v6023 = vpack.c.b16 %v5971, %v5967
    %v6024 = vpack.c.b16 %v5976, %v5972
    %v6025 = vpack.c.b16 %v5977, %v5973
    %v6026 = vpack.c.b16 %v5978, %v5974
    %v6027 = vpack.c.b16 %v5979, %v5975
    %v6028 = vpack.c.b16 %v5984, %v5980
    %v6029 = vpack.c.b16 %v5985, %v5981
    %v6030 = vpack.c.b16 %v5986, %v5982
    %v6031 = vpack.c.b16 %v5987, %v5983
    %v6032 = vpack.c.b16 %v5992, %v5988
    %v6033 = vpack.c.b16 %v5993, %v5989
    %v6034 = vpack.c.b16 %v5994, %v5990
    %v6035 = vpack.c.b16 %v5995, %v5991
    %v6036 = vpack.c.b16 %v6000, %v5996
    %v6037 = vpack.c.b16 %v6001, %v5997
    %v6038 = vpack.c.b16 %v6002, %v5998
    %v6039 = vpack.c.b16 %v6003, %v5999
    %v6077 = vsel %vm894, %v5859, 0
    %6079 = vmatpush.bf16.msra.mxu0 %v6032
    %6080 = vmatpush.bf16.msra.mxu0 %v6028
    %6081 = vmatpush.bf16.msra.mxu0 %v6024
    %6082 = vmatpush.bf16.msra.mxu0 %v6020
    %6083 = vmatpush.bf16.msra.mxu0 %v6016
    %6084 = vmatpush.bf16.msra.mxu0 %v6012
    %6085 = vmatpush.bf16.msra.mxu0 %v6008
    %6086 = vmatpush.bf16.msra.mxu0 %v6004
    %6087 = vmatmul.bf16.gmra.mxu0 %v5858
    %v6088 = vpop.f32.mrf.mxu0
    %v6089 = vadd.f32 0.0, %v6088
    %v6090 = vpop.f32.mrf.mxu0
    %6091 = vdwg.mxu0
    %6092 = vmatpush.bf16.msra.mxu0 0
    %6093 = vmatpush.bf16.msra.mxu0 0
    %6094 = vmatpush.bf16.msra.mxu0 0
    %6095 = vmatpush.bf16.msra.mxu0 0
    %6096 = vmatpush.bf16.msra.mxu0 0
    %6097 = vmatpush.bf16.msra.mxu0 0
    %6098 = vmatpush.bf16.msra.mxu0 0
    %6099 = vmatpush.bf16.msra.mxu0 %v6036
    %6100 = vmatmul.bf16.gmra.mxu0 %v6077
    %v6101 = vpop.f32.mrf.mxu0
    %v6102 = vadd.f32 %v6089, %v6101
    %v6103 = vpop.f32.mrf.mxu0
    %6104 = vdwg.mxu0
    %6105 = vmatpush.bf16.msra.mxu0 %v6033
    %6106 = vmatpush.bf16.msra.mxu0 %v6029
    %6107 = vmatpush.bf16.msra.mxu0 %v6025
    %6108 = vmatpush.bf16.msra.mxu0 %v6021
    %6109 = vmatpush.bf16.msra.mxu0 %v6017
    %6110 = vmatpush.bf16.msra.mxu0 %v6013
    %6111 = vmatpush.bf16.msra.mxu0 %v6009
    %6112 = vmatpush.bf16.msra.mxu0 %v6005
    %6113 = vmatmul.bf16.gmra.mxu0 %v5858
    %v6114 = vpop.f32.mrf.mxu0
    %v6115 = vadd.f32 0.0, %v6114
    %v6116 = vpop.f32.mrf.mxu0
    %6117 = vdwg.mxu0
    %6118 = vmatpush.bf16.msra.mxu0 0
    %6119 = vmatpush.bf16.msra.mxu0 0
    %6120 = vmatpush.bf16.msra.mxu0 0
    %6121 = vmatpush.bf16.msra.mxu0 0
    %6122 = vmatpush.bf16.msra.mxu0 0
    %6123 = vmatpush.bf16.msra.mxu0 0
    %6124 = vmatpush.bf16.msra.mxu0 0
    %6125 = vmatpush.bf16.msra.mxu0 %v6037
    %6126 = vmatmul.bf16.gmra.mxu0 %v6077
    %v6127 = vpop.f32.mrf.mxu0
    %v6128 = vadd.f32 %v6115, %v6127
    %v6129 = vpop.f32.mrf.mxu0
    %6130 = vdwg.mxu0
    %6131 = vmatpush.bf16.msra.mxu0 %v6034
    %6132 = vmatpush.bf16.msra.mxu0 %v6030
    %6133 = vmatpush.bf16.msra.mxu0 %v6026
    %6134 = vmatpush.bf16.msra.mxu0 %v6022
    %6135 = vmatpush.bf16.msra.mxu0 %v6018
    %6136 = vmatpush.bf16.msra.mxu0 %v6014
    %6137 = vmatpush.bf16.msra.mxu0 %v6010
    %6138 = vmatpush.bf16.msra.mxu0 %v6006
    %6139 = vmatmul.bf16.gmra.mxu0 %v5858
    %v6140 = vpop.f32.mrf.mxu0
    %v6141 = vadd.f32 0.0, %v6140
    %v6142 = vpop.f32.mrf.mxu0
    %6143 = vdwg.mxu0
    %6144 = vmatpush.bf16.msra.mxu0 0
    %6145 = vmatpush.bf16.msra.mxu0 0
    %6146 = vmatpush.bf16.msra.mxu0 0
    %6147 = vmatpush.bf16.msra.mxu0 0
    %6148 = vmatpush.bf16.msra.mxu0 0
    %6149 = vmatpush.bf16.msra.mxu0 0
    %6150 = vmatpush.bf16.msra.mxu0 0
    %6151 = vmatpush.bf16.msra.mxu0 %v6038
    %6152 = vmatmul.bf16.gmra.mxu0 %v6077
    %v6153 = vpop.f32.mrf.mxu0
    %v6154 = vadd.f32 %v6141, %v6153
    %v6155 = vpop.f32.mrf.mxu0
    %6156 = vdwg.mxu0
    %6157 = vmatpush.bf16.msra.mxu0 %v6035
    %6158 = vmatpush.bf16.msra.mxu0 %v6031
    %6159 = vmatpush.bf16.msra.mxu0 %v6027
    %6160 = vmatpush.bf16.msra.mxu0 %v6023
    %6161 = vmatpush.bf16.msra.mxu0 %v6019
    %6162 = vmatpush.bf16.msra.mxu0 %v6015
    %6163 = vmatpush.bf16.msra.mxu0 %v6011
    %6164 = vmatpush.bf16.msra.mxu0 %v6007
    %6165 = vmatmul.bf16.gmra.mxu0 %v5858
    %v6166 = vpop.f32.mrf.mxu0
    %v6167 = vadd.f32 0.0, %v6166
    %v6168 = vpop.f32.mrf.mxu0
    %6169 = vdwg.mxu0
    %6170 = vmatpush.bf16.msra.mxu0 0
    %6171 = vmatpush.bf16.msra.mxu0 0
    %6172 = vmatpush.bf16.msra.mxu0 0
    %6173 = vmatpush.bf16.msra.mxu0 0
    %6174 = vmatpush.bf16.msra.mxu0 0
    %6175 = vmatpush.bf16.msra.mxu0 0
    %6176 = vmatpush.bf16.msra.mxu0 0
    %6177 = vmatpush.bf16.msra.mxu0 %v6039
    %6178 = vmatmul.bf16.gmra.mxu0 %v6077
    %v6179 = vpop.f32.mrf.mxu0
    %v6180 = vadd.f32 %v6167, %v6179
    %v6181 = vpop.f32.mrf.mxu0
    %6182 = vdwg.mxu0
    %v6183 = vadd.f32 %v5844, %v6102
    %v6184 = vadd.f32 %v5845, %v6128
    %v6185 = vadd.f32 %v5846, %v6154
    %v6186 = vadd.f32 %v5847, %v6180
    %v6187 = vrot.slane %v1269, 6
    %v6188 = vrot.slane %v1327, 6
    %v6191 = vrot.slane %v1385, 5
    %v6192 = vrot.slane %v1443, 5
    %v6195 = vsel %vm366, %v6187, %v6191
    %v6196 = vsel %vm366, %v6188, %v6192
    %v6197 = vpack.c.bf16 %v6195, %v6195
    %v6198 = vpack.c.bf16 %v6196, %v6196
    %v6199 = vld [vmem:[#allocation2 + $0xfc0] sm:$0xff]
    %v6200 = vld [vmem:[#allocation2 + $0xfc8] sm:$0xff]
    %v6201 = vld [vmem:[#allocation2 + $0xfd0] sm:$0xff]
    %v6202 = vld [vmem:[#allocation2 + $0xfd8] sm:$0xff]
    %v6203 = vld [vmem:[#allocation2 + $0xfe0] sm:$0xff]
    %v6204 = vld [vmem:[#allocation2 + $0xfe8] sm:$0xff]
    %v6205 = vld [vmem:[#allocation2 + $0xff0] sm:$0xff]
    %v6206 = vld [vmem:[#allocation2 + $0xff8] sm:$0xff]
    %v6207 = vld [vmem:[#allocation2 + $0x1000] sm:$0xff]
    %v6208 = vld [vmem:[#allocation2 + $0x1008] sm:$0xff]
    %v6209 = vld [vmem:[#allocation2 + $0x1010] sm:$0xff]
    %v6210 = vld [vmem:[#allocation2 + $0x1018] sm:$0xff]
    %v6211 = vld [vmem:[#allocation2 + $0x1020] sm:$0xff]
    %v6212 = vld [vmem:[#allocation2 + $0x1028] sm:$0xff]
    %v6213 = vld [vmem:[#allocation2 + $0x1030] sm:$0xff]
    %v6214 = vld [vmem:[#allocation2 + $0x1038] sm:$0xff]
    %v6215 = vld [vmem:[#allocation2 + $0x1040] sm:$0xff]
    %v6216 = vld [vmem:[#allocation2 + $0x1048] sm:$0xff]
    %v6217 = vld [vmem:[#allocation2 + $0x1050] sm:$0xff]
    %v6218 = vld [vmem:[#allocation2 + $0x1058] sm:$0xff]
    %v6219 = vld [vmem:[#allocation2 + $0x1060] sm:$0xff]
    %v6220 = vld [vmem:[#allocation2 + $0x1068] sm:$0xff]
    %v6221 = vld [vmem:[#allocation2 + $0x1070] sm:$0xff]
    %v6222 = vld [vmem:[#allocation2 + $0x1078] sm:$0xff]
    %v6223 = vld [vmem:[#allocation2 + $0x1080] sm:$0xff]
    %v6224 = vld [vmem:[#allocation2 + $0x1088] sm:$0xff]
    %v6225 = vld [vmem:[#allocation2 + $0x1090] sm:$0xff]
    %v6226 = vld [vmem:[#allocation2 + $0x1098] sm:$0xff]
    %v6227 = vld [vmem:[#allocation2 + $0x10a0] sm:$0xff]
    %v6228 = vld [vmem:[#allocation2 + $0x10a8] sm:$0xff]
    %v6229 = vld [vmem:[#allocation2 + $0x10b0] sm:$0xff]
    %v6230 = vld [vmem:[#allocation2 + $0x10b8] sm:$0xff]
    %v6231 = vld [vmem:[#allocation2 + $0x10c0] sm:$0xff]
    %v6232 = vld [vmem:[#allocation2 + $0x10c8] sm:$0xff]
    %v6233 = vld [vmem:[#allocation2 + $0x10d0] sm:$0xff]
    %v6234 = vld [vmem:[#allocation2 + $0x10d8] sm:$0xff]
    %v6271 = vunpack.c.l.b16 %v6199
    %v6272 = vunpack.c.h.b16 %v6199
    %v6273 = vunpack.c.l.b16 %v6200
    %v6274 = vunpack.c.h.b16 %v6200
    %v6275 = vunpack.c.l.b16 %v6201
    %v6276 = vunpack.c.h.b16 %v6201
    %v6277 = vunpack.c.l.b16 %v6202
    %v6278 = vunpack.c.h.b16 %v6202
    %v6279 = vunpack.c.l.b16 %v6203
    %v6280 = vunpack.c.h.b16 %v6203
    %v6281 = vunpack.c.l.b16 %v6204
    %v6282 = vunpack.c.h.b16 %v6204
    %v6283 = vunpack.c.l.b16 %v6205
    %v6284 = vunpack.c.h.b16 %v6205
    %v6285 = vunpack.c.l.b16 %v6206
    %v6286 = vunpack.c.h.b16 %v6206
    %v6287 = vunpack.c.l.b16 %v6207
    %v6288 = vunpack.c.h.b16 %v6207
    %v6289 = vunpack.c.l.b16 %v6208
    %v6290 = vunpack.c.h.b16 %v6208
    %v6291 = vunpack.c.l.b16 %v6209
    %v6292 = vunpack.c.h.b16 %v6209
    %v6293 = vunpack.c.l.b16 %v6210
    %v6294 = vunpack.c.h.b16 %v6210
    %v6295 = vunpack.c.l.b16 %v6211
    %v6296 = vunpack.c.h.b16 %v6211
    %v6297 = vunpack.c.l.b16 %v6212
    %v6298 = vunpack.c.h.b16 %v6212
    %v6299 = vunpack.c.l.b16 %v6213
    %v6300 = vunpack.c.h.b16 %v6213
    %v6301 = vunpack.c.l.b16 %v6214
    %v6302 = vunpack.c.h.b16 %v6214
    %v6303 = vunpack.c.l.b16 %v6215
    %v6304 = vunpack.c.h.b16 %v6215
    %v6305 = vunpack.c.l.b16 %v6216
    %v6306 = vunpack.c.h.b16 %v6216
    %v6307 = vunpack.c.l.b16 %v6217
    %v6308 = vunpack.c.h.b16 %v6217
    %v6309 = vunpack.c.l.b16 %v6218
    %v6310 = vunpack.c.h.b16 %v6218
    %v6311 = vunpack.c.l.b16 %v6219
    %v6312 = vunpack.c.h.b16 %v6219
    %v6313 = vunpack.c.l.b16 %v6220
    %v6314 = vunpack.c.h.b16 %v6220
    %v6315 = vunpack.c.l.b16 %v6221
    %v6316 = vunpack.c.h.b16 %v6221
    %v6317 = vunpack.c.l.b16 %v6222
    %v6318 = vunpack.c.h.b16 %v6222
    %v6319 = vunpack.c.l.b16 %v6223
    %v6320 = vunpack.c.h.b16 %v6223
    %v6321 = vunpack.c.l.b16 %v6224
    %v6322 = vunpack.c.h.b16 %v6224
    %v6323 = vunpack.c.l.b16 %v6225
    %v6324 = vunpack.c.h.b16 %v6225
    %v6325 = vunpack.c.l.b16 %v6226
    %v6326 = vunpack.c.h.b16 %v6226
    %v6327 = vunpack.c.l.b16 %v6227
    %v6328 = vunpack.c.h.b16 %v6227
    %v6329 = vunpack.c.l.b16 %v6228
    %v6330 = vunpack.c.h.b16 %v6228
    %v6331 = vunpack.c.l.b16 %v6229
    %v6332 = vunpack.c.h.b16 %v6229
    %v6333 = vunpack.c.l.b16 %v6230
    %v6334 = vunpack.c.h.b16 %v6230
    %v6335 = vunpack.c.l.b16 %v6231
    %v6336 = vunpack.c.h.b16 %v6231
    %v6337 = vunpack.c.l.b16 %v6232
    %v6338 = vunpack.c.h.b16 %v6232
    %v6339 = vunpack.c.l.b16 %v6233
    %v6340 = vunpack.c.h.b16 %v6233
    %v6341 = vunpack.c.l.b16 %v6234
    %v6342 = vunpack.c.h.b16 %v6234
    %v6343 = vpack.c.b16 %v6275, %v6271
    %v6344 = vpack.c.b16 %v6276, %v6272
    %v6345 = vpack.c.b16 %v6277, %v6273
    %v6346 = vpack.c.b16 %v6278, %v6274
    %v6347 = vpack.c.b16 %v6283, %v6279
    %v6348 = vpack.c.b16 %v6284, %v6280
    %v6349 = vpack.c.b16 %v6285, %v6281
    %v6350 = vpack.c.b16 %v6286, %v6282
    %v6351 = vpack.c.b16 %v6291, %v6287
    %v6352 = vpack.c.b16 %v6292, %v6288
    %v6353 = vpack.c.b16 %v6293, %v6289
    %v6354 = vpack.c.b16 %v6294, %v6290
    %v6355 = vpack.c.b16 %v6299, %v6295
    %v6356 = vpack.c.b16 %v6300, %v6296
    %v6357 = vpack.c.b16 %v6301, %v6297
    %v6358 = vpack.c.b16 %v6302, %v6298
    %v6359 = vpack.c.b16 %v6307, %v6303
    %v6360 = vpack.c.b16 %v6308, %v6304
    %v6361 = vpack.c.b16 %v6309, %v6305
    %v6362 = vpack.c.b16 %v6310, %v6306
    %v6363 = vpack.c.b16 %v6315, %v6311
    %v6364 = vpack.c.b16 %v6316, %v6312
    %v6365 = vpack.c.b16 %v6317, %v6313
    %v6366 = vpack.c.b16 %v6318, %v6314
    %v6367 = vpack.c.b16 %v6323, %v6319
    %v6368 = vpack.c.b16 %v6324, %v6320
    %v6369 = vpack.c.b16 %v6325, %v6321
    %v6370 = vpack.c.b16 %v6326, %v6322
    %v6371 = vpack.c.b16 %v6331, %v6327
    %v6372 = vpack.c.b16 %v6332, %v6328
    %v6373 = vpack.c.b16 %v6333, %v6329
    %v6374 = vpack.c.b16 %v6334, %v6330
    %v6375 = vpack.c.b16 %v6339, %v6335
    %v6376 = vpack.c.b16 %v6340, %v6336
    %v6377 = vpack.c.b16 %v6341, %v6337
    %v6378 = vpack.c.b16 %v6342, %v6338
    %v6416 = vsel %vm894, %v6198, 0
    %6418 = vmatpush.bf16.msra.mxu0 %v6371
    %6419 = vmatpush.bf16.msra.mxu0 %v6367
    %6420 = vmatpush.bf16.msra.mxu0 %v6363
    %6421 = vmatpush.bf16.msra.mxu0 %v6359
    %6422 = vmatpush.bf16.msra.mxu0 %v6355
    %6423 = vmatpush.bf16.msra.mxu0 %v6351
    %6424 = vmatpush.bf16.msra.mxu0 %v6347
    %6425 = vmatpush.bf16.msra.mxu0 %v6343
    %6426 = vmatmul.bf16.gmra.mxu0 %v6197
    %v6427 = vpop.f32.mrf.mxu0
    %v6428 = vadd.f32 0.0, %v6427
    %v6429 = vpop.f32.mrf.mxu0
    %6430 = vdwg.mxu0
    %6431 = vmatpush.bf16.msra.mxu0 0
    %6432 = vmatpush.bf16.msra.mxu0 0
    %6433 = vmatpush.bf16.msra.mxu0 0
    %6434 = vmatpush.bf16.msra.mxu0 0
    %6435 = vmatpush.bf16.msra.mxu0 0
    %6436 = vmatpush.bf16.msra.mxu0 0
    %6437 = vmatpush.bf16.msra.mxu0 0
    %6438 = vmatpush.bf16.msra.mxu0 %v6375
    %6439 = vmatmul.bf16.gmra.mxu0 %v6416
    %v6440 = vpop.f32.mrf.mxu0
    %v6441 = vadd.f32 %v6428, %v6440
    %v6442 = vpop.f32.mrf.mxu0
    %6443 = vdwg.mxu0
    %6444 = vmatpush.bf16.msra.mxu0 %v6372
    %6445 = vmatpush.bf16.msra.mxu0 %v6368
    %6446 = vmatpush.bf16.msra.mxu0 %v6364
    %6447 = vmatpush.bf16.msra.mxu0 %v6360
    %6448 = vmatpush.bf16.msra.mxu0 %v6356
    %6449 = vmatpush.bf16.msra.mxu0 %v6352
    %6450 = vmatpush.bf16.msra.mxu0 %v6348
    %6451 = vmatpush.bf16.msra.mxu0 %v6344
    %6452 = vmatmul.bf16.gmra.mxu0 %v6197
    %v6453 = vpop.f32.mrf.mxu0
    %v6454 = vadd.f32 0.0, %v6453
    %v6455 = vpop.f32.mrf.mxu0
    %6456 = vdwg.mxu0
    %6457 = vmatpush.bf16.msra.mxu0 0
    %6458 = vmatpush.bf16.msra.mxu0 0
    %6459 = vmatpush.bf16.msra.mxu0 0
    %6460 = vmatpush.bf16.msra.mxu0 0
    %6461 = vmatpush.bf16.msra.mxu0 0
    %6462 = vmatpush.bf16.msra.mxu0 0
    %6463 = vmatpush.bf16.msra.mxu0 0
    %6464 = vmatpush.bf16.msra.mxu0 %v6376
    %6465 = vmatmul.bf16.gmra.mxu0 %v6416
    %v6466 = vpop.f32.mrf.mxu0
    %v6467 = vadd.f32 %v6454, %v6466
    %v6468 = vpop.f32.mrf.mxu0
    %6469 = vdwg.mxu0
    %6470 = vmatpush.bf16.msra.mxu0 %v6373
    %6471 = vmatpush.bf16.msra.mxu0 %v6369
    %6472 = vmatpush.bf16.msra.mxu0 %v6365
    %6473 = vmatpush.bf16.msra.mxu0 %v6361
    %6474 = vmatpush.bf16.msra.mxu0 %v6357
    %6475 = vmatpush.bf16.msra.mxu0 %v6353
    %6476 = vmatpush.bf16.msra.mxu0 %v6349
    %6477 = vmatpush.bf16.msra.mxu0 %v6345
    %6478 = vmatmul.bf16.gmra.mxu0 %v6197
    %v6479 = vpop.f32.mrf.mxu0
    %v6480 = vadd.f32 0.0, %v6479
    %v6481 = vpop.f32.mrf.mxu0
    %6482 = vdwg.mxu0
    %6483 = vmatpush.bf16.msra.mxu0 0
    %6484 = vmatpush.bf16.msra.mxu0 0
    %6485 = vmatpush.bf16.msra.mxu0 0
    %6486 = vmatpush.bf16.msra.mxu0 0
    %6487 = vmatpush.bf16.msra.mxu0 0
    %6488 = vmatpush.bf16.msra.mxu0 0
    %6489 = vmatpush.bf16.msra.mxu0 0
    %6490 = vmatpush.bf16.msra.mxu0 %v6377
    %6491 = vmatmul.bf16.gmra.mxu0 %v6416
    %v6492 = vpop.f32.mrf.mxu0
    %v6493 = vadd.f32 %v6480, %v6492
    %v6494 = vpop.f32.mrf.mxu0
    %6495 = vdwg.mxu0
    %6496 = vmatpush.bf16.msra.mxu0 %v6374
    %6497 = vmatpush.bf16.msra.mxu0 %v6370
    %6498 = vmatpush.bf16.msra.mxu0 %v6366
    %6499 = vmatpush.bf16.msra.mxu0 %v6362
    %6500 = vmatpush.bf16.msra.mxu0 %v6358
    %6501 = vmatpush.bf16.msra.mxu0 %v6354
    %6502 = vmatpush.bf16.msra.mxu0 %v6350
    %6503 = vmatpush.bf16.msra.mxu0 %v6346
    %6504 = vmatmul.bf16.gmra.mxu0 %v6197
    %v6505 = vpop.f32.mrf.mxu0
    %v6506 = vadd.f32 0.0, %v6505
    %v6507 = vpop.f32.mrf.mxu0
    %6508 = vdwg.mxu0
    %6509 = vmatpush.bf16.msra.mxu0 0
    %6510 = vmatpush.bf16.msra.mxu0 0
    %6511 = vmatpush.bf16.msra.mxu0 0
    %6512 = vmatpush.bf16.msra.mxu0 0
    %6513 = vmatpush.bf16.msra.mxu0 0
    %6514 = vmatpush.bf16.msra.mxu0 0
    %6515 = vmatpush.bf16.msra.mxu0 0
    %6516 = vmatpush.bf16.msra.mxu0 %v6378
    %6517 = vmatmul.bf16.gmra.mxu0 %v6416
    %v6518 = vpop.f32.mrf.mxu0
    %v6519 = vadd.f32 %v6506, %v6518
    %v6520 = vpop.f32.mrf.mxu0
    %6521 = vdwg.mxu0
    %v6522 = vadd.f32 %v6183, %v6441
    %v6523 = vadd.f32 %v6184, %v6467
    %v6524 = vadd.f32 %v6185, %v6493
    %v6525 = vadd.f32 %v6186, %v6519
    %v6526 = vrot.slane %v1269, 7
    %v6527 = vrot.slane %v1327, 7
    %v6530 = vrot.slane %v1385, 6
    %v6531 = vrot.slane %v1443, 6
    %v6534 = vsel %vm366, %v6526, %v6530
    %v6535 = vsel %vm366, %v6527, %v6531
    %v6536 = vpack.c.bf16 %v6534, %v6534
    %v6537 = vpack.c.bf16 %v6535, %v6535
    %v6538 = vld [vmem:[#allocation2 + $0x10e0] sm:$0xff]
    %v6539 = vld [vmem:[#allocation2 + $0x10e8] sm:$0xff]
    %v6540 = vld [vmem:[#allocation2 + $0x10f0] sm:$0xff]
    %v6541 = vld [vmem:[#allocation2 + $0x10f8] sm:$0xff]
    %v6542 = vld [vmem:[#allocation2 + $0x1100] sm:$0xff]
    %v6543 = vld [vmem:[#allocation2 + $0x1108] sm:$0xff]
    %v6544 = vld [vmem:[#allocation2 + $0x1110] sm:$0xff]
    %v6545 = vld [vmem:[#allocation2 + $0x1118] sm:$0xff]
    %v6546 = vld [vmem:[#allocation2 + $0x1120] sm:$0xff]
    %v6547 = vld [vmem:[#allocation2 + $0x1128] sm:$0xff]
    %v6548 = vld [vmem:[#allocation2 + $0x1130] sm:$0xff]
    %v6549 = vld [vmem:[#allocation2 + $0x1138] sm:$0xff]
    %v6550 = vld [vmem:[#allocation2 + $0x1140] sm:$0xff]
    %v6551 = vld [vmem:[#allocation2 + $0x1148] sm:$0xff]
    %v6552 = vld [vmem:[#allocation2 + $0x1150] sm:$0xff]
    %v6553 = vld [vmem:[#allocation2 + $0x1158] sm:$0xff]
    %v6554 = vld [vmem:[#allocation2 + $0x1160] sm:$0xff]
    %v6555 = vld [vmem:[#allocation2 + $0x1168] sm:$0xff]
    %v6556 = vld [vmem:[#allocation2 + $0x1170] sm:$0xff]
    %v6557 = vld [vmem:[#allocation2 + $0x1178] sm:$0xff]
    %v6558 = vld [vmem:[#allocation2 + $0x1180] sm:$0xff]
    %v6559 = vld [vmem:[#allocation2 + $0x1188] sm:$0xff]
    %v6560 = vld [vmem:[#allocation2 + $0x1190] sm:$0xff]
    %v6561 = vld [vmem:[#allocation2 + $0x1198] sm:$0xff]
    %v6562 = vld [vmem:[#allocation2 + $0x11a0] sm:$0xff]
    %v6563 = vld [vmem:[#allocation2 + $0x11a8] sm:$0xff]
    %v6564 = vld [vmem:[#allocation2 + $0x11b0] sm:$0xff]
    %v6565 = vld [vmem:[#allocation2 + $0x11b8] sm:$0xff]
    %v6566 = vld [vmem:[#allocation2 + $0x11c0] sm:$0xff]
    %v6567 = vld [vmem:[#allocation2 + $0x11c8] sm:$0xff]
    %v6568 = vld [vmem:[#allocation2 + $0x11d0] sm:$0xff]
    %v6569 = vld [vmem:[#allocation2 + $0x11d8] sm:$0xff]
    %v6570 = vld [vmem:[#allocation2 + $0x11e0] sm:$0xff]
    %v6571 = vld [vmem:[#allocation2 + $0x11e8] sm:$0xff]
    %v6572 = vld [vmem:[#allocation2 + $0x11f0] sm:$0xff]
    %v6573 = vld [vmem:[#allocation2 + $0x11f8] sm:$0xff]
    %v6610 = vunpack.c.l.b16 %v6538
    %v6611 = vunpack.c.h.b16 %v6538
    %v6612 = vunpack.c.l.b16 %v6539
    %v6613 = vunpack.c.h.b16 %v6539
    %v6614 = vunpack.c.l.b16 %v6540
    %v6615 = vunpack.c.h.b16 %v6540
    %v6616 = vunpack.c.l.b16 %v6541
    %v6617 = vunpack.c.h.b16 %v6541
    %v6618 = vunpack.c.l.b16 %v6542
    %v6619 = vunpack.c.h.b16 %v6542
    %v6620 = vunpack.c.l.b16 %v6543
    %v6621 = vunpack.c.h.b16 %v6543
    %v6622 = vunpack.c.l.b16 %v6544
    %v6623 = vunpack.c.h.b16 %v6544
    %v6624 = vunpack.c.l.b16 %v6545
    %v6625 = vunpack.c.h.b16 %v6545
    %v6626 = vunpack.c.l.b16 %v6546
    %v6627 = vunpack.c.h.b16 %v6546
    %v6628 = vunpack.c.l.b16 %v6547
    %v6629 = vunpack.c.h.b16 %v6547
    %v6630 = vunpack.c.l.b16 %v6548
    %v6631 = vunpack.c.h.b16 %v6548
    %v6632 = vunpack.c.l.b16 %v6549
    %v6633 = vunpack.c.h.b16 %v6549
    %v6634 = vunpack.c.l.b16 %v6550
    %v6635 = vunpack.c.h.b16 %v6550
    %v6636 = vunpack.c.l.b16 %v6551
    %v6637 = vunpack.c.h.b16 %v6551
    %v6638 = vunpack.c.l.b16 %v6552
    %v6639 = vunpack.c.h.b16 %v6552
    %v6640 = vunpack.c.l.b16 %v6553
    %v6641 = vunpack.c.h.b16 %v6553
    %v6642 = vunpack.c.l.b16 %v6554
    %v6643 = vunpack.c.h.b16 %v6554
    %v6644 = vunpack.c.l.b16 %v6555
    %v6645 = vunpack.c.h.b16 %v6555
    %v6646 = vunpack.c.l.b16 %v6556
    %v6647 = vunpack.c.h.b16 %v6556
    %v6648 = vunpack.c.l.b16 %v6557
    %v6649 = vunpack.c.h.b16 %v6557
    %v6650 = vunpack.c.l.b16 %v6558
    %v6651 = vunpack.c.h.b16 %v6558
    %v6652 = vunpack.c.l.b16 %v6559
    %v6653 = vunpack.c.h.b16 %v6559
    %v6654 = vunpack.c.l.b16 %v6560
    %v6655 = vunpack.c.h.b16 %v6560
    %v6656 = vunpack.c.l.b16 %v6561
    %v6657 = vunpack.c.h.b16 %v6561
    %v6658 = vunpack.c.l.b16 %v6562
    %v6659 = vunpack.c.h.b16 %v6562
    %v6660 = vunpack.c.l.b16 %v6563
    %v6661 = vunpack.c.h.b16 %v6563
    %v6662 = vunpack.c.l.b16 %v6564
    %v6663 = vunpack.c.h.b16 %v6564
    %v6664 = vunpack.c.l.b16 %v6565
    %v6665 = vunpack.c.h.b16 %v6565
    %v6666 = vunpack.c.l.b16 %v6566
    %v6667 = vunpack.c.h.b16 %v6566
    %v6668 = vunpack.c.l.b16 %v6567
    %v6669 = vunpack.c.h.b16 %v6567
    %v6670 = vunpack.c.l.b16 %v6568
    %v6671 = vunpack.c.h.b16 %v6568
    %v6672 = vunpack.c.l.b16 %v6569
    %v6673 = vunpack.c.h.b16 %v6569
    %v6674 = vunpack.c.l.b16 %v6570
    %v6675 = vunpack.c.h.b16 %v6570
    %v6676 = vunpack.c.l.b16 %v6571
    %v6677 = vunpack.c.h.b16 %v6571
    %v6678 = vunpack.c.l.b16 %v6572
    %v6679 = vunpack.c.h.b16 %v6572
    %v6680 = vunpack.c.l.b16 %v6573
    %v6681 = vunpack.c.h.b16 %v6573
    %v6682 = vpack.c.b16 %v6614, %v6610
    %v6683 = vpack.c.b16 %v6615, %v6611
    %v6684 = vpack.c.b16 %v6616, %v6612
    %v6685 = vpack.c.b16 %v6617, %v6613
    %v6686 = vpack.c.b16 %v6622, %v6618
    %v6687 = vpack.c.b16 %v6623, %v6619
    %v6688 = vpack.c.b16 %v6624, %v6620
    %v6689 = vpack.c.b16 %v6625, %v6621
    %v6690 = vpack.c.b16 %v6630, %v6626
    %v6691 = vpack.c.b16 %v6631, %v6627
    %v6692 = vpack.c.b16 %v6632, %v6628
    %v6693 = vpack.c.b16 %v6633, %v6629
    %v6694 = vpack.c.b16 %v6638, %v6634
    %v6695 = vpack.c.b16 %v6639, %v6635
    %v6696 = vpack.c.b16 %v6640, %v6636
    %v6697 = vpack.c.b16 %v6641, %v6637
    %v6698 = vpack.c.b16 %v6646, %v6642
    %v6699 = vpack.c.b16 %v6647, %v6643
    %v6700 = vpack.c.b16 %v6648, %v6644
    %v6701 = vpack.c.b16 %v6649, %v6645
    %v6702 = vpack.c.b16 %v6654, %v6650
    %v6703 = vpack.c.b16 %v6655, %v6651
    %v6704 = vpack.c.b16 %v6656, %v6652
    %v6705 = vpack.c.b16 %v6657, %v6653
    %v6706 = vpack.c.b16 %v6662, %v6658
    %v6707 = vpack.c.b16 %v6663, %v6659
    %v6708 = vpack.c.b16 %v6664, %v6660
    %v6709 = vpack.c.b16 %v6665, %v6661
    %v6710 = vpack.c.b16 %v6670, %v6666
    %v6711 = vpack.c.b16 %v6671, %v6667
    %v6712 = vpack.c.b16 %v6672, %v6668
    %v6713 = vpack.c.b16 %v6673, %v6669
    %v6714 = vpack.c.b16 %v6678, %v6674
    %v6715 = vpack.c.b16 %v6679, %v6675
    %v6716 = vpack.c.b16 %v6680, %v6676
    %v6717 = vpack.c.b16 %v6681, %v6677
    %v6755 = vsel %vm894, %v6537, 0
    %6757 = vmatpush.bf16.msra.mxu0 %v6710
    %6758 = vmatpush.bf16.msra.mxu0 %v6706
    %6759 = vmatpush.bf16.msra.mxu0 %v6702
    %6760 = vmatpush.bf16.msra.mxu0 %v6698
    %6761 = vmatpush.bf16.msra.mxu0 %v6694
    %6762 = vmatpush.bf16.msra.mxu0 %v6690
    %6763 = vmatpush.bf16.msra.mxu0 %v6686
    %6764 = vmatpush.bf16.msra.mxu0 %v6682
    %6765 = vmatmul.bf16.gmra.mxu0 %v6536
    %v6766 = vpop.f32.mrf.mxu0
    %v6767 = vadd.f32 0.0, %v6766
    %v6768 = vpop.f32.mrf.mxu0
    %6769 = vdwg.mxu0
    %6770 = vmatpush.bf16.msra.mxu0 0
    %6771 = vmatpush.bf16.msra.mxu0 0
    %6772 = vmatpush.bf16.msra.mxu0 0
    %6773 = vmatpush.bf16.msra.mxu0 0
    %6774 = vmatpush.bf16.msra.mxu0 0
    %6775 = vmatpush.bf16.msra.mxu0 0
    %6776 = vmatpush.bf16.msra.mxu0 0
    %6777 = vmatpush.bf16.msra.mxu0 %v6714
    %6778 = vmatmul.bf16.gmra.mxu0 %v6755
    %v6779 = vpop.f32.mrf.mxu0
    %v6780 = vadd.f32 %v6767, %v6779
    %v6781 = vpop.f32.mrf.mxu0
    %6782 = vdwg.mxu0
    %6783 = vmatpush.bf16.msra.mxu0 %v6711
    %6784 = vmatpush.bf16.msra.mxu0 %v6707
    %6785 = vmatpush.bf16.msra.mxu0 %v6703
    %6786 = vmatpush.bf16.msra.mxu0 %v6699
    %6787 = vmatpush.bf16.msra.mxu0 %v6695
    %6788 = vmatpush.bf16.msra.mxu0 %v6691
    %6789 = vmatpush.bf16.msra.mxu0 %v6687
    %6790 = vmatpush.bf16.msra.mxu0 %v6683
    %6791 = vmatmul.bf16.gmra.mxu0 %v6536
    %v6792 = vpop.f32.mrf.mxu0
    %v6793 = vadd.f32 0.0, %v6792
    %v6794 = vpop.f32.mrf.mxu0
    %6795 = vdwg.mxu0
    %6796 = vmatpush.bf16.msra.mxu0 0
    %6797 = vmatpush.bf16.msra.mxu0 0
    %6798 = vmatpush.bf16.msra.mxu0 0
    %6799 = vmatpush.bf16.msra.mxu0 0
    %6800 = vmatpush.bf16.msra.mxu0 0
    %6801 = vmatpush.bf16.msra.mxu0 0
    %6802 = vmatpush.bf16.msra.mxu0 0
    %6803 = vmatpush.bf16.msra.mxu0 %v6715
    %6804 = vmatmul.bf16.gmra.mxu0 %v6755
    %v6805 = vpop.f32.mrf.mxu0
    %v6806 = vadd.f32 %v6793, %v6805
    %v6807 = vpop.f32.mrf.mxu0
    %6808 = vdwg.mxu0
    %6809 = vmatpush.bf16.msra.mxu0 %v6712
    %6810 = vmatpush.bf16.msra.mxu0 %v6708
    %6811 = vmatpush.bf16.msra.mxu0 %v6704
    %6812 = vmatpush.bf16.msra.mxu0 %v6700
    %6813 = vmatpush.bf16.msra.mxu0 %v6696
    %6814 = vmatpush.bf16.msra.mxu0 %v6692
    %6815 = vmatpush.bf16.msra.mxu0 %v6688
    %6816 = vmatpush.bf16.msra.mxu0 %v6684
    %6817 = vmatmul.bf16.gmra.mxu0 %v6536
    %v6818 = vpop.f32.mrf.mxu0
    %v6819 = vadd.f32 0.0, %v6818
    %v6820 = vpop.f32.mrf.mxu0
    %6821 = vdwg.mxu0
    %6822 = vmatpush.bf16.msra.mxu0 0
    %6823 = vmatpush.bf16.msra.mxu0 0
    %6824 = vmatpush.bf16.msra.mxu0 0
    %6825 = vmatpush.bf16.msra.mxu0 0
    %6826 = vmatpush.bf16.msra.mxu0 0
    %6827 = vmatpush.bf16.msra.mxu0 0
    %6828 = vmatpush.bf16.msra.mxu0 0
    %6829 = vmatpush.bf16.msra.mxu0 %v6716
    %6830 = vmatmul.bf16.gmra.mxu0 %v6755
    %v6831 = vpop.f32.mrf.mxu0
    %v6832 = vadd.f32 %v6819, %v6831
    %v6833 = vpop.f32.mrf.mxu0
    %6834 = vdwg.mxu0
    %6835 = vmatpush.bf16.msra.mxu0 %v6713
    %6836 = vmatpush.bf16.msra.mxu0 %v6709
    %6837 = vmatpush.bf16.msra.mxu0 %v6705
    %6838 = vmatpush.bf16.msra.mxu0 %v6701
    %6839 = vmatpush.bf16.msra.mxu0 %v6697
    %6840 = vmatpush.bf16.msra.mxu0 %v6693
    %6841 = vmatpush.bf16.msra.mxu0 %v6689
    %6842 = vmatpush.bf16.msra.mxu0 %v6685
    %6843 = vmatmul.bf16.gmra.mxu0 %v6536
    %v6844 = vpop.f32.mrf.mxu0
    %v6845 = vadd.f32 0.0, %v6844
    %v6846 = vpop.f32.mrf.mxu0
    %6847 = vdwg.mxu0
    %6848 = vmatpush.bf16.msra.mxu0 0
    %6849 = vmatpush.bf16.msra.mxu0 0
    %6850 = vmatpush.bf16.msra.mxu0 0
    %6851 = vmatpush.bf16.msra.mxu0 0
    %6852 = vmatpush.bf16.msra.mxu0 0
    %6853 = vmatpush.bf16.msra.mxu0 0
    %6854 = vmatpush.bf16.msra.mxu0 0
    %6855 = vmatpush.bf16.msra.mxu0 %v6717
    %6856 = vmatmul.bf16.gmra.mxu0 %v6755
    %v6857 = vpop.f32.mrf.mxu0
    %v6858 = vadd.f32 %v6845, %v6857
    %v6859 = vpop.f32.mrf.mxu0
    %6860 = vdwg.mxu0
    %v6861 = vadd.f32 %v6522, %v6780
    %v6862 = vadd.f32 %v6523, %v6806
    %v6863 = vadd.f32 %v6524, %v6832
    %v6864 = vadd.f32 %v6525, %v6858
    %s6865 = sshll.u32 %s1452, 4
    %6866 = dma.done %s144, %s6865
    %v6869 = vrot.slane %v1388, 7
    %v6870 = vrot.slane %v1446, 7
    %v6873 = vsel %vm366, %v1272, %v6869
    %v6874 = vsel %vm366, %v1330, %v6870
    %v6875 = vpack.c.bf16 %v6873, %v6873
    %v6876 = vpack.c.bf16 %v6874, %v6874
    %v6877 = vld [vmem:[#allocation2 + $0x1200] sm:$0xff]
    %v6878 = vld [vmem:[#allocation2 + $0x1208] sm:$0xff]
    %v6879 = vld [vmem:[#allocation2 + $0x1210] sm:$0xff]
    %v6880 = vld [vmem:[#allocation2 + $0x1218] sm:$0xff]
    %v6881 = vld [vmem:[#allocation2 + $0x1220] sm:$0xff]
    %v6882 = vld [vmem:[#allocation2 + $0x1228] sm:$0xff]
    %v6883 = vld [vmem:[#allocation2 + $0x1230] sm:$0xff]
    %v6884 = vld [vmem:[#allocation2 + $0x1238] sm:$0xff]
    %v6885 = vld [vmem:[#allocation2 + $0x1240] sm:$0xff]
    %v6886 = vld [vmem:[#allocation2 + $0x1248] sm:$0xff]
    %v6887 = vld [vmem:[#allocation2 + $0x1250] sm:$0xff]
    %v6888 = vld [vmem:[#allocation2 + $0x1258] sm:$0xff]
    %v6889 = vld [vmem:[#allocation2 + $0x1260] sm:$0xff]
    %v6890 = vld [vmem:[#allocation2 + $0x1268] sm:$0xff]
    %v6891 = vld [vmem:[#allocation2 + $0x1270] sm:$0xff]
    %v6892 = vld [vmem:[#allocation2 + $0x1278] sm:$0xff]
    %v6893 = vld [vmem:[#allocation2 + $0x1280] sm:$0xff]
    %v6894 = vld [vmem:[#allocation2 + $0x1288] sm:$0xff]
    %v6895 = vld [vmem:[#allocation2 + $0x1290] sm:$0xff]
    %v6896 = vld [vmem:[#allocation2 + $0x1298] sm:$0xff]
    %v6897 = vld [vmem:[#allocation2 + $0x12a0] sm:$0xff]
    %v6898 = vld [vmem:[#allocation2 + $0x12a8] sm:$0xff]
    %v6899 = vld [vmem:[#allocation2 + $0x12b0] sm:$0xff]
    %v6900 = vld [vmem:[#allocation2 + $0x12b8] sm:$0xff]
    %v6901 = vld [vmem:[#allocation2 + $0x12c0] sm:$0xff]
    %v6902 = vld [vmem:[#allocation2 + $0x12c8] sm:$0xff]
    %v6903 = vld [vmem:[#allocation2 + $0x12d0] sm:$0xff]
    %v6904 = vld [vmem:[#allocation2 + $0x12d8] sm:$0xff]
    %v6905 = vld [vmem:[#allocation2 + $0x12e0] sm:$0xff]
    %v6906 = vld [vmem:[#allocation2 + $0x12e8] sm:$0xff]
    %v6907 = vld [vmem:[#allocation2 + $0x12f0] sm:$0xff]
    %v6908 = vld [vmem:[#allocation2 + $0x12f8] sm:$0xff]
    %v6909 = vld [vmem:[#allocation2 + $0x1300] sm:$0xff]
    %v6910 = vld [vmem:[#allocation2 + $0x1308] sm:$0xff]
    %v6911 = vld [vmem:[#allocation2 + $0x1310] sm:$0xff]
    %v6912 = vld [vmem:[#allocation2 + $0x1318] sm:$0xff]
    %v6949 = vunpack.c.l.b16 %v6877
    %v6950 = vunpack.c.h.b16 %v6877
    %v6951 = vunpack.c.l.b16 %v6878
    %v6952 = vunpack.c.h.b16 %v6878
    %v6953 = vunpack.c.l.b16 %v6879
    %v6954 = vunpack.c.h.b16 %v6879
    %v6955 = vunpack.c.l.b16 %v6880
    %v6956 = vunpack.c.h.b16 %v6880
    %v6957 = vunpack.c.l.b16 %v6881
    %v6958 = vunpack.c.h.b16 %v6881
    %v6959 = vunpack.c.l.b16 %v6882
    %v6960 = vunpack.c.h.b16 %v6882
    %v6961 = vunpack.c.l.b16 %v6883
    %v6962 = vunpack.c.h.b16 %v6883
    %v6963 = vunpack.c.l.b16 %v6884
    %v6964 = vunpack.c.h.b16 %v6884
    %v6965 = vunpack.c.l.b16 %v6885
    %v6966 = vunpack.c.h.b16 %v6885
    %v6967 = vunpack.c.l.b16 %v6886
    %v6968 = vunpack.c.h.b16 %v6886
    %v6969 = vunpack.c.l.b16 %v6887
    %v6970 = vunpack.c.h.b16 %v6887
    %v6971 = vunpack.c.l.b16 %v6888
    %v6972 = vunpack.c.h.b16 %v6888
    %v6973 = vunpack.c.l.b16 %v6889
    %v6974 = vunpack.c.h.b16 %v6889
    %v6975 = vunpack.c.l.b16 %v6890
    %v6976 = vunpack.c.h.b16 %v6890
    %v6977 = vunpack.c.l.b16 %v6891
    %v6978 = vunpack.c.h.b16 %v6891
    %v6979 = vunpack.c.l.b16 %v6892
    %v6980 = vunpack.c.h.b16 %v6892
    %v6981 = vunpack.c.l.b16 %v6893
    %v6982 = vunpack.c.h.b16 %v6893
    %v6983 = vunpack.c.l.b16 %v6894
    %v6984 = vunpack.c.h.b16 %v6894
    %v6985 = vunpack.c.l.b16 %v6895
    %v6986 = vunpack.c.h.b16 %v6895
    %v6987 = vunpack.c.l.b16 %v6896
    %v6988 = vunpack.c.h.b16 %v6896
    %v6989 = vunpack.c.l.b16 %v6897
    %v6990 = vunpack.c.h.b16 %v6897
    %v6991 = vunpack.c.l.b16 %v6898
    %v6992 = vunpack.c.h.b16 %v6898
    %v6993 = vunpack.c.l.b16 %v6899
    %v6994 = vunpack.c.h.b16 %v6899
    %v6995 = vunpack.c.l.b16 %v6900
    %v6996 = vunpack.c.h.b16 %v6900
    %v6997 = vunpack.c.l.b16 %v6901
    %v6998 = vunpack.c.h.b16 %v6901
    %v6999 = vunpack.c.l.b16 %v6902
    %v7000 = vunpack.c.h.b16 %v6902
    %v7001 = vunpack.c.l.b16 %v6903
    %v7002 = vunpack.c.h.b16 %v6903
    %v7003 = vunpack.c.l.b16 %v6904
    %v7004 = vunpack.c.h.b16 %v6904
    %v7005 = vunpack.c.l.b16 %v6905
    %v7006 = vunpack.c.h.b16 %v6905
    %v7007 = vunpack.c.l.b16 %v6906
    %v7008 = vunpack.c.h.b16 %v6906
    %v7009 = vunpack.c.l.b16 %v6907
    %v7010 = vunpack.c.h.b16 %v6907
    %v7011 = vunpack.c.l.b16 %v6908
    %v7012 = vunpack.c.h.b16 %v6908
    %v7013 = vunpack.c.l.b16 %v6909
    %v7014 = vunpack.c.h.b16 %v6909
    %v7015 = vunpack.c.l.b16 %v6910
    %v7016 = vunpack.c.h.b16 %v6910
    %v7017 = vunpack.c.l.b16 %v6911
    %v7018 = vunpack.c.h.b16 %v6911
    %v7019 = vunpack.c.l.b16 %v6912
    %v7020 = vunpack.c.h.b16 %v6912
    %v7021 = vpack.c.b16 %v6953, %v6949
    %v7022 = vpack.c.b16 %v6954, %v6950
    %v7023 = vpack.c.b16 %v6955, %v6951
    %v7024 = vpack.c.b16 %v6956, %v6952
    %v7025 = vpack.c.b16 %v6961, %v6957
    %v7026 = vpack.c.b16 %v6962, %v6958
    %v7027 = vpack.c.b16 %v6963, %v6959
    %v7028 = vpack.c.b16 %v6964, %v6960
    %v7029 = vpack.c.b16 %v6969, %v6965
    %v7030 = vpack.c.b16 %v6970, %v6966
    %v7031 = vpack.c.b16 %v6971, %v6967
    %v7032 = vpack.c.b16 %v6972, %v6968
    %v7033 = vpack.c.b16 %v6977, %v6973
    %v7034 = vpack.c.b16 %v6978, %v6974
    %v7035 = vpack.c.b16 %v6979, %v6975
    %v7036 = vpack.c.b16 %v6980, %v6976
    %v7037 = vpack.c.b16 %v6985, %v6981
    %v7038 = vpack.c.b16 %v6986, %v6982
    %v7039 = vpack.c.b16 %v6987, %v6983
    %v7040 = vpack.c.b16 %v6988, %v6984
    %v7041 = vpack.c.b16 %v6993, %v6989
    %v7042 = vpack.c.b16 %v6994, %v6990
    %v7043 = vpack.c.b16 %v6995, %v6991
    %v7044 = vpack.c.b16 %v6996, %v6992
    %v7045 = vpack.c.b16 %v7001, %v6997
    %v7046 = vpack.c.b16 %v7002, %v6998
    %v7047 = vpack.c.b16 %v7003, %v6999
    %v7048 = vpack.c.b16 %v7004, %v7000
    %v7049 = vpack.c.b16 %v7009, %v7005
    %v7050 = vpack.c.b16 %v7010, %v7006
    %v7051 = vpack.c.b16 %v7011, %v7007
    %v7052 = vpack.c.b16 %v7012, %v7008
    %v7053 = vpack.c.b16 %v7017, %v7013
    %v7054 = vpack.c.b16 %v7018, %v7014
    %v7055 = vpack.c.b16 %v7019, %v7015
    %v7056 = vpack.c.b16 %v7020, %v7016
    %v7094 = vsel %vm894, %v6876, 0
    %7096 = vmatpush.bf16.msra.mxu0 %v7049
    %7097 = vmatpush.bf16.msra.mxu0 %v7045
    %7098 = vmatpush.bf16.msra.mxu0 %v7041
    %7099 = vmatpush.bf16.msra.mxu0 %v7037
    %7100 = vmatpush.bf16.msra.mxu0 %v7033
    %7101 = vmatpush.bf16.msra.mxu0 %v7029
    %7102 = vmatpush.bf16.msra.mxu0 %v7025
    %7103 = vmatpush.bf16.msra.mxu0 %v7021
    %7104 = vmatmul.bf16.gmra.mxu0 %v6875
    %v7105 = vpop.f32.mrf.mxu0
    %v7106 = vadd.f32 0.0, %v7105
    %v7107 = vpop.f32.mrf.mxu0
    %7108 = vdwg.mxu0
    %7109 = vmatpush.bf16.msra.mxu0 0
    %7110 = vmatpush.bf16.msra.mxu0 0
    %7111 = vmatpush.bf16.msra.mxu0 0
    %7112 = vmatpush.bf16.msra.mxu0 0
    %7113 = vmatpush.bf16.msra.mxu0 0
    %7114 = vmatpush.bf16.msra.mxu0 0
    %7115 = vmatpush.bf16.msra.mxu0 0
    %7116 = vmatpush.bf16.msra.mxu0 %v7053
    %7117 = vmatmul.bf16.gmra.mxu0 %v7094
    %v7118 = vpop.f32.mrf.mxu0
    %v7119 = vadd.f32 %v7106, %v7118
    %v7120 = vpop.f32.mrf.mxu0
    %7121 = vdwg.mxu0
    %7122 = vmatpush.bf16.msra.mxu0 %v7050
    %7123 = vmatpush.bf16.msra.mxu0 %v7046
    %7124 = vmatpush.bf16.msra.mxu0 %v7042
    %7125 = vmatpush.bf16.msra.mxu0 %v7038
    %7126 = vmatpush.bf16.msra.mxu0 %v7034
    %7127 = vmatpush.bf16.msra.mxu0 %v7030
    %7128 = vmatpush.bf16.msra.mxu0 %v7026
    %7129 = vmatpush.bf16.msra.mxu0 %v7022
    %7130 = vmatmul.bf16.gmra.mxu0 %v6875
    %v7131 = vpop.f32.mrf.mxu0
    %v7132 = vadd.f32 0.0, %v7131
    %v7133 = vpop.f32.mrf.mxu0
    %7134 = vdwg.mxu0
    %7135 = vmatpush.bf16.msra.mxu0 0
    %7136 = vmatpush.bf16.msra.mxu0 0
    %7137 = vmatpush.bf16.msra.mxu0 0
    %7138 = vmatpush.bf16.msra.mxu0 0
    %7139 = vmatpush.bf16.msra.mxu0 0
    %7140 = vmatpush.bf16.msra.mxu0 0
    %7141 = vmatpush.bf16.msra.mxu0 0
    %7142 = vmatpush.bf16.msra.mxu0 %v7054
    %7143 = vmatmul.bf16.gmra.mxu0 %v7094
    %v7144 = vpop.f32.mrf.mxu0
    %v7145 = vadd.f32 %v7132, %v7144
    %v7146 = vpop.f32.mrf.mxu0
    %7147 = vdwg.mxu0
    %7148 = vmatpush.bf16.msra.mxu0 %v7051
    %7149 = vmatpush.bf16.msra.mxu0 %v7047
    %7150 = vmatpush.bf16.msra.mxu0 %v7043
    %7151 = vmatpush.bf16.msra.mxu0 %v7039
    %7152 = vmatpush.bf16.msra.mxu0 %v7035
    %7153 = vmatpush.bf16.msra.mxu0 %v7031
    %7154 = vmatpush.bf16.msra.mxu0 %v7027
    %7155 = vmatpush.bf16.msra.mxu0 %v7023
    %7156 = vmatmul.bf16.gmra.mxu0 %v6875
    %v7157 = vpop.f32.mrf.mxu0
    %v7158 = vadd.f32 0.0, %v7157
    %v7159 = vpop.f32.mrf.mxu0
    %7160 = vdwg.mxu0
    %7161 = vmatpush.bf16.msra.mxu0 0
    %7162 = vmatpush.bf16.msra.mxu0 0
    %7163 = vmatpush.bf16.msra.mxu0 0
    %7164 = vmatpush.bf16.msra.mxu0 0
    %7165 = vmatpush.bf16.msra.mxu0 0
    %7166 = vmatpush.bf16.msra.mxu0 0
    %7167 = vmatpush.bf16.msra.mxu0 0
    %7168 = vmatpush.bf16.msra.mxu0 %v7055
    %7169 = vmatmul.bf16.gmra.mxu0 %v7094
    %v7170 = vpop.f32.mrf.mxu0
    %v7171 = vadd.f32 %v7158, %v7170
    %v7172 = vpop.f32.mrf.mxu0
    %7173 = vdwg.mxu0
    %7174 = vmatpush.bf16.msra.mxu0 %v7052
    %7175 = vmatpush.bf16.msra.mxu0 %v7048
    %7176 = vmatpush.bf16.msra.mxu0 %v7044
    %7177 = vmatpush.bf16.msra.mxu0 %v7040
    %7178 = vmatpush.bf16.msra.mxu0 %v7036
    %7179 = vmatpush.bf16.msra.mxu0 %v7032
    %7180 = vmatpush.bf16.msra.mxu0 %v7028
    %7181 = vmatpush.bf16.msra.mxu0 %v7024
    %7182 = vmatmul.bf16.gmra.mxu0 %v6875
    %v7183 = vpop.f32.mrf.mxu0
    %v7184 = vadd.f32 0.0, %v7183
    %v7185 = vpop.f32.mrf.mxu0
    %7186 = vdwg.mxu0
    %7187 = vmatpush.bf16.msra.mxu0 0
    %7188 = vmatpush.bf16.msra.mxu0 0
    %7189 = vmatpush.bf16.msra.mxu0 0
    %7190 = vmatpush.bf16.msra.mxu0 0
    %7191 = vmatpush.bf16.msra.mxu0 0
    %7192 = vmatpush.bf16.msra.mxu0 0
    %7193 = vmatpush.bf16.msra.mxu0 0
    %7194 = vmatpush.bf16.msra.mxu0 %v7056
    %7195 = vmatmul.bf16.gmra.mxu0 %v7094
    %v7196 = vpop.f32.mrf.mxu0
    %v7197 = vadd.f32 %v7184, %v7196
    %v7198 = vpop.f32.mrf.mxu0
    %7199 = vdwg.mxu0
    %v7200 = vadd.f32 %v6861, %v7119
    %v7201 = vadd.f32 %v6862, %v7145
    %v7202 = vadd.f32 %v6863, %v7171
    %v7203 = vadd.f32 %v6864, %v7197
    %v7206 = vrot.slane %v1272, 1
    %v7207 = vrot.slane %v1330, 1
    %v7210 = vsel %vm366, %v7206, %v1388
    %v7211 = vsel %vm366, %v7207, %v1446
    %v7212 = vpack.c.bf16 %v7210, %v7210
    %v7213 = vpack.c.bf16 %v7211, %v7211
    %v7214 = vld [vmem:[#allocation2 + $0x1320] sm:$0xff]
    %v7215 = vld [vmem:[#allocation2 + $0x1328] sm:$0xff]
    %v7216 = vld [vmem:[#allocation2 + $0x1330] sm:$0xff]
    %v7217 = vld [vmem:[#allocation2 + $0x1338] sm:$0xff]
    %v7218 = vld [vmem:[#allocation2 + $0x1340] sm:$0xff]
    %v7219 = vld [vmem:[#allocation2 + $0x1348] sm:$0xff]
    %v7220 = vld [vmem:[#allocation2 + $0x1350] sm:$0xff]
    %v7221 = vld [vmem:[#allocation2 + $0x1358] sm:$0xff]
    %v7222 = vld [vmem:[#allocation2 + $0x1360] sm:$0xff]
    %v7223 = vld [vmem:[#allocation2 + $0x1368] sm:$0xff]
    %v7224 = vld [vmem:[#allocation2 + $0x1370] sm:$0xff]
    %v7225 = vld [vmem:[#allocation2 + $0x1378] sm:$0xff]
    %v7226 = vld [vmem:[#allocation2 + $0x1380] sm:$0xff]
    %v7227 = vld [vmem:[#allocation2 + $0x1388] sm:$0xff]
    %v7228 = vld [vmem:[#allocation2 + $0x1390] sm:$0xff]
    %v7229 = vld [vmem:[#allocation2 + $0x1398] sm:$0xff]
    %v7230 = vld [vmem:[#allocation2 + $0x13a0] sm:$0xff]
    %v7231 = vld [vmem:[#allocation2 + $0x13a8] sm:$0xff]
    %v7232 = vld [vmem:[#allocation2 + $0x13b0] sm:$0xff]
    %v7233 = vld [vmem:[#allocation2 + $0x13b8] sm:$0xff]
    %v7234 = vld [vmem:[#allocation2 + $0x13c0] sm:$0xff]
    %v7235 = vld [vmem:[#allocation2 + $0x13c8] sm:$0xff]
    %v7236 = vld [vmem:[#allocation2 + $0x13d0] sm:$0xff]
    %v7237 = vld [vmem:[#allocation2 + $0x13d8] sm:$0xff]
    %v7238 = vld [vmem:[#allocation2 + $0x13e0] sm:$0xff]
    %v7239 = vld [vmem:[#allocation2 + $0x13e8] sm:$0xff]
    %v7240 = vld [vmem:[#allocation2 + $0x13f0] sm:$0xff]
    %v7241 = vld [vmem:[#allocation2 + $0x13f8] sm:$0xff]
    %v7242 = vld [vmem:[#allocation2 + $0x1400] sm:$0xff]
    %v7243 = vld [vmem:[#allocation2 + $0x1408] sm:$0xff]
    %v7244 = vld [vmem:[#allocation2 + $0x1410] sm:$0xff]
    %v7245 = vld [vmem:[#allocation2 + $0x1418] sm:$0xff]
    %v7246 = vld [vmem:[#allocation2 + $0x1420] sm:$0xff]
    %v7247 = vld [vmem:[#allocation2 + $0x1428] sm:$0xff]
    %v7248 = vld [vmem:[#allocation2 + $0x1430] sm:$0xff]
    %v7249 = vld [vmem:[#allocation2 + $0x1438] sm:$0xff]
    %v7286 = vunpack.c.l.b16 %v7214
    %v7287 = vunpack.c.h.b16 %v7214
    %v7288 = vunpack.c.l.b16 %v7215
    %v7289 = vunpack.c.h.b16 %v7215
    %v7290 = vunpack.c.l.b16 %v7216
    %v7291 = vunpack.c.h.b16 %v7216
    %v7292 = vunpack.c.l.b16 %v7217
    %v7293 = vunpack.c.h.b16 %v7217
    %v7294 = vunpack.c.l.b16 %v7218
    %v7295 = vunpack.c.h.b16 %v7218
    %v7296 = vunpack.c.l.b16 %v7219
    %v7297 = vunpack.c.h.b16 %v7219
    %v7298 = vunpack.c.l.b16 %v7220
    %v7299 = vunpack.c.h.b16 %v7220
    %v7300 = vunpack.c.l.b16 %v7221
    %v7301 = vunpack.c.h.b16 %v7221
    %v7302 = vunpack.c.l.b16 %v7222
    %v7303 = vunpack.c.h.b16 %v7222
    %v7304 = vunpack.c.l.b16 %v7223
    %v7305 = vunpack.c.h.b16 %v7223
    %v7306 = vunpack.c.l.b16 %v7224
    %v7307 = vunpack.c.h.b16 %v7224
    %v7308 = vunpack.c.l.b16 %v7225
    %v7309 = vunpack.c.h.b16 %v7225
    %v7310 = vunpack.c.l.b16 %v7226
    %v7311 = vunpack.c.h.b16 %v7226
    %v7312 = vunpack.c.l.b16 %v7227
    %v7313 = vunpack.c.h.b16 %v7227
    %v7314 = vunpack.c.l.b16 %v7228
    %v7315 = vunpack.c.h.b16 %v7228
    %v7316 = vunpack.c.l.b16 %v7229
    %v7317 = vunpack.c.h.b16 %v7229
    %v7318 = vunpack.c.l.b16 %v7230
    %v7319 = vunpack.c.h.b16 %v7230
    %v7320 = vunpack.c.l.b16 %v7231
    %v7321 = vunpack.c.h.b16 %v7231
    %v7322 = vunpack.c.l.b16 %v7232
    %v7323 = vunpack.c.h.b16 %v7232
    %v7324 = vunpack.c.l.b16 %v7233
    %v7325 = vunpack.c.h.b16 %v7233
    %v7326 = vunpack.c.l.b16 %v7234
    %v7327 = vunpack.c.h.b16 %v7234
    %v7328 = vunpack.c.l.b16 %v7235
    %v7329 = vunpack.c.h.b16 %v7235
    %v7330 = vunpack.c.l.b16 %v7236
    %v7331 = vunpack.c.h.b16 %v7236
    %v7332 = vunpack.c.l.b16 %v7237
    %v7333 = vunpack.c.h.b16 %v7237
    %v7334 = vunpack.c.l.b16 %v7238
    %v7335 = vunpack.c.h.b16 %v7238
    %v7336 = vunpack.c.l.b16 %v7239
    %v7337 = vunpack.c.h.b16 %v7239
    %v7338 = vunpack.c.l.b16 %v7240
    %v7339 = vunpack.c.h.b16 %v7240
    %v7340 = vunpack.c.l.b16 %v7241
    %v7341 = vunpack.c.h.b16 %v7241
    %v7342 = vunpack.c.l.b16 %v7242
    %v7343 = vunpack.c.h.b16 %v7242
    %v7344 = vunpack.c.l.b16 %v7243
    %v7345 = vunpack.c.h.b16 %v7243
    %v7346 = vunpack.c.l.b16 %v7244
    %v7347 = vunpack.c.h.b16 %v7244
    %v7348 = vunpack.c.l.b16 %v7245
    %v7349 = vunpack.c.h.b16 %v7245
    %v7350 = vunpack.c.l.b16 %v7246
    %v7351 = vunpack.c.h.b16 %v7246
    %v7352 = vunpack.c.l.b16 %v7247
    %v7353 = vunpack.c.h.b16 %v7247
    %v7354 = vunpack.c.l.b16 %v7248
    %v7355 = vunpack.c.h.b16 %v7248
    %v7356 = vunpack.c.l.b16 %v7249
    %v7357 = vunpack.c.h.b16 %v7249
    %v7358 = vpack.c.b16 %v7290, %v7286
    %v7359 = vpack.c.b16 %v7291, %v7287
    %v7360 = vpack.c.b16 %v7292, %v7288
    %v7361 = vpack.c.b16 %v7293, %v7289
    %v7362 = vpack.c.b16 %v7298, %v7294
    %v7363 = vpack.c.b16 %v7299, %v7295
    %v7364 = vpack.c.b16 %v7300, %v7296
    %v7365 = vpack.c.b16 %v7301, %v7297
    %v7366 = vpack.c.b16 %v7306, %v7302
    %v7367 = vpack.c.b16 %v7307, %v7303
    %v7368 = vpack.c.b16 %v7308, %v7304
    %v7369 = vpack.c.b16 %v7309, %v7305
    %v7370 = vpack.c.b16 %v7314, %v7310
    %v7371 = vpack.c.b16 %v7315, %v7311
    %v7372 = vpack.c.b16 %v7316, %v7312
    %v7373 = vpack.c.b16 %v7317, %v7313
    %v7374 = vpack.c.b16 %v7322, %v7318
    %v7375 = vpack.c.b16 %v7323, %v7319
    %v7376 = vpack.c.b16 %v7324, %v7320
    %v7377 = vpack.c.b16 %v7325, %v7321
    %v7378 = vpack.c.b16 %v7330, %v7326
    %v7379 = vpack.c.b16 %v7331, %v7327
    %v7380 = vpack.c.b16 %v7332, %v7328
    %v7381 = vpack.c.b16 %v7333, %v7329
    %v7382 = vpack.c.b16 %v7338, %v7334
    %v7383 = vpack.c.b16 %v7339, %v7335
    %v7384 = vpack.c.b16 %v7340, %v7336
    %v7385 = vpack.c.b16 %v7341, %v7337
    %v7386 = vpack.c.b16 %v7346, %v7342
    %v7387 = vpack.c.b16 %v7347, %v7343
    %v7388 = vpack.c.b16 %v7348, %v7344
    %v7389 = vpack.c.b16 %v7349, %v7345
    %v7390 = vpack.c.b16 %v7354, %v7350
    %v7391 = vpack.c.b16 %v7355, %v7351
    %v7392 = vpack.c.b16 %v7356, %v7352
    %v7393 = vpack.c.b16 %v7357, %v7353
    %v7431 = vsel %vm894, %v7213, 0
    %7433 = vmatpush.bf16.msra.mxu0 %v7386
    %7434 = vmatpush.bf16.msra.mxu0 %v7382
    %7435 = vmatpush.bf16.msra.mxu0 %v7378
    %7436 = vmatpush.bf16.msra.mxu0 %v7374
    %7437 = vmatpush.bf16.msra.mxu0 %v7370
    %7438 = vmatpush.bf16.msra.mxu0 %v7366
    %7439 = vmatpush.bf16.msra.mxu0 %v7362
    %7440 = vmatpush.bf16.msra.mxu0 %v7358
    %7441 = vmatmul.bf16.gmra.mxu0 %v7212
    %v7442 = vpop.f32.mrf.mxu0
    %v7443 = vadd.f32 0.0, %v7442
    %v7444 = vpop.f32.mrf.mxu0
    %7445 = vdwg.mxu0
    %7446 = vmatpush.bf16.msra.mxu0 0
    %7447 = vmatpush.bf16.msra.mxu0 0
    %7448 = vmatpush.bf16.msra.mxu0 0
    %7449 = vmatpush.bf16.msra.mxu0 0
    %7450 = vmatpush.bf16.msra.mxu0 0
    %7451 = vmatpush.bf16.msra.mxu0 0
    %7452 = vmatpush.bf16.msra.mxu0 0
    %7453 = vmatpush.bf16.msra.mxu0 %v7390
    %7454 = vmatmul.bf16.gmra.mxu0 %v7431
    %v7455 = vpop.f32.mrf.mxu0
    %v7456 = vadd.f32 %v7443, %v7455
    %v7457 = vpop.f32.mrf.mxu0
    %7458 = vdwg.mxu0
    %7459 = vmatpush.bf16.msra.mxu0 %v7387
    %7460 = vmatpush.bf16.msra.mxu0 %v7383
    %7461 = vmatpush.bf16.msra.mxu0 %v7379
    %7462 = vmatpush.bf16.msra.mxu0 %v7375
    %7463 = vmatpush.bf16.msra.mxu0 %v7371
    %7464 = vmatpush.bf16.msra.mxu0 %v7367
    %7465 = vmatpush.bf16.msra.mxu0 %v7363
    %7466 = vmatpush.bf16.msra.mxu0 %v7359
    %7467 = vmatmul.bf16.gmra.mxu0 %v7212
    %v7468 = vpop.f32.mrf.mxu0
    %v7469 = vadd.f32 0.0, %v7468
    %v7470 = vpop.f32.mrf.mxu0
    %7471 = vdwg.mxu0
    %7472 = vmatpush.bf16.msra.mxu0 0
    %7473 = vmatpush.bf16.msra.mxu0 0
    %7474 = vmatpush.bf16.msra.mxu0 0
    %7475 = vmatpush.bf16.msra.mxu0 0
    %7476 = vmatpush.bf16.msra.mxu0 0
    %7477 = vmatpush.bf16.msra.mxu0 0
    %7478 = vmatpush.bf16.msra.mxu0 0
    %7479 = vmatpush.bf16.msra.mxu0 %v7391
    %7480 = vmatmul.bf16.gmra.mxu0 %v7431
    %v7481 = vpop.f32.mrf.mxu0
    %v7482 = vadd.f32 %v7469, %v7481
    %v7483 = vpop.f32.mrf.mxu0
    %7484 = vdwg.mxu0
    %7485 = vmatpush.bf16.msra.mxu0 %v7388
    %7486 = vmatpush.bf16.msra.mxu0 %v7384
    %7487 = vmatpush.bf16.msra.mxu0 %v7380
    %7488 = vmatpush.bf16.msra.mxu0 %v7376
    %7489 = vmatpush.bf16.msra.mxu0 %v7372
    %7490 = vmatpush.bf16.msra.mxu0 %v7368
    %7491 = vmatpush.bf16.msra.mxu0 %v7364
    %7492 = vmatpush.bf16.msra.mxu0 %v7360
    %7493 = vmatmul.bf16.gmra.mxu0 %v7212
    %v7494 = vpop.f32.mrf.mxu0
    %v7495 = vadd.f32 0.0, %v7494
    %v7496 = vpop.f32.mrf.mxu0
    %7497 = vdwg.mxu0
    %7498 = vmatpush.bf16.msra.mxu0 0
    %7499 = vmatpush.bf16.msra.mxu0 0
    %7500 = vmatpush.bf16.msra.mxu0 0
    %7501 = vmatpush.bf16.msra.mxu0 0
    %7502 = vmatpush.bf16.msra.mxu0 0
    %7503 = vmatpush.bf16.msra.mxu0 0
    %7504 = vmatpush.bf16.msra.mxu0 0
    %7505 = vmatpush.bf16.msra.mxu0 %v7392
    %7506 = vmatmul.bf16.gmra.mxu0 %v7431
    %v7507 = vpop.f32.mrf.mxu0
    %v7508 = vadd.f32 %v7495, %v7507
    %v7509 = vpop.f32.mrf.mxu0
    %7510 = vdwg.mxu0
    %7511 = vmatpush.bf16.msra.mxu0 %v7389
    %7512 = vmatpush.bf16.msra.mxu0 %v7385
    %7513 = vmatpush.bf16.msra.mxu0 %v7381
    %7514 = vmatpush.bf16.msra.mxu0 %v7377
    %7515 = vmatpush.bf16.msra.mxu0 %v7373
    %7516 = vmatpush.bf16.msra.mxu0 %v7369
    %7517 = vmatpush.bf16.msra.mxu0 %v7365
    %7518 = vmatpush.bf16.msra.mxu0 %v7361
    %7519 = vmatmul.bf16.gmra.mxu0 %v7212
    %v7520 = vpop.f32.mrf.mxu0
    %v7521 = vadd.f32 0.0, %v7520
    %v7522 = vpop.f32.mrf.mxu0
    %7523 = vdwg.mxu0
    %7524 = vmatpush.bf16.msra.mxu0 0
    %7525 = vmatpush.bf16.msra.mxu0 0
    %7526 = vmatpush.bf16.msra.mxu0 0
    %7527 = vmatpush.bf16.msra.mxu0 0
    %7528 = vmatpush.bf16.msra.mxu0 0
    %7529 = vmatpush.bf16.msra.mxu0 0
    %7530 = vmatpush.bf16.msra.mxu0 0
    %7531 = vmatpush.bf16.msra.mxu0 %v7393
    %7532 = vmatmul.bf16.gmra.mxu0 %v7431
    %v7533 = vpop.f32.mrf.mxu0
    %v7534 = vadd.f32 %v7521, %v7533
    %v7535 = vpop.f32.mrf.mxu0
    %7536 = vdwg.mxu0
    %v7537 = vadd.f32 %v7200, %v7456
    %v7538 = vadd.f32 %v7201, %v7482
    %v7539 = vadd.f32 %v7202, %v7508
    %v7540 = vadd.f32 %v7203, %v7534
    %v7541 = vrot.slane %v1272, 2
    %v7542 = vrot.slane %v1330, 2
    %v7545 = vrot.slane %v1388, 1
    %v7546 = vrot.slane %v1446, 1
    %v7549 = vsel %vm366, %v7541, %v7545
    %v7550 = vsel %vm366, %v7542, %v7546
    %v7551 = vpack.c.bf16 %v7549, %v7549
    %v7552 = vpack.c.bf16 %v7550, %v7550
    %v7553 = vld [vmem:[#allocation2 + $0x1440] sm:$0xff]
    %v7554 = vld [vmem:[#allocation2 + $0x1448] sm:$0xff]
    %v7555 = vld [vmem:[#allocation2 + $0x1450] sm:$0xff]
    %v7556 = vld [vmem:[#allocation2 + $0x1458] sm:$0xff]
    %v7557 = vld [vmem:[#allocation2 + $0x1460] sm:$0xff]
    %v7558 = vld [vmem:[#allocation2 + $0x1468] sm:$0xff]
    %v7559 = vld [vmem:[#allocation2 + $0x1470] sm:$0xff]
    %v7560 = vld [vmem:[#allocation2 + $0x1478] sm:$0xff]
    %v7561 = vld [vmem:[#allocation2 + $0x1480] sm:$0xff]
    %v7562 = vld [vmem:[#allocation2 + $0x1488] sm:$0xff]
    %v7563 = vld [vmem:[#allocation2 + $0x1490] sm:$0xff]
    %v7564 = vld [vmem:[#allocation2 + $0x1498] sm:$0xff]
    %v7565 = vld [vmem:[#allocation2 + $0x14a0] sm:$0xff]
    %v7566 = vld [vmem:[#allocation2 + $0x14a8] sm:$0xff]
    %v7567 = vld [vmem:[#allocation2 + $0x14b0] sm:$0xff]
    %v7568 = vld [vmem:[#allocation2 + $0x14b8] sm:$0xff]
    %v7569 = vld [vmem:[#allocation2 + $0x14c0] sm:$0xff]
    %v7570 = vld [vmem:[#allocation2 + $0x14c8] sm:$0xff]
    %v7571 = vld [vmem:[#allocation2 + $0x14d0] sm:$0xff]
    %v7572 = vld [vmem:[#allocation2 + $0x14d8] sm:$0xff]
    %v7573 = vld [vmem:[#allocation2 + $0x14e0] sm:$0xff]
    %v7574 = vld [vmem:[#allocation2 + $0x14e8] sm:$0xff]
    %v7575 = vld [vmem:[#allocation2 + $0x14f0] sm:$0xff]
    %v7576 = vld [vmem:[#allocation2 + $0x14f8] sm:$0xff]
    %v7577 = vld [vmem:[#allocation2 + $0x1500] sm:$0xff]
    %v7578 = vld [vmem:[#allocation2 + $0x1508] sm:$0xff]
    %v7579 = vld [vmem:[#allocation2 + $0x1510] sm:$0xff]
    %v7580 = vld [vmem:[#allocation2 + $0x1518] sm:$0xff]
    %v7581 = vld [vmem:[#allocation2 + $0x1520] sm:$0xff]
    %v7582 = vld [vmem:[#allocation2 + $0x1528] sm:$0xff]
    %v7583 = vld [vmem:[#allocation2 + $0x1530] sm:$0xff]
    %v7584 = vld [vmem:[#allocation2 + $0x1538] sm:$0xff]
    %v7585 = vld [vmem:[#allocation2 + $0x1540] sm:$0xff]
    %v7586 = vld [vmem:[#allocation2 + $0x1548] sm:$0xff]
    %v7587 = vld [vmem:[#allocation2 + $0x1550] sm:$0xff]
    %v7588 = vld [vmem:[#allocation2 + $0x1558] sm:$0xff]
    %v7625 = vunpack.c.l.b16 %v7553
    %v7626 = vunpack.c.h.b16 %v7553
    %v7627 = vunpack.c.l.b16 %v7554
    %v7628 = vunpack.c.h.b16 %v7554
    %v7629 = vunpack.c.l.b16 %v7555
    %v7630 = vunpack.c.h.b16 %v7555
    %v7631 = vunpack.c.l.b16 %v7556
    %v7632 = vunpack.c.h.b16 %v7556
    %v7633 = vunpack.c.l.b16 %v7557
    %v7634 = vunpack.c.h.b16 %v7557
    %v7635 = vunpack.c.l.b16 %v7558
    %v7636 = vunpack.c.h.b16 %v7558
    %v7637 = vunpack.c.l.b16 %v7559
    %v7638 = vunpack.c.h.b16 %v7559
    %v7639 = vunpack.c.l.b16 %v7560
    %v7640 = vunpack.c.h.b16 %v7560
    %v7641 = vunpack.c.l.b16 %v7561
    %v7642 = vunpack.c.h.b16 %v7561
    %v7643 = vunpack.c.l.b16 %v7562
    %v7644 = vunpack.c.h.b16 %v7562
    %v7645 = vunpack.c.l.b16 %v7563
    %v7646 = vunpack.c.h.b16 %v7563
    %v7647 = vunpack.c.l.b16 %v7564
    %v7648 = vunpack.c.h.b16 %v7564
    %v7649 = vunpack.c.l.b16 %v7565
    %v7650 = vunpack.c.h.b16 %v7565
    %v7651 = vunpack.c.l.b16 %v7566
    %v7652 = vunpack.c.h.b16 %v7566
    %v7653 = vunpack.c.l.b16 %v7567
    %v7654 = vunpack.c.h.b16 %v7567
    %v7655 = vunpack.c.l.b16 %v7568
    %v7656 = vunpack.c.h.b16 %v7568
    %v7657 = vunpack.c.l.b16 %v7569
    %v7658 = vunpack.c.h.b16 %v7569
    %v7659 = vunpack.c.l.b16 %v7570
    %v7660 = vunpack.c.h.b16 %v7570
    %v7661 = vunpack.c.l.b16 %v7571
    %v7662 = vunpack.c.h.b16 %v7571
    %v7663 = vunpack.c.l.b16 %v7572
    %v7664 = vunpack.c.h.b16 %v7572
    %v7665 = vunpack.c.l.b16 %v7573
    %v7666 = vunpack.c.h.b16 %v7573
    %v7667 = vunpack.c.l.b16 %v7574
    %v7668 = vunpack.c.h.b16 %v7574
    %v7669 = vunpack.c.l.b16 %v7575
    %v7670 = vunpack.c.h.b16 %v7575
    %v7671 = vunpack.c.l.b16 %v7576
    %v7672 = vunpack.c.h.b16 %v7576
    %v7673 = vunpack.c.l.b16 %v7577
    %v7674 = vunpack.c.h.b16 %v7577
    %v7675 = vunpack.c.l.b16 %v7578
    %v7676 = vunpack.c.h.b16 %v7578
    %v7677 = vunpack.c.l.b16 %v7579
    %v7678 = vunpack.c.h.b16 %v7579
    %v7679 = vunpack.c.l.b16 %v7580
    %v7680 = vunpack.c.h.b16 %v7580
    %v7681 = vunpack.c.l.b16 %v7581
    %v7682 = vunpack.c.h.b16 %v7581
    %v7683 = vunpack.c.l.b16 %v7582
    %v7684 = vunpack.c.h.b16 %v7582
    %v7685 = vunpack.c.l.b16 %v7583
    %v7686 = vunpack.c.h.b16 %v7583
    %v7687 = vunpack.c.l.b16 %v7584
    %v7688 = vunpack.c.h.b16 %v7584
    %v7689 = vunpack.c.l.b16 %v7585
    %v7690 = vunpack.c.h.b16 %v7585
    %v7691 = vunpack.c.l.b16 %v7586
    %v7692 = vunpack.c.h.b16 %v7586
    %v7693 = vunpack.c.l.b16 %v7587
    %v7694 = vunpack.c.h.b16 %v7587
    %v7695 = vunpack.c.l.b16 %v7588
    %v7696 = vunpack.c.h.b16 %v7588
    %v7697 = vpack.c.b16 %v7629, %v7625
    %v7698 = vpack.c.b16 %v7630, %v7626
    %v7699 = vpack.c.b16 %v7631, %v7627
    %v7700 = vpack.c.b16 %v7632, %v7628
    %v7701 = vpack.c.b16 %v7637, %v7633
    %v7702 = vpack.c.b16 %v7638, %v7634
    %v7703 = vpack.c.b16 %v7639, %v7635
    %v7704 = vpack.c.b16 %v7640, %v7636
    %v7705 = vpack.c.b16 %v7645, %v7641
    %v7706 = vpack.c.b16 %v7646, %v7642
    %v7707 = vpack.c.b16 %v7647, %v7643
    %v7708 = vpack.c.b16 %v7648, %v7644
    %v7709 = vpack.c.b16 %v7653, %v7649
    %v7710 = vpack.c.b16 %v7654, %v7650
    %v7711 = vpack.c.b16 %v7655, %v7651
    %v7712 = vpack.c.b16 %v7656, %v7652
    %v7713 = vpack.c.b16 %v7661, %v7657
    %v7714 = vpack.c.b16 %v7662, %v7658
    %v7715 = vpack.c.b16 %v7663, %v7659
    %v7716 = vpack.c.b16 %v7664, %v7660
    %v7717 = vpack.c.b16 %v7669, %v7665
    %v7718 = vpack.c.b16 %v7670, %v7666
    %v7719 = vpack.c.b16 %v7671, %v7667
    %v7720 = vpack.c.b16 %v7672, %v7668
    %v7721 = vpack.c.b16 %v7677, %v7673
    %v7722 = vpack.c.b16 %v7678, %v7674
    %v7723 = vpack.c.b16 %v7679, %v7675
    %v7724 = vpack.c.b16 %v7680, %v7676
    %v7725 = vpack.c.b16 %v7685, %v7681
    %v7726 = vpack.c.b16 %v7686, %v7682
    %v7727 = vpack.c.b16 %v7687, %v7683
    %v7728 = vpack.c.b16 %v7688, %v7684
    %v7729 = vpack.c.b16 %v7693, %v7689
    %v7730 = vpack.c.b16 %v7694, %v7690
    %v7731 = vpack.c.b16 %v7695, %v7691
    %v7732 = vpack.c.b16 %v7696, %v7692
    %v7770 = vsel %vm894, %v7552, 0
    %7772 = vmatpush.bf16.msra.mxu0 %v7725
    %7773 = vmatpush.bf16.msra.mxu0 %v7721
    %7774 = vmatpush.bf16.msra.mxu0 %v7717
    %7775 = vmatpush.bf16.msra.mxu0 %v7713
    %7776 = vmatpush.bf16.msra.mxu0 %v7709
    %7777 = vmatpush.bf16.msra.mxu0 %v7705
    %7778 = vmatpush.bf16.msra.mxu0 %v7701
    %7779 = vmatpush.bf16.msra.mxu0 %v7697
    %7780 = vmatmul.bf16.gmra.mxu0 %v7551
    %v7781 = vpop.f32.mrf.mxu0
    %v7782 = vadd.f32 0.0, %v7781
    %v7783 = vpop.f32.mrf.mxu0
    %7784 = vdwg.mxu0
    %7785 = vmatpush.bf16.msra.mxu0 0
    %7786 = vmatpush.bf16.msra.mxu0 0
    %7787 = vmatpush.bf16.msra.mxu0 0
    %7788 = vmatpush.bf16.msra.mxu0 0
    %7789 = vmatpush.bf16.msra.mxu0 0
    %7790 = vmatpush.bf16.msra.mxu0 0
    %7791 = vmatpush.bf16.msra.mxu0 0
    %7792 = vmatpush.bf16.msra.mxu0 %v7729
    %7793 = vmatmul.bf16.gmra.mxu0 %v7770
    %v7794 = vpop.f32.mrf.mxu0
    %v7795 = vadd.f32 %v7782, %v7794
    %v7796 = vpop.f32.mrf.mxu0
    %7797 = vdwg.mxu0
    %7798 = vmatpush.bf16.msra.mxu0 %v7726
    %7799 = vmatpush.bf16.msra.mxu0 %v7722
    %7800 = vmatpush.bf16.msra.mxu0 %v7718
    %7801 = vmatpush.bf16.msra.mxu0 %v7714
    %7802 = vmatpush.bf16.msra.mxu0 %v7710
    %7803 = vmatpush.bf16.msra.mxu0 %v7706
    %7804 = vmatpush.bf16.msra.mxu0 %v7702
    %7805 = vmatpush.bf16.msra.mxu0 %v7698
    %7806 = vmatmul.bf16.gmra.mxu0 %v7551
    %v7807 = vpop.f32.mrf.mxu0
    %v7808 = vadd.f32 0.0, %v7807
    %v7809 = vpop.f32.mrf.mxu0
    %7810 = vdwg.mxu0
    %7811 = vmatpush.bf16.msra.mxu0 0
    %7812 = vmatpush.bf16.msra.mxu0 0
    %7813 = vmatpush.bf16.msra.mxu0 0
    %7814 = vmatpush.bf16.msra.mxu0 0
    %7815 = vmatpush.bf16.msra.mxu0 0
    %7816 = vmatpush.bf16.msra.mxu0 0
    %7817 = vmatpush.bf16.msra.mxu0 0
    %7818 = vmatpush.bf16.msra.mxu0 %v7730
    %7819 = vmatmul.bf16.gmra.mxu0 %v7770
    %v7820 = vpop.f32.mrf.mxu0
    %v7821 = vadd.f32 %v7808, %v7820
    %v7822 = vpop.f32.mrf.mxu0
    %7823 = vdwg.mxu0
    %7824 = vmatpush.bf16.msra.mxu0 %v7727
    %7825 = vmatpush.bf16.msra.mxu0 %v7723
    %7826 = vmatpush.bf16.msra.mxu0 %v7719
    %7827 = vmatpush.bf16.msra.mxu0 %v7715
    %7828 = vmatpush.bf16.msra.mxu0 %v7711
    %7829 = vmatpush.bf16.msra.mxu0 %v7707
    %7830 = vmatpush.bf16.msra.mxu0 %v7703
    %7831 = vmatpush.bf16.msra.mxu0 %v7699
    %7832 = vmatmul.bf16.gmra.mxu0 %v7551
    %v7833 = vpop.f32.mrf.mxu0
    %v7834 = vadd.f32 0.0, %v7833
    %v7835 = vpop.f32.mrf.mxu0
    %7836 = vdwg.mxu0
    %7837 = vmatpush.bf16.msra.mxu0 0
    %7838 = vmatpush.bf16.msra.mxu0 0
    %7839 = vmatpush.bf16.msra.mxu0 0
    %7840 = vmatpush.bf16.msra.mxu0 0
    %7841 = vmatpush.bf16.msra.mxu0 0
    %7842 = vmatpush.bf16.msra.mxu0 0
    %7843 = vmatpush.bf16.msra.mxu0 0
    %7844 = vmatpush.bf16.msra.mxu0 %v7731
    %7845 = vmatmul.bf16.gmra.mxu0 %v7770
    %v7846 = vpop.f32.mrf.mxu0
    %v7847 = vadd.f32 %v7834, %v7846
    %v7848 = vpop.f32.mrf.mxu0
    %7849 = vdwg.mxu0
    %7850 = vmatpush.bf16.msra.mxu0 %v7728
    %7851 = vmatpush.bf16.msra.mxu0 %v7724
    %7852 = vmatpush.bf16.msra.mxu0 %v7720
    %7853 = vmatpush.bf16.msra.mxu0 %v7716
    %7854 = vmatpush.bf16.msra.mxu0 %v7712
    %7855 = vmatpush.bf16.msra.mxu0 %v7708
    %7856 = vmatpush.bf16.msra.mxu0 %v7704
    %7857 = vmatpush.bf16.msra.mxu0 %v7700
    %7858 = vmatmul.bf16.gmra.mxu0 %v7551
    %v7859 = vpop.f32.mrf.mxu0
    %v7860 = vadd.f32 0.0, %v7859
    %v7861 = vpop.f32.mrf.mxu0
    %7862 = vdwg.mxu0
    %7863 = vmatpush.bf16.msra.mxu0 0
    %7864 = vmatpush.bf16.msra.mxu0 0
    %7865 = vmatpush.bf16.msra.mxu0 0
    %7866 = vmatpush.bf16.msra.mxu0 0
    %7867 = vmatpush.bf16.msra.mxu0 0
    %7868 = vmatpush.bf16.msra.mxu0 0
    %7869 = vmatpush.bf16.msra.mxu0 0
    %7870 = vmatpush.bf16.msra.mxu0 %v7732
    %7871 = vmatmul.bf16.gmra.mxu0 %v7770
    %v7872 = vpop.f32.mrf.mxu0
    %v7873 = vadd.f32 %v7860, %v7872
    %v7874 = vpop.f32.mrf.mxu0
    %7875 = vdwg.mxu0
    %v7876 = vadd.f32 %v7537, %v7795
    %v7877 = vadd.f32 %v7538, %v7821
    %v7878 = vadd.f32 %v7539, %v7847
    %v7879 = vadd.f32 %v7540, %v7873
    %v7880 = vrot.slane %v1272, 3
    %v7881 = vrot.slane %v1330, 3
    %v7884 = vrot.slane %v1388, 2
    %v7885 = vrot.slane %v1446, 2
    %v7888 = vsel %vm366, %v7880, %v7884
    %v7889 = vsel %vm366, %v7881, %v7885
    %v7890 = vpack.c.bf16 %v7888, %v7888
    %v7891 = vpack.c.bf16 %v7889, %v7889
    %v7892 = vld [vmem:[#allocation2 + $0x1560] sm:$0xff]
    %v7893 = vld [vmem:[#allocation2 + $0x1568] sm:$0xff]
    %v7894 = vld [vmem:[#allocation2 + $0x1570] sm:$0xff]
    %v7895 = vld [vmem:[#allocation2 + $0x1578] sm:$0xff]
    %v7896 = vld [vmem:[#allocation2 + $0x1580] sm:$0xff]
    %v7897 = vld [vmem:[#allocation2 + $0x1588] sm:$0xff]
    %v7898 = vld [vmem:[#allocation2 + $0x1590] sm:$0xff]
    %v7899 = vld [vmem:[#allocation2 + $0x1598] sm:$0xff]
    %v7900 = vld [vmem:[#allocation2 + $0x15a0] sm:$0xff]
    %v7901 = vld [vmem:[#allocation2 + $0x15a8] sm:$0xff]
    %v7902 = vld [vmem:[#allocation2 + $0x15b0] sm:$0xff]
    %v7903 = vld [vmem:[#allocation2 + $0x15b8] sm:$0xff]
    %v7904 = vld [vmem:[#allocation2 + $0x15c0] sm:$0xff]
    %v7905 = vld [vmem:[#allocation2 + $0x15c8] sm:$0xff]
    %v7906 = vld [vmem:[#allocation2 + $0x15d0] sm:$0xff]
    %v7907 = vld [vmem:[#allocation2 + $0x15d8] sm:$0xff]
    %v7908 = vld [vmem:[#allocation2 + $0x15e0] sm:$0xff]
    %v7909 = vld [vmem:[#allocation2 + $0x15e8] sm:$0xff]
    %v7910 = vld [vmem:[#allocation2 + $0x15f0] sm:$0xff]
    %v7911 = vld [vmem:[#allocation2 + $0x15f8] sm:$0xff]
    %v7912 = vld [vmem:[#allocation2 + $0x1600] sm:$0xff]
    %v7913 = vld [vmem:[#allocation2 + $0x1608] sm:$0xff]
    %v7914 = vld [vmem:[#allocation2 + $0x1610] sm:$0xff]
    %v7915 = vld [vmem:[#allocation2 + $0x1618] sm:$0xff]
    %v7916 = vld [vmem:[#allocation2 + $0x1620] sm:$0xff]
    %v7917 = vld [vmem:[#allocation2 + $0x1628] sm:$0xff]
    %v7918 = vld [vmem:[#allocation2 + $0x1630] sm:$0xff]
    %v7919 = vld [vmem:[#allocation2 + $0x1638] sm:$0xff]
    %v7920 = vld [vmem:[#allocation2 + $0x1640] sm:$0xff]
    %v7921 = vld [vmem:[#allocation2 + $0x1648] sm:$0xff]
    %v7922 = vld [vmem:[#allocation2 + $0x1650] sm:$0xff]
    %v7923 = vld [vmem:[#allocation2 + $0x1658] sm:$0xff]
    %v7924 = vld [vmem:[#allocation2 + $0x1660] sm:$0xff]
    %v7925 = vld [vmem:[#allocation2 + $0x1668] sm:$0xff]
    %v7926 = vld [vmem:[#allocation2 + $0x1670] sm:$0xff]
    %v7927 = vld [vmem:[#allocation2 + $0x1678] sm:$0xff]
    %v7964 = vunpack.c.l.b16 %v7892
    %v7965 = vunpack.c.h.b16 %v7892
    %v7966 = vunpack.c.l.b16 %v7893
    %v7967 = vunpack.c.h.b16 %v7893
    %v7968 = vunpack.c.l.b16 %v7894
    %v7969 = vunpack.c.h.b16 %v7894
    %v7970 = vunpack.c.l.b16 %v7895
    %v7971 = vunpack.c.h.b16 %v7895
    %v7972 = vunpack.c.l.b16 %v7896
    %v7973 = vunpack.c.h.b16 %v7896
    %v7974 = vunpack.c.l.b16 %v7897
    %v7975 = vunpack.c.h.b16 %v7897
    %v7976 = vunpack.c.l.b16 %v7898
    %v7977 = vunpack.c.h.b16 %v7898
    %v7978 = vunpack.c.l.b16 %v7899
    %v7979 = vunpack.c.h.b16 %v7899
    %v7980 = vunpack.c.l.b16 %v7900
    %v7981 = vunpack.c.h.b16 %v7900
    %v7982 = vunpack.c.l.b16 %v7901
    %v7983 = vunpack.c.h.b16 %v7901
    %v7984 = vunpack.c.l.b16 %v7902
    %v7985 = vunpack.c.h.b16 %v7902
    %v7986 = vunpack.c.l.b16 %v7903
    %v7987 = vunpack.c.h.b16 %v7903
    %v7988 = vunpack.c.l.b16 %v7904
    %v7989 = vunpack.c.h.b16 %v7904
    %v7990 = vunpack.c.l.b16 %v7905
    %v7991 = vunpack.c.h.b16 %v7905
    %v7992 = vunpack.c.l.b16 %v7906
    %v7993 = vunpack.c.h.b16 %v7906
    %v7994 = vunpack.c.l.b16 %v7907
    %v7995 = vunpack.c.h.b16 %v7907
    %v7996 = vunpack.c.l.b16 %v7908
    %v7997 = vunpack.c.h.b16 %v7908
    %v7998 = vunpack.c.l.b16 %v7909
    %v7999 = vunpack.c.h.b16 %v7909
    %v8000 = vunpack.c.l.b16 %v7910
    %v8001 = vunpack.c.h.b16 %v7910
    %v8002 = vunpack.c.l.b16 %v7911
    %v8003 = vunpack.c.h.b16 %v7911
    %v8004 = vunpack.c.l.b16 %v7912
    %v8005 = vunpack.c.h.b16 %v7912
    %v8006 = vunpack.c.l.b16 %v7913
    %v8007 = vunpack.c.h.b16 %v7913
    %v8008 = vunpack.c.l.b16 %v7914
    %v8009 = vunpack.c.h.b16 %v7914
    %v8010 = vunpack.c.l.b16 %v7915
    %v8011 = vunpack.c.h.b16 %v7915
    %v8012 = vunpack.c.l.b16 %v7916
    %v8013 = vunpack.c.h.b16 %v7916
    %v8014 = vunpack.c.l.b16 %v7917
    %v8015 = vunpack.c.h.b16 %v7917
    %v8016 = vunpack.c.l.b16 %v7918
    %v8017 = vunpack.c.h.b16 %v7918
    %v8018 = vunpack.c.l.b16 %v7919
    %v8019 = vunpack.c.h.b16 %v7919
    %v8020 = vunpack.c.l.b16 %v7920
    %v8021 = vunpack.c.h.b16 %v7920
    %v8022 = vunpack.c.l.b16 %v7921
    %v8023 = vunpack.c.h.b16 %v7921
    %v8024 = vunpack.c.l.b16 %v7922
    %v8025 = vunpack.c.h.b16 %v7922
    %v8026 = vunpack.c.l.b16 %v7923
    %v8027 = vunpack.c.h.b16 %v7923
    %v8028 = vunpack.c.l.b16 %v7924
    %v8029 = vunpack.c.h.b16 %v7924
    %v8030 = vunpack.c.l.b16 %v7925
    %v8031 = vunpack.c.h.b16 %v7925
    %v8032 = vunpack.c.l.b16 %v7926
    %v8033 = vunpack.c.h.b16 %v7926
    %v8034 = vunpack.c.l.b16 %v7927
    %v8035 = vunpack.c.h.b16 %v7927
    %v8036 = vpack.c.b16 %v7968, %v7964
    %v8037 = vpack.c.b16 %v7969, %v7965
    %v8038 = vpack.c.b16 %v7970, %v7966
    %v8039 = vpack.c.b16 %v7971, %v7967
    %v8040 = vpack.c.b16 %v7976, %v7972
    %v8041 = vpack.c.b16 %v7977, %v7973
    %v8042 = vpack.c.b16 %v7978, %v7974
    %v8043 = vpack.c.b16 %v7979, %v7975
    %v8044 = vpack.c.b16 %v7984, %v7980
    %v8045 = vpack.c.b16 %v7985, %v7981
    %v8046 = vpack.c.b16 %v7986, %v7982
    %v8047 = vpack.c.b16 %v7987, %v7983
    %v8048 = vpack.c.b16 %v7992, %v7988
    %v8049 = vpack.c.b16 %v7993, %v7989
    %v8050 = vpack.c.b16 %v7994, %v7990
    %v8051 = vpack.c.b16 %v7995, %v7991
    %v8052 = vpack.c.b16 %v8000, %v7996
    %v8053 = vpack.c.b16 %v8001, %v7997
    %v8054 = vpack.c.b16 %v8002, %v7998
    %v8055 = vpack.c.b16 %v8003, %v7999
    %v8056 = vpack.c.b16 %v8008, %v8004
    %v8057 = vpack.c.b16 %v8009, %v8005
    %v8058 = vpack.c.b16 %v8010, %v8006
    %v8059 = vpack.c.b16 %v8011, %v8007
    %v8060 = vpack.c.b16 %v8016, %v8012
    %v8061 = vpack.c.b16 %v8017, %v8013
    %v8062 = vpack.c.b16 %v8018, %v8014
    %v8063 = vpack.c.b16 %v8019, %v8015
    %v8064 = vpack.c.b16 %v8024, %v8020
    %v8065 = vpack.c.b16 %v8025, %v8021
    %v8066 = vpack.c.b16 %v8026, %v8022
    %v8067 = vpack.c.b16 %v8027, %v8023
    %v8068 = vpack.c.b16 %v8032, %v8028
    %v8069 = vpack.c.b16 %v8033, %v8029
    %v8070 = vpack.c.b16 %v8034, %v8030
    %v8071 = vpack.c.b16 %v8035, %v8031
    %v8109 = vsel %vm894, %v7891, 0
    %8111 = vmatpush.bf16.msra.mxu0 %v8064
    %8112 = vmatpush.bf16.msra.mxu0 %v8060
    %8113 = vmatpush.bf16.msra.mxu0 %v8056
    %8114 = vmatpush.bf16.msra.mxu0 %v8052
    %8115 = vmatpush.bf16.msra.mxu0 %v8048
    %8116 = vmatpush.bf16.msra.mxu0 %v8044
    %8117 = vmatpush.bf16.msra.mxu0 %v8040
    %8118 = vmatpush.bf16.msra.mxu0 %v8036
    %8119 = vmatmul.bf16.gmra.mxu0 %v7890
    %v8120 = vpop.f32.mrf.mxu0
    %v8121 = vadd.f32 0.0, %v8120
    %v8122 = vpop.f32.mrf.mxu0
    %8123 = vdwg.mxu0
    %8124 = vmatpush.bf16.msra.mxu0 0
    %8125 = vmatpush.bf16.msra.mxu0 0
    %8126 = vmatpush.bf16.msra.mxu0 0
    %8127 = vmatpush.bf16.msra.mxu0 0
    %8128 = vmatpush.bf16.msra.mxu0 0
    %8129 = vmatpush.bf16.msra.mxu0 0
    %8130 = vmatpush.bf16.msra.mxu0 0
    %8131 = vmatpush.bf16.msra.mxu0 %v8068
    %8132 = vmatmul.bf16.gmra.mxu0 %v8109
    %v8133 = vpop.f32.mrf.mxu0
    %v8134 = vadd.f32 %v8121, %v8133
    %v8135 = vpop.f32.mrf.mxu0
    %8136 = vdwg.mxu0
    %8137 = vmatpush.bf16.msra.mxu0 %v8065
    %8138 = vmatpush.bf16.msra.mxu0 %v8061
    %8139 = vmatpush.bf16.msra.mxu0 %v8057
    %8140 = vmatpush.bf16.msra.mxu0 %v8053
    %8141 = vmatpush.bf16.msra.mxu0 %v8049
    %8142 = vmatpush.bf16.msra.mxu0 %v8045
    %8143 = vmatpush.bf16.msra.mxu0 %v8041
    %8144 = vmatpush.bf16.msra.mxu0 %v8037
    %8145 = vmatmul.bf16.gmra.mxu0 %v7890
    %v8146 = vpop.f32.mrf.mxu0
    %v8147 = vadd.f32 0.0, %v8146
    %v8148 = vpop.f32.mrf.mxu0
    %8149 = vdwg.mxu0
    %8150 = vmatpush.bf16.msra.mxu0 0
    %8151 = vmatpush.bf16.msra.mxu0 0
    %8152 = vmatpush.bf16.msra.mxu0 0
    %8153 = vmatpush.bf16.msra.mxu0 0
    %8154 = vmatpush.bf16.msra.mxu0 0
    %8155 = vmatpush.bf16.msra.mxu0 0
    %8156 = vmatpush.bf16.msra.mxu0 0
    %8157 = vmatpush.bf16.msra.mxu0 %v8069
    %8158 = vmatmul.bf16.gmra.mxu0 %v8109
    %v8159 = vpop.f32.mrf.mxu0
    %v8160 = vadd.f32 %v8147, %v8159
    %v8161 = vpop.f32.mrf.mxu0
    %8162 = vdwg.mxu0
    %8163 = vmatpush.bf16.msra.mxu0 %v8066
    %8164 = vmatpush.bf16.msra.mxu0 %v8062
    %8165 = vmatpush.bf16.msra.mxu0 %v8058
    %8166 = vmatpush.bf16.msra.mxu0 %v8054
    %8167 = vmatpush.bf16.msra.mxu0 %v8050
    %8168 = vmatpush.bf16.msra.mxu0 %v8046
    %8169 = vmatpush.bf16.msra.mxu0 %v8042
    %8170 = vmatpush.bf16.msra.mxu0 %v8038
    %8171 = vmatmul.bf16.gmra.mxu0 %v7890
    %v8172 = vpop.f32.mrf.mxu0
    %v8173 = vadd.f32 0.0, %v8172
    %v8174 = vpop.f32.mrf.mxu0
    %8175 = vdwg.mxu0
    %8176 = vmatpush.bf16.msra.mxu0 0
    %8177 = vmatpush.bf16.msra.mxu0 0
    %8178 = vmatpush.bf16.msra.mxu0 0
    %8179 = vmatpush.bf16.msra.mxu0 0
    %8180 = vmatpush.bf16.msra.mxu0 0
    %8181 = vmatpush.bf16.msra.mxu0 0
    %8182 = vmatpush.bf16.msra.mxu0 0
    %8183 = vmatpush.bf16.msra.mxu0 %v8070
    %8184 = vmatmul.bf16.gmra.mxu0 %v8109
    %v8185 = vpop.f32.mrf.mxu0
    %v8186 = vadd.f32 %v8173, %v8185
    %v8187 = vpop.f32.mrf.mxu0
    %8188 = vdwg.mxu0
    %8189 = vmatpush.bf16.msra.mxu0 %v8067
    %8190 = vmatpush.bf16.msra.mxu0 %v8063
    %8191 = vmatpush.bf16.msra.mxu0 %v8059
    %8192 = vmatpush.bf16.msra.mxu0 %v8055
    %8193 = vmatpush.bf16.msra.mxu0 %v8051
    %8194 = vmatpush.bf16.msra.mxu0 %v8047
    %8195 = vmatpush.bf16.msra.mxu0 %v8043
    %8196 = vmatpush.bf16.msra.mxu0 %v8039
    %8197 = vmatmul.bf16.gmra.mxu0 %v7890
    %v8198 = vpop.f32.mrf.mxu0
    %v8199 = vadd.f32 0.0, %v8198
    %v8200 = vpop.f32.mrf.mxu0
    %8201 = vdwg.mxu0
    %8202 = vmatpush.bf16.msra.mxu0 0
    %8203 = vmatpush.bf16.msra.mxu0 0
    %8204 = vmatpush.bf16.msra.mxu0 0
    %8205 = vmatpush.bf16.msra.mxu0 0
    %8206 = vmatpush.bf16.msra.mxu0 0
    %8207 = vmatpush.bf16.msra.mxu0 0
    %8208 = vmatpush.bf16.msra.mxu0 0
    %8209 = vmatpush.bf16.msra.mxu0 %v8071
    %8210 = vmatmul.bf16.gmra.mxu0 %v8109
    %v8211 = vpop.f32.mrf.mxu0
    %v8212 = vadd.f32 %v8199, %v8211
    %v8213 = vpop.f32.mrf.mxu0
    %8214 = vdwg.mxu0
    %v8215 = vadd.f32 %v7876, %v8134
    %v8216 = vadd.f32 %v7877, %v8160
    %v8217 = vadd.f32 %v7878, %v8186
    %v8218 = vadd.f32 %v7879, %v8212
    %v8219 = vrot.slane %v1272, 4
    %v8220 = vrot.slane %v1330, 4
    %v8223 = vrot.slane %v1388, 3
    %v8224 = vrot.slane %v1446, 3
    %v8227 = vsel %vm366, %v8219, %v8223
    %v8228 = vsel %vm366, %v8220, %v8224
    %v8229 = vpack.c.bf16 %v8227, %v8227
    %v8230 = vpack.c.bf16 %v8228, %v8228
    %v8231 = vld [vmem:[#allocation2 + $0x1680] sm:$0xff]
    %v8232 = vld [vmem:[#allocation2 + $0x1688] sm:$0xff]
    %v8233 = vld [vmem:[#allocation2 + $0x1690] sm:$0xff]
    %v8234 = vld [vmem:[#allocation2 + $0x1698] sm:$0xff]
    %v8235 = vld [vmem:[#allocation2 + $0x16a0] sm:$0xff]
    %v8236 = vld [vmem:[#allocation2 + $0x16a8] sm:$0xff]
    %v8237 = vld [vmem:[#allocation2 + $0x16b0] sm:$0xff]
    %v8238 = vld [vmem:[#allocation2 + $0x16b8] sm:$0xff]
    %v8239 = vld [vmem:[#allocation2 + $0x16c0] sm:$0xff]
    %v8240 = vld [vmem:[#allocation2 + $0x16c8] sm:$0xff]
    %v8241 = vld [vmem:[#allocation2 + $0x16d0] sm:$0xff]
    %v8242 = vld [vmem:[#allocation2 + $0x16d8] sm:$0xff]
    %v8243 = vld [vmem:[#allocation2 + $0x16e0] sm:$0xff]
    %v8244 = vld [vmem:[#allocation2 + $0x16e8] sm:$0xff]
    %v8245 = vld [vmem:[#allocation2 + $0x16f0] sm:$0xff]
    %v8246 = vld [vmem:[#allocation2 + $0x16f8] sm:$0xff]
    %v8247 = vld [vmem:[#allocation2 + $0x1700] sm:$0xff]
    %v8248 = vld [vmem:[#allocation2 + $0x1708] sm:$0xff]
    %v8249 = vld [vmem:[#allocation2 + $0x1710] sm:$0xff]
    %v8250 = vld [vmem:[#allocation2 + $0x1718] sm:$0xff]
    %v8251 = vld [vmem:[#allocation2 + $0x1720] sm:$0xff]
    %v8252 = vld [vmem:[#allocation2 + $0x1728] sm:$0xff]
    %v8253 = vld [vmem:[#allocation2 + $0x1730] sm:$0xff]
    %v8254 = vld [vmem:[#allocation2 + $0x1738] sm:$0xff]
    %v8255 = vld [vmem:[#allocation2 + $0x1740] sm:$0xff]
    %v8256 = vld [vmem:[#allocation2 + $0x1748] sm:$0xff]
    %v8257 = vld [vmem:[#allocation2 + $0x1750] sm:$0xff]
    %v8258 = vld [vmem:[#allocation2 + $0x1758] sm:$0xff]
    %v8259 = vld [vmem:[#allocation2 + $0x1760] sm:$0xff]
    %v8260 = vld [vmem:[#allocation2 + $0x1768] sm:$0xff]
    %v8261 = vld [vmem:[#allocation2 + $0x1770] sm:$0xff]
    %v8262 = vld [vmem:[#allocation2 + $0x1778] sm:$0xff]
    %v8263 = vld [vmem:[#allocation2 + $0x1780] sm:$0xff]
    %v8264 = vld [vmem:[#allocation2 + $0x1788] sm:$0xff]
    %v8265 = vld [vmem:[#allocation2 + $0x1790] sm:$0xff]
    %v8266 = vld [vmem:[#allocation2 + $0x1798] sm:$0xff]
    %v8303 = vunpack.c.l.b16 %v8231
    %v8304 = vunpack.c.h.b16 %v8231
    %v8305 = vunpack.c.l.b16 %v8232
    %v8306 = vunpack.c.h.b16 %v8232
    %v8307 = vunpack.c.l.b16 %v8233
    %v8308 = vunpack.c.h.b16 %v8233
    %v8309 = vunpack.c.l.b16 %v8234
    %v8310 = vunpack.c.h.b16 %v8234
    %v8311 = vunpack.c.l.b16 %v8235
    %v8312 = vunpack.c.h.b16 %v8235
    %v8313 = vunpack.c.l.b16 %v8236
    %v8314 = vunpack.c.h.b16 %v8236
    %v8315 = vunpack.c.l.b16 %v8237
    %v8316 = vunpack.c.h.b16 %v8237
    %v8317 = vunpack.c.l.b16 %v8238
    %v8318 = vunpack.c.h.b16 %v8238
    %v8319 = vunpack.c.l.b16 %v8239
    %v8320 = vunpack.c.h.b16 %v8239
    %v8321 = vunpack.c.l.b16 %v8240
    %v8322 = vunpack.c.h.b16 %v8240
    %v8323 = vunpack.c.l.b16 %v8241
    %v8324 = vunpack.c.h.b16 %v8241
    %v8325 = vunpack.c.l.b16 %v8242
    %v8326 = vunpack.c.h.b16 %v8242
    %v8327 = vunpack.c.l.b16 %v8243
    %v8328 = vunpack.c.h.b16 %v8243
    %v8329 = vunpack.c.l.b16 %v8244
    %v8330 = vunpack.c.h.b16 %v8244
    %v8331 = vunpack.c.l.b16 %v8245
    %v8332 = vunpack.c.h.b16 %v8245
    %v8333 = vunpack.c.l.b16 %v8246
    %v8334 = vunpack.c.h.b16 %v8246
    %v8335 = vunpack.c.l.b16 %v8247
    %v8336 = vunpack.c.h.b16 %v8247
    %v8337 = vunpack.c.l.b16 %v8248
    %v8338 = vunpack.c.h.b16 %v8248
    %v8339 = vunpack.c.l.b16 %v8249
    %v8340 = vunpack.c.h.b16 %v8249
    %v8341 = vunpack.c.l.b16 %v8250
    %v8342 = vunpack.c.h.b16 %v8250
    %v8343 = vunpack.c.l.b16 %v8251
    %v8344 = vunpack.c.h.b16 %v8251
    %v8345 = vunpack.c.l.b16 %v8252
    %v8346 = vunpack.c.h.b16 %v8252
    %v8347 = vunpack.c.l.b16 %v8253
    %v8348 = vunpack.c.h.b16 %v8253
    %v8349 = vunpack.c.l.b16 %v8254
    %v8350 = vunpack.c.h.b16 %v8254
    %v8351 = vunpack.c.l.b16 %v8255
    %v8352 = vunpack.c.h.b16 %v8255
    %v8353 = vunpack.c.l.b16 %v8256
    %v8354 = vunpack.c.h.b16 %v8256
    %v8355 = vunpack.c.l.b16 %v8257
    %v8356 = vunpack.c.h.b16 %v8257
    %v8357 = vunpack.c.l.b16 %v8258
    %v8358 = vunpack.c.h.b16 %v8258
    %v8359 = vunpack.c.l.b16 %v8259
    %v8360 = vunpack.c.h.b16 %v8259
    %v8361 = vunpack.c.l.b16 %v8260
    %v8362 = vunpack.c.h.b16 %v8260
    %v8363 = vunpack.c.l.b16 %v8261
    %v8364 = vunpack.c.h.b16 %v8261
    %v8365 = vunpack.c.l.b16 %v8262
    %v8366 = vunpack.c.h.b16 %v8262
    %v8367 = vunpack.c.l.b16 %v8263
    %v8368 = vunpack.c.h.b16 %v8263
    %v8369 = vunpack.c.l.b16 %v8264
    %v8370 = vunpack.c.h.b16 %v8264
    %v8371 = vunpack.c.l.b16 %v8265
    %v8372 = vunpack.c.h.b16 %v8265
    %v8373 = vunpack.c.l.b16 %v8266
    %v8374 = vunpack.c.h.b16 %v8266
    %v8375 = vpack.c.b16 %v8307, %v8303
    %v8376 = vpack.c.b16 %v8308, %v8304
    %v8377 = vpack.c.b16 %v8309, %v8305
    %v8378 = vpack.c.b16 %v8310, %v8306
    %v8379 = vpack.c.b16 %v8315, %v8311
    %v8380 = vpack.c.b16 %v8316, %v8312
    %v8381 = vpack.c.b16 %v8317, %v8313
    %v8382 = vpack.c.b16 %v8318, %v8314
    %v8383 = vpack.c.b16 %v8323, %v8319
    %v8384 = vpack.c.b16 %v8324, %v8320
    %v8385 = vpack.c.b16 %v8325, %v8321
    %v8386 = vpack.c.b16 %v8326, %v8322
    %v8387 = vpack.c.b16 %v8331, %v8327
    %v8388 = vpack.c.b16 %v8332, %v8328
    %v8389 = vpack.c.b16 %v8333, %v8329
    %v8390 = vpack.c.b16 %v8334, %v8330
    %v8391 = vpack.c.b16 %v8339, %v8335
    %v8392 = vpack.c.b16 %v8340, %v8336
    %v8393 = vpack.c.b16 %v8341, %v8337
    %v8394 = vpack.c.b16 %v8342, %v8338
    %v8395 = vpack.c.b16 %v8347, %v8343
    %v8396 = vpack.c.b16 %v8348, %v8344
    %v8397 = vpack.c.b16 %v8349, %v8345
    %v8398 = vpack.c.b16 %v8350, %v8346
    %v8399 = vpack.c.b16 %v8355, %v8351
    %v8400 = vpack.c.b16 %v8356, %v8352
    %v8401 = vpack.c.b16 %v8357, %v8353
    %v8402 = vpack.c.b16 %v8358, %v8354
    %v8403 = vpack.c.b16 %v8363, %v8359
    %v8404 = vpack.c.b16 %v8364, %v8360
    %v8405 = vpack.c.b16 %v8365, %v8361
    %v8406 = vpack.c.b16 %v8366, %v8362
    %v8407 = vpack.c.b16 %v8371, %v8367
    %v8408 = vpack.c.b16 %v8372, %v8368
    %v8409 = vpack.c.b16 %v8373, %v8369
    %v8410 = vpack.c.b16 %v8374, %v8370
    %v8448 = vsel %vm894, %v8230, 0
    %8450 = vmatpush.bf16.msra.mxu0 %v8403
    %8451 = vmatpush.bf16.msra.mxu0 %v8399
    %8452 = vmatpush.bf16.msra.mxu0 %v8395
    %8453 = vmatpush.bf16.msra.mxu0 %v8391
    %8454 = vmatpush.bf16.msra.mxu0 %v8387
    %8455 = vmatpush.bf16.msra.mxu0 %v8383
    %8456 = vmatpush.bf16.msra.mxu0 %v8379
    %8457 = vmatpush.bf16.msra.mxu0 %v8375
    %8458 = vmatmul.bf16.gmra.mxu0 %v8229
    %v8459 = vpop.f32.mrf.mxu0
    %v8460 = vadd.f32 0.0, %v8459
    %v8461 = vpop.f32.mrf.mxu0
    %8462 = vdwg.mxu0
    %8463 = vmatpush.bf16.msra.mxu0 0
    %8464 = vmatpush.bf16.msra.mxu0 0
    %8465 = vmatpush.bf16.msra.mxu0 0
    %8466 = vmatpush.bf16.msra.mxu0 0
    %8467 = vmatpush.bf16.msra.mxu0 0
    %8468 = vmatpush.bf16.msra.mxu0 0
    %8469 = vmatpush.bf16.msra.mxu0 0
    %8470 = vmatpush.bf16.msra.mxu0 %v8407
    %8471 = vmatmul.bf16.gmra.mxu0 %v8448
    %v8472 = vpop.f32.mrf.mxu0
    %v8473 = vadd.f32 %v8460, %v8472
    %v8474 = vpop.f32.mrf.mxu0
    %8475 = vdwg.mxu0
    %8476 = vmatpush.bf16.msra.mxu0 %v8404
    %8477 = vmatpush.bf16.msra.mxu0 %v8400
    %8478 = vmatpush.bf16.msra.mxu0 %v8396
    %8479 = vmatpush.bf16.msra.mxu0 %v8392
    %8480 = vmatpush.bf16.msra.mxu0 %v8388
    %8481 = vmatpush.bf16.msra.mxu0 %v8384
    %8482 = vmatpush.bf16.msra.mxu0 %v8380
    %8483 = vmatpush.bf16.msra.mxu0 %v8376
    %8484 = vmatmul.bf16.gmra.mxu0 %v8229
    %v8485 = vpop.f32.mrf.mxu0
    %v8486 = vadd.f32 0.0, %v8485
    %v8487 = vpop.f32.mrf.mxu0
    %8488 = vdwg.mxu0
    %8489 = vmatpush.bf16.msra.mxu0 0
    %8490 = vmatpush.bf16.msra.mxu0 0
    %8491 = vmatpush.bf16.msra.mxu0 0
    %8492 = vmatpush.bf16.msra.mxu0 0
    %8493 = vmatpush.bf16.msra.mxu0 0
    %8494 = vmatpush.bf16.msra.mxu0 0
    %8495 = vmatpush.bf16.msra.mxu0 0
    %8496 = vmatpush.bf16.msra.mxu0 %v8408
    %8497 = vmatmul.bf16.gmra.mxu0 %v8448
    %v8498 = vpop.f32.mrf.mxu0
    %v8499 = vadd.f32 %v8486, %v8498
    %v8500 = vpop.f32.mrf.mxu0
    %8501 = vdwg.mxu0
    %8502 = vmatpush.bf16.msra.mxu0 %v8405
    %8503 = vmatpush.bf16.msra.mxu0 %v8401
    %8504 = vmatpush.bf16.msra.mxu0 %v8397
    %8505 = vmatpush.bf16.msra.mxu0 %v8393
    %8506 = vmatpush.bf16.msra.mxu0 %v8389
    %8507 = vmatpush.bf16.msra.mxu0 %v8385
    %8508 = vmatpush.bf16.msra.mxu0 %v8381
    %8509 = vmatpush.bf16.msra.mxu0 %v8377
    %8510 = vmatmul.bf16.gmra.mxu0 %v8229
    %v8511 = vpop.f32.mrf.mxu0
    %v8512 = vadd.f32 0.0, %v8511
    %v8513 = vpop.f32.mrf.mxu0
    %8514 = vdwg.mxu0
    %8515 = vmatpush.bf16.msra.mxu0 0
    %8516 = vmatpush.bf16.msra.mxu0 0
    %8517 = vmatpush.bf16.msra.mxu0 0
    %8518 = vmatpush.bf16.msra.mxu0 0
    %8519 = vmatpush.bf16.msra.mxu0 0
    %8520 = vmatpush.bf16.msra.mxu0 0
    %8521 = vmatpush.bf16.msra.mxu0 0
    %8522 = vmatpush.bf16.msra.mxu0 %v8409
    %8523 = vmatmul.bf16.gmra.mxu0 %v8448
    %v8524 = vpop.f32.mrf.mxu0
    %v8525 = vadd.f32 %v8512, %v8524
    %v8526 = vpop.f32.mrf.mxu0
    %8527 = vdwg.mxu0
    %8528 = vmatpush.bf16.msra.mxu0 %v8406
    %8529 = vmatpush.bf16.msra.mxu0 %v8402
    %8530 = vmatpush.bf16.msra.mxu0 %v8398
    %8531 = vmatpush.bf16.msra.mxu0 %v8394
    %8532 = vmatpush.bf16.msra.mxu0 %v8390
    %8533 = vmatpush.bf16.msra.mxu0 %v8386
    %8534 = vmatpush.bf16.msra.mxu0 %v8382
    %8535 = vmatpush.bf16.msra.mxu0 %v8378
    %8536 = vmatmul.bf16.gmra.mxu0 %v8229
    %v8537 = vpop.f32.mrf.mxu0
    %v8538 = vadd.f32 0.0, %v8537
    %v8539 = vpop.f32.mrf.mxu0
    %8540 = vdwg.mxu0
    %8541 = vmatpush.bf16.msra.mxu0 0
    %8542 = vmatpush.bf16.msra.mxu0 0
    %8543 = vmatpush.bf16.msra.mxu0 0
    %8544 = vmatpush.bf16.msra.mxu0 0
    %8545 = vmatpush.bf16.msra.mxu0 0
    %8546 = vmatpush.bf16.msra.mxu0 0
    %8547 = vmatpush.bf16.msra.mxu0 0
    %8548 = vmatpush.bf16.msra.mxu0 %v8410
    %8549 = vmatmul.bf16.gmra.mxu0 %v8448
    %v8550 = vpop.f32.mrf.mxu0
    %v8551 = vadd.f32 %v8538, %v8550
    %v8552 = vpop.f32.mrf.mxu0
    %8553 = vdwg.mxu0
    %v8554 = vadd.f32 %v8215, %v8473
    %v8555 = vadd.f32 %v8216, %v8499
    %v8556 = vadd.f32 %v8217, %v8525
    %v8557 = vadd.f32 %v8218, %v8551
    %v8558 = vrot.slane %v1272, 5
    %v8559 = vrot.slane %v1330, 5
    %v8562 = vrot.slane %v1388, 4
    %v8563 = vrot.slane %v1446, 4
    %v8566 = vsel %vm366, %v8558, %v8562
    %v8567 = vsel %vm366, %v8559, %v8563
    %v8568 = vpack.c.bf16 %v8566, %v8566
    %v8569 = vpack.c.bf16 %v8567, %v8567
    %v8570 = vld [vmem:[#allocation2 + $0x17a0] sm:$0xff]
    %v8571 = vld [vmem:[#allocation2 + $0x17a8] sm:$0xff]
    %v8572 = vld [vmem:[#allocation2 + $0x17b0] sm:$0xff]
    %v8573 = vld [vmem:[#allocation2 + $0x17b8] sm:$0xff]
    %v8574 = vld [vmem:[#allocation2 + $0x17c0] sm:$0xff]
    %v8575 = vld [vmem:[#allocation2 + $0x17c8] sm:$0xff]
    %v8576 = vld [vmem:[#allocation2 + $0x17d0] sm:$0xff]
    %v8577 = vld [vmem:[#allocation2 + $0x17d8] sm:$0xff]
    %v8578 = vld [vmem:[#allocation2 + $0x17e0] sm:$0xff]
    %v8579 = vld [vmem:[#allocation2 + $0x17e8] sm:$0xff]
    %v8580 = vld [vmem:[#allocation2 + $0x17f0] sm:$0xff]
    %v8581 = vld [vmem:[#allocation2 + $0x17f8] sm:$0xff]
    %v8582 = vld [vmem:[#allocation2 + $0x1800] sm:$0xff]
    %v8583 = vld [vmem:[#allocation2 + $0x1808] sm:$0xff]
    %v8584 = vld [vmem:[#allocation2 + $0x1810] sm:$0xff]
    %v8585 = vld [vmem:[#allocation2 + $0x1818] sm:$0xff]
    %v8586 = vld [vmem:[#allocation2 + $0x1820] sm:$0xff]
    %v8587 = vld [vmem:[#allocation2 + $0x1828] sm:$0xff]
    %v8588 = vld [vmem:[#allocation2 + $0x1830] sm:$0xff]
    %v8589 = vld [vmem:[#allocation2 + $0x1838] sm:$0xff]
    %v8590 = vld [vmem:[#allocation2 + $0x1840] sm:$0xff]
    %v8591 = vld [vmem:[#allocation2 + $0x1848] sm:$0xff]
    %v8592 = vld [vmem:[#allocation2 + $0x1850] sm:$0xff]
    %v8593 = vld [vmem:[#allocation2 + $0x1858] sm:$0xff]
    %v8594 = vld [vmem:[#allocation2 + $0x1860] sm:$0xff]
    %v8595 = vld [vmem:[#allocation2 + $0x1868] sm:$0xff]
    %v8596 = vld [vmem:[#allocation2 + $0x1870] sm:$0xff]
    %v8597 = vld [vmem:[#allocation2 + $0x1878] sm:$0xff]
    %v8598 = vld [vmem:[#allocation2 + $0x1880] sm:$0xff]
    %v8599 = vld [vmem:[#allocation2 + $0x1888] sm:$0xff]
    %v8600 = vld [vmem:[#allocation2 + $0x1890] sm:$0xff]
    %v8601 = vld [vmem:[#allocation2 + $0x1898] sm:$0xff]
    %v8602 = vld [vmem:[#allocation2 + $0x18a0] sm:$0xff]
    %v8603 = vld [vmem:[#allocation2 + $0x18a8] sm:$0xff]
    %v8604 = vld [vmem:[#allocation2 + $0x18b0] sm:$0xff]
    %v8605 = vld [vmem:[#allocation2 + $0x18b8] sm:$0xff]
    %v8642 = vunpack.c.l.b16 %v8570
    %v8643 = vunpack.c.h.b16 %v8570
    %v8644 = vunpack.c.l.b16 %v8571
    %v8645 = vunpack.c.h.b16 %v8571
    %v8646 = vunpack.c.l.b16 %v8572
    %v8647 = vunpack.c.h.b16 %v8572
    %v8648 = vunpack.c.l.b16 %v8573
    %v8649 = vunpack.c.h.b16 %v8573
    %v8650 = vunpack.c.l.b16 %v8574
    %v8651 = vunpack.c.h.b16 %v8574
    %v8652 = vunpack.c.l.b16 %v8575
    %v8653 = vunpack.c.h.b16 %v8575
    %v8654 = vunpack.c.l.b16 %v8576
    %v8655 = vunpack.c.h.b16 %v8576
    %v8656 = vunpack.c.l.b16 %v8577
    %v8657 = vunpack.c.h.b16 %v8577
    %v8658 = vunpack.c.l.b16 %v8578
    %v8659 = vunpack.c.h.b16 %v8578
    %v8660 = vunpack.c.l.b16 %v8579
    %v8661 = vunpack.c.h.b16 %v8579
    %v8662 = vunpack.c.l.b16 %v8580
    %v8663 = vunpack.c.h.b16 %v8580
    %v8664 = vunpack.c.l.b16 %v8581
    %v8665 = vunpack.c.h.b16 %v8581
    %v8666 = vunpack.c.l.b16 %v8582
    %v8667 = vunpack.c.h.b16 %v8582
    %v8668 = vunpack.c.l.b16 %v8583
    %v8669 = vunpack.c.h.b16 %v8583
    %v8670 = vunpack.c.l.b16 %v8584
    %v8671 = vunpack.c.h.b16 %v8584
    %v8672 = vunpack.c.l.b16 %v8585
    %v8673 = vunpack.c.h.b16 %v8585
    %v8674 = vunpack.c.l.b16 %v8586
    %v8675 = vunpack.c.h.b16 %v8586
    %v8676 = vunpack.c.l.b16 %v8587
    %v8677 = vunpack.c.h.b16 %v8587
    %v8678 = vunpack.c.l.b16 %v8588
    %v8679 = vunpack.c.h.b16 %v8588
    %v8680 = vunpack.c.l.b16 %v8589
    %v8681 = vunpack.c.h.b16 %v8589
    %v8682 = vunpack.c.l.b16 %v8590
    %v8683 = vunpack.c.h.b16 %v8590
    %v8684 = vunpack.c.l.b16 %v8591
    %v8685 = vunpack.c.h.b16 %v8591
    %v8686 = vunpack.c.l.b16 %v8592
    %v8687 = vunpack.c.h.b16 %v8592
    %v8688 = vunpack.c.l.b16 %v8593
    %v8689 = vunpack.c.h.b16 %v8593
    %v8690 = vunpack.c.l.b16 %v8594
    %v8691 = vunpack.c.h.b16 %v8594
    %v8692 = vunpack.c.l.b16 %v8595
    %v8693 = vunpack.c.h.b16 %v8595
    %v8694 = vunpack.c.l.b16 %v8596
    %v8695 = vunpack.c.h.b16 %v8596
    %v8696 = vunpack.c.l.b16 %v8597
    %v8697 = vunpack.c.h.b16 %v8597
    %v8698 = vunpack.c.l.b16 %v8598
    %v8699 = vunpack.c.h.b16 %v8598
    %v8700 = vunpack.c.l.b16 %v8599
    %v8701 = vunpack.c.h.b16 %v8599
    %v8702 = vunpack.c.l.b16 %v8600
    %v8703 = vunpack.c.h.b16 %v8600
    %v8704 = vunpack.c.l.b16 %v8601
    %v8705 = vunpack.c.h.b16 %v8601
    %v8706 = vunpack.c.l.b16 %v8602
    %v8707 = vunpack.c.h.b16 %v8602
    %v8708 = vunpack.c.l.b16 %v8603
    %v8709 = vunpack.c.h.b16 %v8603
    %v8710 = vunpack.c.l.b16 %v8604
    %v8711 = vunpack.c.h.b16 %v8604
    %v8712 = vunpack.c.l.b16 %v8605
    %v8713 = vunpack.c.h.b16 %v8605
    %v8714 = vpack.c.b16 %v8646, %v8642
    %v8715 = vpack.c.b16 %v8647, %v8643
    %v8716 = vpack.c.b16 %v8648, %v8644
    %v8717 = vpack.c.b16 %v8649, %v8645
    %v8718 = vpack.c.b16 %v8654, %v8650
    %v8719 = vpack.c.b16 %v8655, %v8651
    %v8720 = vpack.c.b16 %v8656, %v8652
    %v8721 = vpack.c.b16 %v8657, %v8653
    %v8722 = vpack.c.b16 %v8662, %v8658
    %v8723 = vpack.c.b16 %v8663, %v8659
    %v8724 = vpack.c.b16 %v8664, %v8660
    %v8725 = vpack.c.b16 %v8665, %v8661
    %v8726 = vpack.c.b16 %v8670, %v8666
    %v8727 = vpack.c.b16 %v8671, %v8667
    %v8728 = vpack.c.b16 %v8672, %v8668
    %v8729 = vpack.c.b16 %v8673, %v8669
    %v8730 = vpack.c.b16 %v8678, %v8674
    %v8731 = vpack.c.b16 %v8679, %v8675
    %v8732 = vpack.c.b16 %v8680, %v8676
    %v8733 = vpack.c.b16 %v8681, %v8677
    %v8734 = vpack.c.b16 %v8686, %v8682
    %v8735 = vpack.c.b16 %v8687, %v8683
    %v8736 = vpack.c.b16 %v8688, %v8684
    %v8737 = vpack.c.b16 %v8689, %v8685
    %v8738 = vpack.c.b16 %v8694, %v8690
    %v8739 = vpack.c.b16 %v8695, %v8691
    %v8740 = vpack.c.b16 %v8696, %v8692
    %v8741 = vpack.c.b16 %v8697, %v8693
    %v8742 = vpack.c.b16 %v8702, %v8698
    %v8743 = vpack.c.b16 %v8703, %v8699
    %v8744 = vpack.c.b16 %v8704, %v8700
    %v8745 = vpack.c.b16 %v8705, %v8701
    %v8746 = vpack.c.b16 %v8710, %v8706
    %v8747 = vpack.c.b16 %v8711, %v8707
    %v8748 = vpack.c.b16 %v8712, %v8708
    %v8749 = vpack.c.b16 %v8713, %v8709
    %v8787 = vsel %vm894, %v8569, 0
    %8789 = vmatpush.bf16.msra.mxu0 %v8742
    %8790 = vmatpush.bf16.msra.mxu0 %v8738
    %8791 = vmatpush.bf16.msra.mxu0 %v8734
    %8792 = vmatpush.bf16.msra.mxu0 %v8730
    %8793 = vmatpush.bf16.msra.mxu0 %v8726
    %8794 = vmatpush.bf16.msra.mxu0 %v8722
    %8795 = vmatpush.bf16.msra.mxu0 %v8718
    %8796 = vmatpush.bf16.msra.mxu0 %v8714
    %8797 = vmatmul.bf16.gmra.mxu0 %v8568
    %v8798 = vpop.f32.mrf.mxu0
    %v8799 = vadd.f32 0.0, %v8798
    %v8800 = vpop.f32.mrf.mxu0
    %8801 = vdwg.mxu0
    %8802 = vmatpush.bf16.msra.mxu0 0
    %8803 = vmatpush.bf16.msra.mxu0 0
    %8804 = vmatpush.bf16.msra.mxu0 0
    %8805 = vmatpush.bf16.msra.mxu0 0
    %8806 = vmatpush.bf16.msra.mxu0 0
    %8807 = vmatpush.bf16.msra.mxu0 0
    %8808 = vmatpush.bf16.msra.mxu0 0
    %8809 = vmatpush.bf16.msra.mxu0 %v8746
    %8810 = vmatmul.bf16.gmra.mxu0 %v8787
    %v8811 = vpop.f32.mrf.mxu0
    %v8812 = vadd.f32 %v8799, %v8811
    %v8813 = vpop.f32.mrf.mxu0
    %8814 = vdwg.mxu0
    %8815 = vmatpush.bf16.msra.mxu0 %v8743
    %8816 = vmatpush.bf16.msra.mxu0 %v8739
    %8817 = vmatpush.bf16.msra.mxu0 %v8735
    %8818 = vmatpush.bf16.msra.mxu0 %v8731
    %8819 = vmatpush.bf16.msra.mxu0 %v8727
    %8820 = vmatpush.bf16.msra.mxu0 %v8723
    %8821 = vmatpush.bf16.msra.mxu0 %v8719
    %8822 = vmatpush.bf16.msra.mxu0 %v8715
    %8823 = vmatmul.bf16.gmra.mxu0 %v8568
    %v8824 = vpop.f32.mrf.mxu0
    %v8825 = vadd.f32 0.0, %v8824
    %v8826 = vpop.f32.mrf.mxu0
    %8827 = vdwg.mxu0
    %8828 = vmatpush.bf16.msra.mxu0 0
    %8829 = vmatpush.bf16.msra.mxu0 0
    %8830 = vmatpush.bf16.msra.mxu0 0
    %8831 = vmatpush.bf16.msra.mxu0 0
    %8832 = vmatpush.bf16.msra.mxu0 0
    %8833 = vmatpush.bf16.msra.mxu0 0
    %8834 = vmatpush.bf16.msra.mxu0 0
    %8835 = vmatpush.bf16.msra.mxu0 %v8747
    %8836 = vmatmul.bf16.gmra.mxu0 %v8787
    %v8837 = vpop.f32.mrf.mxu0
    %v8838 = vadd.f32 %v8825, %v8837
    %v8839 = vpop.f32.mrf.mxu0
    %8840 = vdwg.mxu0
    %8841 = vmatpush.bf16.msra.mxu0 %v8744
    %8842 = vmatpush.bf16.msra.mxu0 %v8740
    %8843 = vmatpush.bf16.msra.mxu0 %v8736
    %8844 = vmatpush.bf16.msra.mxu0 %v8732
    %8845 = vmatpush.bf16.msra.mxu0 %v8728
    %8846 = vmatpush.bf16.msra.mxu0 %v8724
    %8847 = vmatpush.bf16.msra.mxu0 %v8720
    %8848 = vmatpush.bf16.msra.mxu0 %v8716
    %8849 = vmatmul.bf16.gmra.mxu0 %v8568
    %v8850 = vpop.f32.mrf.mxu0
    %v8851 = vadd.f32 0.0, %v8850
    %v8852 = vpop.f32.mrf.mxu0
    %8853 = vdwg.mxu0
    %8854 = vmatpush.bf16.msra.mxu0 0
    %8855 = vmatpush.bf16.msra.mxu0 0
    %8856 = vmatpush.bf16.msra.mxu0 0
    %8857 = vmatpush.bf16.msra.mxu0 0
    %8858 = vmatpush.bf16.msra.mxu0 0
    %8859 = vmatpush.bf16.msra.mxu0 0
    %8860 = vmatpush.bf16.msra.mxu0 0
    %8861 = vmatpush.bf16.msra.mxu0 %v8748
    %8862 = vmatmul.bf16.gmra.mxu0 %v8787
    %v8863 = vpop.f32.mrf.mxu0
    %v8864 = vadd.f32 %v8851, %v8863
    %v8865 = vpop.f32.mrf.mxu0
    %8866 = vdwg.mxu0
    %8867 = vmatpush.bf16.msra.mxu0 %v8745
    %8868 = vmatpush.bf16.msra.mxu0 %v8741
    %8869 = vmatpush.bf16.msra.mxu0 %v8737
    %8870 = vmatpush.bf16.msra.mxu0 %v8733
    %8871 = vmatpush.bf16.msra.mxu0 %v8729
    %8872 = vmatpush.bf16.msra.mxu0 %v8725
    %8873 = vmatpush.bf16.msra.mxu0 %v8721
    %8874 = vmatpush.bf16.msra.mxu0 %v8717
    %8875 = vmatmul.bf16.gmra.mxu0 %v8568
    %v8876 = vpop.f32.mrf.mxu0
    %v8877 = vadd.f32 0.0, %v8876
    %v8878 = vpop.f32.mrf.mxu0
    %8879 = vdwg.mxu0
    %8880 = vmatpush.bf16.msra.mxu0 0
    %8881 = vmatpush.bf16.msra.mxu0 0
    %8882 = vmatpush.bf16.msra.mxu0 0
    %8883 = vmatpush.bf16.msra.mxu0 0
    %8884 = vmatpush.bf16.msra.mxu0 0
    %8885 = vmatpush.bf16.msra.mxu0 0
    %8886 = vmatpush.bf16.msra.mxu0 0
    %8887 = vmatpush.bf16.msra.mxu0 %v8749
    %8888 = vmatmul.bf16.gmra.mxu0 %v8787
    %v8889 = vpop.f32.mrf.mxu0
    %v8890 = vadd.f32 %v8877, %v8889
    %v8891 = vpop.f32.mrf.mxu0
    %8892 = vdwg.mxu0
    %v8893 = vadd.f32 %v8554, %v8812
    %v8894 = vadd.f32 %v8555, %v8838
    %v8895 = vadd.f32 %v8556, %v8864
    %v8896 = vadd.f32 %v8557, %v8890
    %v8897 = vrot.slane %v1272, 6
    %v8898 = vrot.slane %v1330, 6
    %v8901 = vrot.slane %v1388, 5
    %v8902 = vrot.slane %v1446, 5
    %v8905 = vsel %vm366, %v8897, %v8901
    %v8906 = vsel %vm366, %v8898, %v8902
    %v8907 = vpack.c.bf16 %v8905, %v8905
    %v8908 = vpack.c.bf16 %v8906, %v8906
    %v8909 = vld [vmem:[#allocation2 + $0x18c0] sm:$0xff]
    %v8910 = vld [vmem:[#allocation2 + $0x18c8] sm:$0xff]
    %v8911 = vld [vmem:[#allocation2 + $0x18d0] sm:$0xff]
    %v8912 = vld [vmem:[#allocation2 + $0x18d8] sm:$0xff]
    %v8913 = vld [vmem:[#allocation2 + $0x18e0] sm:$0xff]
    %v8914 = vld [vmem:[#allocation2 + $0x18e8] sm:$0xff]
    %v8915 = vld [vmem:[#allocation2 + $0x18f0] sm:$0xff]
    %v8916 = vld [vmem:[#allocation2 + $0x18f8] sm:$0xff]
    %v8917 = vld [vmem:[#allocation2 + $0x1900] sm:$0xff]
    %v8918 = vld [vmem:[#allocation2 + $0x1908] sm:$0xff]
    %v8919 = vld [vmem:[#allocation2 + $0x1910] sm:$0xff]
    %v8920 = vld [vmem:[#allocation2 + $0x1918] sm:$0xff]
    %v8921 = vld [vmem:[#allocation2 + $0x1920] sm:$0xff]
    %v8922 = vld [vmem:[#allocation2 + $0x1928] sm:$0xff]
    %v8923 = vld [vmem:[#allocation2 + $0x1930] sm:$0xff]
    %v8924 = vld [vmem:[#allocation2 + $0x1938] sm:$0xff]
    %v8925 = vld [vmem:[#allocation2 + $0x1940] sm:$0xff]
    %v8926 = vld [vmem:[#allocation2 + $0x1948] sm:$0xff]
    %v8927 = vld [vmem:[#allocation2 + $0x1950] sm:$0xff]
    %v8928 = vld [vmem:[#allocation2 + $0x1958] sm:$0xff]
    %v8929 = vld [vmem:[#allocation2 + $0x1960] sm:$0xff]
    %v8930 = vld [vmem:[#allocation2 + $0x1968] sm:$0xff]
    %v8931 = vld [vmem:[#allocation2 + $0x1970] sm:$0xff]
    %v8932 = vld [vmem:[#allocation2 + $0x1978] sm:$0xff]
    %v8933 = vld [vmem:[#allocation2 + $0x1980] sm:$0xff]
    %v8934 = vld [vmem:[#allocation2 + $0x1988] sm:$0xff]
    %v8935 = vld [vmem:[#allocation2 + $0x1990] sm:$0xff]
    %v8936 = vld [vmem:[#allocation2 + $0x1998] sm:$0xff]
    %v8937 = vld [vmem:[#allocation2 + $0x19a0] sm:$0xff]
    %v8938 = vld [vmem:[#allocation2 + $0x19a8] sm:$0xff]
    %v8939 = vld [vmem:[#allocation2 + $0x19b0] sm:$0xff]
    %v8940 = vld [vmem:[#allocation2 + $0x19b8] sm:$0xff]
    %v8941 = vld [vmem:[#allocation2 + $0x19c0] sm:$0xff]
    %v8942 = vld [vmem:[#allocation2 + $0x19c8] sm:$0xff]
    %v8943 = vld [vmem:[#allocation2 + $0x19d0] sm:$0xff]
    %v8944 = vld [vmem:[#allocation2 + $0x19d8] sm:$0xff]
    %v8981 = vunpack.c.l.b16 %v8909
    %v8982 = vunpack.c.h.b16 %v8909
    %v8983 = vunpack.c.l.b16 %v8910
    %v8984 = vunpack.c.h.b16 %v8910
    %v8985 = vunpack.c.l.b16 %v8911
    %v8986 = vunpack.c.h.b16 %v8911
    %v8987 = vunpack.c.l.b16 %v8912
    %v8988 = vunpack.c.h.b16 %v8912
    %v8989 = vunpack.c.l.b16 %v8913
    %v8990 = vunpack.c.h.b16 %v8913
    %v8991 = vunpack.c.l.b16 %v8914
    %v8992 = vunpack.c.h.b16 %v8914
    %v8993 = vunpack.c.l.b16 %v8915
    %v8994 = vunpack.c.h.b16 %v8915
    %v8995 = vunpack.c.l.b16 %v8916
    %v8996 = vunpack.c.h.b16 %v8916
    %v8997 = vunpack.c.l.b16 %v8917
    %v8998 = vunpack.c.h.b16 %v8917
    %v8999 = vunpack.c.l.b16 %v8918
    %v9000 = vunpack.c.h.b16 %v8918
    %v9001 = vunpack.c.l.b16 %v8919
    %v9002 = vunpack.c.h.b16 %v8919
    %v9003 = vunpack.c.l.b16 %v8920
    %v9004 = vunpack.c.h.b16 %v8920
    %v9005 = vunpack.c.l.b16 %v8921
    %v9006 = vunpack.c.h.b16 %v8921
    %v9007 = vunpack.c.l.b16 %v8922
    %v9008 = vunpack.c.h.b16 %v8922
    %v9009 = vunpack.c.l.b16 %v8923
    %v9010 = vunpack.c.h.b16 %v8923
    %v9011 = vunpack.c.l.b16 %v8924
    %v9012 = vunpack.c.h.b16 %v8924
    %v9013 = vunpack.c.l.b16 %v8925
    %v9014 = vunpack.c.h.b16 %v8925
    %v9015 = vunpack.c.l.b16 %v8926
    %v9016 = vunpack.c.h.b16 %v8926
    %v9017 = vunpack.c.l.b16 %v8927
    %v9018 = vunpack.c.h.b16 %v8927
    %v9019 = vunpack.c.l.b16 %v8928
    %v9020 = vunpack.c.h.b16 %v8928
    %v9021 = vunpack.c.l.b16 %v8929
    %v9022 = vunpack.c.h.b16 %v8929
    %v9023 = vunpack.c.l.b16 %v8930
    %v9024 = vunpack.c.h.b16 %v8930
    %v9025 = vunpack.c.l.b16 %v8931
    %v9026 = vunpack.c.h.b16 %v8931
    %v9027 = vunpack.c.l.b16 %v8932
    %v9028 = vunpack.c.h.b16 %v8932
    %v9029 = vunpack.c.l.b16 %v8933
    %v9030 = vunpack.c.h.b16 %v8933
    %v9031 = vunpack.c.l.b16 %v8934
    %v9032 = vunpack.c.h.b16 %v8934
    %v9033 = vunpack.c.l.b16 %v8935
    %v9034 = vunpack.c.h.b16 %v8935
    %v9035 = vunpack.c.l.b16 %v8936
    %v9036 = vunpack.c.h.b16 %v8936
    %v9037 = vunpack.c.l.b16 %v8937
    %v9038 = vunpack.c.h.b16 %v8937
    %v9039 = vunpack.c.l.b16 %v8938
    %v9040 = vunpack.c.h.b16 %v8938
    %v9041 = vunpack.c.l.b16 %v8939
    %v9042 = vunpack.c.h.b16 %v8939
    %v9043 = vunpack.c.l.b16 %v8940
    %v9044 = vunpack.c.h.b16 %v8940
    %v9045 = vunpack.c.l.b16 %v8941
    %v9046 = vunpack.c.h.b16 %v8941
    %v9047 = vunpack.c.l.b16 %v8942
    %v9048 = vunpack.c.h.b16 %v8942
    %v9049 = vunpack.c.l.b16 %v8943
    %v9050 = vunpack.c.h.b16 %v8943
    %v9051 = vunpack.c.l.b16 %v8944
    %v9052 = vunpack.c.h.b16 %v8944
    %v9053 = vpack.c.b16 %v8985, %v8981
    %v9054 = vpack.c.b16 %v8986, %v8982
    %v9055 = vpack.c.b16 %v8987, %v8983
    %v9056 = vpack.c.b16 %v8988, %v8984
    %v9057 = vpack.c.b16 %v8993, %v8989
    %v9058 = vpack.c.b16 %v8994, %v8990
    %v9059 = vpack.c.b16 %v8995, %v8991
    %v9060 = vpack.c.b16 %v8996, %v8992
    %v9061 = vpack.c.b16 %v9001, %v8997
    %v9062 = vpack.c.b16 %v9002, %v8998
    %v9063 = vpack.c.b16 %v9003, %v8999
    %v9064 = vpack.c.b16 %v9004, %v9000
    %v9065 = vpack.c.b16 %v9009, %v9005
    %v9066 = vpack.c.b16 %v9010, %v9006
    %v9067 = vpack.c.b16 %v9011, %v9007
    %v9068 = vpack.c.b16 %v9012, %v9008
    %v9069 = vpack.c.b16 %v9017, %v9013
    %v9070 = vpack.c.b16 %v9018, %v9014
    %v9071 = vpack.c.b16 %v9019, %v9015
    %v9072 = vpack.c.b16 %v9020, %v9016
    %v9073 = vpack.c.b16 %v9025, %v9021
    %v9074 = vpack.c.b16 %v9026, %v9022
    %v9075 = vpack.c.b16 %v9027, %v9023
    %v9076 = vpack.c.b16 %v9028, %v9024
    %v9077 = vpack.c.b16 %v9033, %v9029
    %v9078 = vpack.c.b16 %v9034, %v9030
    %v9079 = vpack.c.b16 %v9035, %v9031
    %v9080 = vpack.c.b16 %v9036, %v9032
    %v9081 = vpack.c.b16 %v9041, %v9037
    %v9082 = vpack.c.b16 %v9042, %v9038
    %v9083 = vpack.c.b16 %v9043, %v9039
    %v9084 = vpack.c.b16 %v9044, %v9040
    %v9085 = vpack.c.b16 %v9049, %v9045
    %v9086 = vpack.c.b16 %v9050, %v9046
    %v9087 = vpack.c.b16 %v9051, %v9047
    %v9088 = vpack.c.b16 %v9052, %v9048
    %v9126 = vsel %vm894, %v8908, 0
    %9128 = vmatpush.bf16.msra.mxu0 %v9081
    %9129 = vmatpush.bf16.msra.mxu0 %v9077
    %9130 = vmatpush.bf16.msra.mxu0 %v9073
    %9131 = vmatpush.bf16.msra.mxu0 %v9069
    %9132 = vmatpush.bf16.msra.mxu0 %v9065
    %9133 = vmatpush.bf16.msra.mxu0 %v9061
    %9134 = vmatpush.bf16.msra.mxu0 %v9057
    %9135 = vmatpush.bf16.msra.mxu0 %v9053
    %9136 = vmatmul.bf16.gmra.mxu0 %v8907
    %v9137 = vpop.f32.mrf.mxu0
    %v9138 = vadd.f32 0.0, %v9137
    %v9139 = vpop.f32.mrf.mxu0
    %9140 = vdwg.mxu0
    %9141 = vmatpush.bf16.msra.mxu0 0
    %9142 = vmatpush.bf16.msra.mxu0 0
    %9143 = vmatpush.bf16.msra.mxu0 0
    %9144 = vmatpush.bf16.msra.mxu0 0
    %9145 = vmatpush.bf16.msra.mxu0 0
    %9146 = vmatpush.bf16.msra.mxu0 0
    %9147 = vmatpush.bf16.msra.mxu0 0
    %9148 = vmatpush.bf16.msra.mxu0 %v9085
    %9149 = vmatmul.bf16.gmra.mxu0 %v9126
    %v9150 = vpop.f32.mrf.mxu0
    %v9151 = vadd.f32 %v9138, %v9150
    %v9152 = vpop.f32.mrf.mxu0
    %9153 = vdwg.mxu0
    %9154 = vmatpush.bf16.msra.mxu0 %v9082
    %9155 = vmatpush.bf16.msra.mxu0 %v9078
    %9156 = vmatpush.bf16.msra.mxu0 %v9074
    %9157 = vmatpush.bf16.msra.mxu0 %v9070
    %9158 = vmatpush.bf16.msra.mxu0 %v9066
    %9159 = vmatpush.bf16.msra.mxu0 %v9062
    %9160 = vmatpush.bf16.msra.mxu0 %v9058
    %9161 = vmatpush.bf16.msra.mxu0 %v9054
    %9162 = vmatmul.bf16.gmra.mxu0 %v8907
    %v9163 = vpop.f32.mrf.mxu0
    %v9164 = vadd.f32 0.0, %v9163
    %v9165 = vpop.f32.mrf.mxu0
    %9166 = vdwg.mxu0
    %9167 = vmatpush.bf16.msra.mxu0 0
    %9168 = vmatpush.bf16.msra.mxu0 0
    %9169 = vmatpush.bf16.msra.mxu0 0
    %9170 = vmatpush.bf16.msra.mxu0 0
    %9171 = vmatpush.bf16.msra.mxu0 0
    %9172 = vmatpush.bf16.msra.mxu0 0
    %9173 = vmatpush.bf16.msra.mxu0 0
    %9174 = vmatpush.bf16.msra.mxu0 %v9086
    %9175 = vmatmul.bf16.gmra.mxu0 %v9126
    %v9176 = vpop.f32.mrf.mxu0
    %v9177 = vadd.f32 %v9164, %v9176
    %v9178 = vpop.f32.mrf.mxu0
    %9179 = vdwg.mxu0
    %9180 = vmatpush.bf16.msra.mxu0 %v9083
    %9181 = vmatpush.bf16.msra.mxu0 %v9079
    %9182 = vmatpush.bf16.msra.mxu0 %v9075
    %9183 = vmatpush.bf16.msra.mxu0 %v9071
    %9184 = vmatpush.bf16.msra.mxu0 %v9067
    %9185 = vmatpush.bf16.msra.mxu0 %v9063
    %9186 = vmatpush.bf16.msra.mxu0 %v9059
    %9187 = vmatpush.bf16.msra.mxu0 %v9055
    %9188 = vmatmul.bf16.gmra.mxu0 %v8907
    %v9189 = vpop.f32.mrf.mxu0
    %v9190 = vadd.f32 0.0, %v9189
    %v9191 = vpop.f32.mrf.mxu0
    %9192 = vdwg.mxu0
    %9193 = vmatpush.bf16.msra.mxu0 0
    %9194 = vmatpush.bf16.msra.mxu0 0
    %9195 = vmatpush.bf16.msra.mxu0 0
    %9196 = vmatpush.bf16.msra.mxu0 0
    %9197 = vmatpush.bf16.msra.mxu0 0
    %9198 = vmatpush.bf16.msra.mxu0 0
    %9199 = vmatpush.bf16.msra.mxu0 0
    %9200 = vmatpush.bf16.msra.mxu0 %v9087
    %9201 = vmatmul.bf16.gmra.mxu0 %v9126
    %v9202 = vpop.f32.mrf.mxu0
    %v9203 = vadd.f32 %v9190, %v9202
    %v9204 = vpop.f32.mrf.mxu0
    %9205 = vdwg.mxu0
    %9206 = vmatpush.bf16.msra.mxu0 %v9084
    %9207 = vmatpush.bf16.msra.mxu0 %v9080
    %9208 = vmatpush.bf16.msra.mxu0 %v9076
    %9209 = vmatpush.bf16.msra.mxu0 %v9072
    %9210 = vmatpush.bf16.msra.mxu0 %v9068
    %9211 = vmatpush.bf16.msra.mxu0 %v9064
    %9212 = vmatpush.bf16.msra.mxu0 %v9060
    %9213 = vmatpush.bf16.msra.mxu0 %v9056
    %9214 = vmatmul.bf16.gmra.mxu0 %v8907
    %v9215 = vpop.f32.mrf.mxu0
    %v9216 = vadd.f32 0.0, %v9215
    %v9217 = vpop.f32.mrf.mxu0
    %9218 = vdwg.mxu0
    %9219 = vmatpush.bf16.msra.mxu0 0
    %9220 = vmatpush.bf16.msra.mxu0 0
    %9221 = vmatpush.bf16.msra.mxu0 0
    %9222 = vmatpush.bf16.msra.mxu0 0
    %9223 = vmatpush.bf16.msra.mxu0 0
    %9224 = vmatpush.bf16.msra.mxu0 0
    %9225 = vmatpush.bf16.msra.mxu0 0
    %9226 = vmatpush.bf16.msra.mxu0 %v9088
    %9227 = vmatmul.bf16.gmra.mxu0 %v9126
    %v9228 = vpop.f32.mrf.mxu0
    %v9229 = vadd.f32 %v9216, %v9228
    %v9230 = vpop.f32.mrf.mxu0
    %9231 = vdwg.mxu0
    %v9232 = vadd.f32 %v8893, %v9151
    %v9233 = vadd.f32 %v8894, %v9177
    %v9234 = vadd.f32 %v8895, %v9203
    %v9235 = vadd.f32 %v8896, %v9229
    %v9236 = vrot.slane %v1272, 7
    %v9237 = vrot.slane %v1330, 7
    %v9240 = vrot.slane %v1388, 6
    %v9241 = vrot.slane %v1446, 6
    %v9244 = vsel %vm366, %v9236, %v9240
    %v9245 = vsel %vm366, %v9237, %v9241
    %v9246 = vpack.c.bf16 %v9244, %v9244
    %v9247 = vpack.c.bf16 %v9245, %v9245
    %v9248 = vld [vmem:[#allocation2 + $0x19e0] sm:$0xff]
    %v9249 = vld [vmem:[#allocation2 + $0x19e8] sm:$0xff]
    %v9250 = vld [vmem:[#allocation2 + $0x19f0] sm:$0xff]
    %v9251 = vld [vmem:[#allocation2 + $0x19f8] sm:$0xff]
    %v9252 = vld [vmem:[#allocation2 + $0x1a00] sm:$0xff]
    %v9253 = vld [vmem:[#allocation2 + $0x1a08] sm:$0xff]
    %v9254 = vld [vmem:[#allocation2 + $0x1a10] sm:$0xff]
    %v9255 = vld [vmem:[#allocation2 + $0x1a18] sm:$0xff]
    %v9256 = vld [vmem:[#allocation2 + $0x1a20] sm:$0xff]
    %v9257 = vld [vmem:[#allocation2 + $0x1a28] sm:$0xff]
    %v9258 = vld [vmem:[#allocation2 + $0x1a30] sm:$0xff]
    %v9259 = vld [vmem:[#allocation2 + $0x1a38] sm:$0xff]
    %v9260 = vld [vmem:[#allocation2 + $0x1a40] sm:$0xff]
    %v9261 = vld [vmem:[#allocation2 + $0x1a48] sm:$0xff]
    %v9262 = vld [vmem:[#allocation2 + $0x1a50] sm:$0xff]
    %v9263 = vld [vmem:[#allocation2 + $0x1a58] sm:$0xff]
    %v9264 = vld [vmem:[#allocation2 + $0x1a60] sm:$0xff]
    %v9265 = vld [vmem:[#allocation2 + $0x1a68] sm:$0xff]
    %v9266 = vld [vmem:[#allocation2 + $0x1a70] sm:$0xff]
    %v9267 = vld [vmem:[#allocation2 + $0x1a78] sm:$0xff]
    %v9268 = vld [vmem:[#allocation2 + $0x1a80] sm:$0xff]
    %v9269 = vld [vmem:[#allocation2 + $0x1a88] sm:$0xff]
    %v9270 = vld [vmem:[#allocation2 + $0x1a90] sm:$0xff]
    %v9271 = vld [vmem:[#allocation2 + $0x1a98] sm:$0xff]
    %v9272 = vld [vmem:[#allocation2 + $0x1aa0] sm:$0xff]
    %v9273 = vld [vmem:[#allocation2 + $0x1aa8] sm:$0xff]
    %v9274 = vld [vmem:[#allocation2 + $0x1ab0] sm:$0xff]
    %v9275 = vld [vmem:[#allocation2 + $0x1ab8] sm:$0xff]
    %v9276 = vld [vmem:[#allocation2 + $0x1ac0] sm:$0xff]
    %v9277 = vld [vmem:[#allocation2 + $0x1ac8] sm:$0xff]
    %v9278 = vld [vmem:[#allocation2 + $0x1ad0] sm:$0xff]
    %v9279 = vld [vmem:[#allocation2 + $0x1ad8] sm:$0xff]
    %v9280 = vld [vmem:[#allocation2 + $0x1ae0] sm:$0xff]
    %v9281 = vld [vmem:[#allocation2 + $0x1ae8] sm:$0xff]
    %v9282 = vld [vmem:[#allocation2 + $0x1af0] sm:$0xff]
    %v9283 = vld [vmem:[#allocation2 + $0x1af8] sm:$0xff]
    %v9320 = vunpack.c.l.b16 %v9248
    %v9321 = vunpack.c.h.b16 %v9248
    %v9322 = vunpack.c.l.b16 %v9249
    %v9323 = vunpack.c.h.b16 %v9249
    %v9324 = vunpack.c.l.b16 %v9250
    %v9325 = vunpack.c.h.b16 %v9250
    %v9326 = vunpack.c.l.b16 %v9251
    %v9327 = vunpack.c.h.b16 %v9251
    %v9328 = vunpack.c.l.b16 %v9252
    %v9329 = vunpack.c.h.b16 %v9252
    %v9330 = vunpack.c.l.b16 %v9253
    %v9331 = vunpack.c.h.b16 %v9253
    %v9332 = vunpack.c.l.b16 %v9254
    %v9333 = vunpack.c.h.b16 %v9254
    %v9334 = vunpack.c.l.b16 %v9255
    %v9335 = vunpack.c.h.b16 %v9255
    %v9336 = vunpack.c.l.b16 %v9256
    %v9337 = vunpack.c.h.b16 %v9256
    %v9338 = vunpack.c.l.b16 %v9257
    %v9339 = vunpack.c.h.b16 %v9257
    %v9340 = vunpack.c.l.b16 %v9258
    %v9341 = vunpack.c.h.b16 %v9258
    %v9342 = vunpack.c.l.b16 %v9259
    %v9343 = vunpack.c.h.b16 %v9259
    %v9344 = vunpack.c.l.b16 %v9260
    %v9345 = vunpack.c.h.b16 %v9260
    %v9346 = vunpack.c.l.b16 %v9261
    %v9347 = vunpack.c.h.b16 %v9261
    %v9348 = vunpack.c.l.b16 %v9262
    %v9349 = vunpack.c.h.b16 %v9262
    %v9350 = vunpack.c.l.b16 %v9263
    %v9351 = vunpack.c.h.b16 %v9263
    %v9352 = vunpack.c.l.b16 %v9264
    %v9353 = vunpack.c.h.b16 %v9264
    %v9354 = vunpack.c.l.b16 %v9265
    %v9355 = vunpack.c.h.b16 %v9265
    %v9356 = vunpack.c.l.b16 %v9266
    %v9357 = vunpack.c.h.b16 %v9266
    %v9358 = vunpack.c.l.b16 %v9267
    %v9359 = vunpack.c.h.b16 %v9267
    %v9360 = vunpack.c.l.b16 %v9268
    %v9361 = vunpack.c.h.b16 %v9268
    %v9362 = vunpack.c.l.b16 %v9269
    %v9363 = vunpack.c.h.b16 %v9269
    %v9364 = vunpack.c.l.b16 %v9270
    %v9365 = vunpack.c.h.b16 %v9270
    %v9366 = vunpack.c.l.b16 %v9271
    %v9367 = vunpack.c.h.b16 %v9271
    %v9368 = vunpack.c.l.b16 %v9272
    %v9369 = vunpack.c.h.b16 %v9272
    %v9370 = vunpack.c.l.b16 %v9273
    %v9371 = vunpack.c.h.b16 %v9273
    %v9372 = vunpack.c.l.b16 %v9274
    %v9373 = vunpack.c.h.b16 %v9274
    %v9374 = vunpack.c.l.b16 %v9275
    %v9375 = vunpack.c.h.b16 %v9275
    %v9376 = vunpack.c.l.b16 %v9276
    %v9377 = vunpack.c.h.b16 %v9276
    %v9378 = vunpack.c.l.b16 %v9277
    %v9379 = vunpack.c.h.b16 %v9277
    %v9380 = vunpack.c.l.b16 %v9278
    %v9381 = vunpack.c.h.b16 %v9278
    %v9382 = vunpack.c.l.b16 %v9279
    %v9383 = vunpack.c.h.b16 %v9279
    %v9384 = vunpack.c.l.b16 %v9280
    %v9385 = vunpack.c.h.b16 %v9280
    %v9386 = vunpack.c.l.b16 %v9281
    %v9387 = vunpack.c.h.b16 %v9281
    %v9388 = vunpack.c.l.b16 %v9282
    %v9389 = vunpack.c.h.b16 %v9282
    %v9390 = vunpack.c.l.b16 %v9283
    %v9391 = vunpack.c.h.b16 %v9283
    %v9392 = vpack.c.b16 %v9324, %v9320
    %v9393 = vpack.c.b16 %v9325, %v9321
    %v9394 = vpack.c.b16 %v9326, %v9322
    %v9395 = vpack.c.b16 %v9327, %v9323
    %v9396 = vpack.c.b16 %v9332, %v9328
    %v9397 = vpack.c.b16 %v9333, %v9329
    %v9398 = vpack.c.b16 %v9334, %v9330
    %v9399 = vpack.c.b16 %v9335, %v9331
    %v9400 = vpack.c.b16 %v9340, %v9336
    %v9401 = vpack.c.b16 %v9341, %v9337
    %v9402 = vpack.c.b16 %v9342, %v9338
    %v9403 = vpack.c.b16 %v9343, %v9339
    %v9404 = vpack.c.b16 %v9348, %v9344
    %v9405 = vpack.c.b16 %v9349, %v9345
    %v9406 = vpack.c.b16 %v9350, %v9346
    %v9407 = vpack.c.b16 %v9351, %v9347
    %v9408 = vpack.c.b16 %v9356, %v9352
    %v9409 = vpack.c.b16 %v9357, %v9353
    %v9410 = vpack.c.b16 %v9358, %v9354
    %v9411 = vpack.c.b16 %v9359, %v9355
    %v9412 = vpack.c.b16 %v9364, %v9360
    %v9413 = vpack.c.b16 %v9365, %v9361
    %v9414 = vpack.c.b16 %v9366, %v9362
    %v9415 = vpack.c.b16 %v9367, %v9363
    %v9416 = vpack.c.b16 %v9372, %v9368
    %v9417 = vpack.c.b16 %v9373, %v9369
    %v9418 = vpack.c.b16 %v9374, %v9370
    %v9419 = vpack.c.b16 %v9375, %v9371
    %v9420 = vpack.c.b16 %v9380, %v9376
    %v9421 = vpack.c.b16 %v9381, %v9377
    %v9422 = vpack.c.b16 %v9382, %v9378
    %v9423 = vpack.c.b16 %v9383, %v9379
    %v9424 = vpack.c.b16 %v9388, %v9384
    %v9425 = vpack.c.b16 %v9389, %v9385
    %v9426 = vpack.c.b16 %v9390, %v9386
    %v9427 = vpack.c.b16 %v9391, %v9387
    %v9465 = vsel %vm894, %v9247, 0
    %9467 = vmatpush.bf16.msra.mxu0 %v9420
    %9468 = vmatpush.bf16.msra.mxu0 %v9416
    %9469 = vmatpush.bf16.msra.mxu0 %v9412
    %9470 = vmatpush.bf16.msra.mxu0 %v9408
    %9471 = vmatpush.bf16.msra.mxu0 %v9404
    %9472 = vmatpush.bf16.msra.mxu0 %v9400
    %9473 = vmatpush.bf16.msra.mxu0 %v9396
    %9474 = vmatpush.bf16.msra.mxu0 %v9392
    %9475 = vmatmul.bf16.gmra.mxu0 %v9246
    %v9476 = vpop.f32.mrf.mxu0
    %v9477 = vadd.f32 0.0, %v9476
    %v9478 = vpop.f32.mrf.mxu0
    %9479 = vdwg.mxu0
    %9480 = vmatpush.bf16.msra.mxu0 0
    %9481 = vmatpush.bf16.msra.mxu0 0
    %9482 = vmatpush.bf16.msra.mxu0 0
    %9483 = vmatpush.bf16.msra.mxu0 0
    %9484 = vmatpush.bf16.msra.mxu0 0
    %9485 = vmatpush.bf16.msra.mxu0 0
    %9486 = vmatpush.bf16.msra.mxu0 0
    %9487 = vmatpush.bf16.msra.mxu0 %v9424
    %9488 = vmatmul.bf16.gmra.mxu0 %v9465
    %v9489 = vpop.f32.mrf.mxu0
    %v9490 = vadd.f32 %v9477, %v9489
    %v9491 = vpop.f32.mrf.mxu0
    %9492 = vdwg.mxu0
    %9493 = vmatpush.bf16.msra.mxu0 %v9421
    %9494 = vmatpush.bf16.msra.mxu0 %v9417
    %9495 = vmatpush.bf16.msra.mxu0 %v9413
    %9496 = vmatpush.bf16.msra.mxu0 %v9409
    %9497 = vmatpush.bf16.msra.mxu0 %v9405
    %9498 = vmatpush.bf16.msra.mxu0 %v9401
    %9499 = vmatpush.bf16.msra.mxu0 %v9397
    %9500 = vmatpush.bf16.msra.mxu0 %v9393
    %9501 = vmatmul.bf16.gmra.mxu0 %v9246
    %v9502 = vpop.f32.mrf.mxu0
    %v9503 = vadd.f32 0.0, %v9502
    %v9504 = vpop.f32.mrf.mxu0
    %9505 = vdwg.mxu0
    %9506 = vmatpush.bf16.msra.mxu0 0
    %9507 = vmatpush.bf16.msra.mxu0 0
    %9508 = vmatpush.bf16.msra.mxu0 0
    %9509 = vmatpush.bf16.msra.mxu0 0
    %9510 = vmatpush.bf16.msra.mxu0 0
    %9511 = vmatpush.bf16.msra.mxu0 0
    %9512 = vmatpush.bf16.msra.mxu0 0
    %9513 = vmatpush.bf16.msra.mxu0 %v9425
    %9514 = vmatmul.bf16.gmra.mxu0 %v9465
    %v9515 = vpop.f32.mrf.mxu0
    %v9516 = vadd.f32 %v9503, %v9515
    %v9517 = vpop.f32.mrf.mxu0
    %9518 = vdwg.mxu0
    %9519 = vmatpush.bf16.msra.mxu0 %v9422
    %9520 = vmatpush.bf16.msra.mxu0 %v9418
    %9521 = vmatpush.bf16.msra.mxu0 %v9414
    %9522 = vmatpush.bf16.msra.mxu0 %v9410
    %9523 = vmatpush.bf16.msra.mxu0 %v9406
    %9524 = vmatpush.bf16.msra.mxu0 %v9402
    %9525 = vmatpush.bf16.msra.mxu0 %v9398
    %9526 = vmatpush.bf16.msra.mxu0 %v9394
    %9527 = vmatmul.bf16.gmra.mxu0 %v9246
    %v9528 = vpop.f32.mrf.mxu0
    %v9529 = vadd.f32 0.0, %v9528
    %v9530 = vpop.f32.mrf.mxu0
    %9531 = vdwg.mxu0
    %9532 = vmatpush.bf16.msra.mxu0 0
    %9533 = vmatpush.bf16.msra.mxu0 0
    %9534 = vmatpush.bf16.msra.mxu0 0
    %9535 = vmatpush.bf16.msra.mxu0 0
    %9536 = vmatpush.bf16.msra.mxu0 0
    %9537 = vmatpush.bf16.msra.mxu0 0
    %9538 = vmatpush.bf16.msra.mxu0 0
    %9539 = vmatpush.bf16.msra.mxu0 %v9426
    %9540 = vmatmul.bf16.gmra.mxu0 %v9465
    %v9541 = vpop.f32.mrf.mxu0
    %v9542 = vadd.f32 %v9529, %v9541
    %v9543 = vpop.f32.mrf.mxu0
    %9544 = vdwg.mxu0
    %9545 = vmatpush.bf16.msra.mxu0 %v9423
    %9546 = vmatpush.bf16.msra.mxu0 %v9419
    %9547 = vmatpush.bf16.msra.mxu0 %v9415
    %9548 = vmatpush.bf16.msra.mxu0 %v9411
    %9549 = vmatpush.bf16.msra.mxu0 %v9407
    %9550 = vmatpush.bf16.msra.mxu0 %v9403
    %9551 = vmatpush.bf16.msra.mxu0 %v9399
    %9552 = vmatpush.bf16.msra.mxu0 %v9395
    %9553 = vmatmul.bf16.gmra.mxu0 %v9246
    %v9554 = vpop.f32.mrf.mxu0
    %v9555 = vadd.f32 0.0, %v9554
    %v9556 = vpop.f32.mrf.mxu0
    %9557 = vdwg.mxu0
    %9558 = vmatpush.bf16.msra.mxu0 0
    %9559 = vmatpush.bf16.msra.mxu0 0
    %9560 = vmatpush.bf16.msra.mxu0 0
    %9561 = vmatpush.bf16.msra.mxu0 0
    %9562 = vmatpush.bf16.msra.mxu0 0
    %9563 = vmatpush.bf16.msra.mxu0 0
    %9564 = vmatpush.bf16.msra.mxu0 0
    %9565 = vmatpush.bf16.msra.mxu0 %v9427
    %9566 = vmatmul.bf16.gmra.mxu0 %v9465
    %v9567 = vpop.f32.mrf.mxu0
    %v9568 = vadd.f32 %v9555, %v9567
    %v9569 = vpop.f32.mrf.mxu0
    %9570 = vdwg.mxu0
    %v9571 = vadd.f32 %v9232, %v9490
    %v9572 = vadd.f32 %v9233, %v9516
    %v9573 = vadd.f32 %v9234, %v9542
    %v9574 = vadd.f32 %v9235, %v9568
    %s9575 = sshll.u32 %s1452, 4
    %9576 = dma.done %s160, %s9575
    %v9579 = vrot.slane %v1391, 7
    %v9580 = vrot.slane %v1449, 7
    %v9583 = vsel %vm366, %v1275, %v9579
    %v9584 = vsel %vm366, %v1333, %v9580
    %v9585 = vpack.c.bf16 %v9583, %v9583
    %v9586 = vpack.c.bf16 %v9584, %v9584
    %v9587 = vld [vmem:[#allocation2 + $0x1b00] sm:$0xff]
    %v9588 = vld [vmem:[#allocation2 + $0x1b08] sm:$0xff]
    %v9589 = vld [vmem:[#allocation2 + $0x1b10] sm:$0xff]
    %v9590 = vld [vmem:[#allocation2 + $0x1b18] sm:$0xff]
    %v9591 = vld [vmem:[#allocation2 + $0x1b20] sm:$0xff]
    %v9592 = vld [vmem:[#allocation2 + $0x1b28] sm:$0xff]
    %v9593 = vld [vmem:[#allocation2 + $0x1b30] sm:$0xff]
    %v9594 = vld [vmem:[#allocation2 + $0x1b38] sm:$0xff]
    %v9595 = vld [vmem:[#allocation2 + $0x1b40] sm:$0xff]
    %v9596 = vld [vmem:[#allocation2 + $0x1b48] sm:$0xff]
    %v9597 = vld [vmem:[#allocation2 + $0x1b50] sm:$0xff]
    %v9598 = vld [vmem:[#allocation2 + $0x1b58] sm:$0xff]
    %v9599 = vld [vmem:[#allocation2 + $0x1b60] sm:$0xff]
    %v9600 = vld [vmem:[#allocation2 + $0x1b68] sm:$0xff]
    %v9601 = vld [vmem:[#allocation2 + $0x1b70] sm:$0xff]
    %v9602 = vld [vmem:[#allocation2 + $0x1b78] sm:$0xff]
    %v9603 = vld [vmem:[#allocation2 + $0x1b80] sm:$0xff]
    %v9604 = vld [vmem:[#allocation2 + $0x1b88] sm:$0xff]
    %v9605 = vld [vmem:[#allocation2 + $0x1b90] sm:$0xff]
    %v9606 = vld [vmem:[#allocation2 + $0x1b98] sm:$0xff]
    %v9607 = vld [vmem:[#allocation2 + $0x1ba0] sm:$0xff]
    %v9608 = vld [vmem:[#allocation2 + $0x1ba8] sm:$0xff]
    %v9609 = vld [vmem:[#allocation2 + $0x1bb0] sm:$0xff]
    %v9610 = vld [vmem:[#allocation2 + $0x1bb8] sm:$0xff]
    %v9611 = vld [vmem:[#allocation2 + $0x1bc0] sm:$0xff]
    %v9612 = vld [vmem:[#allocation2 + $0x1bc8] sm:$0xff]
    %v9613 = vld [vmem:[#allocation2 + $0x1bd0] sm:$0xff]
    %v9614 = vld [vmem:[#allocation2 + $0x1bd8] sm:$0xff]
    %v9615 = vld [vmem:[#allocation2 + $0x1be0] sm:$0xff]
    %v9616 = vld [vmem:[#allocation2 + $0x1be8] sm:$0xff]
    %v9617 = vld [vmem:[#allocation2 + $0x1bf0] sm:$0xff]
    %v9618 = vld [vmem:[#allocation2 + $0x1bf8] sm:$0xff]
    %v9619 = vld [vmem:[#allocation2 + $0x1c00] sm:$0xff]
    %v9620 = vld [vmem:[#allocation2 + $0x1c08] sm:$0xff]
    %v9621 = vld [vmem:[#allocation2 + $0x1c10] sm:$0xff]
    %v9622 = vld [vmem:[#allocation2 + $0x1c18] sm:$0xff]
    %v9659 = vunpack.c.l.b16 %v9587
    %v9660 = vunpack.c.h.b16 %v9587
    %v9661 = vunpack.c.l.b16 %v9588
    %v9662 = vunpack.c.h.b16 %v9588
    %v9663 = vunpack.c.l.b16 %v9589
    %v9664 = vunpack.c.h.b16 %v9589
    %v9665 = vunpack.c.l.b16 %v9590
    %v9666 = vunpack.c.h.b16 %v9590
    %v9667 = vunpack.c.l.b16 %v9591
    %v9668 = vunpack.c.h.b16 %v9591
    %v9669 = vunpack.c.l.b16 %v9592
    %v9670 = vunpack.c.h.b16 %v9592
    %v9671 = vunpack.c.l.b16 %v9593
    %v9672 = vunpack.c.h.b16 %v9593
    %v9673 = vunpack.c.l.b16 %v9594
    %v9674 = vunpack.c.h.b16 %v9594
    %v9675 = vunpack.c.l.b16 %v9595
    %v9676 = vunpack.c.h.b16 %v9595
    %v9677 = vunpack.c.l.b16 %v9596
    %v9678 = vunpack.c.h.b16 %v9596
    %v9679 = vunpack.c.l.b16 %v9597
    %v9680 = vunpack.c.h.b16 %v9597
    %v9681 = vunpack.c.l.b16 %v9598
    %v9682 = vunpack.c.h.b16 %v9598
    %v9683 = vunpack.c.l.b16 %v9599
    %v9684 = vunpack.c.h.b16 %v9599
    %v9685 = vunpack.c.l.b16 %v9600
    %v9686 = vunpack.c.h.b16 %v9600
    %v9687 = vunpack.c.l.b16 %v9601
    %v9688 = vunpack.c.h.b16 %v9601
    %v9689 = vunpack.c.l.b16 %v9602
    %v9690 = vunpack.c.h.b16 %v9602
    %v9691 = vunpack.c.l.b16 %v9603
    %v9692 = vunpack.c.h.b16 %v9603
    %v9693 = vunpack.c.l.b16 %v9604
    %v9694 = vunpack.c.h.b16 %v9604
    %v9695 = vunpack.c.l.b16 %v9605
    %v9696 = vunpack.c.h.b16 %v9605
    %v9697 = vunpack.c.l.b16 %v9606
    %v9698 = vunpack.c.h.b16 %v9606
    %v9699 = vunpack.c.l.b16 %v9607
    %v9700 = vunpack.c.h.b16 %v9607
    %v9701 = vunpack.c.l.b16 %v9608
    %v9702 = vunpack.c.h.b16 %v9608
    %v9703 = vunpack.c.l.b16 %v9609
    %v9704 = vunpack.c.h.b16 %v9609
    %v9705 = vunpack.c.l.b16 %v9610
    %v9706 = vunpack.c.h.b16 %v9610
    %v9707 = vunpack.c.l.b16 %v9611
    %v9708 = vunpack.c.h.b16 %v9611
    %v9709 = vunpack.c.l.b16 %v9612
    %v9710 = vunpack.c.h.b16 %v9612
    %v9711 = vunpack.c.l.b16 %v9613
    %v9712 = vunpack.c.h.b16 %v9613
    %v9713 = vunpack.c.l.b16 %v9614
    %v9714 = vunpack.c.h.b16 %v9614
    %v9715 = vunpack.c.l.b16 %v9615
    %v9716 = vunpack.c.h.b16 %v9615
    %v9717 = vunpack.c.l.b16 %v9616
    %v9718 = vunpack.c.h.b16 %v9616
    %v9719 = vunpack.c.l.b16 %v9617
    %v9720 = vunpack.c.h.b16 %v9617
    %v9721 = vunpack.c.l.b16 %v9618
    %v9722 = vunpack.c.h.b16 %v9618
    %v9723 = vunpack.c.l.b16 %v9619
    %v9724 = vunpack.c.h.b16 %v9619
    %v9725 = vunpack.c.l.b16 %v9620
    %v9726 = vunpack.c.h.b16 %v9620
    %v9727 = vunpack.c.l.b16 %v9621
    %v9728 = vunpack.c.h.b16 %v9621
    %v9729 = vunpack.c.l.b16 %v9622
    %v9730 = vunpack.c.h.b16 %v9622
    %v9731 = vpack.c.b16 %v9663, %v9659
    %v9732 = vpack.c.b16 %v9664, %v9660
    %v9733 = vpack.c.b16 %v9665, %v9661
    %v9734 = vpack.c.b16 %v9666, %v9662
    %v9735 = vpack.c.b16 %v9671, %v9667
    %v9736 = vpack.c.b16 %v9672, %v9668
    %v9737 = vpack.c.b16 %v9673, %v9669
    %v9738 = vpack.c.b16 %v9674, %v9670
    %v9739 = vpack.c.b16 %v9679, %v9675
    %v9740 = vpack.c.b16 %v9680, %v9676
    %v9741 = vpack.c.b16 %v9681, %v9677
    %v9742 = vpack.c.b16 %v9682, %v9678
    %v9743 = vpack.c.b16 %v9687, %v9683
    %v9744 = vpack.c.b16 %v9688, %v9684
    %v9745 = vpack.c.b16 %v9689, %v9685
    %v9746 = vpack.c.b16 %v9690, %v9686
    %v9747 = vpack.c.b16 %v9695, %v9691
    %v9748 = vpack.c.b16 %v9696, %v9692
    %v9749 = vpack.c.b16 %v9697, %v9693
    %v9750 = vpack.c.b16 %v9698, %v9694
    %v9751 = vpack.c.b16 %v9703, %v9699
    %v9752 = vpack.c.b16 %v9704, %v9700
    %v9753 = vpack.c.b16 %v9705, %v9701
    %v9754 = vpack.c.b16 %v9706, %v9702
    %v9755 = vpack.c.b16 %v9711, %v9707
    %v9756 = vpack.c.b16 %v9712, %v9708
    %v9757 = vpack.c.b16 %v9713, %v9709
    %v9758 = vpack.c.b16 %v9714, %v9710
    %v9759 = vpack.c.b16 %v9719, %v9715
    %v9760 = vpack.c.b16 %v9720, %v9716
    %v9761 = vpack.c.b16 %v9721, %v9717
    %v9762 = vpack.c.b16 %v9722, %v9718
    %v9763 = vpack.c.b16 %v9727, %v9723
    %v9764 = vpack.c.b16 %v9728, %v9724
    %v9765 = vpack.c.b16 %v9729, %v9725
    %v9766 = vpack.c.b16 %v9730, %v9726
    %v9804 = vsel %vm894, %v9586, 0
    %9806 = vmatpush.bf16.msra.mxu0 %v9759
    %9807 = vmatpush.bf16.msra.mxu0 %v9755
    %9808 = vmatpush.bf16.msra.mxu0 %v9751
    %9809 = vmatpush.bf16.msra.mxu0 %v9747
    %9810 = vmatpush.bf16.msra.mxu0 %v9743
    %9811 = vmatpush.bf16.msra.mxu0 %v9739
    %9812 = vmatpush.bf16.msra.mxu0 %v9735
    %9813 = vmatpush.bf16.msra.mxu0 %v9731
    %9814 = vmatmul.bf16.gmra.mxu0 %v9585
    %v9815 = vpop.f32.mrf.mxu0
    %v9816 = vadd.f32 0.0, %v9815
    %v9817 = vpop.f32.mrf.mxu0
    %9818 = vdwg.mxu0
    %9819 = vmatpush.bf16.msra.mxu0 0
    %9820 = vmatpush.bf16.msra.mxu0 0
    %9821 = vmatpush.bf16.msra.mxu0 0
    %9822 = vmatpush.bf16.msra.mxu0 0
    %9823 = vmatpush.bf16.msra.mxu0 0
    %9824 = vmatpush.bf16.msra.mxu0 0
    %9825 = vmatpush.bf16.msra.mxu0 0
    %9826 = vmatpush.bf16.msra.mxu0 %v9763
    %9827 = vmatmul.bf16.gmra.mxu0 %v9804
    %v9828 = vpop.f32.mrf.mxu0
    %v9829 = vadd.f32 %v9816, %v9828
    %v9830 = vpop.f32.mrf.mxu0
    %9831 = vdwg.mxu0
    %9832 = vmatpush.bf16.msra.mxu0 %v9760
    %9833 = vmatpush.bf16.msra.mxu0 %v9756
    %9834 = vmatpush.bf16.msra.mxu0 %v9752
    %9835 = vmatpush.bf16.msra.mxu0 %v9748
    %9836 = vmatpush.bf16.msra.mxu0 %v9744
    %9837 = vmatpush.bf16.msra.mxu0 %v9740
    %9838 = vmatpush.bf16.msra.mxu0 %v9736
    %9839 = vmatpush.bf16.msra.mxu0 %v9732
    %9840 = vmatmul.bf16.gmra.mxu0 %v9585
    %v9841 = vpop.f32.mrf.mxu0
    %v9842 = vadd.f32 0.0, %v9841
    %v9843 = vpop.f32.mrf.mxu0
    %9844 = vdwg.mxu0
    %9845 = vmatpush.bf16.msra.mxu0 0
    %9846 = vmatpush.bf16.msra.mxu0 0
    %9847 = vmatpush.bf16.msra.mxu0 0
    %9848 = vmatpush.bf16.msra.mxu0 0
    %9849 = vmatpush.bf16.msra.mxu0 0
    %9850 = vmatpush.bf16.msra.mxu0 0
    %9851 = vmatpush.bf16.msra.mxu0 0
    %9852 = vmatpush.bf16.msra.mxu0 %v9764
    %9853 = vmatmul.bf16.gmra.mxu0 %v9804
    %v9854 = vpop.f32.mrf.mxu0
    %v9855 = vadd.f32 %v9842, %v9854
    %v9856 = vpop.f32.mrf.mxu0
    %9857 = vdwg.mxu0
    %9858 = vmatpush.bf16.msra.mxu0 %v9761
    %9859 = vmatpush.bf16.msra.mxu0 %v9757
    %9860 = vmatpush.bf16.msra.mxu0 %v9753
    %9861 = vmatpush.bf16.msra.mxu0 %v9749
    %9862 = vmatpush.bf16.msra.mxu0 %v9745
    %9863 = vmatpush.bf16.msra.mxu0 %v9741
    %9864 = vmatpush.bf16.msra.mxu0 %v9737
    %9865 = vmatpush.bf16.msra.mxu0 %v9733
    %9866 = vmatmul.bf16.gmra.mxu0 %v9585
    %v9867 = vpop.f32.mrf.mxu0
    %v9868 = vadd.f32 0.0, %v9867
    %v9869 = vpop.f32.mrf.mxu0
    %9870 = vdwg.mxu0
    %9871 = vmatpush.bf16.msra.mxu0 0
    %9872 = vmatpush.bf16.msra.mxu0 0
    %9873 = vmatpush.bf16.msra.mxu0 0
    %9874 = vmatpush.bf16.msra.mxu0 0
    %9875 = vmatpush.bf16.msra.mxu0 0
    %9876 = vmatpush.bf16.msra.mxu0 0
    %9877 = vmatpush.bf16.msra.mxu0 0
    %9878 = vmatpush.bf16.msra.mxu0 %v9765
    %9879 = vmatmul.bf16.gmra.mxu0 %v9804
    %v9880 = vpop.f32.mrf.mxu0
    %v9881 = vadd.f32 %v9868, %v9880
    %v9882 = vpop.f32.mrf.mxu0
    %9883 = vdwg.mxu0
    %9884 = vmatpush.bf16.msra.mxu0 %v9762
    %9885 = vmatpush.bf16.msra.mxu0 %v9758
    %9886 = vmatpush.bf16.msra.mxu0 %v9754
    %9887 = vmatpush.bf16.msra.mxu0 %v9750
    %9888 = vmatpush.bf16.msra.mxu0 %v9746
    %9889 = vmatpush.bf16.msra.mxu0 %v9742
    %9890 = vmatpush.bf16.msra.mxu0 %v9738
    %9891 = vmatpush.bf16.msra.mxu0 %v9734
    %9892 = vmatmul.bf16.gmra.mxu0 %v9585
    %v9893 = vpop.f32.mrf.mxu0
    %v9894 = vadd.f32 0.0, %v9893
    %v9895 = vpop.f32.mrf.mxu0
    %9896 = vdwg.mxu0
    %9897 = vmatpush.bf16.msra.mxu0 0
    %9898 = vmatpush.bf16.msra.mxu0 0
    %9899 = vmatpush.bf16.msra.mxu0 0
    %9900 = vmatpush.bf16.msra.mxu0 0
    %9901 = vmatpush.bf16.msra.mxu0 0
    %9902 = vmatpush.bf16.msra.mxu0 0
    %9903 = vmatpush.bf16.msra.mxu0 0
    %9904 = vmatpush.bf16.msra.mxu0 %v9766
    %9905 = vmatmul.bf16.gmra.mxu0 %v9804
    %v9906 = vpop.f32.mrf.mxu0
    %v9907 = vadd.f32 %v9894, %v9906
    %v9908 = vpop.f32.mrf.mxu0
    %9909 = vdwg.mxu0
    %v9910 = vadd.f32 %v9571, %v9829
    %v9911 = vadd.f32 %v9572, %v9855
    %v9912 = vadd.f32 %v9573, %v9881
    %v9913 = vadd.f32 %v9574, %v9907
    %v9916 = vrot.slane %v1275, 1
    %v9917 = vrot.slane %v1333, 1
    %v9920 = vsel %vm366, %v9916, %v1391
    %v9921 = vsel %vm366, %v9917, %v1449
    %v9922 = vpack.c.bf16 %v9920, %v9920
    %v9923 = vpack.c.bf16 %v9921, %v9921
    %v9924 = vld [vmem:[#allocation2 + $0x1c20] sm:$0xff]
    %v9925 = vld [vmem:[#allocation2 + $0x1c28] sm:$0xff]
    %v9926 = vld [vmem:[#allocation2 + $0x1c30] sm:$0xff]
    %v9927 = vld [vmem:[#allocation2 + $0x1c38] sm:$0xff]
    %v9928 = vld [vmem:[#allocation2 + $0x1c40] sm:$0xff]
    %v9929 = vld [vmem:[#allocation2 + $0x1c48] sm:$0xff]
    %v9930 = vld [vmem:[#allocation2 + $0x1c50] sm:$0xff]
    %v9931 = vld [vmem:[#allocation2 + $0x1c58] sm:$0xff]
    %v9932 = vld [vmem:[#allocation2 + $0x1c60] sm:$0xff]
    %v9933 = vld [vmem:[#allocation2 + $0x1c68] sm:$0xff]
    %v9934 = vld [vmem:[#allocation2 + $0x1c70] sm:$0xff]
    %v9935 = vld [vmem:[#allocation2 + $0x1c78] sm:$0xff]
    %v9936 = vld [vmem:[#allocation2 + $0x1c80] sm:$0xff]
    %v9937 = vld [vmem:[#allocation2 + $0x1c88] sm:$0xff]
    %v9938 = vld [vmem:[#allocation2 + $0x1c90] sm:$0xff]
    %v9939 = vld [vmem:[#allocation2 + $0x1c98] sm:$0xff]
    %v9940 = vld [vmem:[#allocation2 + $0x1ca0] sm:$0xff]
    %v9941 = vld [vmem:[#allocation2 + $0x1ca8] sm:$0xff]
    %v9942 = vld [vmem:[#allocation2 + $0x1cb0] sm:$0xff]
    %v9943 = vld [vmem:[#allocation2 + $0x1cb8] sm:$0xff]
    %v9944 = vld [vmem:[#allocation2 + $0x1cc0] sm:$0xff]
    %v9945 = vld [vmem:[#allocation2 + $0x1cc8] sm:$0xff]
    %v9946 = vld [vmem:[#allocation2 + $0x1cd0] sm:$0xff]
    %v9947 = vld [vmem:[#allocation2 + $0x1cd8] sm:$0xff]
    %v9948 = vld [vmem:[#allocation2 + $0x1ce0] sm:$0xff]
    %v9949 = vld [vmem:[#allocation2 + $0x1ce8] sm:$0xff]
    %v9950 = vld [vmem:[#allocation2 + $0x1cf0] sm:$0xff]
    %v9951 = vld [vmem:[#allocation2 + $0x1cf8] sm:$0xff]
    %v9952 = vld [vmem:[#allocation2 + $0x1d00] sm:$0xff]
    %v9953 = vld [vmem:[#allocation2 + $0x1d08] sm:$0xff]
    %v9954 = vld [vmem:[#allocation2 + $0x1d10] sm:$0xff]
    %v9955 = vld [vmem:[#allocation2 + $0x1d18] sm:$0xff]
    %v9956 = vld [vmem:[#allocation2 + $0x1d20] sm:$0xff]
    %v9957 = vld [vmem:[#allocation2 + $0x1d28] sm:$0xff]
    %v9958 = vld [vmem:[#allocation2 + $0x1d30] sm:$0xff]
    %v9959 = vld [vmem:[#allocation2 + $0x1d38] sm:$0xff]
    %v9996 = vunpack.c.l.b16 %v9924
    %v9997 = vunpack.c.h.b16 %v9924
    %v9998 = vunpack.c.l.b16 %v9925
    %v9999 = vunpack.c.h.b16 %v9925
    %v10000 = vunpack.c.l.b16 %v9926
    %v10001 = vunpack.c.h.b16 %v9926
    %v10002 = vunpack.c.l.b16 %v9927
    %v10003 = vunpack.c.h.b16 %v9927
    %v10004 = vunpack.c.l.b16 %v9928
    %v10005 = vunpack.c.h.b16 %v9928
    %v10006 = vunpack.c.l.b16 %v9929
    %v10007 = vunpack.c.h.b16 %v9929
    %v10008 = vunpack.c.l.b16 %v9930
    %v10009 = vunpack.c.h.b16 %v9930
    %v10010 = vunpack.c.l.b16 %v9931
    %v10011 = vunpack.c.h.b16 %v9931
    %v10012 = vunpack.c.l.b16 %v9932
    %v10013 = vunpack.c.h.b16 %v9932
    %v10014 = vunpack.c.l.b16 %v9933
    %v10015 = vunpack.c.h.b16 %v9933
    %v10016 = vunpack.c.l.b16 %v9934
    %v10017 = vunpack.c.h.b16 %v9934
    %v10018 = vunpack.c.l.b16 %v9935
    %v10019 = vunpack.c.h.b16 %v9935
    %v10020 = vunpack.c.l.b16 %v9936
    %v10021 = vunpack.c.h.b16 %v9936
    %v10022 = vunpack.c.l.b16 %v9937
    %v10023 = vunpack.c.h.b16 %v9937
    %v10024 = vunpack.c.l.b16 %v9938
    %v10025 = vunpack.c.h.b16 %v9938
    %v10026 = vunpack.c.l.b16 %v9939
    %v10027 = vunpack.c.h.b16 %v9939
    %v10028 = vunpack.c.l.b16 %v9940
    %v10029 = vunpack.c.h.b16 %v9940
    %v10030 = vunpack.c.l.b16 %v9941
    %v10031 = vunpack.c.h.b16 %v9941
    %v10032 = vunpack.c.l.b16 %v9942
    %v10033 = vunpack.c.h.b16 %v9942
    %v10034 = vunpack.c.l.b16 %v9943
    %v10035 = vunpack.c.h.b16 %v9943
    %v10036 = vunpack.c.l.b16 %v9944
    %v10037 = vunpack.c.h.b16 %v9944
    %v10038 = vunpack.c.l.b16 %v9945
    %v10039 = vunpack.c.h.b16 %v9945
    %v10040 = vunpack.c.l.b16 %v9946
    %v10041 = vunpack.c.h.b16 %v9946
    %v10042 = vunpack.c.l.b16 %v9947
    %v10043 = vunpack.c.h.b16 %v9947
    %v10044 = vunpack.c.l.b16 %v9948
    %v10045 = vunpack.c.h.b16 %v9948
    %v10046 = vunpack.c.l.b16 %v9949
    %v10047 = vunpack.c.h.b16 %v9949
    %v10048 = vunpack.c.l.b16 %v9950
    %v10049 = vunpack.c.h.b16 %v9950
    %v10050 = vunpack.c.l.b16 %v9951
    %v10051 = vunpack.c.h.b16 %v9951
    %v10052 = vunpack.c.l.b16 %v9952
    %v10053 = vunpack.c.h.b16 %v9952
    %v10054 = vunpack.c.l.b16 %v9953
    %v10055 = vunpack.c.h.b16 %v9953
    %v10056 = vunpack.c.l.b16 %v9954
    %v10057 = vunpack.c.h.b16 %v9954
    %v10058 = vunpack.c.l.b16 %v9955
    %v10059 = vunpack.c.h.b16 %v9955
    %v10060 = vunpack.c.l.b16 %v9956
    %v10061 = vunpack.c.h.b16 %v9956
    %v10062 = vunpack.c.l.b16 %v9957
    %v10063 = vunpack.c.h.b16 %v9957
    %v10064 = vunpack.c.l.b16 %v9958
    %v10065 = vunpack.c.h.b16 %v9958
    %v10066 = vunpack.c.l.b16 %v9959
    %v10067 = vunpack.c.h.b16 %v9959
    %v10068 = vpack.c.b16 %v10000, %v9996
    %v10069 = vpack.c.b16 %v10001, %v9997
    %v10070 = vpack.c.b16 %v10002, %v9998
    %v10071 = vpack.c.b16 %v10003, %v9999
    %v10072 = vpack.c.b16 %v10008, %v10004
    %v10073 = vpack.c.b16 %v10009, %v10005
    %v10074 = vpack.c.b16 %v10010, %v10006
    %v10075 = vpack.c.b16 %v10011, %v10007
    %v10076 = vpack.c.b16 %v10016, %v10012
    %v10077 = vpack.c.b16 %v10017, %v10013
    %v10078 = vpack.c.b16 %v10018, %v10014
    %v10079 = vpack.c.b16 %v10019, %v10015
    %v10080 = vpack.c.b16 %v10024, %v10020
    %v10081 = vpack.c.b16 %v10025, %v10021
    %v10082 = vpack.c.b16 %v10026, %v10022
    %v10083 = vpack.c.b16 %v10027, %v10023
    %v10084 = vpack.c.b16 %v10032, %v10028
    %v10085 = vpack.c.b16 %v10033, %v10029
    %v10086 = vpack.c.b16 %v10034, %v10030
    %v10087 = vpack.c.b16 %v10035, %v10031
    %v10088 = vpack.c.b16 %v10040, %v10036
    %v10089 = vpack.c.b16 %v10041, %v10037
    %v10090 = vpack.c.b16 %v10042, %v10038
    %v10091 = vpack.c.b16 %v10043, %v10039
    %v10092 = vpack.c.b16 %v10048, %v10044
    %v10093 = vpack.c.b16 %v10049, %v10045
    %v10094 = vpack.c.b16 %v10050, %v10046
    %v10095 = vpack.c.b16 %v10051, %v10047
    %v10096 = vpack.c.b16 %v10056, %v10052
    %v10097 = vpack.c.b16 %v10057, %v10053
    %v10098 = vpack.c.b16 %v10058, %v10054
    %v10099 = vpack.c.b16 %v10059, %v10055
    %v10100 = vpack.c.b16 %v10064, %v10060
    %v10101 = vpack.c.b16 %v10065, %v10061
    %v10102 = vpack.c.b16 %v10066, %v10062
    %v10103 = vpack.c.b16 %v10067, %v10063
    %v10141 = vsel %vm894, %v9923, 0
    %10143 = vmatpush.bf16.msra.mxu0 %v10096
    %10144 = vmatpush.bf16.msra.mxu0 %v10092
    %10145 = vmatpush.bf16.msra.mxu0 %v10088
    %10146 = vmatpush.bf16.msra.mxu0 %v10084
    %10147 = vmatpush.bf16.msra.mxu0 %v10080
    %10148 = vmatpush.bf16.msra.mxu0 %v10076
    %10149 = vmatpush.bf16.msra.mxu0 %v10072
    %10150 = vmatpush.bf16.msra.mxu0 %v10068
    %10151 = vmatmul.bf16.gmra.mxu0 %v9922
    %v10152 = vpop.f32.mrf.mxu0
    %v10153 = vadd.f32 0.0, %v10152
    %v10154 = vpop.f32.mrf.mxu0
    %10155 = vdwg.mxu0
    %10156 = vmatpush.bf16.msra.mxu0 0
    %10157 = vmatpush.bf16.msra.mxu0 0
    %10158 = vmatpush.bf16.msra.mxu0 0
    %10159 = vmatpush.bf16.msra.mxu0 0
    %10160 = vmatpush.bf16.msra.mxu0 0
    %10161 = vmatpush.bf16.msra.mxu0 0
    %10162 = vmatpush.bf16.msra.mxu0 0
    %10163 = vmatpush.bf16.msra.mxu0 %v10100
    %10164 = vmatmul.bf16.gmra.mxu0 %v10141
    %v10165 = vpop.f32.mrf.mxu0
    %v10166 = vadd.f32 %v10153, %v10165
    %v10167 = vpop.f32.mrf.mxu0
    %10168 = vdwg.mxu0
    %10169 = vmatpush.bf16.msra.mxu0 %v10097
    %10170 = vmatpush.bf16.msra.mxu0 %v10093
    %10171 = vmatpush.bf16.msra.mxu0 %v10089
    %10172 = vmatpush.bf16.msra.mxu0 %v10085
    %10173 = vmatpush.bf16.msra.mxu0 %v10081
    %10174 = vmatpush.bf16.msra.mxu0 %v10077
    %10175 = vmatpush.bf16.msra.mxu0 %v10073
    %10176 = vmatpush.bf16.msra.mxu0 %v10069
    %10177 = vmatmul.bf16.gmra.mxu0 %v9922
    %v10178 = vpop.f32.mrf.mxu0
    %v10179 = vadd.f32 0.0, %v10178
    %v10180 = vpop.f32.mrf.mxu0
    %10181 = vdwg.mxu0
    %10182 = vmatpush.bf16.msra.mxu0 0
    %10183 = vmatpush.bf16.msra.mxu0 0
    %10184 = vmatpush.bf16.msra.mxu0 0
    %10185 = vmatpush.bf16.msra.mxu0 0
    %10186 = vmatpush.bf16.msra.mxu0 0
    %10187 = vmatpush.bf16.msra.mxu0 0
    %10188 = vmatpush.bf16.msra.mxu0 0
    %10189 = vmatpush.bf16.msra.mxu0 %v10101
    %10190 = vmatmul.bf16.gmra.mxu0 %v10141
    %v10191 = vpop.f32.mrf.mxu0
    %v10192 = vadd.f32 %v10179, %v10191
    %v10193 = vpop.f32.mrf.mxu0
    %10194 = vdwg.mxu0
    %10195 = vmatpush.bf16.msra.mxu0 %v10098
    %10196 = vmatpush.bf16.msra.mxu0 %v10094
    %10197 = vmatpush.bf16.msra.mxu0 %v10090
    %10198 = vmatpush.bf16.msra.mxu0 %v10086
    %10199 = vmatpush.bf16.msra.mxu0 %v10082
    %10200 = vmatpush.bf16.msra.mxu0 %v10078
    %10201 = vmatpush.bf16.msra.mxu0 %v10074
    %10202 = vmatpush.bf16.msra.mxu0 %v10070
    %10203 = vmatmul.bf16.gmra.mxu0 %v9922
    %v10204 = vpop.f32.mrf.mxu0
    %v10205 = vadd.f32 0.0, %v10204
    %v10206 = vpop.f32.mrf.mxu0
    %10207 = vdwg.mxu0
    %10208 = vmatpush.bf16.msra.mxu0 0
    %10209 = vmatpush.bf16.msra.mxu0 0
    %10210 = vmatpush.bf16.msra.mxu0 0
    %10211 = vmatpush.bf16.msra.mxu0 0
    %10212 = vmatpush.bf16.msra.mxu0 0
    %10213 = vmatpush.bf16.msra.mxu0 0
    %10214 = vmatpush.bf16.msra.mxu0 0
    %10215 = vmatpush.bf16.msra.mxu0 %v10102
    %10216 = vmatmul.bf16.gmra.mxu0 %v10141
    %v10217 = vpop.f32.mrf.mxu0
    %v10218 = vadd.f32 %v10205, %v10217
    %v10219 = vpop.f32.mrf.mxu0
    %10220 = vdwg.mxu0
    %10221 = vmatpush.bf16.msra.mxu0 %v10099
    %10222 = vmatpush.bf16.msra.mxu0 %v10095
    %10223 = vmatpush.bf16.msra.mxu0 %v10091
    %10224 = vmatpush.bf16.msra.mxu0 %v10087
    %10225 = vmatpush.bf16.msra.mxu0 %v10083
    %10226 = vmatpush.bf16.msra.mxu0 %v10079
    %10227 = vmatpush.bf16.msra.mxu0 %v10075
    %10228 = vmatpush.bf16.msra.mxu0 %v10071
    %10229 = vmatmul.bf16.gmra.mxu0 %v9922
    %v10230 = vpop.f32.mrf.mxu0
    %v10231 = vadd.f32 0.0, %v10230
    %v10232 = vpop.f32.mrf.mxu0
    %10233 = vdwg.mxu0
    %10234 = vmatpush.bf16.msra.mxu0 0
    %10235 = vmatpush.bf16.msra.mxu0 0
    %10236 = vmatpush.bf16.msra.mxu0 0
    %10237 = vmatpush.bf16.msra.mxu0 0
    %10238 = vmatpush.bf16.msra.mxu0 0
    %10239 = vmatpush.bf16.msra.mxu0 0
    %10240 = vmatpush.bf16.msra.mxu0 0
    %10241 = vmatpush.bf16.msra.mxu0 %v10103
    %10242 = vmatmul.bf16.gmra.mxu0 %v10141
    %v10243 = vpop.f32.mrf.mxu0
    %v10244 = vadd.f32 %v10231, %v10243
    %v10245 = vpop.f32.mrf.mxu0
    %10246 = vdwg.mxu0
    %v10247 = vadd.f32 %v9910, %v10166
    %v10248 = vadd.f32 %v9911, %v10192
    %v10249 = vadd.f32 %v9912, %v10218
    %v10250 = vadd.f32 %v9913, %v10244
    %v10251 = vrot.slane %v1275, 2
    %v10252 = vrot.slane %v1333, 2
    %v10255 = vrot.slane %v1391, 1
    %v10256 = vrot.slane %v1449, 1
    %v10259 = vsel %vm366, %v10251, %v10255
    %v10260 = vsel %vm366, %v10252, %v10256
    %v10261 = vpack.c.bf16 %v10259, %v10259
    %v10262 = vpack.c.bf16 %v10260, %v10260
    %v10263 = vld [vmem:[#allocation2 + $0x1d40] sm:$0xff]
    %v10264 = vld [vmem:[#allocation2 + $0x1d48] sm:$0xff]
    %v10265 = vld [vmem:[#allocation2 + $0x1d50] sm:$0xff]
    %v10266 = vld [vmem:[#allocation2 + $0x1d58] sm:$0xff]
    %v10267 = vld [vmem:[#allocation2 + $0x1d60] sm:$0xff]
    %v10268 = vld [vmem:[#allocation2 + $0x1d68] sm:$0xff]
    %v10269 = vld [vmem:[#allocation2 + $0x1d70] sm:$0xff]
    %v10270 = vld [vmem:[#allocation2 + $0x1d78] sm:$0xff]
    %v10271 = vld [vmem:[#allocation2 + $0x1d80] sm:$0xff]
    %v10272 = vld [vmem:[#allocation2 + $0x1d88] sm:$0xff]
    %v10273 = vld [vmem:[#allocation2 + $0x1d90] sm:$0xff]
    %v10274 = vld [vmem:[#allocation2 + $0x1d98] sm:$0xff]
    %v10275 = vld [vmem:[#allocation2 + $0x1da0] sm:$0xff]
    %v10276 = vld [vmem:[#allocation2 + $0x1da8] sm:$0xff]
    %v10277 = vld [vmem:[#allocation2 + $0x1db0] sm:$0xff]
    %v10278 = vld [vmem:[#allocation2 + $0x1db8] sm:$0xff]
    %v10279 = vld [vmem:[#allocation2 + $0x1dc0] sm:$0xff]
    %v10280 = vld [vmem:[#allocation2 + $0x1dc8] sm:$0xff]
    %v10281 = vld [vmem:[#allocation2 + $0x1dd0] sm:$0xff]
    %v10282 = vld [vmem:[#allocation2 + $0x1dd8] sm:$0xff]
    %v10283 = vld [vmem:[#allocation2 + $0x1de0] sm:$0xff]
    %v10284 = vld [vmem:[#allocation2 + $0x1de8] sm:$0xff]
    %v10285 = vld [vmem:[#allocation2 + $0x1df0] sm:$0xff]
    %v10286 = vld [vmem:[#allocation2 + $0x1df8] sm:$0xff]
    %v10287 = vld [vmem:[#allocation2 + $0x1e00] sm:$0xff]
    %v10288 = vld [vmem:[#allocation2 + $0x1e08] sm:$0xff]
    %v10289 = vld [vmem:[#allocation2 + $0x1e10] sm:$0xff]
    %v10290 = vld [vmem:[#allocation2 + $0x1e18] sm:$0xff]
    %v10291 = vld [vmem:[#allocation2 + $0x1e20] sm:$0xff]
    %v10292 = vld [vmem:[#allocation2 + $0x1e28] sm:$0xff]
    %v10293 = vld [vmem:[#allocation2 + $0x1e30] sm:$0xff]
    %v10294 = vld [vmem:[#allocation2 + $0x1e38] sm:$0xff]
    %v10295 = vld [vmem:[#allocation2 + $0x1e40] sm:$0xff]
    %v10296 = vld [vmem:[#allocation2 + $0x1e48] sm:$0xff]
    %v10297 = vld [vmem:[#allocation2 + $0x1e50] sm:$0xff]
    %v10298 = vld [vmem:[#allocation2 + $0x1e58] sm:$0xff]
    %v10335 = vunpack.c.l.b16 %v10263
    %v10336 = vunpack.c.h.b16 %v10263
    %v10337 = vunpack.c.l.b16 %v10264
    %v10338 = vunpack.c.h.b16 %v10264
    %v10339 = vunpack.c.l.b16 %v10265
    %v10340 = vunpack.c.h.b16 %v10265
    %v10341 = vunpack.c.l.b16 %v10266
    %v10342 = vunpack.c.h.b16 %v10266
    %v10343 = vunpack.c.l.b16 %v10267
    %v10344 = vunpack.c.h.b16 %v10267
    %v10345 = vunpack.c.l.b16 %v10268
    %v10346 = vunpack.c.h.b16 %v10268
    %v10347 = vunpack.c.l.b16 %v10269
    %v10348 = vunpack.c.h.b16 %v10269
    %v10349 = vunpack.c.l.b16 %v10270
    %v10350 = vunpack.c.h.b16 %v10270
    %v10351 = vunpack.c.l.b16 %v10271
    %v10352 = vunpack.c.h.b16 %v10271
    %v10353 = vunpack.c.l.b16 %v10272
    %v10354 = vunpack.c.h.b16 %v10272
    %v10355 = vunpack.c.l.b16 %v10273
    %v10356 = vunpack.c.h.b16 %v10273
    %v10357 = vunpack.c.l.b16 %v10274
    %v10358 = vunpack.c.h.b16 %v10274
    %v10359 = vunpack.c.l.b16 %v10275
    %v10360 = vunpack.c.h.b16 %v10275
    %v10361 = vunpack.c.l.b16 %v10276
    %v10362 = vunpack.c.h.b16 %v10276
    %v10363 = vunpack.c.l.b16 %v10277
    %v10364 = vunpack.c.h.b16 %v10277
    %v10365 = vunpack.c.l.b16 %v10278
    %v10366 = vunpack.c.h.b16 %v10278
    %v10367 = vunpack.c.l.b16 %v10279
    %v10368 = vunpack.c.h.b16 %v10279
    %v10369 = vunpack.c.l.b16 %v10280
    %v10370 = vunpack.c.h.b16 %v10280
    %v10371 = vunpack.c.l.b16 %v10281
    %v10372 = vunpack.c.h.b16 %v10281
    %v10373 = vunpack.c.l.b16 %v10282
    %v10374 = vunpack.c.h.b16 %v10282
    %v10375 = vunpack.c.l.b16 %v10283
    %v10376 = vunpack.c.h.b16 %v10283
    %v10377 = vunpack.c.l.b16 %v10284
    %v10378 = vunpack.c.h.b16 %v10284
    %v10379 = vunpack.c.l.b16 %v10285
    %v10380 = vunpack.c.h.b16 %v10285
    %v10381 = vunpack.c.l.b16 %v10286
    %v10382 = vunpack.c.h.b16 %v10286
    %v10383 = vunpack.c.l.b16 %v10287
    %v10384 = vunpack.c.h.b16 %v10287
    %v10385 = vunpack.c.l.b16 %v10288
    %v10386 = vunpack.c.h.b16 %v10288
    %v10387 = vunpack.c.l.b16 %v10289
    %v10388 = vunpack.c.h.b16 %v10289
    %v10389 = vunpack.c.l.b16 %v10290
    %v10390 = vunpack.c.h.b16 %v10290
    %v10391 = vunpack.c.l.b16 %v10291
    %v10392 = vunpack.c.h.b16 %v10291
    %v10393 = vunpack.c.l.b16 %v10292
    %v10394 = vunpack.c.h.b16 %v10292
    %v10395 = vunpack.c.l.b16 %v10293
    %v10396 = vunpack.c.h.b16 %v10293
    %v10397 = vunpack.c.l.b16 %v10294
    %v10398 = vunpack.c.h.b16 %v10294
    %v10399 = vunpack.c.l.b16 %v10295
    %v10400 = vunpack.c.h.b16 %v10295
    %v10401 = vunpack.c.l.b16 %v10296
    %v10402 = vunpack.c.h.b16 %v10296
    %v10403 = vunpack.c.l.b16 %v10297
    %v10404 = vunpack.c.h.b16 %v10297
    %v10405 = vunpack.c.l.b16 %v10298
    %v10406 = vunpack.c.h.b16 %v10298
    %v10407 = vpack.c.b16 %v10339, %v10335
    %v10408 = vpack.c.b16 %v10340, %v10336
    %v10409 = vpack.c.b16 %v10341, %v10337
    %v10410 = vpack.c.b16 %v10342, %v10338
    %v10411 = vpack.c.b16 %v10347, %v10343
    %v10412 = vpack.c.b16 %v10348, %v10344
    %v10413 = vpack.c.b16 %v10349, %v10345
    %v10414 = vpack.c.b16 %v10350, %v10346
    %v10415 = vpack.c.b16 %v10355, %v10351
    %v10416 = vpack.c.b16 %v10356, %v10352
    %v10417 = vpack.c.b16 %v10357, %v10353
    %v10418 = vpack.c.b16 %v10358, %v10354
    %v10419 = vpack.c.b16 %v10363, %v10359
    %v10420 = vpack.c.b16 %v10364, %v10360
    %v10421 = vpack.c.b16 %v10365, %v10361
    %v10422 = vpack.c.b16 %v10366, %v10362
    %v10423 = vpack.c.b16 %v10371, %v10367
    %v10424 = vpack.c.b16 %v10372, %v10368
    %v10425 = vpack.c.b16 %v10373, %v10369
    %v10426 = vpack.c.b16 %v10374, %v10370
    %v10427 = vpack.c.b16 %v10379, %v10375
    %v10428 = vpack.c.b16 %v10380, %v10376
    %v10429 = vpack.c.b16 %v10381, %v10377
    %v10430 = vpack.c.b16 %v10382, %v10378
    %v10431 = vpack.c.b16 %v10387, %v10383
    %v10432 = vpack.c.b16 %v10388, %v10384
    %v10433 = vpack.c.b16 %v10389, %v10385
    %v10434 = vpack.c.b16 %v10390, %v10386
    %v10435 = vpack.c.b16 %v10395, %v10391
    %v10436 = vpack.c.b16 %v10396, %v10392
    %v10437 = vpack.c.b16 %v10397, %v10393
    %v10438 = vpack.c.b16 %v10398, %v10394
    %v10439 = vpack.c.b16 %v10403, %v10399
    %v10440 = vpack.c.b16 %v10404, %v10400
    %v10441 = vpack.c.b16 %v10405, %v10401
    %v10442 = vpack.c.b16 %v10406, %v10402
    %v10480 = vsel %vm894, %v10262, 0
    %10482 = vmatpush.bf16.msra.mxu0 %v10435
    %10483 = vmatpush.bf16.msra.mxu0 %v10431
    %10484 = vmatpush.bf16.msra.mxu0 %v10427
    %10485 = vmatpush.bf16.msra.mxu0 %v10423
    %10486 = vmatpush.bf16.msra.mxu0 %v10419
    %10487 = vmatpush.bf16.msra.mxu0 %v10415
    %10488 = vmatpush.bf16.msra.mxu0 %v10411
    %10489 = vmatpush.bf16.msra.mxu0 %v10407
    %10490 = vmatmul.bf16.gmra.mxu0 %v10261
    %v10491 = vpop.f32.mrf.mxu0
    %v10492 = vadd.f32 0.0, %v10491
    %v10493 = vpop.f32.mrf.mxu0
    %10494 = vdwg.mxu0
    %10495 = vmatpush.bf16.msra.mxu0 0
    %10496 = vmatpush.bf16.msra.mxu0 0
    %10497 = vmatpush.bf16.msra.mxu0 0
    %10498 = vmatpush.bf16.msra.mxu0 0
    %10499 = vmatpush.bf16.msra.mxu0 0
    %10500 = vmatpush.bf16.msra.mxu0 0
    %10501 = vmatpush.bf16.msra.mxu0 0
    %10502 = vmatpush.bf16.msra.mxu0 %v10439
    %10503 = vmatmul.bf16.gmra.mxu0 %v10480
    %v10504 = vpop.f32.mrf.mxu0
    %v10505 = vadd.f32 %v10492, %v10504
    %v10506 = vpop.f32.mrf.mxu0
    %10507 = vdwg.mxu0
    %10508 = vmatpush.bf16.msra.mxu0 %v10436
    %10509 = vmatpush.bf16.msra.mxu0 %v10432
    %10510 = vmatpush.bf16.msra.mxu0 %v10428
    %10511 = vmatpush.bf16.msra.mxu0 %v10424
    %10512 = vmatpush.bf16.msra.mxu0 %v10420
    %10513 = vmatpush.bf16.msra.mxu0 %v10416
    %10514 = vmatpush.bf16.msra.mxu0 %v10412
    %10515 = vmatpush.bf16.msra.mxu0 %v10408
    %10516 = vmatmul.bf16.gmra.mxu0 %v10261
    %v10517 = vpop.f32.mrf.mxu0
    %v10518 = vadd.f32 0.0, %v10517
    %v10519 = vpop.f32.mrf.mxu0
    %10520 = vdwg.mxu0
    %10521 = vmatpush.bf16.msra.mxu0 0
    %10522 = vmatpush.bf16.msra.mxu0 0
    %10523 = vmatpush.bf16.msra.mxu0 0
    %10524 = vmatpush.bf16.msra.mxu0 0
    %10525 = vmatpush.bf16.msra.mxu0 0
    %10526 = vmatpush.bf16.msra.mxu0 0
    %10527 = vmatpush.bf16.msra.mxu0 0
    %10528 = vmatpush.bf16.msra.mxu0 %v10440
    %10529 = vmatmul.bf16.gmra.mxu0 %v10480
    %v10530 = vpop.f32.mrf.mxu0
    %v10531 = vadd.f32 %v10518, %v10530
    %v10532 = vpop.f32.mrf.mxu0
    %10533 = vdwg.mxu0
    %10534 = vmatpush.bf16.msra.mxu0 %v10437
    %10535 = vmatpush.bf16.msra.mxu0 %v10433
    %10536 = vmatpush.bf16.msra.mxu0 %v10429
    %10537 = vmatpush.bf16.msra.mxu0 %v10425
    %10538 = vmatpush.bf16.msra.mxu0 %v10421
    %10539 = vmatpush.bf16.msra.mxu0 %v10417
    %10540 = vmatpush.bf16.msra.mxu0 %v10413
    %10541 = vmatpush.bf16.msra.mxu0 %v10409
    %10542 = vmatmul.bf16.gmra.mxu0 %v10261
    %v10543 = vpop.f32.mrf.mxu0
    %v10544 = vadd.f32 0.0, %v10543
    %v10545 = vpop.f32.mrf.mxu0
    %10546 = vdwg.mxu0
    %10547 = vmatpush.bf16.msra.mxu0 0
    %10548 = vmatpush.bf16.msra.mxu0 0
    %10549 = vmatpush.bf16.msra.mxu0 0
    %10550 = vmatpush.bf16.msra.mxu0 0
    %10551 = vmatpush.bf16.msra.mxu0 0
    %10552 = vmatpush.bf16.msra.mxu0 0
    %10553 = vmatpush.bf16.msra.mxu0 0
    %10554 = vmatpush.bf16.msra.mxu0 %v10441
    %10555 = vmatmul.bf16.gmra.mxu0 %v10480
    %v10556 = vpop.f32.mrf.mxu0
    %v10557 = vadd.f32 %v10544, %v10556
    %v10558 = vpop.f32.mrf.mxu0
    %10559 = vdwg.mxu0
    %10560 = vmatpush.bf16.msra.mxu0 %v10438
    %10561 = vmatpush.bf16.msra.mxu0 %v10434
    %10562 = vmatpush.bf16.msra.mxu0 %v10430
    %10563 = vmatpush.bf16.msra.mxu0 %v10426
    %10564 = vmatpush.bf16.msra.mxu0 %v10422
    %10565 = vmatpush.bf16.msra.mxu0 %v10418
    %10566 = vmatpush.bf16.msra.mxu0 %v10414
    %10567 = vmatpush.bf16.msra.mxu0 %v10410
    %10568 = vmatmul.bf16.gmra.mxu0 %v10261
    %v10569 = vpop.f32.mrf.mxu0
    %v10570 = vadd.f32 0.0, %v10569
    %v10571 = vpop.f32.mrf.mxu0
    %10572 = vdwg.mxu0
    %10573 = vmatpush.bf16.msra.mxu0 0
    %10574 = vmatpush.bf16.msra.mxu0 0
    %10575 = vmatpush.bf16.msra.mxu0 0
    %10576 = vmatpush.bf16.msra.mxu0 0
    %10577 = vmatpush.bf16.msra.mxu0 0
    %10578 = vmatpush.bf16.msra.mxu0 0
    %10579 = vmatpush.bf16.msra.mxu0 0
    %10580 = vmatpush.bf16.msra.mxu0 %v10442
    %10581 = vmatmul.bf16.gmra.mxu0 %v10480
    %v10582 = vpop.f32.mrf.mxu0
    %v10583 = vadd.f32 %v10570, %v10582
    %v10584 = vpop.f32.mrf.mxu0
    %10585 = vdwg.mxu0
    %v10586 = vadd.f32 %v10247, %v10505
    %v10587 = vadd.f32 %v10248, %v10531
    %v10588 = vadd.f32 %v10249, %v10557
    %v10589 = vadd.f32 %v10250, %v10583
    %v10590 = vrot.slane %v1275, 3
    %v10591 = vrot.slane %v1333, 3
    %v10594 = vrot.slane %v1391, 2
    %v10595 = vrot.slane %v1449, 2
    %v10598 = vsel %vm366, %v10590, %v10594
    %v10599 = vsel %vm366, %v10591, %v10595
    %v10600 = vpack.c.bf16 %v10598, %v10598
    %v10601 = vpack.c.bf16 %v10599, %v10599
    %v10602 = vld [vmem:[#allocation2 + $0x1e60] sm:$0xff]
    %v10603 = vld [vmem:[#allocation2 + $0x1e68] sm:$0xff]
    %v10604 = vld [vmem:[#allocation2 + $0x1e70] sm:$0xff]
    %v10605 = vld [vmem:[#allocation2 + $0x1e78] sm:$0xff]
    %v10606 = vld [vmem:[#allocation2 + $0x1e80] sm:$0xff]
    %v10607 = vld [vmem:[#allocation2 + $0x1e88] sm:$0xff]
    %v10608 = vld [vmem:[#allocation2 + $0x1e90] sm:$0xff]
    %v10609 = vld [vmem:[#allocation2 + $0x1e98] sm:$0xff]
    %v10610 = vld [vmem:[#allocation2 + $0x1ea0] sm:$0xff]
    %v10611 = vld [vmem:[#allocation2 + $0x1ea8] sm:$0xff]
    %v10612 = vld [vmem:[#allocation2 + $0x1eb0] sm:$0xff]
    %v10613 = vld [vmem:[#allocation2 + $0x1eb8] sm:$0xff]
    %v10614 = vld [vmem:[#allocation2 + $0x1ec0] sm:$0xff]
    %v10615 = vld [vmem:[#allocation2 + $0x1ec8] sm:$0xff]
    %v10616 = vld [vmem:[#allocation2 + $0x1ed0] sm:$0xff]
    %v10617 = vld [vmem:[#allocation2 + $0x1ed8] sm:$0xff]
    %v10618 = vld [vmem:[#allocation2 + $0x1ee0] sm:$0xff]
    %v10619 = vld [vmem:[#allocation2 + $0x1ee8] sm:$0xff]
    %v10620 = vld [vmem:[#allocation2 + $0x1ef0] sm:$0xff]
    %v10621 = vld [vmem:[#allocation2 + $0x1ef8] sm:$0xff]
    %v10622 = vld [vmem:[#allocation2 + $0x1f00] sm:$0xff]
    %v10623 = vld [vmem:[#allocation2 + $0x1f08] sm:$0xff]
    %v10624 = vld [vmem:[#allocation2 + $0x1f10] sm:$0xff]
    %v10625 = vld [vmem:[#allocation2 + $0x1f18] sm:$0xff]
    %v10626 = vld [vmem:[#allocation2 + $0x1f20] sm:$0xff]
    %v10627 = vld [vmem:[#allocation2 + $0x1f28] sm:$0xff]
    %v10628 = vld [vmem:[#allocation2 + $0x1f30] sm:$0xff]
    %v10629 = vld [vmem:[#allocation2 + $0x1f38] sm:$0xff]
    %v10630 = vld [vmem:[#allocation2 + $0x1f40] sm:$0xff]
    %v10631 = vld [vmem:[#allocation2 + $0x1f48] sm:$0xff]
    %v10632 = vld [vmem:[#allocation2 + $0x1f50] sm:$0xff]
    %v10633 = vld [vmem:[#allocation2 + $0x1f58] sm:$0xff]
    %v10634 = vld [vmem:[#allocation2 + $0x1f60] sm:$0xff]
    %v10635 = vld [vmem:[#allocation2 + $0x1f68] sm:$0xff]
    %v10636 = vld [vmem:[#allocation2 + $0x1f70] sm:$0xff]
    %v10637 = vld [vmem:[#allocation2 + $0x1f78] sm:$0xff]
    %v10674 = vunpack.c.l.b16 %v10602
    %v10675 = vunpack.c.h.b16 %v10602
    %v10676 = vunpack.c.l.b16 %v10603
    %v10677 = vunpack.c.h.b16 %v10603
    %v10678 = vunpack.c.l.b16 %v10604
    %v10679 = vunpack.c.h.b16 %v10604
    %v10680 = vunpack.c.l.b16 %v10605
    %v10681 = vunpack.c.h.b16 %v10605
    %v10682 = vunpack.c.l.b16 %v10606
    %v10683 = vunpack.c.h.b16 %v10606
    %v10684 = vunpack.c.l.b16 %v10607
    %v10685 = vunpack.c.h.b16 %v10607
    %v10686 = vunpack.c.l.b16 %v10608
    %v10687 = vunpack.c.h.b16 %v10608
    %v10688 = vunpack.c.l.b16 %v10609
    %v10689 = vunpack.c.h.b16 %v10609
    %v10690 = vunpack.c.l.b16 %v10610
    %v10691 = vunpack.c.h.b16 %v10610
    %v10692 = vunpack.c.l.b16 %v10611
    %v10693 = vunpack.c.h.b16 %v10611
    %v10694 = vunpack.c.l.b16 %v10612
    %v10695 = vunpack.c.h.b16 %v10612
    %v10696 = vunpack.c.l.b16 %v10613
    %v10697 = vunpack.c.h.b16 %v10613
    %v10698 = vunpack.c.l.b16 %v10614
    %v10699 = vunpack.c.h.b16 %v10614
    %v10700 = vunpack.c.l.b16 %v10615
    %v10701 = vunpack.c.h.b16 %v10615
    %v10702 = vunpack.c.l.b16 %v10616
    %v10703 = vunpack.c.h.b16 %v10616
    %v10704 = vunpack.c.l.b16 %v10617
    %v10705 = vunpack.c.h.b16 %v10617
    %v10706 = vunpack.c.l.b16 %v10618
    %v10707 = vunpack.c.h.b16 %v10618
    %v10708 = vunpack.c.l.b16 %v10619
    %v10709 = vunpack.c.h.b16 %v10619
    %v10710 = vunpack.c.l.b16 %v10620
    %v10711 = vunpack.c.h.b16 %v10620
    %v10712 = vunpack.c.l.b16 %v10621
    %v10713 = vunpack.c.h.b16 %v10621
    %v10714 = vunpack.c.l.b16 %v10622
    %v10715 = vunpack.c.h.b16 %v10622
    %v10716 = vunpack.c.l.b16 %v10623
    %v10717 = vunpack.c.h.b16 %v10623
    %v10718 = vunpack.c.l.b16 %v10624
    %v10719 = vunpack.c.h.b16 %v10624
    %v10720 = vunpack.c.l.b16 %v10625
    %v10721 = vunpack.c.h.b16 %v10625
    %v10722 = vunpack.c.l.b16 %v10626
    %v10723 = vunpack.c.h.b16 %v10626
    %v10724 = vunpack.c.l.b16 %v10627
    %v10725 = vunpack.c.h.b16 %v10627
    %v10726 = vunpack.c.l.b16 %v10628
    %v10727 = vunpack.c.h.b16 %v10628
    %v10728 = vunpack.c.l.b16 %v10629
    %v10729 = vunpack.c.h.b16 %v10629
    %v10730 = vunpack.c.l.b16 %v10630
    %v10731 = vunpack.c.h.b16 %v10630
    %v10732 = vunpack.c.l.b16 %v10631
    %v10733 = vunpack.c.h.b16 %v10631
    %v10734 = vunpack.c.l.b16 %v10632
    %v10735 = vunpack.c.h.b16 %v10632
    %v10736 = vunpack.c.l.b16 %v10633
    %v10737 = vunpack.c.h.b16 %v10633
    %v10738 = vunpack.c.l.b16 %v10634
    %v10739 = vunpack.c.h.b16 %v10634
    %v10740 = vunpack.c.l.b16 %v10635
    %v10741 = vunpack.c.h.b16 %v10635
    %v10742 = vunpack.c.l.b16 %v10636
    %v10743 = vunpack.c.h.b16 %v10636
    %v10744 = vunpack.c.l.b16 %v10637
    %v10745 = vunpack.c.h.b16 %v10637
    %v10746 = vpack.c.b16 %v10678, %v10674
    %v10747 = vpack.c.b16 %v10679, %v10675
    %v10748 = vpack.c.b16 %v10680, %v10676
    %v10749 = vpack.c.b16 %v10681, %v10677
    %v10750 = vpack.c.b16 %v10686, %v10682
    %v10751 = vpack.c.b16 %v10687, %v10683
    %v10752 = vpack.c.b16 %v10688, %v10684
    %v10753 = vpack.c.b16 %v10689, %v10685
    %v10754 = vpack.c.b16 %v10694, %v10690
    %v10755 = vpack.c.b16 %v10695, %v10691
    %v10756 = vpack.c.b16 %v10696, %v10692
    %v10757 = vpack.c.b16 %v10697, %v10693
    %v10758 = vpack.c.b16 %v10702, %v10698
    %v10759 = vpack.c.b16 %v10703, %v10699
    %v10760 = vpack.c.b16 %v10704, %v10700
    %v10761 = vpack.c.b16 %v10705, %v10701
    %v10762 = vpack.c.b16 %v10710, %v10706
    %v10763 = vpack.c.b16 %v10711, %v10707
    %v10764 = vpack.c.b16 %v10712, %v10708
    %v10765 = vpack.c.b16 %v10713, %v10709
    %v10766 = vpack.c.b16 %v10718, %v10714
    %v10767 = vpack.c.b16 %v10719, %v10715
    %v10768 = vpack.c.b16 %v10720, %v10716
    %v10769 = vpack.c.b16 %v10721, %v10717
    %v10770 = vpack.c.b16 %v10726, %v10722
    %v10771 = vpack.c.b16 %v10727, %v10723
    %v10772 = vpack.c.b16 %v10728, %v10724
    %v10773 = vpack.c.b16 %v10729, %v10725
    %v10774 = vpack.c.b16 %v10734, %v10730
    %v10775 = vpack.c.b16 %v10735, %v10731
    %v10776 = vpack.c.b16 %v10736, %v10732
    %v10777 = vpack.c.b16 %v10737, %v10733
    %v10778 = vpack.c.b16 %v10742, %v10738
    %v10779 = vpack.c.b16 %v10743, %v10739
    %v10780 = vpack.c.b16 %v10744, %v10740
    %v10781 = vpack.c.b16 %v10745, %v10741
    %v10819 = vsel %vm894, %v10601, 0
    %10821 = vmatpush.bf16.msra.mxu0 %v10774
    %10822 = vmatpush.bf16.msra.mxu0 %v10770
    %10823 = vmatpush.bf16.msra.mxu0 %v10766
    %10824 = vmatpush.bf16.msra.mxu0 %v10762
    %10825 = vmatpush.bf16.msra.mxu0 %v10758
    %10826 = vmatpush.bf16.msra.mxu0 %v10754
    %10827 = vmatpush.bf16.msra.mxu0 %v10750
    %10828 = vmatpush.bf16.msra.mxu0 %v10746
    %10829 = vmatmul.bf16.gmra.mxu0 %v10600
    %v10830 = vpop.f32.mrf.mxu0
    %v10831 = vadd.f32 0.0, %v10830
    %v10832 = vpop.f32.mrf.mxu0
    %10833 = vdwg.mxu0
    %10834 = vmatpush.bf16.msra.mxu0 0
    %10835 = vmatpush.bf16.msra.mxu0 0
    %10836 = vmatpush.bf16.msra.mxu0 0
    %10837 = vmatpush.bf16.msra.mxu0 0
    %10838 = vmatpush.bf16.msra.mxu0 0
    %10839 = vmatpush.bf16.msra.mxu0 0
    %10840 = vmatpush.bf16.msra.mxu0 0
    %10841 = vmatpush.bf16.msra.mxu0 %v10778
    %10842 = vmatmul.bf16.gmra.mxu0 %v10819
    %v10843 = vpop.f32.mrf.mxu0
    %v10844 = vadd.f32 %v10831, %v10843
    %v10845 = vpop.f32.mrf.mxu0
    %10846 = vdwg.mxu0
    %10847 = vmatpush.bf16.msra.mxu0 %v10775
    %10848 = vmatpush.bf16.msra.mxu0 %v10771
    %10849 = vmatpush.bf16.msra.mxu0 %v10767
    %10850 = vmatpush.bf16.msra.mxu0 %v10763
    %10851 = vmatpush.bf16.msra.mxu0 %v10759
    %10852 = vmatpush.bf16.msra.mxu0 %v10755
    %10853 = vmatpush.bf16.msra.mxu0 %v10751
    %10854 = vmatpush.bf16.msra.mxu0 %v10747
    %10855 = vmatmul.bf16.gmra.mxu0 %v10600
    %v10856 = vpop.f32.mrf.mxu0
    %v10857 = vadd.f32 0.0, %v10856
    %v10858 = vpop.f32.mrf.mxu0
    %10859 = vdwg.mxu0
    %10860 = vmatpush.bf16.msra.mxu0 0
    %10861 = vmatpush.bf16.msra.mxu0 0
    %10862 = vmatpush.bf16.msra.mxu0 0
    %10863 = vmatpush.bf16.msra.mxu0 0
    %10864 = vmatpush.bf16.msra.mxu0 0
    %10865 = vmatpush.bf16.msra.mxu0 0
    %10866 = vmatpush.bf16.msra.mxu0 0
    %10867 = vmatpush.bf16.msra.mxu0 %v10779
    %10868 = vmatmul.bf16.gmra.mxu0 %v10819
    %v10869 = vpop.f32.mrf.mxu0
    %v10870 = vadd.f32 %v10857, %v10869
    %v10871 = vpop.f32.mrf.mxu0
    %10872 = vdwg.mxu0
    %10873 = vmatpush.bf16.msra.mxu0 %v10776
    %10874 = vmatpush.bf16.msra.mxu0 %v10772
    %10875 = vmatpush.bf16.msra.mxu0 %v10768
    %10876 = vmatpush.bf16.msra.mxu0 %v10764
    %10877 = vmatpush.bf16.msra.mxu0 %v10760
    %10878 = vmatpush.bf16.msra.mxu0 %v10756
    %10879 = vmatpush.bf16.msra.mxu0 %v10752
    %10880 = vmatpush.bf16.msra.mxu0 %v10748
    %10881 = vmatmul.bf16.gmra.mxu0 %v10600
    %v10882 = vpop.f32.mrf.mxu0
    %v10883 = vadd.f32 0.0, %v10882
    %v10884 = vpop.f32.mrf.mxu0
    %10885 = vdwg.mxu0
    %10886 = vmatpush.bf16.msra.mxu0 0
    %10887 = vmatpush.bf16.msra.mxu0 0
    %10888 = vmatpush.bf16.msra.mxu0 0
    %10889 = vmatpush.bf16.msra.mxu0 0
    %10890 = vmatpush.bf16.msra.mxu0 0
    %10891 = vmatpush.bf16.msra.mxu0 0
    %10892 = vmatpush.bf16.msra.mxu0 0
    %10893 = vmatpush.bf16.msra.mxu0 %v10780
    %10894 = vmatmul.bf16.gmra.mxu0 %v10819
    %v10895 = vpop.f32.mrf.mxu0
    %v10896 = vadd.f32 %v10883, %v10895
    %v10897 = vpop.f32.mrf.mxu0
    %10898 = vdwg.mxu0
    %10899 = vmatpush.bf16.msra.mxu0 %v10777
    %10900 = vmatpush.bf16.msra.mxu0 %v10773
    %10901 = vmatpush.bf16.msra.mxu0 %v10769
    %10902 = vmatpush.bf16.msra.mxu0 %v10765
    %10903 = vmatpush.bf16.msra.mxu0 %v10761
    %10904 = vmatpush.bf16.msra.mxu0 %v10757
    %10905 = vmatpush.bf16.msra.mxu0 %v10753
    %10906 = vmatpush.bf16.msra.mxu0 %v10749
    %10907 = vmatmul.bf16.gmra.mxu0 %v10600
    %v10908 = vpop.f32.mrf.mxu0
    %v10909 = vadd.f32 0.0, %v10908
    %v10910 = vpop.f32.mrf.mxu0
    %10911 = vdwg.mxu0
    %10912 = vmatpush.bf16.msra.mxu0 0
    %10913 = vmatpush.bf16.msra.mxu0 0
    %10914 = vmatpush.bf16.msra.mxu0 0
    %10915 = vmatpush.bf16.msra.mxu0 0
    %10916 = vmatpush.bf16.msra.mxu0 0
    %10917 = vmatpush.bf16.msra.mxu0 0
    %10918 = vmatpush.bf16.msra.mxu0 0
    %10919 = vmatpush.bf16.msra.mxu0 %v10781
    %10920 = vmatmul.bf16.gmra.mxu0 %v10819
    %v10921 = vpop.f32.mrf.mxu0
    %v10922 = vadd.f32 %v10909, %v10921
    %v10923 = vpop.f32.mrf.mxu0
    %10924 = vdwg.mxu0
    %v10925 = vadd.f32 %v10586, %v10844
    %v10926 = vadd.f32 %v10587, %v10870
    %v10927 = vadd.f32 %v10588, %v10896
    %v10928 = vadd.f32 %v10589, %v10922
    %v10929 = vrot.slane %v1275, 4
    %v10930 = vrot.slane %v1333, 4
    %v10933 = vrot.slane %v1391, 3
    %v10934 = vrot.slane %v1449, 3
    %v10937 = vsel %vm366, %v10929, %v10933
    %v10938 = vsel %vm366, %v10930, %v10934
    %v10939 = vpack.c.bf16 %v10937, %v10937
    %v10940 = vpack.c.bf16 %v10938, %v10938
    %v10941 = vld [vmem:[#allocation2 + $0x1f80] sm:$0xff]
    %v10942 = vld [vmem:[#allocation2 + $0x1f88] sm:$0xff]
    %v10943 = vld [vmem:[#allocation2 + $0x1f90] sm:$0xff]
    %v10944 = vld [vmem:[#allocation2 + $0x1f98] sm:$0xff]
    %v10945 = vld [vmem:[#allocation2 + $0x1fa0] sm:$0xff]
    %v10946 = vld [vmem:[#allocation2 + $0x1fa8] sm:$0xff]
    %v10947 = vld [vmem:[#allocation2 + $0x1fb0] sm:$0xff]
    %v10948 = vld [vmem:[#allocation2 + $0x1fb8] sm:$0xff]
    %v10949 = vld [vmem:[#allocation2 + $0x1fc0] sm:$0xff]
    %v10950 = vld [vmem:[#allocation2 + $0x1fc8] sm:$0xff]
    %v10951 = vld [vmem:[#allocation2 + $0x1fd0] sm:$0xff]
    %v10952 = vld [vmem:[#allocation2 + $0x1fd8] sm:$0xff]
    %v10953 = vld [vmem:[#allocation2 + $0x1fe0] sm:$0xff]
    %v10954 = vld [vmem:[#allocation2 + $0x1fe8] sm:$0xff]
    %v10955 = vld [vmem:[#allocation2 + $0x1ff0] sm:$0xff]
    %v10956 = vld [vmem:[#allocation2 + $0x1ff8] sm:$0xff]
    %v10957 = vld [vmem:[#allocation2 + $0x2000] sm:$0xff]
    %v10958 = vld [vmem:[#allocation2 + $0x2008] sm:$0xff]
    %v10959 = vld [vmem:[#allocation2 + $0x2010] sm:$0xff]
    %v10960 = vld [vmem:[#allocation2 + $0x2018] sm:$0xff]
    %v10961 = vld [vmem:[#allocation2 + $0x2020] sm:$0xff]
    %v10962 = vld [vmem:[#allocation2 + $0x2028] sm:$0xff]
    %v10963 = vld [vmem:[#allocation2 + $0x2030] sm:$0xff]
    %v10964 = vld [vmem:[#allocation2 + $0x2038] sm:$0xff]
    %v10965 = vld [vmem:[#allocation2 + $0x2040] sm:$0xff]
    %v10966 = vld [vmem:[#allocation2 + $0x2048] sm:$0xff]
    %v10967 = vld [vmem:[#allocation2 + $0x2050] sm:$0xff]
    %v10968 = vld [vmem:[#allocation2 + $0x2058] sm:$0xff]
    %v10969 = vld [vmem:[#allocation2 + $0x2060] sm:$0xff]
    %v10970 = vld [vmem:[#allocation2 + $0x2068] sm:$0xff]
    %v10971 = vld [vmem:[#allocation2 + $0x2070] sm:$0xff]
    %v10972 = vld [vmem:[#allocation2 + $0x2078] sm:$0xff]
    %v10973 = vld [vmem:[#allocation2 + $0x2080] sm:$0xff]
    %v10974 = vld [vmem:[#allocation2 + $0x2088] sm:$0xff]
    %v10975 = vld [vmem:[#allocation2 + $0x2090] sm:$0xff]
    %v10976 = vld [vmem:[#allocation2 + $0x2098] sm:$0xff]
    %v11013 = vunpack.c.l.b16 %v10941
    %v11014 = vunpack.c.h.b16 %v10941
    %v11015 = vunpack.c.l.b16 %v10942
    %v11016 = vunpack.c.h.b16 %v10942
    %v11017 = vunpack.c.l.b16 %v10943
    %v11018 = vunpack.c.h.b16 %v10943
    %v11019 = vunpack.c.l.b16 %v10944
    %v11020 = vunpack.c.h.b16 %v10944
    %v11021 = vunpack.c.l.b16 %v10945
    %v11022 = vunpack.c.h.b16 %v10945
    %v11023 = vunpack.c.l.b16 %v10946
    %v11024 = vunpack.c.h.b16 %v10946
    %v11025 = vunpack.c.l.b16 %v10947
    %v11026 = vunpack.c.h.b16 %v10947
    %v11027 = vunpack.c.l.b16 %v10948
    %v11028 = vunpack.c.h.b16 %v10948
    %v11029 = vunpack.c.l.b16 %v10949
    %v11030 = vunpack.c.h.b16 %v10949
    %v11031 = vunpack.c.l.b16 %v10950
    %v11032 = vunpack.c.h.b16 %v10950
    %v11033 = vunpack.c.l.b16 %v10951
    %v11034 = vunpack.c.h.b16 %v10951
    %v11035 = vunpack.c.l.b16 %v10952
    %v11036 = vunpack.c.h.b16 %v10952
    %v11037 = vunpack.c.l.b16 %v10953
    %v11038 = vunpack.c.h.b16 %v10953
    %v11039 = vunpack.c.l.b16 %v10954
    %v11040 = vunpack.c.h.b16 %v10954
    %v11041 = vunpack.c.l.b16 %v10955
    %v11042 = vunpack.c.h.b16 %v10955
    %v11043 = vunpack.c.l.b16 %v10956
    %v11044 = vunpack.c.h.b16 %v10956
    %v11045 = vunpack.c.l.b16 %v10957
    %v11046 = vunpack.c.h.b16 %v10957
    %v11047 = vunpack.c.l.b16 %v10958
    %v11048 = vunpack.c.h.b16 %v10958
    %v11049 = vunpack.c.l.b16 %v10959
    %v11050 = vunpack.c.h.b16 %v10959
    %v11051 = vunpack.c.l.b16 %v10960
    %v11052 = vunpack.c.h.b16 %v10960
    %v11053 = vunpack.c.l.b16 %v10961
    %v11054 = vunpack.c.h.b16 %v10961
    %v11055 = vunpack.c.l.b16 %v10962
    %v11056 = vunpack.c.h.b16 %v10962
    %v11057 = vunpack.c.l.b16 %v10963
    %v11058 = vunpack.c.h.b16 %v10963
    %v11059 = vunpack.c.l.b16 %v10964
    %v11060 = vunpack.c.h.b16 %v10964
    %v11061 = vunpack.c.l.b16 %v10965
    %v11062 = vunpack.c.h.b16 %v10965
    %v11063 = vunpack.c.l.b16 %v10966
    %v11064 = vunpack.c.h.b16 %v10966
    %v11065 = vunpack.c.l.b16 %v10967
    %v11066 = vunpack.c.h.b16 %v10967
    %v11067 = vunpack.c.l.b16 %v10968
    %v11068 = vunpack.c.h.b16 %v10968
    %v11069 = vunpack.c.l.b16 %v10969
    %v11070 = vunpack.c.h.b16 %v10969
    %v11071 = vunpack.c.l.b16 %v10970
    %v11072 = vunpack.c.h.b16 %v10970
    %v11073 = vunpack.c.l.b16 %v10971
    %v11074 = vunpack.c.h.b16 %v10971
    %v11075 = vunpack.c.l.b16 %v10972
    %v11076 = vunpack.c.h.b16 %v10972
    %v11077 = vunpack.c.l.b16 %v10973
    %v11078 = vunpack.c.h.b16 %v10973
    %v11079 = vunpack.c.l.b16 %v10974
    %v11080 = vunpack.c.h.b16 %v10974
    %v11081 = vunpack.c.l.b16 %v10975
    %v11082 = vunpack.c.h.b16 %v10975
    %v11083 = vunpack.c.l.b16 %v10976
    %v11084 = vunpack.c.h.b16 %v10976
    %v11085 = vpack.c.b16 %v11017, %v11013
    %v11086 = vpack.c.b16 %v11018, %v11014
    %v11087 = vpack.c.b16 %v11019, %v11015
    %v11088 = vpack.c.b16 %v11020, %v11016
    %v11089 = vpack.c.b16 %v11025, %v11021
    %v11090 = vpack.c.b16 %v11026, %v11022
    %v11091 = vpack.c.b16 %v11027, %v11023
    %v11092 = vpack.c.b16 %v11028, %v11024
    %v11093 = vpack.c.b16 %v11033, %v11029
    %v11094 = vpack.c.b16 %v11034, %v11030
    %v11095 = vpack.c.b16 %v11035, %v11031
    %v11096 = vpack.c.b16 %v11036, %v11032
    %v11097 = vpack.c.b16 %v11041, %v11037
    %v11098 = vpack.c.b16 %v11042, %v11038
    %v11099 = vpack.c.b16 %v11043, %v11039
    %v11100 = vpack.c.b16 %v11044, %v11040
    %v11101 = vpack.c.b16 %v11049, %v11045
    %v11102 = vpack.c.b16 %v11050, %v11046
    %v11103 = vpack.c.b16 %v11051, %v11047
    %v11104 = vpack.c.b16 %v11052, %v11048
    %v11105 = vpack.c.b16 %v11057, %v11053
    %v11106 = vpack.c.b16 %v11058, %v11054
    %v11107 = vpack.c.b16 %v11059, %v11055
    %v11108 = vpack.c.b16 %v11060, %v11056
    %v11109 = vpack.c.b16 %v11065, %v11061
    %v11110 = vpack.c.b16 %v11066, %v11062
    %v11111 = vpack.c.b16 %v11067, %v11063
    %v11112 = vpack.c.b16 %v11068, %v11064
    %v11113 = vpack.c.b16 %v11073, %v11069
    %v11114 = vpack.c.b16 %v11074, %v11070
    %v11115 = vpack.c.b16 %v11075, %v11071
    %v11116 = vpack.c.b16 %v11076, %v11072
    %v11117 = vpack.c.b16 %v11081, %v11077
    %v11118 = vpack.c.b16 %v11082, %v11078
    %v11119 = vpack.c.b16 %v11083, %v11079
    %v11120 = vpack.c.b16 %v11084, %v11080
    %v11158 = vsel %vm894, %v10940, 0
    %11160 = vmatpush.bf16.msra.mxu0 %v11113
    %11161 = vmatpush.bf16.msra.mxu0 %v11109
    %11162 = vmatpush.bf16.msra.mxu0 %v11105
    %11163 = vmatpush.bf16.msra.mxu0 %v11101
    %11164 = vmatpush.bf16.msra.mxu0 %v11097
    %11165 = vmatpush.bf16.msra.mxu0 %v11093
    %11166 = vmatpush.bf16.msra.mxu0 %v11089
    %11167 = vmatpush.bf16.msra.mxu0 %v11085
    %11168 = vmatmul.bf16.gmra.mxu0 %v10939
    %v11169 = vpop.f32.mrf.mxu0
    %v11170 = vadd.f32 0.0, %v11169
    %v11171 = vpop.f32.mrf.mxu0
    %11172 = vdwg.mxu0
    %11173 = vmatpush.bf16.msra.mxu0 0
    %11174 = vmatpush.bf16.msra.mxu0 0
    %11175 = vmatpush.bf16.msra.mxu0 0
    %11176 = vmatpush.bf16.msra.mxu0 0
    %11177 = vmatpush.bf16.msra.mxu0 0
    %11178 = vmatpush.bf16.msra.mxu0 0
    %11179 = vmatpush.bf16.msra.mxu0 0
    %11180 = vmatpush.bf16.msra.mxu0 %v11117
    %11181 = vmatmul.bf16.gmra.mxu0 %v11158
    %v11182 = vpop.f32.mrf.mxu0
    %v11183 = vadd.f32 %v11170, %v11182
    %v11184 = vpop.f32.mrf.mxu0
    %11185 = vdwg.mxu0
    %11186 = vmatpush.bf16.msra.mxu0 %v11114
    %11187 = vmatpush.bf16.msra.mxu0 %v11110
    %11188 = vmatpush.bf16.msra.mxu0 %v11106
    %11189 = vmatpush.bf16.msra.mxu0 %v11102
    %11190 = vmatpush.bf16.msra.mxu0 %v11098
    %11191 = vmatpush.bf16.msra.mxu0 %v11094
    %11192 = vmatpush.bf16.msra.mxu0 %v11090
    %11193 = vmatpush.bf16.msra.mxu0 %v11086
    %11194 = vmatmul.bf16.gmra.mxu0 %v10939
    %v11195 = vpop.f32.mrf.mxu0
    %v11196 = vadd.f32 0.0, %v11195
    %v11197 = vpop.f32.mrf.mxu0
    %11198 = vdwg.mxu0
    %11199 = vmatpush.bf16.msra.mxu0 0
    %11200 = vmatpush.bf16.msra.mxu0 0
    %11201 = vmatpush.bf16.msra.mxu0 0
    %11202 = vmatpush.bf16.msra.mxu0 0
    %11203 = vmatpush.bf16.msra.mxu0 0
    %11204 = vmatpush.bf16.msra.mxu0 0
    %11205 = vmatpush.bf16.msra.mxu0 0
    %11206 = vmatpush.bf16.msra.mxu0 %v11118
    %11207 = vmatmul.bf16.gmra.mxu0 %v11158
    %v11208 = vpop.f32.mrf.mxu0
    %v11209 = vadd.f32 %v11196, %v11208
    %v11210 = vpop.f32.mrf.mxu0
    %11211 = vdwg.mxu0
    %11212 = vmatpush.bf16.msra.mxu0 %v11115
    %11213 = vmatpush.bf16.msra.mxu0 %v11111
    %11214 = vmatpush.bf16.msra.mxu0 %v11107
    %11215 = vmatpush.bf16.msra.mxu0 %v11103
    %11216 = vmatpush.bf16.msra.mxu0 %v11099
    %11217 = vmatpush.bf16.msra.mxu0 %v11095
    %11218 = vmatpush.bf16.msra.mxu0 %v11091
    %11219 = vmatpush.bf16.msra.mxu0 %v11087
    %11220 = vmatmul.bf16.gmra.mxu0 %v10939
    %v11221 = vpop.f32.mrf.mxu0
    %v11222 = vadd.f32 0.0, %v11221
    %v11223 = vpop.f32.mrf.mxu0
    %11224 = vdwg.mxu0
    %11225 = vmatpush.bf16.msra.mxu0 0
    %11226 = vmatpush.bf16.msra.mxu0 0
    %11227 = vmatpush.bf16.msra.mxu0 0
    %11228 = vmatpush.bf16.msra.mxu0 0
    %11229 = vmatpush.bf16.msra.mxu0 0
    %11230 = vmatpush.bf16.msra.mxu0 0
    %11231 = vmatpush.bf16.msra.mxu0 0
    %11232 = vmatpush.bf16.msra.mxu0 %v11119
    %11233 = vmatmul.bf16.gmra.mxu0 %v11158
    %v11234 = vpop.f32.mrf.mxu0
    %v11235 = vadd.f32 %v11222, %v11234
    %v11236 = vpop.f32.mrf.mxu0
    %11237 = vdwg.mxu0
    %11238 = vmatpush.bf16.msra.mxu0 %v11116
    %11239 = vmatpush.bf16.msra.mxu0 %v11112
    %11240 = vmatpush.bf16.msra.mxu0 %v11108
    %11241 = vmatpush.bf16.msra.mxu0 %v11104
    %11242 = vmatpush.bf16.msra.mxu0 %v11100
    %11243 = vmatpush.bf16.msra.mxu0 %v11096
    %11244 = vmatpush.bf16.msra.mxu0 %v11092
    %11245 = vmatpush.bf16.msra.mxu0 %v11088
    %11246 = vmatmul.bf16.gmra.mxu0 %v10939
    %v11247 = vpop.f32.mrf.mxu0
    %v11248 = vadd.f32 0.0, %v11247
    %v11249 = vpop.f32.mrf.mxu0
    %11250 = vdwg.mxu0
    %11251 = vmatpush.bf16.msra.mxu0 0
    %11252 = vmatpush.bf16.msra.mxu0 0
    %11253 = vmatpush.bf16.msra.mxu0 0
    %11254 = vmatpush.bf16.msra.mxu0 0
    %11255 = vmatpush.bf16.msra.mxu0 0
    %11256 = vmatpush.bf16.msra.mxu0 0
    %11257 = vmatpush.bf16.msra.mxu0 0
    %11258 = vmatpush.bf16.msra.mxu0 %v11120
    %11259 = vmatmul.bf16.gmra.mxu0 %v11158
    %v11260 = vpop.f32.mrf.mxu0
    %v11261 = vadd.f32 %v11248, %v11260
    %v11262 = vpop.f32.mrf.mxu0
    %11263 = vdwg.mxu0
    %v11264 = vadd.f32 %v10925, %v11183
    %v11265 = vadd.f32 %v10926, %v11209
    %v11266 = vadd.f32 %v10927, %v11235
    %v11267 = vadd.f32 %v10928, %v11261
    %v11268 = vrot.slane %v1275, 5
    %v11269 = vrot.slane %v1333, 5
    %v11272 = vrot.slane %v1391, 4
    %v11273 = vrot.slane %v1449, 4
    %v11276 = vsel %vm366, %v11268, %v11272
    %v11277 = vsel %vm366, %v11269, %v11273
    %v11278 = vpack.c.bf16 %v11276, %v11276
    %v11279 = vpack.c.bf16 %v11277, %v11277
    %v11280 = vld [vmem:[#allocation2 + $0x20a0] sm:$0xff]
    %v11281 = vld [vmem:[#allocation2 + $0x20a8] sm:$0xff]
    %v11282 = vld [vmem:[#allocation2 + $0x20b0] sm:$0xff]
    %v11283 = vld [vmem:[#allocation2 + $0x20b8] sm:$0xff]
    %v11284 = vld [vmem:[#allocation2 + $0x20c0] sm:$0xff]
    %v11285 = vld [vmem:[#allocation2 + $0x20c8] sm:$0xff]
    %v11286 = vld [vmem:[#allocation2 + $0x20d0] sm:$0xff]
    %v11287 = vld [vmem:[#allocation2 + $0x20d8] sm:$0xff]
    %v11288 = vld [vmem:[#allocation2 + $0x20e0] sm:$0xff]
    %v11289 = vld [vmem:[#allocation2 + $0x20e8] sm:$0xff]
    %v11290 = vld [vmem:[#allocation2 + $0x20f0] sm:$0xff]
    %v11291 = vld [vmem:[#allocation2 + $0x20f8] sm:$0xff]
    %v11292 = vld [vmem:[#allocation2 + $0x2100] sm:$0xff]
    %v11293 = vld [vmem:[#allocation2 + $0x2108] sm:$0xff]
    %v11294 = vld [vmem:[#allocation2 + $0x2110] sm:$0xff]
    %v11295 = vld [vmem:[#allocation2 + $0x2118] sm:$0xff]
    %v11296 = vld [vmem:[#allocation2 + $0x2120] sm:$0xff]
    %v11297 = vld [vmem:[#allocation2 + $0x2128] sm:$0xff]
    %v11298 = vld [vmem:[#allocation2 + $0x2130] sm:$0xff]
    %v11299 = vld [vmem:[#allocation2 + $0x2138] sm:$0xff]
    %v11300 = vld [vmem:[#allocation2 + $0x2140] sm:$0xff]
    %v11301 = vld [vmem:[#allocation2 + $0x2148] sm:$0xff]
    %v11302 = vld [vmem:[#allocation2 + $0x2150] sm:$0xff]
    %v11303 = vld [vmem:[#allocation2 + $0x2158] sm:$0xff]
    %v11304 = vld [vmem:[#allocation2 + $0x2160] sm:$0xff]
    %v11305 = vld [vmem:[#allocation2 + $0x2168] sm:$0xff]
    %v11306 = vld [vmem:[#allocation2 + $0x2170] sm:$0xff]
    %v11307 = vld [vmem:[#allocation2 + $0x2178] sm:$0xff]
    %v11308 = vld [vmem:[#allocation2 + $0x2180] sm:$0xff]
    %v11309 = vld [vmem:[#allocation2 + $0x2188] sm:$0xff]
    %v11310 = vld [vmem:[#allocation2 + $0x2190] sm:$0xff]
    %v11311 = vld [vmem:[#allocation2 + $0x2198] sm:$0xff]
    %v11312 = vld [vmem:[#allocation2 + $0x21a0] sm:$0xff]
    %v11313 = vld [vmem:[#allocation2 + $0x21a8] sm:$0xff]
    %v11314 = vld [vmem:[#allocation2 + $0x21b0] sm:$0xff]
    %v11315 = vld [vmem:[#allocation2 + $0x21b8] sm:$0xff]
    %v11352 = vunpack.c.l.b16 %v11280
    %v11353 = vunpack.c.h.b16 %v11280
    %v11354 = vunpack.c.l.b16 %v11281
    %v11355 = vunpack.c.h.b16 %v11281
    %v11356 = vunpack.c.l.b16 %v11282
    %v11357 = vunpack.c.h.b16 %v11282
    %v11358 = vunpack.c.l.b16 %v11283
    %v11359 = vunpack.c.h.b16 %v11283
    %v11360 = vunpack.c.l.b16 %v11284
    %v11361 = vunpack.c.h.b16 %v11284
    %v11362 = vunpack.c.l.b16 %v11285
    %v11363 = vunpack.c.h.b16 %v11285
    %v11364 = vunpack.c.l.b16 %v11286
    %v11365 = vunpack.c.h.b16 %v11286
    %v11366 = vunpack.c.l.b16 %v11287
    %v11367 = vunpack.c.h.b16 %v11287
    %v11368 = vunpack.c.l.b16 %v11288
    %v11369 = vunpack.c.h.b16 %v11288
    %v11370 = vunpack.c.l.b16 %v11289
    %v11371 = vunpack.c.h.b16 %v11289
    %v11372 = vunpack.c.l.b16 %v11290
    %v11373 = vunpack.c.h.b16 %v11290
    %v11374 = vunpack.c.l.b16 %v11291
    %v11375 = vunpack.c.h.b16 %v11291
    %v11376 = vunpack.c.l.b16 %v11292
    %v11377 = vunpack.c.h.b16 %v11292
    %v11378 = vunpack.c.l.b16 %v11293
    %v11379 = vunpack.c.h.b16 %v11293
    %v11380 = vunpack.c.l.b16 %v11294
    %v11381 = vunpack.c.h.b16 %v11294
    %v11382 = vunpack.c.l.b16 %v11295
    %v11383 = vunpack.c.h.b16 %v11295
    %v11384 = vunpack.c.l.b16 %v11296
    %v11385 = vunpack.c.h.b16 %v11296
    %v11386 = vunpack.c.l.b16 %v11297
    %v11387 = vunpack.c.h.b16 %v11297
    %v11388 = vunpack.c.l.b16 %v11298
    %v11389 = vunpack.c.h.b16 %v11298
    %v11390 = vunpack.c.l.b16 %v11299
    %v11391 = vunpack.c.h.b16 %v11299
    %v11392 = vunpack.c.l.b16 %v11300
    %v11393 = vunpack.c.h.b16 %v11300
    %v11394 = vunpack.c.l.b16 %v11301
    %v11395 = vunpack.c.h.b16 %v11301
    %v11396 = vunpack.c.l.b16 %v11302
    %v11397 = vunpack.c.h.b16 %v11302
    %v11398 = vunpack.c.l.b16 %v11303
    %v11399 = vunpack.c.h.b16 %v11303
    %v11400 = vunpack.c.l.b16 %v11304
    %v11401 = vunpack.c.h.b16 %v11304
    %v11402 = vunpack.c.l.b16 %v11305
    %v11403 = vunpack.c.h.b16 %v11305
    %v11404 = vunpack.c.l.b16 %v11306
    %v11405 = vunpack.c.h.b16 %v11306
    %v11406 = vunpack.c.l.b16 %v11307
    %v11407 = vunpack.c.h.b16 %v11307
    %v11408 = vunpack.c.l.b16 %v11308
    %v11409 = vunpack.c.h.b16 %v11308
    %v11410 = vunpack.c.l.b16 %v11309
    %v11411 = vunpack.c.h.b16 %v11309
    %v11412 = vunpack.c.l.b16 %v11310
    %v11413 = vunpack.c.h.b16 %v11310
    %v11414 = vunpack.c.l.b16 %v11311
    %v11415 = vunpack.c.h.b16 %v11311
    %v11416 = vunpack.c.l.b16 %v11312
    %v11417 = vunpack.c.h.b16 %v11312
    %v11418 = vunpack.c.l.b16 %v11313
    %v11419 = vunpack.c.h.b16 %v11313
    %v11420 = vunpack.c.l.b16 %v11314
    %v11421 = vunpack.c.h.b16 %v11314
    %v11422 = vunpack.c.l.b16 %v11315
    %v11423 = vunpack.c.h.b16 %v11315
    %v11424 = vpack.c.b16 %v11356, %v11352
    %v11425 = vpack.c.b16 %v11357, %v11353
    %v11426 = vpack.c.b16 %v11358, %v11354
    %v11427 = vpack.c.b16 %v11359, %v11355
    %v11428 = vpack.c.b16 %v11364, %v11360
    %v11429 = vpack.c.b16 %v11365, %v11361
    %v11430 = vpack.c.b16 %v11366, %v11362
    %v11431 = vpack.c.b16 %v11367, %v11363
    %v11432 = vpack.c.b16 %v11372, %v11368
    %v11433 = vpack.c.b16 %v11373, %v11369
    %v11434 = vpack.c.b16 %v11374, %v11370
    %v11435 = vpack.c.b16 %v11375, %v11371
    %v11436 = vpack.c.b16 %v11380, %v11376
    %v11437 = vpack.c.b16 %v11381, %v11377
    %v11438 = vpack.c.b16 %v11382, %v11378
    %v11439 = vpack.c.b16 %v11383, %v11379
    %v11440 = vpack.c.b16 %v11388, %v11384
    %v11441 = vpack.c.b16 %v11389, %v11385
    %v11442 = vpack.c.b16 %v11390, %v11386
    %v11443 = vpack.c.b16 %v11391, %v11387
    %v11444 = vpack.c.b16 %v11396, %v11392
    %v11445 = vpack.c.b16 %v11397, %v11393
    %v11446 = vpack.c.b16 %v11398, %v11394
    %v11447 = vpack.c.b16 %v11399, %v11395
    %v11448 = vpack.c.b16 %v11404, %v11400
    %v11449 = vpack.c.b16 %v11405, %v11401
    %v11450 = vpack.c.b16 %v11406, %v11402
    %v11451 = vpack.c.b16 %v11407, %v11403
    %v11452 = vpack.c.b16 %v11412, %v11408
    %v11453 = vpack.c.b16 %v11413, %v11409
    %v11454 = vpack.c.b16 %v11414, %v11410
    %v11455 = vpack.c.b16 %v11415, %v11411
    %v11456 = vpack.c.b16 %v11420, %v11416
    %v11457 = vpack.c.b16 %v11421, %v11417
    %v11458 = vpack.c.b16 %v11422, %v11418
    %v11459 = vpack.c.b16 %v11423, %v11419
    %v11497 = vsel %vm894, %v11279, 0
    %11499 = vmatpush.bf16.msra.mxu0 %v11452
    %11500 = vmatpush.bf16.msra.mxu0 %v11448
    %11501 = vmatpush.bf16.msra.mxu0 %v11444
    %11502 = vmatpush.bf16.msra.mxu0 %v11440
    %11503 = vmatpush.bf16.msra.mxu0 %v11436
    %11504 = vmatpush.bf16.msra.mxu0 %v11432
    %11505 = vmatpush.bf16.msra.mxu0 %v11428
    %11506 = vmatpush.bf16.msra.mxu0 %v11424
    %11507 = vmatmul.bf16.gmra.mxu0 %v11278
    %v11508 = vpop.f32.mrf.mxu0
    %v11509 = vadd.f32 0.0, %v11508
    %v11510 = vpop.f32.mrf.mxu0
    %11511 = vdwg.mxu0
    %11512 = vmatpush.bf16.msra.mxu0 0
    %11513 = vmatpush.bf16.msra.mxu0 0
    %11514 = vmatpush.bf16.msra.mxu0 0
    %11515 = vmatpush.bf16.msra.mxu0 0
    %11516 = vmatpush.bf16.msra.mxu0 0
    %11517 = vmatpush.bf16.msra.mxu0 0
    %11518 = vmatpush.bf16.msra.mxu0 0
    %11519 = vmatpush.bf16.msra.mxu0 %v11456
    %11520 = vmatmul.bf16.gmra.mxu0 %v11497
    %v11521 = vpop.f32.mrf.mxu0
    %v11522 = vadd.f32 %v11509, %v11521
    %v11523 = vpop.f32.mrf.mxu0
    %11524 = vdwg.mxu0
    %11525 = vmatpush.bf16.msra.mxu0 %v11453
    %11526 = vmatpush.bf16.msra.mxu0 %v11449
    %11527 = vmatpush.bf16.msra.mxu0 %v11445
    %11528 = vmatpush.bf16.msra.mxu0 %v11441
    %11529 = vmatpush.bf16.msra.mxu0 %v11437
    %11530 = vmatpush.bf16.msra.mxu0 %v11433
    %11531 = vmatpush.bf16.msra.mxu0 %v11429
    %11532 = vmatpush.bf16.msra.mxu0 %v11425
    %11533 = vmatmul.bf16.gmra.mxu0 %v11278
    %v11534 = vpop.f32.mrf.mxu0
    %v11535 = vadd.f32 0.0, %v11534
    %v11536 = vpop.f32.mrf.mxu0
    %11537 = vdwg.mxu0
    %11538 = vmatpush.bf16.msra.mxu0 0
    %11539 = vmatpush.bf16.msra.mxu0 0
    %11540 = vmatpush.bf16.msra.mxu0 0
    %11541 = vmatpush.bf16.msra.mxu0 0
    %11542 = vmatpush.bf16.msra.mxu0 0
    %11543 = vmatpush.bf16.msra.mxu0 0
    %11544 = vmatpush.bf16.msra.mxu0 0
    %11545 = vmatpush.bf16.msra.mxu0 %v11457
    %11546 = vmatmul.bf16.gmra.mxu0 %v11497
    %v11547 = vpop.f32.mrf.mxu0
    %v11548 = vadd.f32 %v11535, %v11547
    %v11549 = vpop.f32.mrf.mxu0
    %11550 = vdwg.mxu0
    %11551 = vmatpush.bf16.msra.mxu0 %v11454
    %11552 = vmatpush.bf16.msra.mxu0 %v11450
    %11553 = vmatpush.bf16.msra.mxu0 %v11446
    %11554 = vmatpush.bf16.msra.mxu0 %v11442
    %11555 = vmatpush.bf16.msra.mxu0 %v11438
    %11556 = vmatpush.bf16.msra.mxu0 %v11434
    %11557 = vmatpush.bf16.msra.mxu0 %v11430
    %11558 = vmatpush.bf16.msra.mxu0 %v11426
    %11559 = vmatmul.bf16.gmra.mxu0 %v11278
    %v11560 = vpop.f32.mrf.mxu0
    %v11561 = vadd.f32 0.0, %v11560
    %v11562 = vpop.f32.mrf.mxu0
    %11563 = vdwg.mxu0
    %11564 = vmatpush.bf16.msra.mxu0 0
    %11565 = vmatpush.bf16.msra.mxu0 0
    %11566 = vmatpush.bf16.msra.mxu0 0
    %11567 = vmatpush.bf16.msra.mxu0 0
    %11568 = vmatpush.bf16.msra.mxu0 0
    %11569 = vmatpush.bf16.msra.mxu0 0
    %11570 = vmatpush.bf16.msra.mxu0 0
    %11571 = vmatpush.bf16.msra.mxu0 %v11458
    %11572 = vmatmul.bf16.gmra.mxu0 %v11497
    %v11573 = vpop.f32.mrf.mxu0
    %v11574 = vadd.f32 %v11561, %v11573
    %v11575 = vpop.f32.mrf.mxu0
    %11576 = vdwg.mxu0
    %11577 = vmatpush.bf16.msra.mxu0 %v11455
    %11578 = vmatpush.bf16.msra.mxu0 %v11451
    %11579 = vmatpush.bf16.msra.mxu0 %v11447
    %11580 = vmatpush.bf16.msra.mxu0 %v11443
    %11581 = vmatpush.bf16.msra.mxu0 %v11439
    %11582 = vmatpush.bf16.msra.mxu0 %v11435
    %11583 = vmatpush.bf16.msra.mxu0 %v11431
    %11584 = vmatpush.bf16.msra.mxu0 %v11427
    %11585 = vmatmul.bf16.gmra.mxu0 %v11278
    %v11586 = vpop.f32.mrf.mxu0
    %v11587 = vadd.f32 0.0, %v11586
    %v11588 = vpop.f32.mrf.mxu0
    %11589 = vdwg.mxu0
    %11590 = vmatpush.bf16.msra.mxu0 0
    %11591 = vmatpush.bf16.msra.mxu0 0
    %11592 = vmatpush.bf16.msra.mxu0 0
    %11593 = vmatpush.bf16.msra.mxu0 0
    %11594 = vmatpush.bf16.msra.mxu0 0
    %11595 = vmatpush.bf16.msra.mxu0 0
    %11596 = vmatpush.bf16.msra.mxu0 0
    %11597 = vmatpush.bf16.msra.mxu0 %v11459
    %11598 = vmatmul.bf16.gmra.mxu0 %v11497
    %v11599 = vpop.f32.mrf.mxu0
    %v11600 = vadd.f32 %v11587, %v11599
    %v11601 = vpop.f32.mrf.mxu0
    %11602 = vdwg.mxu0
    %v11603 = vadd.f32 %v11264, %v11522
    %v11604 = vadd.f32 %v11265, %v11548
    %v11605 = vadd.f32 %v11266, %v11574
    %v11606 = vadd.f32 %v11267, %v11600
    %v11607 = vrot.slane %v1275, 6
    %v11608 = vrot.slane %v1333, 6
    %v11611 = vrot.slane %v1391, 5
    %v11612 = vrot.slane %v1449, 5
    %v11615 = vsel %vm366, %v11607, %v11611
    %v11616 = vsel %vm366, %v11608, %v11612
    %v11617 = vpack.c.bf16 %v11615, %v11615
    %v11618 = vpack.c.bf16 %v11616, %v11616
    %v11619 = vld [vmem:[#allocation2 + $0x21c0] sm:$0xff]
    %v11620 = vld [vmem:[#allocation2 + $0x21c8] sm:$0xff]
    %v11621 = vld [vmem:[#allocation2 + $0x21d0] sm:$0xff]
    %v11622 = vld [vmem:[#allocation2 + $0x21d8] sm:$0xff]
    %v11623 = vld [vmem:[#allocation2 + $0x21e0] sm:$0xff]
    %v11624 = vld [vmem:[#allocation2 + $0x21e8] sm:$0xff]
    %v11625 = vld [vmem:[#allocation2 + $0x21f0] sm:$0xff]
    %v11626 = vld [vmem:[#allocation2 + $0x21f8] sm:$0xff]
    %v11627 = vld [vmem:[#allocation2 + $0x2200] sm:$0xff]
    %v11628 = vld [vmem:[#allocation2 + $0x2208] sm:$0xff]
    %v11629 = vld [vmem:[#allocation2 + $0x2210] sm:$0xff]
    %v11630 = vld [vmem:[#allocation2 + $0x2218] sm:$0xff]
    %v11631 = vld [vmem:[#allocation2 + $0x2220] sm:$0xff]
    %v11632 = vld [vmem:[#allocation2 + $0x2228] sm:$0xff]
    %v11633 = vld [vmem:[#allocation2 + $0x2230] sm:$0xff]
    %v11634 = vld [vmem:[#allocation2 + $0x2238] sm:$0xff]
    %v11635 = vld [vmem:[#allocation2 + $0x2240] sm:$0xff]
    %v11636 = vld [vmem:[#allocation2 + $0x2248] sm:$0xff]
    %v11637 = vld [vmem:[#allocation2 + $0x2250] sm:$0xff]
    %v11638 = vld [vmem:[#allocation2 + $0x2258] sm:$0xff]
    %v11639 = vld [vmem:[#allocation2 + $0x2260] sm:$0xff]
    %v11640 = vld [vmem:[#allocation2 + $0x2268] sm:$0xff]
    %v11641 = vld [vmem:[#allocation2 + $0x2270] sm:$0xff]
    %v11642 = vld [vmem:[#allocation2 + $0x2278] sm:$0xff]
    %v11643 = vld [vmem:[#allocation2 + $0x2280] sm:$0xff]
    %v11644 = vld [vmem:[#allocation2 + $0x2288] sm:$0xff]
    %v11645 = vld [vmem:[#allocation2 + $0x2290] sm:$0xff]
    %v11646 = vld [vmem:[#allocation2 + $0x2298] sm:$0xff]
    %v11647 = vld [vmem:[#allocation2 + $0x22a0] sm:$0xff]
    %v11648 = vld [vmem:[#allocation2 + $0x22a8] sm:$0xff]
    %v11649 = vld [vmem:[#allocation2 + $0x22b0] sm:$0xff]
    %v11650 = vld [vmem:[#allocation2 + $0x22b8] sm:$0xff]
    %v11651 = vld [vmem:[#allocation2 + $0x22c0] sm:$0xff]
    %v11652 = vld [vmem:[#allocation2 + $0x22c8] sm:$0xff]
    %v11653 = vld [vmem:[#allocation2 + $0x22d0] sm:$0xff]
    %v11654 = vld [vmem:[#allocation2 + $0x22d8] sm:$0xff]
    %v11691 = vunpack.c.l.b16 %v11619
    %v11692 = vunpack.c.h.b16 %v11619
    %v11693 = vunpack.c.l.b16 %v11620
    %v11694 = vunpack.c.h.b16 %v11620
    %v11695 = vunpack.c.l.b16 %v11621
    %v11696 = vunpack.c.h.b16 %v11621
    %v11697 = vunpack.c.l.b16 %v11622
    %v11698 = vunpack.c.h.b16 %v11622
    %v11699 = vunpack.c.l.b16 %v11623
    %v11700 = vunpack.c.h.b16 %v11623
    %v11701 = vunpack.c.l.b16 %v11624
    %v11702 = vunpack.c.h.b16 %v11624
    %v11703 = vunpack.c.l.b16 %v11625
    %v11704 = vunpack.c.h.b16 %v11625
    %v11705 = vunpack.c.l.b16 %v11626
    %v11706 = vunpack.c.h.b16 %v11626
    %v11707 = vunpack.c.l.b16 %v11627
    %v11708 = vunpack.c.h.b16 %v11627
    %v11709 = vunpack.c.l.b16 %v11628
    %v11710 = vunpack.c.h.b16 %v11628
    %v11711 = vunpack.c.l.b16 %v11629
    %v11712 = vunpack.c.h.b16 %v11629
    %v11713 = vunpack.c.l.b16 %v11630
    %v11714 = vunpack.c.h.b16 %v11630
    %v11715 = vunpack.c.l.b16 %v11631
    %v11716 = vunpack.c.h.b16 %v11631
    %v11717 = vunpack.c.l.b16 %v11632
    %v11718 = vunpack.c.h.b16 %v11632
    %v11719 = vunpack.c.l.b16 %v11633
    %v11720 = vunpack.c.h.b16 %v11633
    %v11721 = vunpack.c.l.b16 %v11634
    %v11722 = vunpack.c.h.b16 %v11634
    %v11723 = vunpack.c.l.b16 %v11635
    %v11724 = vunpack.c.h.b16 %v11635
    %v11725 = vunpack.c.l.b16 %v11636
    %v11726 = vunpack.c.h.b16 %v11636
    %v11727 = vunpack.c.l.b16 %v11637
    %v11728 = vunpack.c.h.b16 %v11637
    %v11729 = vunpack.c.l.b16 %v11638
    %v11730 = vunpack.c.h.b16 %v11638
    %v11731 = vunpack.c.l.b16 %v11639
    %v11732 = vunpack.c.h.b16 %v11639
    %v11733 = vunpack.c.l.b16 %v11640
    %v11734 = vunpack.c.h.b16 %v11640
    %v11735 = vunpack.c.l.b16 %v11641
    %v11736 = vunpack.c.h.b16 %v11641
    %v11737 = vunpack.c.l.b16 %v11642
    %v11738 = vunpack.c.h.b16 %v11642
    %v11739 = vunpack.c.l.b16 %v11643
    %v11740 = vunpack.c.h.b16 %v11643
    %v11741 = vunpack.c.l.b16 %v11644
    %v11742 = vunpack.c.h.b16 %v11644
    %v11743 = vunpack.c.l.b16 %v11645
    %v11744 = vunpack.c.h.b16 %v11645
    %v11745 = vunpack.c.l.b16 %v11646
    %v11746 = vunpack.c.h.b16 %v11646
    %v11747 = vunpack.c.l.b16 %v11647
    %v11748 = vunpack.c.h.b16 %v11647
    %v11749 = vunpack.c.l.b16 %v11648
    %v11750 = vunpack.c.h.b16 %v11648
    %v11751 = vunpack.c.l.b16 %v11649
    %v11752 = vunpack.c.h.b16 %v11649
    %v11753 = vunpack.c.l.b16 %v11650
    %v11754 = vunpack.c.h.b16 %v11650
    %v11755 = vunpack.c.l.b16 %v11651
    %v11756 = vunpack.c.h.b16 %v11651
    %v11757 = vunpack.c.l.b16 %v11652
    %v11758 = vunpack.c.h.b16 %v11652
    %v11759 = vunpack.c.l.b16 %v11653
    %v11760 = vunpack.c.h.b16 %v11653
    %v11761 = vunpack.c.l.b16 %v11654
    %v11762 = vunpack.c.h.b16 %v11654
    %v11763 = vpack.c.b16 %v11695, %v11691
    %v11764 = vpack.c.b16 %v11696, %v11692
    %v11765 = vpack.c.b16 %v11697, %v11693
    %v11766 = vpack.c.b16 %v11698, %v11694
    %v11767 = vpack.c.b16 %v11703, %v11699
    %v11768 = vpack.c.b16 %v11704, %v11700
    %v11769 = vpack.c.b16 %v11705, %v11701
    %v11770 = vpack.c.b16 %v11706, %v11702
    %v11771 = vpack.c.b16 %v11711, %v11707
    %v11772 = vpack.c.b16 %v11712, %v11708
    %v11773 = vpack.c.b16 %v11713, %v11709
    %v11774 = vpack.c.b16 %v11714, %v11710
    %v11775 = vpack.c.b16 %v11719, %v11715
    %v11776 = vpack.c.b16 %v11720, %v11716
    %v11777 = vpack.c.b16 %v11721, %v11717
    %v11778 = vpack.c.b16 %v11722, %v11718
    %v11779 = vpack.c.b16 %v11727, %v11723
    %v11780 = vpack.c.b16 %v11728, %v11724
    %v11781 = vpack.c.b16 %v11729, %v11725
    %v11782 = vpack.c.b16 %v11730, %v11726
    %v11783 = vpack.c.b16 %v11735, %v11731
    %v11784 = vpack.c.b16 %v11736, %v11732
    %v11785 = vpack.c.b16 %v11737, %v11733
    %v11786 = vpack.c.b16 %v11738, %v11734
    %v11787 = vpack.c.b16 %v11743, %v11739
    %v11788 = vpack.c.b16 %v11744, %v11740
    %v11789 = vpack.c.b16 %v11745, %v11741
    %v11790 = vpack.c.b16 %v11746, %v11742
    %v11791 = vpack.c.b16 %v11751, %v11747
    %v11792 = vpack.c.b16 %v11752, %v11748
    %v11793 = vpack.c.b16 %v11753, %v11749
    %v11794 = vpack.c.b16 %v11754, %v11750
    %v11795 = vpack.c.b16 %v11759, %v11755
    %v11796 = vpack.c.b16 %v11760, %v11756
    %v11797 = vpack.c.b16 %v11761, %v11757
    %v11798 = vpack.c.b16 %v11762, %v11758
    %v11836 = vsel %vm894, %v11618, 0
    %11838 = vmatpush.bf16.msra.mxu0 %v11791
    %11839 = vmatpush.bf16.msra.mxu0 %v11787
    %11840 = vmatpush.bf16.msra.mxu0 %v11783
    %11841 = vmatpush.bf16.msra.mxu0 %v11779
    %11842 = vmatpush.bf16.msra.mxu0 %v11775
    %11843 = vmatpush.bf16.msra.mxu0 %v11771
    %11844 = vmatpush.bf16.msra.mxu0 %v11767
    %11845 = vmatpush.bf16.msra.mxu0 %v11763
    %11846 = vmatmul.bf16.gmra.mxu0 %v11617
    %v11847 = vpop.f32.mrf.mxu0
    %v11848 = vadd.f32 0.0, %v11847
    %v11849 = vpop.f32.mrf.mxu0
    %11850 = vdwg.mxu0
    %11851 = vmatpush.bf16.msra.mxu0 0
    %11852 = vmatpush.bf16.msra.mxu0 0
    %11853 = vmatpush.bf16.msra.mxu0 0
    %11854 = vmatpush.bf16.msra.mxu0 0
    %11855 = vmatpush.bf16.msra.mxu0 0
    %11856 = vmatpush.bf16.msra.mxu0 0
    %11857 = vmatpush.bf16.msra.mxu0 0
    %11858 = vmatpush.bf16.msra.mxu0 %v11795
    %11859 = vmatmul.bf16.gmra.mxu0 %v11836
    %v11860 = vpop.f32.mrf.mxu0
    %v11861 = vadd.f32 %v11848, %v11860
    %v11862 = vpop.f32.mrf.mxu0
    %11863 = vdwg.mxu0
    %11864 = vmatpush.bf16.msra.mxu0 %v11792
    %11865 = vmatpush.bf16.msra.mxu0 %v11788
    %11866 = vmatpush.bf16.msra.mxu0 %v11784
    %11867 = vmatpush.bf16.msra.mxu0 %v11780
    %11868 = vmatpush.bf16.msra.mxu0 %v11776
    %11869 = vmatpush.bf16.msra.mxu0 %v11772
    %11870 = vmatpush.bf16.msra.mxu0 %v11768
    %11871 = vmatpush.bf16.msra.mxu0 %v11764
    %11872 = vmatmul.bf16.gmra.mxu0 %v11617
    %v11873 = vpop.f32.mrf.mxu0
    %v11874 = vadd.f32 0.0, %v11873
    %v11875 = vpop.f32.mrf.mxu0
    %11876 = vdwg.mxu0
    %11877 = vmatpush.bf16.msra.mxu0 0
    %11878 = vmatpush.bf16.msra.mxu0 0
    %11879 = vmatpush.bf16.msra.mxu0 0
    %11880 = vmatpush.bf16.msra.mxu0 0
    %11881 = vmatpush.bf16.msra.mxu0 0
    %11882 = vmatpush.bf16.msra.mxu0 0
    %11883 = vmatpush.bf16.msra.mxu0 0
    %11884 = vmatpush.bf16.msra.mxu0 %v11796
    %11885 = vmatmul.bf16.gmra.mxu0 %v11836
    %v11886 = vpop.f32.mrf.mxu0
    %v11887 = vadd.f32 %v11874, %v11886
    %v11888 = vpop.f32.mrf.mxu0
    %11889 = vdwg.mxu0
    %11890 = vmatpush.bf16.msra.mxu0 %v11793
    %11891 = vmatpush.bf16.msra.mxu0 %v11789
    %11892 = vmatpush.bf16.msra.mxu0 %v11785
    %11893 = vmatpush.bf16.msra.mxu0 %v11781
    %11894 = vmatpush.bf16.msra.mxu0 %v11777
    %11895 = vmatpush.bf16.msra.mxu0 %v11773
    %11896 = vmatpush.bf16.msra.mxu0 %v11769
    %11897 = vmatpush.bf16.msra.mxu0 %v11765
    %11898 = vmatmul.bf16.gmra.mxu0 %v11617
    %v11899 = vpop.f32.mrf.mxu0
    %v11900 = vadd.f32 0.0, %v11899
    %v11901 = vpop.f32.mrf.mxu0
    %11902 = vdwg.mxu0
    %11903 = vmatpush.bf16.msra.mxu0 0
    %11904 = vmatpush.bf16.msra.mxu0 0
    %11905 = vmatpush.bf16.msra.mxu0 0
    %11906 = vmatpush.bf16.msra.mxu0 0
    %11907 = vmatpush.bf16.msra.mxu0 0
    %11908 = vmatpush.bf16.msra.mxu0 0
    %11909 = vmatpush.bf16.msra.mxu0 0
    %11910 = vmatpush.bf16.msra.mxu0 %v11797
    %11911 = vmatmul.bf16.gmra.mxu0 %v11836
    %v11912 = vpop.f32.mrf.mxu0
    %v11913 = vadd.f32 %v11900, %v11912
    %v11914 = vpop.f32.mrf.mxu0
    %11915 = vdwg.mxu0
    %11916 = vmatpush.bf16.msra.mxu0 %v11794
    %11917 = vmatpush.bf16.msra.mxu0 %v11790
    %11918 = vmatpush.bf16.msra.mxu0 %v11786
    %11919 = vmatpush.bf16.msra.mxu0 %v11782
    %11920 = vmatpush.bf16.msra.mxu0 %v11778
    %11921 = vmatpush.bf16.msra.mxu0 %v11774
    %11922 = vmatpush.bf16.msra.mxu0 %v11770
    %11923 = vmatpush.bf16.msra.mxu0 %v11766
    %11924 = vmatmul.bf16.gmra.mxu0 %v11617
    %v11925 = vpop.f32.mrf.mxu0
    %v11926 = vadd.f32 0.0, %v11925
    %v11927 = vpop.f32.mrf.mxu0
    %11928 = vdwg.mxu0
    %11929 = vmatpush.bf16.msra.mxu0 0
    %11930 = vmatpush.bf16.msra.mxu0 0
    %11931 = vmatpush.bf16.msra.mxu0 0
    %11932 = vmatpush.bf16.msra.mxu0 0
    %11933 = vmatpush.bf16.msra.mxu0 0
    %11934 = vmatpush.bf16.msra.mxu0 0
    %11935 = vmatpush.bf16.msra.mxu0 0
    %11936 = vmatpush.bf16.msra.mxu0 %v11798
    %11937 = vmatmul.bf16.gmra.mxu0 %v11836
    %v11938 = vpop.f32.mrf.mxu0
    %v11939 = vadd.f32 %v11926, %v11938
    %v11940 = vpop.f32.mrf.mxu0
    %11941 = vdwg.mxu0
    %v11942 = vadd.f32 %v11603, %v11861
    %v11943 = vadd.f32 %v11604, %v11887
    %v11944 = vadd.f32 %v11605, %v11913
    %v11945 = vadd.f32 %v11606, %v11939
    %v11946 = vrot.slane %v1275, 7
    %v11947 = vrot.slane %v1333, 7
    %v11950 = vrot.slane %v1391, 6
    %v11951 = vrot.slane %v1449, 6
    %v11954 = vsel %vm366, %v11946, %v11950
    %v11955 = vsel %vm366, %v11947, %v11951
    %v11956 = vpack.c.bf16 %v11954, %v11954
    %v11957 = vpack.c.bf16 %v11955, %v11955
    %v11958 = vld [vmem:[#allocation2 + $0x22e0] sm:$0xff]
    %v11959 = vld [vmem:[#allocation2 + $0x22e8] sm:$0xff]
    %v11960 = vld [vmem:[#allocation2 + $0x22f0] sm:$0xff]
    %v11961 = vld [vmem:[#allocation2 + $0x22f8] sm:$0xff]
    %v11962 = vld [vmem:[#allocation2 + $0x2300] sm:$0xff]
    %v11963 = vld [vmem:[#allocation2 + $0x2308] sm:$0xff]
    %v11964 = vld [vmem:[#allocation2 + $0x2310] sm:$0xff]
    %v11965 = vld [vmem:[#allocation2 + $0x2318] sm:$0xff]
    %v11966 = vld [vmem:[#allocation2 + $0x2320] sm:$0xff]
    %v11967 = vld [vmem:[#allocation2 + $0x2328] sm:$0xff]
    %v11968 = vld [vmem:[#allocation2 + $0x2330] sm:$0xff]
    %v11969 = vld [vmem:[#allocation2 + $0x2338] sm:$0xff]
    %v11970 = vld [vmem:[#allocation2 + $0x2340] sm:$0xff]
    %v11971 = vld [vmem:[#allocation2 + $0x2348] sm:$0xff]
    %v11972 = vld [vmem:[#allocation2 + $0x2350] sm:$0xff]
    %v11973 = vld [vmem:[#allocation2 + $0x2358] sm:$0xff]
    %v11974 = vld [vmem:[#allocation2 + $0x2360] sm:$0xff]
    %v11975 = vld [vmem:[#allocation2 + $0x2368] sm:$0xff]
    %v11976 = vld [vmem:[#allocation2 + $0x2370] sm:$0xff]
    %v11977 = vld [vmem:[#allocation2 + $0x2378] sm:$0xff]
    %v11978 = vld [vmem:[#allocation2 + $0x2380] sm:$0xff]
    %v11979 = vld [vmem:[#allocation2 + $0x2388] sm:$0xff]
    %v11980 = vld [vmem:[#allocation2 + $0x2390] sm:$0xff]
    %v11981 = vld [vmem:[#allocation2 + $0x2398] sm:$0xff]
    %v11982 = vld [vmem:[#allocation2 + $0x23a0] sm:$0xff]
    %v11983 = vld [vmem:[#allocation2 + $0x23a8] sm:$0xff]
    %v11984 = vld [vmem:[#allocation2 + $0x23b0] sm:$0xff]
    %v11985 = vld [vmem:[#allocation2 + $0x23b8] sm:$0xff]
    %v11986 = vld [vmem:[#allocation2 + $0x23c0] sm:$0xff]
    %v11987 = vld [vmem:[#allocation2 + $0x23c8] sm:$0xff]
    %v11988 = vld [vmem:[#allocation2 + $0x23d0] sm:$0xff]
    %v11989 = vld [vmem:[#allocation2 + $0x23d8] sm:$0xff]
    %v11990 = vld [vmem:[#allocation2 + $0x23e0] sm:$0xff]
    %v11991 = vld [vmem:[#allocation2 + $0x23e8] sm:$0xff]
    %v11992 = vld [vmem:[#allocation2 + $0x23f0] sm:$0xff]
    %v11993 = vld [vmem:[#allocation2 + $0x23f8] sm:$0xff]
    %v12030 = vunpack.c.l.b16 %v11958
    %v12031 = vunpack.c.h.b16 %v11958
    %v12032 = vunpack.c.l.b16 %v11959
    %v12033 = vunpack.c.h.b16 %v11959
    %v12034 = vunpack.c.l.b16 %v11960
    %v12035 = vunpack.c.h.b16 %v11960
    %v12036 = vunpack.c.l.b16 %v11961
    %v12037 = vunpack.c.h.b16 %v11961
    %v12038 = vunpack.c.l.b16 %v11962
    %v12039 = vunpack.c.h.b16 %v11962
    %v12040 = vunpack.c.l.b16 %v11963
    %v12041 = vunpack.c.h.b16 %v11963
    %v12042 = vunpack.c.l.b16 %v11964
    %v12043 = vunpack.c.h.b16 %v11964
    %v12044 = vunpack.c.l.b16 %v11965
    %v12045 = vunpack.c.h.b16 %v11965
    %v12046 = vunpack.c.l.b16 %v11966
    %v12047 = vunpack.c.h.b16 %v11966
    %v12048 = vunpack.c.l.b16 %v11967
    %v12049 = vunpack.c.h.b16 %v11967
    %v12050 = vunpack.c.l.b16 %v11968
    %v12051 = vunpack.c.h.b16 %v11968
    %v12052 = vunpack.c.l.b16 %v11969
    %v12053 = vunpack.c.h.b16 %v11969
    %v12054 = vunpack.c.l.b16 %v11970
    %v12055 = vunpack.c.h.b16 %v11970
    %v12056 = vunpack.c.l.b16 %v11971
    %v12057 = vunpack.c.h.b16 %v11971
    %v12058 = vunpack.c.l.b16 %v11972
    %v12059 = vunpack.c.h.b16 %v11972
    %v12060 = vunpack.c.l.b16 %v11973
    %v12061 = vunpack.c.h.b16 %v11973
    %v12062 = vunpack.c.l.b16 %v11974
    %v12063 = vunpack.c.h.b16 %v11974
    %v12064 = vunpack.c.l.b16 %v11975
    %v12065 = vunpack.c.h.b16 %v11975
    %v12066 = vunpack.c.l.b16 %v11976
    %v12067 = vunpack.c.h.b16 %v11976
    %v12068 = vunpack.c.l.b16 %v11977
    %v12069 = vunpack.c.h.b16 %v11977
    %v12070 = vunpack.c.l.b16 %v11978
    %v12071 = vunpack.c.h.b16 %v11978
    %v12072 = vunpack.c.l.b16 %v11979
    %v12073 = vunpack.c.h.b16 %v11979
    %v12074 = vunpack.c.l.b16 %v11980
    %v12075 = vunpack.c.h.b16 %v11980
    %v12076 = vunpack.c.l.b16 %v11981
    %v12077 = vunpack.c.h.b16 %v11981
    %v12078 = vunpack.c.l.b16 %v11982
    %v12079 = vunpack.c.h.b16 %v11982
    %v12080 = vunpack.c.l.b16 %v11983
    %v12081 = vunpack.c.h.b16 %v11983
    %v12082 = vunpack.c.l.b16 %v11984
    %v12083 = vunpack.c.h.b16 %v11984
    %v12084 = vunpack.c.l.b16 %v11985
    %v12085 = vunpack.c.h.b16 %v11985
    %v12086 = vunpack.c.l.b16 %v11986
    %v12087 = vunpack.c.h.b16 %v11986
    %v12088 = vunpack.c.l.b16 %v11987
    %v12089 = vunpack.c.h.b16 %v11987
    %v12090 = vunpack.c.l.b16 %v11988
    %v12091 = vunpack.c.h.b16 %v11988
    %v12092 = vunpack.c.l.b16 %v11989
    %v12093 = vunpack.c.h.b16 %v11989
    %v12094 = vunpack.c.l.b16 %v11990
    %v12095 = vunpack.c.h.b16 %v11990
    %v12096 = vunpack.c.l.b16 %v11991
    %v12097 = vunpack.c.h.b16 %v11991
    %v12098 = vunpack.c.l.b16 %v11992
    %v12099 = vunpack.c.h.b16 %v11992
    %v12100 = vunpack.c.l.b16 %v11993
    %v12101 = vunpack.c.h.b16 %v11993
    %v12102 = vpack.c.b16 %v12034, %v12030
    %v12103 = vpack.c.b16 %v12035, %v12031
    %v12104 = vpack.c.b16 %v12036, %v12032
    %v12105 = vpack.c.b16 %v12037, %v12033
    %v12106 = vpack.c.b16 %v12042, %v12038
    %v12107 = vpack.c.b16 %v12043, %v12039
    %v12108 = vpack.c.b16 %v12044, %v12040
    %v12109 = vpack.c.b16 %v12045, %v12041
    %v12110 = vpack.c.b16 %v12050, %v12046
    %v12111 = vpack.c.b16 %v12051, %v12047
    %v12112 = vpack.c.b16 %v12052, %v12048
    %v12113 = vpack.c.b16 %v12053, %v12049
    %v12114 = vpack.c.b16 %v12058, %v12054
    %v12115 = vpack.c.b16 %v12059, %v12055
    %v12116 = vpack.c.b16 %v12060, %v12056
    %v12117 = vpack.c.b16 %v12061, %v12057
    %v12118 = vpack.c.b16 %v12066, %v12062
    %v12119 = vpack.c.b16 %v12067, %v12063
    %v12120 = vpack.c.b16 %v12068, %v12064
    %v12121 = vpack.c.b16 %v12069, %v12065
    %v12122 = vpack.c.b16 %v12074, %v12070
    %v12123 = vpack.c.b16 %v12075, %v12071
    %v12124 = vpack.c.b16 %v12076, %v12072
    %v12125 = vpack.c.b16 %v12077, %v12073
    %v12126 = vpack.c.b16 %v12082, %v12078
    %v12127 = vpack.c.b16 %v12083, %v12079
    %v12128 = vpack.c.b16 %v12084, %v12080
    %v12129 = vpack.c.b16 %v12085, %v12081
    %v12130 = vpack.c.b16 %v12090, %v12086
    %v12131 = vpack.c.b16 %v12091, %v12087
    %v12132 = vpack.c.b16 %v12092, %v12088
    %v12133 = vpack.c.b16 %v12093, %v12089
    %v12134 = vpack.c.b16 %v12098, %v12094
    %v12135 = vpack.c.b16 %v12099, %v12095
    %v12136 = vpack.c.b16 %v12100, %v12096
    %v12137 = vpack.c.b16 %v12101, %v12097
    %v12175 = vsel %vm894, %v11957, 0
    %12177 = vmatpush.bf16.msra.mxu0 %v12130
    %12178 = vmatpush.bf16.msra.mxu0 %v12126
    %12179 = vmatpush.bf16.msra.mxu0 %v12122
    %12180 = vmatpush.bf16.msra.mxu0 %v12118
    %12181 = vmatpush.bf16.msra.mxu0 %v12114
    %12182 = vmatpush.bf16.msra.mxu0 %v12110
    %12183 = vmatpush.bf16.msra.mxu0 %v12106
    %12184 = vmatpush.bf16.msra.mxu0 %v12102
    %12185 = vmatmul.bf16.gmra.mxu0 %v11956
    %v12186 = vpop.f32.mrf.mxu0
    %v12187 = vadd.f32 0.0, %v12186
    %v12188 = vpop.f32.mrf.mxu0
    %12189 = vdwg.mxu0
    %12190 = vmatpush.bf16.msra.mxu0 0
    %12191 = vmatpush.bf16.msra.mxu0 0
    %12192 = vmatpush.bf16.msra.mxu0 0
    %12193 = vmatpush.bf16.msra.mxu0 0
    %12194 = vmatpush.bf16.msra.mxu0 0
    %12195 = vmatpush.bf16.msra.mxu0 0
    %12196 = vmatpush.bf16.msra.mxu0 0
    %12197 = vmatpush.bf16.msra.mxu0 %v12134
    %12198 = vmatmul.bf16.gmra.mxu0 %v12175
    %v12199 = vpop.f32.mrf.mxu0
    %v12200 = vadd.f32 %v12187, %v12199
    %v12201 = vpop.f32.mrf.mxu0
    %12202 = vdwg.mxu0
    %12203 = vmatpush.bf16.msra.mxu0 %v12131
    %12204 = vmatpush.bf16.msra.mxu0 %v12127
    %12205 = vmatpush.bf16.msra.mxu0 %v12123
    %12206 = vmatpush.bf16.msra.mxu0 %v12119
    %12207 = vmatpush.bf16.msra.mxu0 %v12115
    %12208 = vmatpush.bf16.msra.mxu0 %v12111
    %12209 = vmatpush.bf16.msra.mxu0 %v12107
    %12210 = vmatpush.bf16.msra.mxu0 %v12103
    %12211 = vmatmul.bf16.gmra.mxu0 %v11956
    %v12212 = vpop.f32.mrf.mxu0
    %v12213 = vadd.f32 0.0, %v12212
    %v12214 = vpop.f32.mrf.mxu0
    %12215 = vdwg.mxu0
    %12216 = vmatpush.bf16.msra.mxu0 0
    %12217 = vmatpush.bf16.msra.mxu0 0
    %12218 = vmatpush.bf16.msra.mxu0 0
    %12219 = vmatpush.bf16.msra.mxu0 0
    %12220 = vmatpush.bf16.msra.mxu0 0
    %12221 = vmatpush.bf16.msra.mxu0 0
    %12222 = vmatpush.bf16.msra.mxu0 0
    %12223 = vmatpush.bf16.msra.mxu0 %v12135
    %12224 = vmatmul.bf16.gmra.mxu0 %v12175
    %v12225 = vpop.f32.mrf.mxu0
    %v12226 = vadd.f32 %v12213, %v12225
    %v12227 = vpop.f32.mrf.mxu0
    %12228 = vdwg.mxu0
    %12229 = vmatpush.bf16.msra.mxu0 %v12132
    %12230 = vmatpush.bf16.msra.mxu0 %v12128
    %12231 = vmatpush.bf16.msra.mxu0 %v12124
    %12232 = vmatpush.bf16.msra.mxu0 %v12120
    %12233 = vmatpush.bf16.msra.mxu0 %v12116
    %12234 = vmatpush.bf16.msra.mxu0 %v12112
    %12235 = vmatpush.bf16.msra.mxu0 %v12108
    %12236 = vmatpush.bf16.msra.mxu0 %v12104
    %12237 = vmatmul.bf16.gmra.mxu0 %v11956
    %v12238 = vpop.f32.mrf.mxu0
    %v12239 = vadd.f32 0.0, %v12238
    %v12240 = vpop.f32.mrf.mxu0
    %12241 = vdwg.mxu0
    %12242 = vmatpush.bf16.msra.mxu0 0
    %12243 = vmatpush.bf16.msra.mxu0 0
    %12244 = vmatpush.bf16.msra.mxu0 0
    %12245 = vmatpush.bf16.msra.mxu0 0
    %12246 = vmatpush.bf16.msra.mxu0 0
    %12247 = vmatpush.bf16.msra.mxu0 0
    %12248 = vmatpush.bf16.msra.mxu0 0
    %12249 = vmatpush.bf16.msra.mxu0 %v12136
    %12250 = vmatmul.bf16.gmra.mxu0 %v12175
    %v12251 = vpop.f32.mrf.mxu0
    %v12252 = vadd.f32 %v12239, %v12251
    %v12253 = vpop.f32.mrf.mxu0
    %12254 = vdwg.mxu0
    %12255 = vmatpush.bf16.msra.mxu0 %v12133
    %12256 = vmatpush.bf16.msra.mxu0 %v12129
    %12257 = vmatpush.bf16.msra.mxu0 %v12125
    %12258 = vmatpush.bf16.msra.mxu0 %v12121
    %12259 = vmatpush.bf16.msra.mxu0 %v12117
    %12260 = vmatpush.bf16.msra.mxu0 %v12113
    %12261 = vmatpush.bf16.msra.mxu0 %v12109
    %12262 = vmatpush.bf16.msra.mxu0 %v12105
    %12263 = vmatmul.bf16.gmra.mxu0 %v11956
    %v12264 = vpop.f32.mrf.mxu0
    %v12265 = vadd.f32 0.0, %v12264
    %v12266 = vpop.f32.mrf.mxu0
    %12267 = vdwg.mxu0
    %12268 = vmatpush.bf16.msra.mxu0 0
    %12269 = vmatpush.bf16.msra.mxu0 0
    %12270 = vmatpush.bf16.msra.mxu0 0
    %12271 = vmatpush.bf16.msra.mxu0 0
    %12272 = vmatpush.bf16.msra.mxu0 0
    %12273 = vmatpush.bf16.msra.mxu0 0
    %12274 = vmatpush.bf16.msra.mxu0 0
    %12275 = vmatpush.bf16.msra.mxu0 %v12137
    %12276 = vmatmul.bf16.gmra.mxu0 %v12175
    %v12277 = vpop.f32.mrf.mxu0
    %v12278 = vadd.f32 %v12265, %v12277
    %v12279 = vpop.f32.mrf.mxu0
    %12280 = vdwg.mxu0
    %v12281 = vadd.f32 %v11942, %v12200
    %v12282 = vadd.f32 %v11943, %v12226
    %v12283 = vadd.f32 %v11944, %v12252
    %v12284 = vadd.f32 %v11945, %v12278
    %v12285 = vld [vmem:[#allocation7] sm:$0xf]
    %v12287 = vperm.slane %v12285, 0
    %v12288 = vperm.slane %v12285, 1
    %v12289 = vperm.slane %v12285, 2
    %v12290 = vperm.slane %v12285, 3
    %v12295 = vadd.f32 %v12281, %v12287
    %v12296 = vadd.f32 %v12282, %v12288
    %v12297 = vadd.f32 %v12283, %v12289
    %v12298 = vadd.f32 %v12284, %v12290
    %v12299 = vmax.f32 %v12295, 0.0
    %v12300 = vmax.f32 %v12296, 0.0
    %v12301 = vmax.f32 %v12297, 0.0
    %v12302 = vmax.f32 %v12298, 0.0
    %v12303 = vld [vmem:[#allocation9] sm:$0xff]
    %v12304 = vld [vmem:[#allocation9 + $0x8] sm:$0xff]
    %v12305 = vld [vmem:[#allocation9 + $0x10] sm:$0xff]
    %v12306 = vld [vmem:[#allocation9 + $0x18] sm:$0xff]
    %v12307 = vld [vmem:[#allocation9 + $0x20] sm:$0xff]
    %v12308 = vld [vmem:[#allocation9 + $0x28] sm:$0xff]
    %v12309 = vld [vmem:[#allocation9 + $0x30] sm:$0xff]
    %v12310 = vld [vmem:[#allocation9 + $0x38] sm:$0xff]
    %v12311 = vld [vmem:[#allocation9 + $0x40] sm:$0xff]
    %v12312 = vld [vmem:[#allocation9 + $0x48] sm:$0xff]
    %v12313 = vld [vmem:[#allocation9 + $0x50] sm:$0xff]
    %v12314 = vld [vmem:[#allocation9 + $0x58] sm:$0xff]
    %v12315 = vld [vmem:[#allocation9 + $0x60] sm:$0xff]
    %v12316 = vld [vmem:[#allocation9 + $0x68] sm:$0xff]
    %v12317 = vld [vmem:[#allocation9 + $0x70] sm:$0xff]
    %v12318 = vld [vmem:[#allocation9 + $0x78] sm:$0xff]
    %v12319 = vld [vmem:[#allocation9 + $0x80] sm:$0xff]
    %v12320 = vld [vmem:[#allocation9 + $0x88] sm:$0xff]
    %v12321 = vld [vmem:[#allocation9 + $0x90] sm:$0xff]
    %v12322 = vld [vmem:[#allocation9 + $0x98] sm:$0xff]
    %v12323 = vld [vmem:[#allocation9 + $0xa0] sm:$0xff]
    %v12324 = vld [vmem:[#allocation9 + $0xa8] sm:$0xff]
    %v12325 = vld [vmem:[#allocation9 + $0xb0] sm:$0xff]
    %v12326 = vld [vmem:[#allocation9 + $0xb8] sm:$0xff]
    %v12327 = vld [vmem:[#allocation9 + $0xc0] sm:$0xff]
    %v12328 = vld [vmem:[#allocation9 + $0xc8] sm:$0xff]
    %v12329 = vld [vmem:[#allocation9 + $0xd0] sm:$0xff]
    %v12330 = vld [vmem:[#allocation9 + $0xd8] sm:$0xff]
    %v12331 = vld [vmem:[#allocation9 + $0xe0] sm:$0xff]
    %v12332 = vld [vmem:[#allocation9 + $0xe8] sm:$0xff]
    %v12333 = vld [vmem:[#allocation9 + $0xf0] sm:$0xff]
    %v12334 = vld [vmem:[#allocation9 + $0xf8] sm:$0xff]
    %v12335 = vld [vmem:[#allocation9 + $0x100] sm:$0xff]
    %v12336 = vld [vmem:[#allocation9 + $0x108] sm:$0xff]
    %v12337 = vld [vmem:[#allocation9 + $0x110] sm:$0xff]
    %v12338 = vld [vmem:[#allocation9 + $0x118] sm:$0xff]
    %v12339 = vld [vmem:[#allocation9 + $0x120] sm:$0xff]
    %v12340 = vld [vmem:[#allocation9 + $0x128] sm:$0xff]
    %v12341 = vld [vmem:[#allocation9 + $0x130] sm:$0xff]
    %v12342 = vld [vmem:[#allocation9 + $0x138] sm:$0xff]
    %v12343 = vld [vmem:[#allocation9 + $0x140] sm:$0xff]
    %v12344 = vld [vmem:[#allocation9 + $0x148] sm:$0xff]
    %v12345 = vld [vmem:[#allocation9 + $0x150] sm:$0xff]
    %v12346 = vld [vmem:[#allocation9 + $0x158] sm:$0xff]
    %v12347 = vld [vmem:[#allocation9 + $0x160] sm:$0xff]
    %v12348 = vld [vmem:[#allocation9 + $0x168] sm:$0xff]
    %v12349 = vld [vmem:[#allocation9 + $0x170] sm:$0xff]
    %v12350 = vld [vmem:[#allocation9 + $0x178] sm:$0xff]
    %v12351 = vld [vmem:[#allocation9 + $0x180] sm:$0xff]
    %v12352 = vld [vmem:[#allocation9 + $0x188] sm:$0xff]
    %v12353 = vld [vmem:[#allocation9 + $0x190] sm:$0xff]
    %v12354 = vld [vmem:[#allocation9 + $0x198] sm:$0xff]
    %v12355 = vld [vmem:[#allocation9 + $0x1a0] sm:$0xff]
    %v12356 = vld [vmem:[#allocation9 + $0x1a8] sm:$0xff]
    %v12357 = vld [vmem:[#allocation9 + $0x1b0] sm:$0xff]
    %v12358 = vld [vmem:[#allocation9 + $0x1b8] sm:$0xff]
    %v12359 = vld [vmem:[#allocation9 + $0x1c0] sm:$0xff]
    %v12360 = vld [vmem:[#allocation9 + $0x1c8] sm:$0xff]
    %v12361 = vld [vmem:[#allocation9 + $0x1d0] sm:$0xff]
    %v12362 = vld [vmem:[#allocation9 + $0x1d8] sm:$0xff]
    %v12363 = vld [vmem:[#allocation9 + $0x1e0] sm:$0xff]
    %v12364 = vld [vmem:[#allocation9 + $0x1e8] sm:$0xff]
    %v12365 = vld [vmem:[#allocation9 + $0x1f0] sm:$0xff]
    %v12366 = vld [vmem:[#allocation9 + $0x1f8] sm:$0xff]
    %v12367 = vld [vmem:[#allocation10] sm:$0x1]
    %v12369 = vperm.slane %v12367, 0
    %12371 = vmatpush.msra.mxu0 %v12318
    %12372 = vmatpush.msra.mxu0 %v12317
    %12373 = vmatpush.msra.mxu0 %v12316
    %12374 = vmatpush.msra.mxu0 %v12315
    %12375 = vmatpush.msra.mxu0 %v12314
    %12376 = vmatpush.msra.mxu0 %v12313
    %12377 = vmatpush.msra.mxu0 %v12312
    %12378 = vmatpush.msra.mxu0 %v12311
    %12379 = vmatpush.msra.mxu0 %v12310
    %12380 = vmatpush.msra.mxu0 %v12309
    %12381 = vmatpush.msra.mxu0 %v12308
    %12382 = vmatpush.msra.mxu0 %v12307
    %12383 = vmatpush.msra.mxu0 %v12306
    %12384 = vmatpush.msra.mxu0 %v12305
    %12385 = vmatpush.msra.mxu0 %v12304
    %12386 = vmatpush.msra.mxu0 %v12303
    %12387 = vmatmul.f32.gmra.mxu0 %v12299
    %v12388 = vpop.f32.mrf.mxu0
    %v12389 = vadd.f32 %v12369, %v12388
    %12390 = vdwg.mxu0
    %12391 = vmatpush.msra.mxu0 %v12334
    %12392 = vmatpush.msra.mxu0 %v12333
    %12393 = vmatpush.msra.mxu0 %v12332
    %12394 = vmatpush.msra.mxu0 %v12331
    %12395 = vmatpush.msra.mxu0 %v12330
    %12396 = vmatpush.msra.mxu0 %v12329
    %12397 = vmatpush.msra.mxu0 %v12328
    %12398 = vmatpush.msra.mxu0 %v12327
    %12399 = vmatpush.msra.mxu0 %v12326
    %12400 = vmatpush.msra.mxu0 %v12325
    %12401 = vmatpush.msra.mxu0 %v12324
    %12402 = vmatpush.msra.mxu0 %v12323
    %12403 = vmatpush.msra.mxu0 %v12322
    %12404 = vmatpush.msra.mxu0 %v12321
    %12405 = vmatpush.msra.mxu0 %v12320
    %12406 = vmatpush.msra.mxu0 %v12319
    %12407 = vmatmul.f32.gmra.mxu0 %v12300
    %v12408 = vpop.f32.mrf.mxu0
    %v12409 = vadd.f32 %v12389, %v12408
    %12410 = vdwg.mxu0
    %12411 = vmatpush.msra.mxu0 %v12350
    %12412 = vmatpush.msra.mxu0 %v12349
    %12413 = vmatpush.msra.mxu0 %v12348
    %12414 = vmatpush.msra.mxu0 %v12347
    %12415 = vmatpush.msra.mxu0 %v12346
    %12416 = vmatpush.msra.mxu0 %v12345
    %12417 = vmatpush.msra.mxu0 %v12344
    %12418 = vmatpush.msra.mxu0 %v12343
    %12419 = vmatpush.msra.mxu0 %v12342
    %12420 = vmatpush.msra.mxu0 %v12341
    %12421 = vmatpush.msra.mxu0 %v12340
    %12422 = vmatpush.msra.mxu0 %v12339
    %12423 = vmatpush.msra.mxu0 %v12338
    %12424 = vmatpush.msra.mxu0 %v12337
    %12425 = vmatpush.msra.mxu0 %v12336
    %12426 = vmatpush.msra.mxu0 %v12335
    %12427 = vmatmul.f32.gmra.mxu0 %v12301
    %v12428 = vpop.f32.mrf.mxu0
    %v12429 = vadd.f32 %v12409, %v12428
    %12430 = vdwg.mxu0
    %12431 = vmatpush.msra.mxu0 %v12366
    %12432 = vmatpush.msra.mxu0 %v12365
    %12433 = vmatpush.msra.mxu0 %v12364
    %12434 = vmatpush.msra.mxu0 %v12363
    %12435 = vmatpush.msra.mxu0 %v12362
    %12436 = vmatpush.msra.mxu0 %v12361
    %12437 = vmatpush.msra.mxu0 %v12360
    %12438 = vmatpush.msra.mxu0 %v12359
    %12439 = vmatpush.msra.mxu0 %v12358
    %12440 = vmatpush.msra.mxu0 %v12357
    %12441 = vmatpush.msra.mxu0 %v12356
    %12442 = vmatpush.msra.mxu0 %v12355
    %12443 = vmatpush.msra.mxu0 %v12354
    %12444 = vmatpush.msra.mxu0 %v12353
    %12445 = vmatpush.msra.mxu0 %v12352
    %12446 = vmatpush.msra.mxu0 %v12351
    %12447 = vmatmul.f32.gmra.mxu0 %v12302
    %v12448 = vpop.f32.mrf.mxu0
    %v12449 = vadd.f32 %v12429, %v12448
    %12450 = vdwg.mxu0
    %v12451 = vmax.f32 %v12449, 0.0
    %v12452 = vld [vmem:[%s10] sm:$0xff]
    %v12453 = vld [vmem:[%s10 + $0x8] sm:$0xff]
    %v12454 = vld [vmem:[%s10 + $0x10] sm:$0xff]
    %v12455 = vld [vmem:[%s10 + $0x18] sm:$0xff]
    %v12456 = vld [vmem:[%s10 + $0x20] sm:$0xff]
    %v12457 = vld [vmem:[%s10 + $0x28] sm:$0xff]
    %v12458 = vld [vmem:[%s10 + $0x30] sm:$0xff]
    %v12459 = vld [vmem:[%s10 + $0x38] sm:$0xff]
    %v12460 = vld [vmem:[%s10 + $0x40] sm:$0xff]
    %v12461 = vld [vmem:[%s10 + $0x48] sm:$0xff]
    %v12462 = vld [vmem:[%s10 + $0x50] sm:$0xff]
    %v12463 = vld [vmem:[%s10 + $0x58] sm:$0xff]
    %v12464 = vld [vmem:[%s10 + $0x60] sm:$0xff]
    %v12465 = vld [vmem:[%s10 + $0x68] sm:$0xff]
    %v12466 = vld [vmem:[%s10 + $0x70] sm:$0xff]
    %v12467 = vld [vmem:[%s10 + $0x78] sm:$0xff]
    %v12468 = vld [vmem:[#allocation12] sm:$0x1]
    %v12470 = vperm.slane %v12468, 0
    %12472 = vmatpush.msra.mxu0 %v12467
    %12473 = vmatpush.msra.mxu0 %v12466
    %12474 = vmatpush.msra.mxu0 %v12465
    %12475 = vmatpush.msra.mxu0 %v12464
    %12476 = vmatpush.msra.mxu0 %v12463
    %12477 = vmatpush.msra.mxu0 %v12462
    %12478 = vmatpush.msra.mxu0 %v12461
    %12479 = vmatpush.msra.mxu0 %v12460
    %12480 = vmatpush.msra.mxu0 %v12459
    %12481 = vmatpush.msra.mxu0 %v12458
    %12482 = vmatpush.msra.mxu0 %v12457
    %12483 = vmatpush.msra.mxu0 %v12456
    %12484 = vmatpush.msra.mxu0 %v12455
    %12485 = vmatpush.msra.mxu0 %v12454
    %12486 = vmatpush.msra.mxu0 %v12453
    %12487 = vmatpush.msra.mxu0 %v12452
    %12488 = vmatmul.f32.gmra.mxu0 %v12451
    %v12489 = vpop.f32.mrf.mxu0
    %v12490 = vadd.f32 %v12470, %v12489
    %12491 = vdwg.mxu0
    %vm12492 = vcmask 25600
    %12493 = vst.msk [vmem:[#allocation13] sm:$0x3] %vm12492, %v12490
    // Predicated region
    $region82: #{_lambda_.1} parent=1 // pred_check
      _
    $region83: #{_lambda_.1} parent=1 // pred_check_branch
      %12495 = sbr.rel (0) target = $region85
    $region84: #{_lambda_.1} parent=1 // pred_region
      %12497 = vsyncadd [#allocation6], 0
      %s12499 = sshll.u32 [#allocation13], 4
      %s12500 = int_to_ptr.vmem [resolvable:$true] %s12499
      %s12501 = sshll.u32 %s12, 4
      %s12502 = int_to_ptr.hbm [resolvable:$true] %s12501
      %12504 = dma.vmem_to_hbm [thread:$0]  %s12500, 32, %s12502, [#allocation6]
    $region85: #{_lambda_.1} parent=1 // pred_fallthru
      _
    // Predicated region
    $region86: #{_lambda_.1} parent=1 // pred_check
      _
    $region87: #{_lambda_.1} parent=1 // pred_check_branch
      %12506 = sbr.rel (0) target = $region89
    $region88: #{_lambda_.1} parent=1 // pred_region
      %12508 = dma.done [#allocation6], 32
    $region89: #{_lambda_.1} parent=1 // pred_fallthru
      _
    %12509 = vsyncpa [#allocation5], 1
    %12510 = vsyncpa [#allocation8], 1
    %12511 = vsyncpa [#allocation11], 1
    %12512 = vsyncpa [#allocation6], 1
  %12513 = vsyncmov [#allocation3]
  %s12514 = vpop.sfrf %12513
  %p12515 = scmp.eq.s32.totalorder %s12514, 0
  %p12516 = pneg %p12515
  %12518 = shalt.err (%p12516)
  %s12519 = scalar_lea.sflag [#allocation3], 1
  %12520 = vsyncmov %s12519
  %s12521 = vpop.sfrf %12520
  %p12522 = scmp.eq.s32.totalorder %s12521, 0
  %p12523 = pneg %p12522
  %12525 = shalt.err (%p12523)
  %s12526 = scalar_lea.sflag [#allocation3], 2
  %12527 = vsyncmov %s12526
  %s12528 = vpop.sfrf %12527
  %p12529 = scmp.eq.s32.totalorder %s12528, 0
  %p12530 = pneg %p12529
  %12532 = shalt.err (%p12530)
  %s12533 = scalar_lea.sflag [#allocation3], 3
  %12534 = vsyncmov %s12533
  %s12535 = vpop.sfrf %12534
  %p12536 = scmp.eq.s32.totalorder %s12535, 0
  %p12537 = pneg %p12536
  %12539 = shalt.err (%p12537)

</llo_original>
